<compile_context>
chip_gen: v7x
topology: tpu7x:2x2x1
jax: 0.10.0
libtpu: 0.0.40
codegen_flags: <defaults>
</compile_context>

<pallas_src>
import math

import jax
import jax.numpy as jnp
from jax.experimental import pallas as pl
from jax.experimental.pallas import tpu as pltpu


def _conv3x3_relu_pool2x2(x_nhwc, pad_ref, col_ref, w_ref, b_ref):
    """3x3 'same' conv (single im2col matmul) + bias + ReLU + 2x2/2 max pool.

    x_nhwc : (Bt, h, w, cin)   f32 value
    pad_ref: (Bt, h+2, w+2, cin) f32 VMEM scratch (zero-padded copy)
    col_ref: (Bt*h*w, 9*cin)     f32 VMEM scratch (im2col matrix)
    w_ref  : (9*cin, cout) bf16, rows ordered (kh, kw, cin)
    b_ref  : (1, cout) f32
    returns (Bt*(h//2)*(w//2), cout) f32, rows ordered (b, h', w')
    """
    bt, h, w, cin = x_nhwc.shape
    cout = w_ref.shape[-1]

    # Zero-pad into VMEM scratch (halo of 1 pixel).
    pad_ref[...] = jnp.zeros_like(pad_ref)
    pad_ref[:, 1:h + 1, 1:w + 1, :] = x_nhwc

    # im2col: write the 9 shifted views into column bands -> one MXU matmul.
    t = 0
    for kh in range(3):
        for kw in range(3):
            col_ref[:, t * cin:(t + 1) * cin] = (
                pad_ref[:, kh:kh + h, kw:kw + w, :].reshape(bt * h * w, cin))
            t += 1

    acc = jnp.dot(col_ref[...].astype(jnp.bfloat16), w_ref[...],
                  preferred_element_type=jnp.float32)      # (Bt*h*w, cout) f32
    acc = jnp.maximum(acc + b_ref[...], 0.0)                # bias + ReLU (f32)

    # 2x2 max pool, stride 2 (batch folded into the row dimension).
    acc = acc.reshape(bt * (h // 2), 2, w, cout)
    acc = jnp.maximum(acc[:, 0], acc[:, 1])                 # pool rows
    acc = acc.reshape(bt * (h // 2) * (w // 2), 2, cout)
    acc = jnp.maximum(acc[:, 0], acc[:, 1])                 # pool cols
    return acc


def cnn_fused_kernel(x_ref, wc1_ref, bc1_ref, wc2_ref, bc2_ref,
                     wl1_ref, bl1_ref, wl2_ref, bl2_ref, o_ref,
                     pad1_ref, col1_ref, pad2_ref, col2_ref, flat_ref):
    bt, h, w, _ = x_ref.shape
    c1 = wc1_ref.shape[-1]
    c2 = wc2_ref.shape[-1]
    ho, wo = h // 2, w // 2
    hq, wq = ho // 2, wo // 2
    n_cls = o_ref.shape[-1]

    # conv1 + ReLU + pool   (one matmul, M = Bt*h*w, K = 9*Cin)
    p1 = _conv3x3_relu_pool2x2(x_ref[...], pad1_ref, col1_ref, wc1_ref, bc1_ref)
    p1 = p1.reshape(bt, ho, wo, c1)

    # conv2 + ReLU + pool   (one matmul, K = 9*C1 = 288)
    p2 = _conv3x3_relu_pool2x2(p1, pad2_ref, col2_ref, wc2_ref, bc2_ref)

    # Flatten in (h, w, c) order into a lane-dense (bt, hq*wq*c2) slab.
    # wl1 rows were pre-permuted host-side from torch's (c, h, w) order.
    p2 = p2.reshape(bt, hq * wq, c2)
    for s in range(hq * wq):
        flat_ref[:, s * c2:(s + 1) * c2] = p2[:, s, :]

    # MLP head: Linear(flat,128) + ReLU + Linear(128, 128-padded) + log-softmax
    hid = jnp.dot(flat_ref[...].astype(jnp.bfloat16), wl1_ref[...],
                  preferred_element_type=jnp.float32)
    hid = jnp.maximum(hid + bl1_ref[...], 0.0)
    z = jnp.dot(hid.astype(jnp.bfloat16), wl2_ref[...],
                preferred_element_type=jnp.float32) + bl2_ref[...]

    # Masked, numerically stable log-softmax over the first n_cls columns.
    col = jax.lax.broadcasted_iota(jnp.int32, z.shape, 1)
    valid = col < n_cls
    zm = jnp.where(valid, z, -1e30)
    m = jnp.max(zm, axis=-1, keepdims=True)
    e = jnp.where(valid, jnp.exp(zm - m), 0.0)
    lse = jnp.log(jnp.sum(e, axis=-1, keepdims=True)) + m
    o_ref[...] = (zm - lse)[:, :n_cls].astype(o_ref.dtype)


def cnn_forward(x_nchw, params):
    (wc1f, bc1, wc2f, bc2, wl1, bl1, wl2p, bl2p) = params
    B, C, H, W = x_nchw.shape
    C1 = wc2f.shape[0] // 9        # conv1 output channels (= conv2 input)
    C2 = wc2f.shape[-1]
    n_cls = 10
    assert H % 4 == 0 and W % 4 == 0

    # Batch tile: fold several images into the matmul M dim per grid step.
    block_b = B if B <= 8 else 8
    assert B % block_b == 0, "batch must be a multiple of the batch tile"

    # Single cheap layout op on the small raw input; everything downstream
    # stays in VMEM inside one fused kernel.
    x = jnp.transpose(x_nchw, (0, 2, 3, 1)).astype(jnp.float32)   # NCHW -> NHWC

    return pl.pallas_call(
        cnn_fused_kernel,
        out_shape=jax.ShapeDtypeStruct((B, n_cls), jnp.float32),
        grid=(B // block_b,),
        in_specs=[
            pl.BlockSpec((block_b, H, W, C), lambda b: (b, 0, 0, 0)),
            pl.BlockSpec(wc1f.shape, lambda b: (0, 0)),   # weights stay resident
            pl.BlockSpec(bc1.shape, lambda b: (0, 0)),
            pl.BlockSpec(wc2f.shape, lambda b: (0, 0)),
            pl.BlockSpec(bc2.shape, lambda b: (0, 0)),
            pl.BlockSpec(wl1.shape, lambda b: (0, 0)),
            pl.BlockSpec(bl1.shape, lambda b: (0, 0)),
            pl.BlockSpec(wl2p.shape, lambda b: (0, 0)),
            pl.BlockSpec(bl2p.shape, lambda b: (0, 0)),
        ],
        out_specs=pl.BlockSpec((block_b, n_cls), lambda b: (b, 0)),
        scratch_shapes=[
            pltpu.VMEM((block_b, H + 2, W + 2, C), jnp.float32),           # pad1
            pltpu.VMEM((block_b * H * W, 9 * C), jnp.float32),             # col1
            pltpu.VMEM((block_b, H // 2 + 2, W // 2 + 2, C1), jnp.float32),  # pad2
            pltpu.VMEM((block_b * (H // 2) * (W // 2), 9 * C1), jnp.float32),  # col2
            pltpu.VMEM((block_b, (H // 4) * (W // 4) * C2), jnp.float32),  # flat
        ],
        compiler_params=pltpu.CompilerParams(
            dimension_semantics=("parallel",)),
    )(x, wc1f, bc1, wc2f, bc2, wl1, bl1, wl2p, bl2p)


def init_params(key, shape):
    """Torch-equivalent init (uniform +-1/sqrt(fan_in)) in 'natural' layouts."""
    c, h, w = shape
    filters = 32
    filters2 = filters * 2
    flat = (h // 4) * (w // 4) * filters2
    ks = jax.random.split(key, 8)

    def uni(k, shp, fan_in):
        bound = 1.0 / math.sqrt(fan_in)
        return jax.random.uniform(k, shp, jnp.float32, -bound, bound)

    wc1 = uni(ks[0], (3, 3, c, filters), 3 * 3 * c)
    bc1 = uni(ks[1], (1, filters), 3 * 3 * c)
    wc2 = uni(ks[2], (3, 3, filters, filters2), 3 * 3 * filters)
    bc2 = uni(ks[3], (1, filters2), 3 * 3 * filters)
    wl1 = uni(ks[4], (flat, 128), flat)     # rows in torch (c, h, w) flatten order
    bl1 = uni(ks[5], (1, 128), flat)
    wl2 = uni(ks[6], (128, 10), 128)
    bl2 = uni(ks[7], (1, 10), 128)
    return (wc1, bc1, wc2, bc2, wl1, bl1, wl2, bl2)


def prepare_params(params, shape):
    """One-time host-side weight re-layout (zero per-step runtime cost):
       - conv weights (3,3,cin,cout) -> (9*cin, cout) im2col form, bf16
       - wl1 rows permuted from torch (c,h,w) flatten order to (h,w,c)
       - classifier padded from 10 to 128 output columns (masked in-kernel)
    """
    (wc1, bc1, wc2, bc2, wl1, bl1, wl2, bl2) = params
    c, h, w = shape
    c2 = wc2.shape[-1]
    hq, wq = h // 4, w // 4
    n_hid = wl1.shape[-1]
    n_cls = wl2.shape[-1]
    n_pad = 128

    wc1f = wc1.reshape(-1, wc1.shape[-1]).astype(jnp.bfloat16)   # (9*Cin, 32)
    wc2f = wc2.reshape(-1, wc2.shape[-1]).astype(jnp.bfloat16)   # (288, 64)
    wl1p = (wl1.reshape(c2, hq, wq, n_hid)
               .transpose(1, 2, 0, 3)
               .reshape(hq * wq * c2, n_hid)).astype(jnp.bfloat16)
    wl2p = jnp.zeros((n_hid, n_pad), jnp.bfloat16).at[:, :n_cls].set(
        wl2.astype(jnp.bfloat16))
    bl2p = jnp.zeros((1, n_pad), jnp.float32).at[:, :n_cls].set(bl2)
    return (wc1f, bc1.astype(jnp.float32), wc2f, bc2.astype(jnp.float32),
            wl1p, bl1.astype(jnp.float32), wl2p, bl2p)


if __name__ == "__main__":
    B, C, H, W = 2, 4, 16, 16
    key = jax.random.PRNGKey(0)
    k_x, k_p = jax.random.split(key)
    x = jax.random.normal(k_x, (B, C, H, W), jnp.float32)   # NCHW input
    params = prepare_params(init_params(k_p, (C, H, W)), (C, H, W))

    out = jax.jit(cnn_forward)(x, params)
    out = jax.block_until_ready(out)

    assert out.shape == (B, 10), out.shape
    # log-softmax rows should sum (in probability space) to ~1
    assert bool(jnp.all(jnp.abs(jnp.sum(jnp.exp(out), axis=-1) - 1.0) < 1e-3))
    print("KERNEL_OK")
</pallas_src>

<mosaic_0001>
module attributes {stable_mosaic.version = 11 : i64} {
  func.func @cnn_fused_kernel(%arg0: i32, %arg1: memref<2x16x16x4xf32, #tpu.memory_space<vmem>>, %arg2: memref<36x32xbf16, #tpu.memory_space<vmem>>, %arg3: memref<1x32xf32, #tpu.memory_space<vmem>>, %arg4: memref<288x64xbf16, #tpu.memory_space<vmem>>, %arg5: memref<1x64xf32, #tpu.memory_space<vmem>>, %arg6: memref<1024x128xbf16, #tpu.memory_space<vmem>>, %arg7: memref<1x128xf32, #tpu.memory_space<vmem>>, %arg8: memref<128x128xbf16, #tpu.memory_space<vmem>>, %arg9: memref<1x128xf32, #tpu.memory_space<vmem>>, %arg10: memref<2x10xf32, #tpu.memory_space<vmem>>, %arg11: memref<2x18x18x4xf32, #tpu.memory_space<vmem>>, %arg12: memref<512x36xf32, #tpu.memory_space<vmem>>, %arg13: memref<2x10x10x32xf32, #tpu.memory_space<vmem>>, %arg14: memref<128x288xf32, #tpu.memory_space<vmem>>, %arg15: memref<2x1024xf32, #tpu.memory_space<vmem>>) attributes {dimension_semantics = [#tpu.dimension_semantics<parallel>], iteration_bounds = array<i64: 1>, scalar_prefetch = 0 : i64, scratch_operands = 5 : i64, tpu.core_type = #tpu.core_type<tc>, window_params = [{transform_indices = @transform_0, window_bounds = array<i64: 2, 16, 16, 4>}, {pipeline_mode = #tpu.pipeline_mode<synchronous>, transform_indices = @transform_1, window_bounds = array<i64: 36, 32>}, {pipeline_mode = #tpu.pipeline_mode<synchronous>, transform_indices = @transform_2, window_bounds = array<i64: 1, 32>}, {pipeline_mode = #tpu.pipeline_mode<synchronous>, transform_indices = @transform_3, window_bounds = array<i64: 288, 64>}, {pipeline_mode = #tpu.pipeline_mode<synchronous>, transform_indices = @transform_4, window_bounds = array<i64: 1, 64>}, {pipeline_mode = #tpu.pipeline_mode<synchronous>, transform_indices = @transform_5, window_bounds = array<i64: 1024, 128>}, {pipeline_mode = #tpu.pipeline_mode<synchronous>, transform_indices = @transform_6, window_bounds = array<i64: 1, 128>}, {pipeline_mode = #tpu.pipeline_mode<synchronous>, transform_indices = @transform_7, window_bounds = array<i64: 128, 128>}, {pipeline_mode = #tpu.pipeline_mode<synchronous>, transform_indices = @transform_8, window_bounds = array<i64: 1, 128>}, {transform_indices = @transform_9, window_bounds = array<i64: 2, 10>}]} {
    %c0 = arith.constant 0 : index
    %c0_0 = arith.constant 0 : index
    %c0_1 = arith.constant 0 : index
    %c0_2 = arith.constant 0 : index
    %0 = vector.load %arg1[%c0, %c0_0, %c0_1, %c0_2] : memref<2x16x16x4xf32, #tpu.memory_space<vmem>>, vector<2x16x16x4xf32>
    %cst = arith.constant 0.000000e+00 : f32
    %1 = vector.broadcast %cst : f32 to vector<2x18x18x4xf32>
    %c0_3 = arith.constant 0 : index
    %c0_4 = arith.constant 0 : index
    %c0_5 = arith.constant 0 : index
    %c0_6 = arith.constant 0 : index
    %2 = vector.load %arg11[%c0_3, %c0_4, %c0_5, %c0_6] : memref<2x18x18x4xf32, #tpu.memory_space<vmem>>, vector<2x18x18x4xf32>
    tpu.vector_store %arg11[%c0_3, %c0_4, %c0_5, %c0_6], %1 {strides = array<i32>} : memref<2x18x18x4xf32, #tpu.memory_space<vmem>>, vector<2x18x18x4xf32>,
    %c0_7 = arith.constant 0 : index
    %c1 = arith.constant 1 : index
    %c1_8 = arith.constant 1 : index
    %c0_9 = arith.constant 0 : index
    %3 = vector.load %arg11[%c0_7, %c1, %c1_8, %c0_9] : memref<2x18x18x4xf32, #tpu.memory_space<vmem>>, vector<2x16x16x4xf32>
    tpu.vector_store %arg11[%c0_7, %c1, %c1_8, %c0_9], %0 {strides = array<i32>} : memref<2x18x18x4xf32, #tpu.memory_space<vmem>>, vector<2x16x16x4xf32>,
    %c0_10 = arith.constant 0 : index
    %c0_11 = arith.constant 0 : index
    %c0_12 = arith.constant 0 : index
    %c0_13 = arith.constant 0 : index
    %4 = vector.load %arg11[%c0_10, %c0_11, %c0_12, %c0_13] : memref<2x18x18x4xf32, #tpu.memory_space<vmem>>, vector<2x16x16x4xf32>
    %5 = vector.shape_cast %4 : vector<2x16x16x4xf32> to vector<512x4xf32>
    %c0_14 = arith.constant 0 : index
    %c0_15 = arith.constant 0 : index
    %6 = vector.load %arg12[%c0_14, %c0_15] : memref<512x36xf32, #tpu.memory_space<vmem>>, vector<512x4xf32>
    tpu.vector_store %arg12[%c0_14, %c0_15], %5 {strides = array<i32>} : memref<512x36xf32, #tpu.memory_space<vmem>>, vector<512x4xf32>,
    %c0_16 = arith.constant 0 : index
    %c0_17 = arith.constant 0 : index
    %c1_18 = arith.constant 1 : index
    %c0_19 = arith.constant 0 : index
    %7 = vector.load %arg11[%c0_16, %c0_17, %c1_18, %c0_19] : memref<2x18x18x4xf32, #tpu.memory_space<vmem>>, vector<2x16x16x4xf32>
    %8 = vector.shape_cast %7 : vector<2x16x16x4xf32> to vector<512x4xf32>
    %c0_20 = arith.constant 0 : index
    %c4 = arith.constant 4 : index
    %9 = vector.load %arg12[%c0_20, %c4] : memref<512x36xf32, #tpu.memory_space<vmem>>, vector<512x4xf32>
    tpu.vector_store %arg12[%c0_20, %c4], %8 {strides = array<i32>} : memref<512x36xf32, #tpu.memory_space<vmem>>, vector<512x4xf32>,
    %c0_21 = arith.constant 0 : index
    %c0_22 = arith.constant 0 : index
    %c2 = arith.constant 2 : index
    %c0_23 = arith.constant 0 : index
    %10 = vector.load %arg11[%c0_21, %c0_22, %c2, %c0_23] : memref<2x18x18x4xf32, #tpu.memory_space<vmem>>, vector<2x16x16x4xf32>
    %11 = vector.shape_cast %10 : vector<2x16x16x4xf32> to vector<512x4xf32>
    %c0_24 = arith.constant 0 : index
    %c8 = arith.constant 8 : index
    %12 = vector.load %arg12[%c0_24, %c8] : memref<512x36xf32, #tpu.memory_space<vmem>>, vector<512x4xf32>
    tpu.vector_store %arg12[%c0_24, %c8], %11 {strides = array<i32>} : memref<512x36xf32, #tpu.memory_space<vmem>>, vector<512x4xf32>,
    %c0_25 = arith.constant 0 : index
    %c1_26 = arith.constant 1 : index
    %c0_27 = arith.constant 0 : index
    %c0_28 = arith.constant 0 : index
    %13 = vector.load %arg11[%c0_25, %c1_26, %c0_27, %c0_28] : memref<2x18x18x4xf32, #tpu.memory_space<vmem>>, vector<2x16x16x4xf32>
    %14 = vector.shape_cast %13 : vector<2x16x16x4xf32> to vector<512x4xf32>
    %c0_29 = arith.constant 0 : index
    %c12 = arith.constant 12 : index
    %15 = vector.load %arg12[%c0_29, %c12] : memref<512x36xf32, #tpu.memory_space<vmem>>, vector<512x4xf32>
    tpu.vector_store %arg12[%c0_29, %c12], %14 {strides = array<i32>} : memref<512x36xf32, #tpu.memory_space<vmem>>, vector<512x4xf32>,
    %c0_30 = arith.constant 0 : index
    %c1_31 = arith.constant 1 : index
    %c1_32 = arith.constant 1 : index
    %c0_33 = arith.constant 0 : index
    %16 = vector.load %arg11[%c0_30, %c1_31, %c1_32, %c0_33] : memref<2x18x18x4xf32, #tpu.memory_space<vmem>>, vector<2x16x16x4xf32>
    %17 = vector.shape_cast %16 : vector<2x16x16x4xf32> to vector<512x4xf32>
    %c0_34 = arith.constant 0 : index
    %c16 = arith.constant 16 : index
    %18 = vector.load %arg12[%c0_34, %c16] : memref<512x36xf32, #tpu.memory_space<vmem>>, vector<512x4xf32>
    tpu.vector_store %arg12[%c0_34, %c16], %17 {strides = array<i32>} : memref<512x36xf32, #tpu.memory_space<vmem>>, vector<512x4xf32>,
    %c0_35 = arith.constant 0 : index
    %c1_36 = arith.constant 1 : index
    %c2_37 = arith.constant 2 : index
    %c0_38 = arith.constant 0 : index
    %19 = vector.load %arg11[%c0_35, %c1_36, %c2_37, %c0_38] : memref<2x18x18x4xf32, #tpu.memory_space<vmem>>, vector<2x16x16x4xf32>
    %20 = vector.shape_cast %19 : vector<2x16x16x4xf32> to vector<512x4xf32>
    %c0_39 = arith.constant 0 : index
    %c20 = arith.constant 20 : index
    %21 = vector.load %arg12[%c0_39, %c20] : memref<512x36xf32, #tpu.memory_space<vmem>>, vector<512x4xf32>
    tpu.vector_store %arg12[%c0_39, %c20], %20 {strides = array<i32>} : memref<512x36xf32, #tpu.memory_space<vmem>>, vector<512x4xf32>,
    %c0_40 = arith.constant 0 : index
    %c2_41 = arith.constant 2 : index
    %c0_42 = arith.constant 0 : index
    %c0_43 = arith.constant 0 : index
    %22 = vector.load %arg11[%c0_40, %c2_41, %c0_42, %c0_43] : memref<2x18x18x4xf32, #tpu.memory_space<vmem>>, vector<2x16x16x4xf32>
    %23 = vector.shape_cast %22 : vector<2x16x16x4xf32> to vector<512x4xf32>
    %c0_44 = arith.constant 0 : index
    %c24 = arith.constant 24 : index
    %24 = vector.load %arg12[%c0_44, %c24] : memref<512x36xf32, #tpu.memory_space<vmem>>, vector<512x4xf32>
    tpu.vector_store %arg12[%c0_44, %c24], %23 {strides = array<i32>} : memref<512x36xf32, #tpu.memory_space<vmem>>, vector<512x4xf32>,
    %c0_45 = arith.constant 0 : index
    %c2_46 = arith.constant 2 : index
    %c1_47 = arith.constant 1 : index
    %c0_48 = arith.constant 0 : index
    %25 = vector.load %arg11[%c0_45, %c2_46, %c1_47, %c0_48] : memref<2x18x18x4xf32, #tpu.memory_space<vmem>>, vector<2x16x16x4xf32>
    %26 = vector.shape_cast %25 : vector<2x16x16x4xf32> to vector<512x4xf32>
    %c0_49 = arith.constant 0 : index
    %c28 = arith.constant 28 : index
    %27 = vector.load %arg12[%c0_49, %c28] : memref<512x36xf32, #tpu.memory_space<vmem>>, vector<512x4xf32>
    tpu.vector_store %arg12[%c0_49, %c28], %26 {strides = array<i32>} : memref<512x36xf32, #tpu.memory_space<vmem>>, vector<512x4xf32>,
    %c0_50 = arith.constant 0 : index
    %c2_51 = arith.constant 2 : index
    %c2_52 = arith.constant 2 : index
    %c0_53 = arith.constant 0 : index
    %28 = vector.load %arg11[%c0_50, %c2_51, %c2_52, %c0_53] : memref<2x18x18x4xf32, #tpu.memory_space<vmem>>, vector<2x16x16x4xf32>
    %29 = vector.shape_cast %28 : vector<2x16x16x4xf32> to vector<512x4xf32>
    %c0_54 = arith.constant 0 : index
    %c32 = arith.constant 32 : index
    %30 = vector.load %arg12[%c0_54, %c32] : memref<512x36xf32, #tpu.memory_space<vmem>>, vector<512x4xf32>
    tpu.vector_store %arg12[%c0_54, %c32], %29 {strides = array<i32>} : memref<512x36xf32, #tpu.memory_space<vmem>>, vector<512x4xf32>,
    %c0_55 = arith.constant 0 : index
    %c0_56 = arith.constant 0 : index
    %31 = vector.load %arg12[%c0_55, %c0_56] : memref<512x36xf32, #tpu.memory_space<vmem>>, vector<512x36xf32>
    %32 = arith.truncf %31 : vector<512x36xf32> to vector<512x36xbf16>
    %c0_57 = arith.constant 0 : index
    %c0_58 = arith.constant 0 : index
    %33 = vector.load %arg2[%c0_57, %c0_58] : memref<36x32xbf16, #tpu.memory_space<vmem>>, vector<36x32xbf16>
    %cst_59 = arith.constant dense<0.000000e+00> : vector<512x32xf32>
    %34 = tpu.matmul %32, %33, %cst_59 {dimension_numbers = #tpu.dot_dimension_numbers<[1], [0], [0], [1], [0, 0, 1, 1], [], []>} : vector<512x36xbf16>, vector<36x32xbf16>, vector<512x32xf32> -> vector<512x32xf32>
    %c0_60 = arith.constant 0 : index
    %c0_61 = arith.constant 0 : index
    %35 = vector.load %arg3[%c0_60, %c0_61] : memref<1x32xf32, #tpu.memory_space<vmem>>, vector<1x32xf32>
    %36 = vector.broadcast %35 : vector<1x32xf32> to vector<512x32xf32>
    %37 = arith.addf %34, %36 : vector<512x32xf32>
    %cst_62 = arith.constant 0.000000e+00 : f32
    %38 = vector.broadcast %cst_62 : f32 to vector<512x32xf32>
    %39 = arith.maximumf %37, %38 : vector<512x32xf32>
    %40 = vector.shape_cast %39 : vector<512x32xf32> to vector<16x2x16x32xf32>
    %41 = vector.extract_strided_slice %40 {offsets = [0, 0, 0, 0], sizes = [16, 1, 16, 32], strides = [1, 1, 1, 1]} : vector<16x2x16x32xf32> to vector<16x1x16x32xf32>
    %42 = vector.shape_cast %41 : vector<16x1x16x32xf32> to vector<16x16x32xf32>
    %43 = vector.extract_strided_slice %40 {offsets = [0, 1, 0, 0], sizes = [16, 1, 16, 32], strides = [1, 1, 1, 1]} : vector<16x2x16x32xf32> to vector<16x1x16x32xf32>
    %44 = vector.shape_cast %43 : vector<16x1x16x32xf32> to vector<16x16x32xf32>
    %45 = arith.maximumf %42, %44 : vector<16x16x32xf32>
    %46 = vector.shape_cast %45 : vector<16x16x32xf32> to vector<128x2x32xf32>
    %47 = vector.extract_strided_slice %46 {offsets = [0, 0, 0], sizes = [128, 1, 32], strides = [1, 1, 1]} : vector<128x2x32xf32> to vector<128x1x32xf32>
    %48 = vector.shape_cast %47 : vector<128x1x32xf32> to vector<128x32xf32>
    %49 = vector.extract_strided_slice %46 {offsets = [0, 1, 0], sizes = [128, 1, 32], strides = [1, 1, 1]} : vector<128x2x32xf32> to vector<128x1x32xf32>
    %50 = vector.shape_cast %49 : vector<128x1x32xf32> to vector<128x32xf32>
    %51 = arith.maximumf %48, %50 : vector<128x32xf32>
    %52 = vector.shape_cast %51 : vector<128x32xf32> to vector<2x8x8x32xf32>
    %cst_63 = arith.constant 0.000000e+00 : f32
    %53 = vector.broadcast %cst_63 : f32 to vector<2x10x10x32xf32>
    %c0_64 = arith.constant 0 : index
    %c0_65 = arith.constant 0 : index
    %c0_66 = arith.constant 0 : index
    %c0_67 = arith.constant 0 : index
    %54 = vector.load %arg13[%c0_64, %c0_65, %c0_66, %c0_67] : memref<2x10x10x32xf32, #tpu.memory_space<vmem>>, vector<2x10x10x32xf32>
    tpu.vector_store %arg13[%c0_64, %c0_65, %c0_66, %c0_67], %53 {strides = array<i32>} : memref<2x10x10x32xf32, #tpu.memory_space<vmem>>, vector<2x10x10x32xf32>,
    %c0_68 = arith.constant 0 : index
    %c1_69 = arith.constant 1 : index
    %c1_70 = arith.constant 1 : index
    %c0_71 = arith.constant 0 : index
    %55 = vector.load %arg13[%c0_68, %c1_69, %c1_70, %c0_71] : memref<2x10x10x32xf32, #tpu.memory_space<vmem>>, vector<2x8x8x32xf32>
    tpu.vector_store %arg13[%c0_68, %c1_69, %c1_70, %c0_71], %52 {strides = array<i32>} : memref<2x10x10x32xf32, #tpu.memory_space<vmem>>, vector<2x8x8x32xf32>,
    %c0_72 = arith.constant 0 : index
    %c0_73 = arith.constant 0 : index
    %c0_74 = arith.constant 0 : index
    %c0_75 = arith.constant 0 : index
    %56 = vector.load %arg13[%c0_72, %c0_73, %c0_74, %c0_75] : memref<2x10x10x32xf32, #tpu.memory_space<vmem>>, vector<2x8x8x32xf32>
    %57 = vector.shape_cast %56 : vector<2x8x8x32xf32> to vector<128x32xf32>
    %c0_76 = arith.constant 0 : index
    %c0_77 = arith.constant 0 : index
    %58 = vector.load %arg14[%c0_76, %c0_77] : memref<128x288xf32, #tpu.memory_space<vmem>>, vector<128x32xf32>
    tpu.vector_store %arg14[%c0_76, %c0_77], %57 {strides = array<i32>} : memref<128x288xf32, #tpu.memory_space<vmem>>, vector<128x32xf32>,
    %c0_78 = arith.constant 0 : index
    %c0_79 = arith.constant 0 : index
    %c1_80 = arith.constant 1 : index
    %c0_81 = arith.constant 0 : index
    %59 = vector.load %arg13[%c0_78, %c0_79, %c1_80, %c0_81] : memref<2x10x10x32xf32, #tpu.memory_space<vmem>>, vector<2x8x8x32xf32>
    %60 = vector.shape_cast %59 : vector<2x8x8x32xf32> to vector<128x32xf32>
    %c0_82 = arith.constant 0 : index
    %c32_83 = arith.constant 32 : index
    %61 = vector.load %arg14[%c0_82, %c32_83] : memref<128x288xf32, #tpu.memory_space<vmem>>, vector<128x32xf32>
    tpu.vector_store %arg14[%c0_82, %c32_83], %60 {strides = array<i32>} : memref<128x288xf32, #tpu.memory_space<vmem>>, vector<128x32xf32>,
    %c0_84 = arith.constant 0 : index
    %c0_85 = arith.constant 0 : index
    %c2_86 = arith.constant 2 : index
    %c0_87 = arith.constant 0 : index
    %62 = vector.load %arg13[%c0_84, %c0_85, %c2_86, %c0_87] : memref<2x10x10x32xf32, #tpu.memory_space<vmem>>, vector<2x8x8x32xf32>
    %63 = vector.shape_cast %62 : vector<2x8x8x32xf32> to vector<128x32xf32>
    %c0_88 = arith.constant 0 : index
    %c64 = arith.constant 64 : index
    %64 = vector.load %arg14[%c0_88, %c64] : memref<128x288xf32, #tpu.memory_space<vmem>>, vector<128x32xf32>
    tpu.vector_store %arg14[%c0_88, %c64], %63 {strides = array<i32>} : memref<128x288xf32, #tpu.memory_space<vmem>>, vector<128x32xf32>,
    %c0_89 = arith.constant 0 : index
    %c1_90 = arith.constant 1 : index
    %c0_91 = arith.constant 0 : index
    %c0_92 = arith.constant 0 : index
    %65 = vector.load %arg13[%c0_89, %c1_90, %c0_91, %c0_92] : memref<2x10x10x32xf32, #tpu.memory_space<vmem>>, vector<2x8x8x32xf32>
    %66 = vector.shape_cast %65 : vector<2x8x8x32xf32> to vector<128x32xf32>
    %c0_93 = arith.constant 0 : index
    %c96 = arith.constant 96 : index
    %67 = vector.load %arg14[%c0_93, %c96] : memref<128x288xf32, #tpu.memory_space<vmem>>, vector<128x32xf32>
    tpu.vector_store %arg14[%c0_93, %c96], %66 {strides = array<i32>} : memref<128x288xf32, #tpu.memory_space<vmem>>, vector<128x32xf32>,
    %c0_94 = arith.constant 0 : index
    %c1_95 = arith.constant 1 : index
    %c1_96 = arith.constant 1 : index
    %c0_97 = arith.constant 0 : index
    %68 = vector.load %arg13[%c0_94, %c1_95, %c1_96, %c0_97] : memref<2x10x10x32xf32, #tpu.memory_space<vmem>>, vector<2x8x8x32xf32>
    %69 = vector.shape_cast %68 : vector<2x8x8x32xf32> to vector<128x32xf32>
    %c0_98 = arith.constant 0 : index
    %c128 = arith.constant 128 : index
    %70 = vector.load %arg14[%c0_98, %c128] : memref<128x288xf32, #tpu.memory_space<vmem>>, vector<128x32xf32>
    tpu.vector_store %arg14[%c0_98, %c128], %69 {strides = array<i32>} : memref<128x288xf32, #tpu.memory_space<vmem>>, vector<128x32xf32>,
    %c0_99 = arith.constant 0 : index
    %c1_100 = arith.constant 1 : index
    %c2_101 = arith.constant 2 : index
    %c0_102 = arith.constant 0 : index
    %71 = vector.load %arg13[%c0_99, %c1_100, %c2_101, %c0_102] : memref<2x10x10x32xf32, #tpu.memory_space<vmem>>, vector<2x8x8x32xf32>
    %72 = vector.shape_cast %71 : vector<2x8x8x32xf32> to vector<128x32xf32>
    %c0_103 = arith.constant 0 : index
    %c160 = arith.constant 160 : index
    %73 = vector.load %arg14[%c0_103, %c160] : memref<128x288xf32, #tpu.memory_space<vmem>>, vector<128x32xf32>
    tpu.vector_store %arg14[%c0_103, %c160], %72 {strides = array<i32>} : memref<128x288xf32, #tpu.memory_space<vmem>>, vector<128x32xf32>,
    %c0_104 = arith.constant 0 : index
    %c2_105 = arith.constant 2 : index
    %c0_106 = arith.constant 0 : index
    %c0_107 = arith.constant 0 : index
    %74 = vector.load %arg13[%c0_104, %c2_105, %c0_106, %c0_107] : memref<2x10x10x32xf32, #tpu.memory_space<vmem>>, vector<2x8x8x32xf32>
    %75 = vector.shape_cast %74 : vector<2x8x8x32xf32> to vector<128x32xf32>
    %c0_108 = arith.constant 0 : index
    %c192 = arith.constant 192 : index
    %76 = vector.load %arg14[%c0_108, %c192] : memref<128x288xf32, #tpu.memory_space<vmem>>, vector<128x32xf32>
    tpu.vector_store %arg14[%c0_108, %c192], %75 {strides = array<i32>} : memref<128x288xf32, #tpu.memory_space<vmem>>, vector<128x32xf32>,
    %c0_109 = arith.constant 0 : index
    %c2_110 = arith.constant 2 : index
    %c1_111 = arith.constant 1 : index
    %c0_112 = arith.constant 0 : index
    %77 = vector.load %arg13[%c0_109, %c2_110, %c1_111, %c0_112] : memref<2x10x10x32xf32, #tpu.memory_space<vmem>>, vector<2x8x8x32xf32>
    %78 = vector.shape_cast %77 : vector<2x8x8x32xf32> to vector<128x32xf32>
    %c0_113 = arith.constant 0 : index
    %c224 = arith.constant 224 : index
    %79 = vector.load %arg14[%c0_113, %c224] : memref<128x288xf32, #tpu.memory_space<vmem>>, vector<128x32xf32>
    tpu.vector_store %arg14[%c0_113, %c224], %78 {strides = array<i32>} : memref<128x288xf32, #tpu.memory_space<vmem>>, vector<128x32xf32>,
    %c0_114 = arith.constant 0 : index
    %c2_115 = arith.constant 2 : index
    %c2_116 = arith.constant 2 : index
    %c0_117 = arith.constant 0 : index
    %80 = vector.load %arg13[%c0_114, %c2_115, %c2_116, %c0_117] : memref<2x10x10x32xf32, #tpu.memory_space<vmem>>, vector<2x8x8x32xf32>
    %81 = vector.shape_cast %80 : vector<2x8x8x32xf32> to vector<128x32xf32>
    %c0_118 = arith.constant 0 : index
    %c256 = arith.constant 256 : index
    %82 = vector.load %arg14[%c0_118, %c256] : memref<128x288xf32, #tpu.memory_space<vmem>>, vector<128x32xf32>
    tpu.vector_store %arg14[%c0_118, %c256], %81 {strides = array<i32>} : memref<128x288xf32, #tpu.memory_space<vmem>>, vector<128x32xf32>,
    %c0_119 = arith.constant 0 : index
    %c0_120 = arith.constant 0 : index
    %83 = vector.load %arg14[%c0_119, %c0_120] : memref<128x288xf32, #tpu.memory_space<vmem>>, vector<128x288xf32>
    %84 = arith.truncf %83 : vector<128x288xf32> to vector<128x288xbf16>
    %c0_121 = arith.constant 0 : index
    %c0_122 = arith.constant 0 : index
    %85 = vector.load %arg4[%c0_121, %c0_122] : memref<288x64xbf16, #tpu.memory_space<vmem>>, vector<288x64xbf16>
    %cst_123 = arith.constant dense<0.000000e+00> : vector<128x64xf32>
    %86 = tpu.matmul %84, %85, %cst_123 {dimension_numbers = #tpu.dot_dimension_numbers<[1], [0], [0], [1], [0, 0, 1, 1], [], []>} : vector<128x288xbf16>, vector<288x64xbf16>, vector<128x64xf32> -> vector<128x64xf32>
    %c0_124 = arith.constant 0 : index
    %c0_125 = arith.constant 0 : index
    %87 = vector.load %arg5[%c0_124, %c0_125] : memref<1x64xf32, #tpu.memory_space<vmem>>, vector<1x64xf32>
    %88 = vector.broadcast %87 : vector<1x64xf32> to vector<128x64xf32>
    %89 = arith.addf %86, %88 : vector<128x64xf32>
    %cst_126 = arith.constant 0.000000e+00 : f32
    %90 = vector.broadcast %cst_126 : f32 to vector<128x64xf32>
    %91 = arith.maximumf %89, %90 : vector<128x64xf32>
    %92 = vector.shape_cast %91 : vector<128x64xf32> to vector<8x2x8x64xf32>
    %93 = vector.extract_strided_slice %92 {offsets = [0, 0, 0, 0], sizes = [8, 1, 8, 64], strides = [1, 1, 1, 1]} : vector<8x2x8x64xf32> to vector<8x1x8x64xf32>
    %94 = vector.shape_cast %93 : vector<8x1x8x64xf32> to vector<8x8x64xf32>
    %95 = vector.extract_strided_slice %92 {offsets = [0, 1, 0, 0], sizes = [8, 1, 8, 64], strides = [1, 1, 1, 1]} : vector<8x2x8x64xf32> to vector<8x1x8x64xf32>
    %96 = vector.shape_cast %95 : vector<8x1x8x64xf32> to vector<8x8x64xf32>
    %97 = arith.maximumf %94, %96 : vector<8x8x64xf32>
    %98 = vector.shape_cast %97 : vector<8x8x64xf32> to vector<32x2x64xf32>
    %99 = vector.extract_strided_slice %98 {offsets = [0, 0, 0], sizes = [32, 1, 64], strides = [1, 1, 1]} : vector<32x2x64xf32> to vector<32x1x64xf32>
    %100 = vector.shape_cast %99 : vector<32x1x64xf32> to vector<32x64xf32>
    %101 = vector.extract_strided_slice %98 {offsets = [0, 1, 0], sizes = [32, 1, 64], strides = [1, 1, 1]} : vector<32x2x64xf32> to vector<32x1x64xf32>
    %102 = vector.shape_cast %101 : vector<32x1x64xf32> to vector<32x64xf32>
    %103 = arith.maximumf %100, %102 : vector<32x64xf32>
    %104 = vector.shape_cast %103 : vector<32x64xf32> to vector<2x16x64xf32>
    %105 = vector.extract_strided_slice %104 {offsets = [0, 0, 0], sizes = [2, 1, 64], strides = [1, 1, 1]} : vector<2x16x64xf32> to vector<2x1x64xf32>
    %106 = vector.shape_cast %105 : vector<2x1x64xf32> to vector<2x64xf32>
    %c0_127 = arith.constant 0 : index
    %c0_128 = arith.constant 0 : index
    %107 = vector.load %arg15[%c0_127, %c0_128] : memref<2x1024xf32, #tpu.memory_space<vmem>>, vector<2x64xf32>
    tpu.vector_store %arg15[%c0_127, %c0_128], %106 {strides = array<i32>} : memref<2x1024xf32, #tpu.memory_space<vmem>>, vector<2x64xf32>,
    %108 = vector.extract_strided_slice %104 {offsets = [0, 1, 0], sizes = [2, 1, 64], strides = [1, 1, 1]} : vector<2x16x64xf32> to vector<2x1x64xf32>
    %109 = vector.shape_cast %108 : vector<2x1x64xf32> to vector<2x64xf32>
    %c0_129 = arith.constant 0 : index
    %c64_130 = arith.constant 64 : index
    %110 = vector.load %arg15[%c0_129, %c64_130] : memref<2x1024xf32, #tpu.memory_space<vmem>>, vector<2x64xf32>
    tpu.vector_store %arg15[%c0_129, %c64_130], %109 {strides = array<i32>} : memref<2x1024xf32, #tpu.memory_space<vmem>>, vector<2x64xf32>,
    %111 = vector.extract_strided_slice %104 {offsets = [0, 2, 0], sizes = [2, 1, 64], strides = [1, 1, 1]} : vector<2x16x64xf32> to vector<2x1x64xf32>
    %112 = vector.shape_cast %111 : vector<2x1x64xf32> to vector<2x64xf32>
    %c0_131 = arith.constant 0 : index
    %c128_132 = arith.constant 128 : index
    %113 = vector.load %arg15[%c0_131, %c128_132] : memref<2x1024xf32, #tpu.memory_space<vmem>>, vector<2x64xf32>
    tpu.vector_store %arg15[%c0_131, %c128_132], %112 {strides = array<i32>} : memref<2x1024xf32, #tpu.memory_space<vmem>>, vector<2x64xf32>,
    %114 = vector.extract_strided_slice %104 {offsets = [0, 3, 0], sizes = [2, 1, 64], strides = [1, 1, 1]} : vector<2x16x64xf32> to vector<2x1x64xf32>
    %115 = vector.shape_cast %114 : vector<2x1x64xf32> to vector<2x64xf32>
    %c0_133 = arith.constant 0 : index
    %c192_134 = arith.constant 192 : index
    %116 = vector.load %arg15[%c0_133, %c192_134] : memref<2x1024xf32, #tpu.memory_space<vmem>>, vector<2x64xf32>
    tpu.vector_store %arg15[%c0_133, %c192_134], %115 {strides = array<i32>} : memref<2x1024xf32, #tpu.memory_space<vmem>>, vector<2x64xf32>,
    %117 = vector.extract_strided_slice %104 {offsets = [0, 4, 0], sizes = [2, 1, 64], strides = [1, 1, 1]} : vector<2x16x64xf32> to vector<2x1x64xf32>
    %118 = vector.shape_cast %117 : vector<2x1x64xf32> to vector<2x64xf32>
    %c0_135 = arith.constant 0 : index
    %c256_136 = arith.constant 256 : index
    %119 = vector.load %arg15[%c0_135, %c256_136] : memref<2x1024xf32, #tpu.memory_space<vmem>>, vector<2x64xf32>
    tpu.vector_store %arg15[%c0_135, %c256_136], %118 {strides = array<i32>} : memref<2x1024xf32, #tpu.memory_space<vmem>>, vector<2x64xf32>,
    %120 = vector.extract_strided_slice %104 {offsets = [0, 5, 0], sizes = [2, 1, 64], strides = [1, 1, 1]} : vector<2x16x64xf32> to vector<2x1x64xf32>
    %121 = vector.shape_cast %120 : vector<2x1x64xf32> to vector<2x64xf32>
    %c0_137 = arith.constant 0 : index
    %c320 = arith.constant 320 : index
    %122 = vector.load %arg15[%c0_137, %c320] : memref<2x1024xf32, #tpu.memory_space<vmem>>, vector<2x64xf32>
    tpu.vector_store %arg15[%c0_137, %c320], %121 {strides = array<i32>} : memref<2x1024xf32, #tpu.memory_space<vmem>>, vector<2x64xf32>,
    %123 = vector.extract_strided_slice %104 {offsets = [0, 6, 0], sizes = [2, 1, 64], strides = [1, 1, 1]} : vector<2x16x64xf32> to vector<2x1x64xf32>
    %124 = vector.shape_cast %123 : vector<2x1x64xf32> to vector<2x64xf32>
    %c0_138 = arith.constant 0 : index
    %c384 = arith.constant 384 : index
    %125 = vector.load %arg15[%c0_138, %c384] : memref<2x1024xf32, #tpu.memory_space<vmem>>, vector<2x64xf32>
    tpu.vector_store %arg15[%c0_138, %c384], %124 {strides = array<i32>} : memref<2x1024xf32, #tpu.memory_space<vmem>>, vector<2x64xf32>,
    %126 = vector.extract_strided_slice %104 {offsets = [0, 7, 0], sizes = [2, 1, 64], strides = [1, 1, 1]} : vector<2x16x64xf32> to vector<2x1x64xf32>
    %127 = vector.shape_cast %126 : vector<2x1x64xf32> to vector<2x64xf32>
    %c0_139 = arith.constant 0 : index
    %c448 = arith.constant 448 : index
    %128 = vector.load %arg15[%c0_139, %c448] : memref<2x1024xf32, #tpu.memory_space<vmem>>, vector<2x64xf32>
    tpu.vector_store %arg15[%c0_139, %c448], %127 {strides = array<i32>} : memref<2x1024xf32, #tpu.memory_space<vmem>>, vector<2x64xf32>,
    %129 = vector.extract_strided_slice %104 {offsets = [0, 8, 0], sizes = [2, 1, 64], strides = [1, 1, 1]} : vector<2x16x64xf32> to vector<2x1x64xf32>
    %130 = vector.shape_cast %129 : vector<2x1x64xf32> to vector<2x64xf32>
    %c0_140 = arith.constant 0 : index
    %c512 = arith.constant 512 : index
    %131 = vector.load %arg15[%c0_140, %c512] : memref<2x1024xf32, #tpu.memory_space<vmem>>, vector<2x64xf32>
    tpu.vector_store %arg15[%c0_140, %c512], %130 {strides = array<i32>} : memref<2x1024xf32, #tpu.memory_space<vmem>>, vector<2x64xf32>,
    %132 = vector.extract_strided_slice %104 {offsets = [0, 9, 0], sizes = [2, 1, 64], strides = [1, 1, 1]} : vector<2x16x64xf32> to vector<2x1x64xf32>
    %133 = vector.shape_cast %132 : vector<2x1x64xf32> to vector<2x64xf32>
    %c0_141 = arith.constant 0 : index
    %c576 = arith.constant 576 : index
    %134 = vector.load %arg15[%c0_141, %c576] : memref<2x1024xf32, #tpu.memory_space<vmem>>, vector<2x64xf32>
    tpu.vector_store %arg15[%c0_141, %c576], %133 {strides = array<i32>} : memref<2x1024xf32, #tpu.memory_space<vmem>>, vector<2x64xf32>,
    %135 = vector.extract_strided_slice %104 {offsets = [0, 10, 0], sizes = [2, 1, 64], strides = [1, 1, 1]} : vector<2x16x64xf32> to vector<2x1x64xf32>
    %136 = vector.shape_cast %135 : vector<2x1x64xf32> to vector<2x64xf32>
    %c0_142 = arith.constant 0 : index
    %c640 = arith.constant 640 : index
    %137 = vector.load %arg15[%c0_142, %c640] : memref<2x1024xf32, #tpu.memory_space<vmem>>, vector<2x64xf32>
    tpu.vector_store %arg15[%c0_142, %c640], %136 {strides = array<i32>} : memref<2x1024xf32, #tpu.memory_space<vmem>>, vector<2x64xf32>,
    %138 = vector.extract_strided_slice %104 {offsets = [0, 11, 0], sizes = [2, 1, 64], strides = [1, 1, 1]} : vector<2x16x64xf32> to vector<2x1x64xf32>
    %139 = vector.shape_cast %138 : vector<2x1x64xf32> to vector<2x64xf32>
    %c0_143 = arith.constant 0 : index
    %c704 = arith.constant 704 : index
    %140 = vector.load %arg15[%c0_143, %c704] : memref<2x1024xf32, #tpu.memory_space<vmem>>, vector<2x64xf32>
    tpu.vector_store %arg15[%c0_143, %c704], %139 {strides = array<i32>} : memref<2x1024xf32, #tpu.memory_space<vmem>>, vector<2x64xf32>,
    %141 = vector.extract_strided_slice %104 {offsets = [0, 12, 0], sizes = [2, 1, 64], strides = [1, 1, 1]} : vector<2x16x64xf32> to vector<2x1x64xf32>
    %142 = vector.shape_cast %141 : vector<2x1x64xf32> to vector<2x64xf32>
    %c0_144 = arith.constant 0 : index
    %c768 = arith.constant 768 : index
    %143 = vector.load %arg15[%c0_144, %c768] : memref<2x1024xf32, #tpu.memory_space<vmem>>, vector<2x64xf32>
    tpu.vector_store %arg15[%c0_144, %c768], %142 {strides = array<i32>} : memref<2x1024xf32, #tpu.memory_space<vmem>>, vector<2x64xf32>,
    %144 = vector.extract_strided_slice %104 {offsets = [0, 13, 0], sizes = [2, 1, 64], strides = [1, 1, 1]} : vector<2x16x64xf32> to vector<2x1x64xf32>
    %145 = vector.shape_cast %144 : vector<2x1x64xf32> to vector<2x64xf32>
    %c0_145 = arith.constant 0 : index
    %c832 = arith.constant 832 : index
    %146 = vector.load %arg15[%c0_145, %c832] : memref<2x1024xf32, #tpu.memory_space<vmem>>, vector<2x64xf32>
    tpu.vector_store %arg15[%c0_145, %c832], %145 {strides = array<i32>} : memref<2x1024xf32, #tpu.memory_space<vmem>>, vector<2x64xf32>,
    %147 = vector.extract_strided_slice %104 {offsets = [0, 14, 0], sizes = [2, 1, 64], strides = [1, 1, 1]} : vector<2x16x64xf32> to vector<2x1x64xf32>
    %148 = vector.shape_cast %147 : vector<2x1x64xf32> to vector<2x64xf32>
    %c0_146 = arith.constant 0 : index
    %c896 = arith.constant 896 : index
    %149 = vector.load %arg15[%c0_146, %c896] : memref<2x1024xf32, #tpu.memory_space<vmem>>, vector<2x64xf32>
    tpu.vector_store %arg15[%c0_146, %c896], %148 {strides = array<i32>} : memref<2x1024xf32, #tpu.memory_space<vmem>>, vector<2x64xf32>,
    %150 = vector.extract_strided_slice %104 {offsets = [0, 15, 0], sizes = [2, 1, 64], strides = [1, 1, 1]} : vector<2x16x64xf32> to vector<2x1x64xf32>
    %151 = vector.shape_cast %150 : vector<2x1x64xf32> to vector<2x64xf32>
    %c0_147 = arith.constant 0 : index
    %c960 = arith.constant 960 : index
    %152 = vector.load %arg15[%c0_147, %c960] : memref<2x1024xf32, #tpu.memory_space<vmem>>, vector<2x64xf32>
    tpu.vector_store %arg15[%c0_147, %c960], %151 {strides = array<i32>} : memref<2x1024xf32, #tpu.memory_space<vmem>>, vector<2x64xf32>,
    %c0_148 = arith.constant 0 : index
    %c0_149 = arith.constant 0 : index
    %153 = vector.load %arg15[%c0_148, %c0_149] : memref<2x1024xf32, #tpu.memory_space<vmem>>, vector<2x1024xf32>
    %154 = arith.truncf %153 : vector<2x1024xf32> to vector<2x1024xbf16>
    %c0_150 = arith.constant 0 : index
    %c0_151 = arith.constant 0 : index
    %155 = vector.load %arg6[%c0_150, %c0_151] : memref<1024x128xbf16, #tpu.memory_space<vmem>>, vector<1024x128xbf16>
    %cst_152 = arith.constant dense<0.000000e+00> : vector<2x128xf32>
    %156 = tpu.matmul %154, %155, %cst_152 {dimension_numbers = #tpu.dot_dimension_numbers<[1], [0], [0], [1], [0, 0, 1, 1], [], []>} : vector<2x1024xbf16>, vector<1024x128xbf16>, vector<2x128xf32> -> vector<2x128xf32>
    %c0_153 = arith.constant 0 : index
    %c0_154 = arith.constant 0 : index
    %157 = vector.load %arg7[%c0_153, %c0_154] : memref<1x128xf32, #tpu.memory_space<vmem>>, vector<1x128xf32>
    %158 = vector.broadcast %157 : vector<1x128xf32> to vector<2x128xf32>
    %159 = arith.addf %156, %158 : vector<2x128xf32>
    %cst_155 = arith.constant 0.000000e+00 : f32
    %160 = vector.broadcast %cst_155 : f32 to vector<2x128xf32>
    %161 = arith.maximumf %159, %160 : vector<2x128xf32>
    %162 = arith.truncf %161 : vector<2x128xf32> to vector<2x128xbf16>
    %c0_156 = arith.constant 0 : index
    %c0_157 = arith.constant 0 : index
    %163 = vector.load %arg8[%c0_156, %c0_157] : memref<128x128xbf16, #tpu.memory_space<vmem>>, vector<128x128xbf16>
    %cst_158 = arith.constant dense<0.000000e+00> : vector<2x128xf32>
    %164 = tpu.matmul %162, %163, %cst_158 {dimension_numbers = #tpu.dot_dimension_numbers<[1], [0], [0], [1], [0, 0, 1, 1], [], []>} : vector<2x128xbf16>, vector<128x128xbf16>, vector<2x128xf32> -> vector<2x128xf32>
    %c0_159 = arith.constant 0 : index
    %c0_160 = arith.constant 0 : index
    %165 = vector.load %arg9[%c0_159, %c0_160] : memref<1x128xf32, #tpu.memory_space<vmem>>, vector<1x128xf32>
    %166 = vector.broadcast %165 : vector<1x128xf32> to vector<2x128xf32>
    %167 = arith.addf %164, %166 : vector<2x128xf32>
    %168 = tpu.iota {dimensions = array<i32: 1>} : vector<2x128xi32>
    %c10_i32 = arith.constant 10 : i32
    %169 = vector.broadcast %c10_i32 : i32 to vector<2x128xi32>
    %170 = arith.cmpi slt, %168, %169 : vector<2x128xi32>
    %cst_161 = arith.constant -1.000000e+30 : f32
    %171 = vector.broadcast %cst_161 : f32 to vector<2x128xf32>
    %172 = arith.select %170, %167, %171 : vector<2x128xi1>, vector<2x128xf32>
    %cst_162 = arith.constant dense<0xFF800000> : vector<2xf32>
    %173 = vector.multi_reduction <maximumf>, %172, %cst_162 [1] : vector<2x128xf32> to vector<2xf32>
    %174 = vector.shape_cast %173 : vector<2xf32> to vector<2x1xf32>
    %175 = vector.broadcast %174 : vector<2x1xf32> to vector<2x128xf32>
    %176 = arith.subf %172, %175 : vector<2x128xf32>
    %177 = math.exp %176 : vector<2x128xf32>
    %cst_163 = arith.constant 0.000000e+00 : f32
    %178 = vector.broadcast %cst_163 : f32 to vector<2x128xf32>
    %179 = arith.select %170, %177, %178 : vector<2x128xi1>, vector<2x128xf32>
    %cst_164 = arith.constant dense<0.000000e+00> : vector<2xf32>
    %180 = vector.multi_reduction <add>, %179, %cst_164 [1] : vector<2x128xf32> to vector<2xf32>
    %181 = vector.shape_cast %180 : vector<2xf32> to vector<2x1xf32>
    %182 = math.log %181 : vector<2x1xf32>
    %183 = arith.addf %182, %174 : vector<2x1xf32>
    %184 = vector.broadcast %183 : vector<2x1xf32> to vector<2x128xf32>
    %185 = arith.subf %172, %184 : vector<2x128xf32>
    %186 = vector.extract_strided_slice %185 {offsets = [0, 0], sizes = [2, 10], strides = [1, 1]} : vector<2x128xf32> to vector<2x10xf32>
    %c0_165 = arith.constant 0 : index
    %c0_166 = arith.constant 0 : index
    %187 = vector.load %arg10[%c0_165, %c0_166] : memref<2x10xf32, #tpu.memory_space<vmem>>, vector<2x10xf32>
    tpu.vector_store %arg10[%c0_165, %c0_166], %186 {strides = array<i32>} : memref<2x10xf32, #tpu.memory_space<vmem>>, vector<2x10xf32>,
    return
  }
  func.func @transform_0(%arg0: i32) -> (i32, i32, i32, i32) {
    %c0_i32 = arith.constant 0 : i32
    %c0_i32_0 = arith.constant 0 : i32
    %c0_i32_1 = arith.constant 0 : i32
    %c0_i32_2 = arith.constant 0 : i32
    return %arg0, %c0_i32, %c0_i32_0, %c0_i32_1 : i32, i32, i32, i32
  }
  func.func @transform_1(%arg0: i32) -> (i32, i32) {
    %c0_i32 = arith.constant 0 : i32
    %c0_i32_0 = arith.constant 0 : i32
    %c0_i32_1 = arith.constant 0 : i32
    return %c0_i32, %c0_i32_0 : i32, i32
  }
  func.func @transform_2(%arg0: i32) -> (i32, i32) {
    %c0_i32 = arith.constant 0 : i32
    %c0_i32_0 = arith.constant 0 : i32
    %c0_i32_1 = arith.constant 0 : i32
    return %c0_i32, %c0_i32_0 : i32, i32
  }
  func.func @transform_3(%arg0: i32) -> (i32, i32) {
    %c0_i32 = arith.constant 0 : i32
    %c0_i32_0 = arith.constant 0 : i32
    %c0_i32_1 = arith.constant 0 : i32
    return %c0_i32, %c0_i32_0 : i32, i32
  }
  func.func @transform_4(%arg0: i32) -> (i32, i32) {
    %c0_i32 = arith.constant 0 : i32
    %c0_i32_0 = arith.constant 0 : i32
    %c0_i32_1 = arith.constant 0 : i32
    return %c0_i32, %c0_i32_0 : i32, i32
  }
  func.func @transform_5(%arg0: i32) -> (i32, i32) {
    %c0_i32 = arith.constant 0 : i32
    %c0_i32_0 = arith.constant 0 : i32
    %c0_i32_1 = arith.constant 0 : i32
    return %c0_i32, %c0_i32_0 : i32, i32
  }
  func.func @transform_6(%arg0: i32) -> (i32, i32) {
    %c0_i32 = arith.constant 0 : i32
    %c0_i32_0 = arith.constant 0 : i32
    %c0_i32_1 = arith.constant 0 : i32
    return %c0_i32, %c0_i32_0 : i32, i32
  }
  func.func @transform_7(%arg0: i32) -> (i32, i32) {
    %c0_i32 = arith.constant 0 : i32
    %c0_i32_0 = arith.constant 0 : i32
    %c0_i32_1 = arith.constant 0 : i32
    return %c0_i32, %c0_i32_0 : i32, i32
  }
  func.func @transform_8(%arg0: i32) -> (i32, i32) {
    %c0_i32 = arith.constant 0 : i32
    %c0_i32_0 = arith.constant 0 : i32
    %c0_i32_1 = arith.constant 0 : i32
    return %c0_i32, %c0_i32_0 : i32, i32
  }
  func.func @transform_9(%arg0: i32) -> (i32, i32) {
    %c0_i32 = arith.constant 0 : i32
    %c0_i32_0 = arith.constant 0 : i32
    return %arg0, %c0_i32 : i32, i32
  }
}

</mosaic_0001>

<llo_original>
// kernel: cnn_forward.1
$region0: #{cnn_forward.1}
  #allocation0 [shape = 'u32[]', space=smem, size = 0x4, offset = 0x4, fixed_abs, tag = 'smem constant byte address 0x4 - core index']
  #allocation1 [shape = 'u32[144,128]{1,0:T(1,128)}', space=vmem, size = 0x12000, scoped, tag = 'internal scratch']
  #allocation2 [shape = 'f32[2,18,18,4]{3,2,1,0:T(8,128)}', space=vmem, size = 0x6c000, scoped, tag = 'scratch operand']
  #allocation3 [shape = 'f32[512,36]{1,0:T(8,128)}', space=vmem, size = 0x40000, scoped, tag = 'scratch operand']
  #allocation4 [shape = 'f32[2,10,10,32]{3,2,1,0:T(8,128)}', space=vmem, size = 0x28000, scoped, tag = 'scratch operand']
  #allocation5 [shape = 'f32[128,288]{1,0:T(8,128)}', space=vmem, size = 0x30000, scoped, tag = 'scratch operand']
  #allocation6 [shape = 'f32[2,1024]{1,0:T(2,128)}', space=vmem, size = 0x2000, scoped, tag = 'scratch operand']
  %s0 = inlined_call_operand.vmem [shape: f32[2,16,16,4], index: 0, kind: input, shape index: {}]
  %s1 = inlined_call_operand.vmem [shape: bf16[36,32], index: 1, kind: input, shape index: {}]
  %s2 = inlined_call_operand.vmem [shape: f32[1,32], index: 2, kind: input, shape index: {}]
  %s3 = inlined_call_operand.vmem [shape: bf16[288,64], index: 3, kind: input, shape index: {}]
  %s4 = inlined_call_operand.vmem [shape: f32[1,64], index: 4, kind: input, shape index: {}]
  %s5 = inlined_call_operand.vmem [shape: bf16[1024,128], index: 5, kind: input, shape index: {}]
  %s6 = inlined_call_operand.vmem [shape: f32[1,128], index: 6, kind: input, shape index: {}]
  %s7 = inlined_call_operand.vmem [shape: bf16[128,128], index: 7, kind: input, shape index: {}]
  %s8 = inlined_call_operand.vmem [shape: f32[1,128], index: 8, kind: input, shape index: {}]
  %s9 = inlined_call_operand.hbm [shape: f32[2,10], index: 9, kind: output, shape index: {}]
  %s10 = sld [smem:[#allocation0]]
  $region46: #{cnn_forward.1} parent=0
    _
  %s12 = ssub.s32 1, %s10
  %s13 = scalar_select 0, %s12, %s10
  $region1: #{cnn_forward.1} parent=0
    #allocation7 [shape = 'u8[1024]{0}', space=vmem, size = 0x400, scoped, tag = 'output window, operand 0, single buffered']
    #allocation8 [shape = 's32[1]{0}', space=sflag, size = 0x4, scoped, tag = 'scoped memory for cnn_forward.1']
    %14 = vsyncpa [#allocation8], 0
    // Predicated region
    $region2: #{cnn_forward.1} parent=1 // pred_check
      _
    $region3: #{cnn_forward.1} parent=1 // pred_check_branch
      %16 = sbr.rel (0) target = $region5
    $region4: #{cnn_forward.1} parent=1 // pred_region
      _
    $region5: #{cnn_forward.1} parent=1 // pred_fallthru
      _
    // Predicated region
    $region6: #{cnn_forward.1} parent=1 // pred_check
      _
    $region7: #{cnn_forward.1} parent=1 // pred_check_branch
      %18 = sbr.rel (0) target = $region9
    $region8: #{cnn_forward.1} parent=1 // pred_region
      _
    $region9: #{cnn_forward.1} parent=1 // pred_fallthru
      _
    // Predicated region
    $region10: #{cnn_forward.1} parent=1 // pred_check
      _
    $region11: #{cnn_forward.1} parent=1 // pred_check_branch
      %20 = sbr.rel (0) target = $region13
    $region12: #{cnn_forward.1} parent=1 // pred_region
      _
    $region13: #{cnn_forward.1} parent=1 // pred_fallthru
      _
    // Predicated region
    $region14: #{cnn_forward.1} parent=1 // pred_check
      _
    $region15: #{cnn_forward.1} parent=1 // pred_check_branch
      %22 = sbr.rel (0) target = $region17
    $region16: #{cnn_forward.1} parent=1 // pred_region
      _
    $region17: #{cnn_forward.1} parent=1 // pred_fallthru
      _
    // Predicated region
    $region18: #{cnn_forward.1} parent=1 // pred_check
      _
    $region19: #{cnn_forward.1} parent=1 // pred_check_branch
      %24 = sbr.rel (0) target = $region21
    $region20: #{cnn_forward.1} parent=1 // pred_region
      _
    $region21: #{cnn_forward.1} parent=1 // pred_fallthru
      _
    // Predicated region
    $region22: #{cnn_forward.1} parent=1 // pred_check
      _
    $region23: #{cnn_forward.1} parent=1 // pred_check_branch
      %26 = sbr.rel (0) target = $region25
    $region24: #{cnn_forward.1} parent=1 // pred_region
      _
    $region25: #{cnn_forward.1} parent=1 // pred_fallthru
      _
    // Predicated region
    $region26: #{cnn_forward.1} parent=1 // pred_check
      _
    $region27: #{cnn_forward.1} parent=1 // pred_check_branch
      %28 = sbr.rel (0) target = $region29
    $region28: #{cnn_forward.1} parent=1 // pred_region
      _
    $region29: #{cnn_forward.1} parent=1 // pred_fallthru
      _
    // Predicated region
    $region30: #{cnn_forward.1} parent=1 // pred_check
      _
    $region31: #{cnn_forward.1} parent=1 // pred_check_branch
      %30 = sbr.rel (0) target = $region33
    $region32: #{cnn_forward.1} parent=1 // pred_region
      _
    $region33: #{cnn_forward.1} parent=1 // pred_fallthru
      _
    // Predicated region
    $region34: #{cnn_forward.1} parent=1 // pred_check
      _
    $region35: #{cnn_forward.1} parent=1 // pred_check_branch
      %32 = sbr.rel (0) target = $region37
    $region36: #{cnn_forward.1} parent=1 // pred_region
      _
    $region37: #{cnn_forward.1} parent=1 // pred_fallthru
      _
    %v34 = vld [vmem:[%s0] sm:$0xff]
    %v35 = vld [vmem:[%s0 + $0x8] sm:$0xff]
    %v36 = vld [vmem:[%s0 + $0x10] sm:$0xff]
    %v37 = vld [vmem:[%s0 + $0x18] sm:$0xff]
    %v38 = vld [vmem:[%s0 + $0x20] sm:$0xff]
    %v39 = vld [vmem:[%s0 + $0x28] sm:$0xff]
    %v40 = vld [vmem:[%s0 + $0x30] sm:$0xff]
    %v41 = vld [vmem:[%s0 + $0x38] sm:$0xff]
    %v42 = vld [vmem:[%s0 + $0x40] sm:$0xff]
    %v43 = vld [vmem:[%s0 + $0x48] sm:$0xff]
    %v44 = vld [vmem:[%s0 + $0x50] sm:$0xff]
    %v45 = vld [vmem:[%s0 + $0x58] sm:$0xff]
    %v46 = vld [vmem:[%s0 + $0x60] sm:$0xff]
    %v47 = vld [vmem:[%s0 + $0x68] sm:$0xff]
    %v48 = vld [vmem:[%s0 + $0x70] sm:$0xff]
    %v49 = vld [vmem:[%s0 + $0x78] sm:$0xff]
    %v50 = vld [vmem:[%s0 + $0x80] sm:$0xff]
    %v51 = vld [vmem:[%s0 + $0x88] sm:$0xff]
    %v52 = vld [vmem:[%s0 + $0x90] sm:$0xff]
    %v53 = vld [vmem:[%s0 + $0x98] sm:$0xff]
    %v54 = vld [vmem:[%s0 + $0xa0] sm:$0xff]
    %v55 = vld [vmem:[%s0 + $0xa8] sm:$0xff]
    %v56 = vld [vmem:[%s0 + $0xb0] sm:$0xff]
    %v57 = vld [vmem:[%s0 + $0xb8] sm:$0xff]
    %v58 = vld [vmem:[%s0 + $0xc0] sm:$0xff]
    %v59 = vld [vmem:[%s0 + $0xc8] sm:$0xff]
    %v60 = vld [vmem:[%s0 + $0xd0] sm:$0xff]
    %v61 = vld [vmem:[%s0 + $0xd8] sm:$0xff]
    %v62 = vld [vmem:[%s0 + $0xe0] sm:$0xff]
    %v63 = vld [vmem:[%s0 + $0xe8] sm:$0xff]
    %v64 = vld [vmem:[%s0 + $0xf0] sm:$0xff]
    %v65 = vld [vmem:[%s0 + $0xf8] sm:$0xff]
    %v66 = vld [vmem:[%s0 + $0x100] sm:$0xff]
    %v67 = vld [vmem:[%s0 + $0x108] sm:$0xff]
    %v68 = vld [vmem:[%s0 + $0x110] sm:$0xff]
    %v69 = vld [vmem:[%s0 + $0x118] sm:$0xff]
    %v70 = vld [vmem:[%s0 + $0x120] sm:$0xff]
    %v71 = vld [vmem:[%s0 + $0x128] sm:$0xff]
    %v72 = vld [vmem:[%s0 + $0x130] sm:$0xff]
    %v73 = vld [vmem:[%s0 + $0x138] sm:$0xff]
    %v74 = vld [vmem:[%s0 + $0x140] sm:$0xff]
    %v75 = vld [vmem:[%s0 + $0x148] sm:$0xff]
    %v76 = vld [vmem:[%s0 + $0x150] sm:$0xff]
    %v77 = vld [vmem:[%s0 + $0x158] sm:$0xff]
    %v78 = vld [vmem:[%s0 + $0x160] sm:$0xff]
    %v79 = vld [vmem:[%s0 + $0x168] sm:$0xff]
    %v80 = vld [vmem:[%s0 + $0x170] sm:$0xff]
    %v81 = vld [vmem:[%s0 + $0x178] sm:$0xff]
    %v82 = vld [vmem:[%s0 + $0x180] sm:$0xff]
    %v83 = vld [vmem:[%s0 + $0x188] sm:$0xff]
    %v84 = vld [vmem:[%s0 + $0x190] sm:$0xff]
    %v85 = vld [vmem:[%s0 + $0x198] sm:$0xff]
    %v86 = vld [vmem:[%s0 + $0x1a0] sm:$0xff]
    %v87 = vld [vmem:[%s0 + $0x1a8] sm:$0xff]
    %v88 = vld [vmem:[%s0 + $0x1b0] sm:$0xff]
    %v89 = vld [vmem:[%s0 + $0x1b8] sm:$0xff]
    %v90 = vld [vmem:[%s0 + $0x1c0] sm:$0xff]
    %v91 = vld [vmem:[%s0 + $0x1c8] sm:$0xff]
    %v92 = vld [vmem:[%s0 + $0x1d0] sm:$0xff]
    %v93 = vld [vmem:[%s0 + $0x1d8] sm:$0xff]
    %v94 = vld [vmem:[%s0 + $0x1e0] sm:$0xff]
    %v95 = vld [vmem:[%s0 + $0x1e8] sm:$0xff]
    %v96 = vld [vmem:[%s0 + $0x1f0] sm:$0xff]
    %v97 = vld [vmem:[%s0 + $0x1f8] sm:$0xff]
    %vm98 = vcmask 31744
    %99 = vst.msk [vmem:[#allocation2] sm:$0xff] %vm98, 0.0
    %100 = vst.msk [vmem:[#allocation2 + $0x8] sm:$0xff] %vm98, 0.0
    %vm101 = vcmask 25600
    %102 = vst.msk [vmem:[#allocation2 + $0x10] sm:$0x3] %vm101, 0.0
    %103 = vst.msk [vmem:[#allocation2 + $0x18] sm:$0xff] %vm98, 0.0
    %104 = vst.msk [vmem:[#allocation2 + $0x20] sm:$0xff] %vm98, 0.0
    %105 = vst.msk [vmem:[#allocation2 + $0x28] sm:$0x3] %vm101, 0.0
    %106 = vst.msk [vmem:[#allocation2 + $0x30] sm:$0xff] %vm98, 0.0
    %107 = vst.msk [vmem:[#allocation2 + $0x38] sm:$0xff] %vm98, 0.0
    %108 = vst.msk [vmem:[#allocation2 + $0x40] sm:$0x3] %vm101, 0.0
    %109 = vst.msk [vmem:[#allocation2 + $0x48] sm:$0xff] %vm98, 0.0
    %110 = vst.msk [vmem:[#allocation2 + $0x50] sm:$0xff] %vm98, 0.0
    %111 = vst.msk [vmem:[#allocation2 + $0x58] sm:$0x3] %vm101, 0.0
    %112 = vst.msk [vmem:[#allocation2 + $0x60] sm:$0xff] %vm98, 0.0
    %113 = vst.msk [vmem:[#allocation2 + $0x68] sm:$0xff] %vm98, 0.0
    %114 = vst.msk [vmem:[#allocation2 + $0x70] sm:$0x3] %vm101, 0.0
    %115 = vst.msk [vmem:[#allocation2 + $0x78] sm:$0xff] %vm98, 0.0
    %116 = vst.msk [vmem:[#allocation2 + $0x80] sm:$0xff] %vm98, 0.0
    %117 = vst.msk [vmem:[#allocation2 + $0x88] sm:$0x3] %vm101, 0.0
    %118 = vst.msk [vmem:[#allocation2 + $0x90] sm:$0xff] %vm98, 0.0
    %119 = vst.msk [vmem:[#allocation2 + $0x98] sm:$0xff] %vm98, 0.0
    %120 = vst.msk [vmem:[#allocation2 + $0xa0] sm:$0x3] %vm101, 0.0
    %121 = vst.msk [vmem:[#allocation2 + $0xa8] sm:$0xff] %vm98, 0.0
    %122 = vst.msk [vmem:[#allocation2 + $0xb0] sm:$0xff] %vm98, 0.0
    %123 = vst.msk [vmem:[#allocation2 + $0xb8] sm:$0x3] %vm101, 0.0
    %124 = vst.msk [vmem:[#allocation2 + $0xc0] sm:$0xff] %vm98, 0.0
    %125 = vst.msk [vmem:[#allocation2 + $0xc8] sm:$0xff] %vm98, 0.0
    %126 = vst.msk [vmem:[#allocation2 + $0xd0] sm:$0x3] %vm101, 0.0
    %127 = vst.msk [vmem:[#allocation2 + $0xd8] sm:$0xff] %vm98, 0.0
    %128 = vst.msk [vmem:[#allocation2 + $0xe0] sm:$0xff] %vm98, 0.0
    %129 = vst.msk [vmem:[#allocation2 + $0xe8] sm:$0x3] %vm101, 0.0
    %130 = vst.msk [vmem:[#allocation2 + $0xf0] sm:$0xff] %vm98, 0.0
    %131 = vst.msk [vmem:[#allocation2 + $0xf8] sm:$0xff] %vm98, 0.0
    %132 = vst.msk [vmem:[#allocation2 + $0x100] sm:$0x3] %vm101, 0.0
    %133 = vst.msk [vmem:[#allocation2 + $0x108] sm:$0xff] %vm98, 0.0
    %134 = vst.msk [vmem:[#allocation2 + $0x110] sm:$0xff] %vm98, 0.0
    %135 = vst.msk [vmem:[#allocation2 + $0x118] sm:$0x3] %vm101, 0.0
    %136 = vst.msk [vmem:[#allocation2 + $0x120] sm:$0xff] %vm98, 0.0
    %137 = vst.msk [vmem:[#allocation2 + $0x128] sm:$0xff] %vm98, 0.0
    %138 = vst.msk [vmem:[#allocation2 + $0x130] sm:$0x3] %vm101, 0.0
    %139 = vst.msk [vmem:[#allocation2 + $0x138] sm:$0xff] %vm98, 0.0
    %140 = vst.msk [vmem:[#allocation2 + $0x140] sm:$0xff] %vm98, 0.0
    %141 = vst.msk [vmem:[#allocation2 + $0x148] sm:$0x3] %vm101, 0.0
    %142 = vst.msk [vmem:[#allocation2 + $0x150] sm:$0xff] %vm98, 0.0
    %143 = vst.msk [vmem:[#allocation2 + $0x158] sm:$0xff] %vm98, 0.0
    %144 = vst.msk [vmem:[#allocation2 + $0x160] sm:$0x3] %vm101, 0.0
    %145 = vst.msk [vmem:[#allocation2 + $0x168] sm:$0xff] %vm98, 0.0
    %146 = vst.msk [vmem:[#allocation2 + $0x170] sm:$0xff] %vm98, 0.0
    %147 = vst.msk [vmem:[#allocation2 + $0x178] sm:$0x3] %vm101, 0.0
    %148 = vst.msk [vmem:[#allocation2 + $0x180] sm:$0xff] %vm98, 0.0
    %149 = vst.msk [vmem:[#allocation2 + $0x188] sm:$0xff] %vm98, 0.0
    %150 = vst.msk [vmem:[#allocation2 + $0x190] sm:$0x3] %vm101, 0.0
    %151 = vst.msk [vmem:[#allocation2 + $0x198] sm:$0xff] %vm98, 0.0
    %152 = vst.msk [vmem:[#allocation2 + $0x1a0] sm:$0xff] %vm98, 0.0
    %153 = vst.msk [vmem:[#allocation2 + $0x1a8] sm:$0x3] %vm101, 0.0
    %154 = vst.msk [vmem:[#allocation2 + $0x1b0] sm:$0xff] %vm98, 0.0
    %155 = vst.msk [vmem:[#allocation2 + $0x1b8] sm:$0xff] %vm98, 0.0
    %156 = vst.msk [vmem:[#allocation2 + $0x1c0] sm:$0x3] %vm101, 0.0
    %157 = vst.msk [vmem:[#allocation2 + $0x1c8] sm:$0xff] %vm98, 0.0
    %158 = vst.msk [vmem:[#allocation2 + $0x1d0] sm:$0xff] %vm98, 0.0
    %159 = vst.msk [vmem:[#allocation2 + $0x1d8] sm:$0x3] %vm101, 0.0
    %160 = vst.msk [vmem:[#allocation2 + $0x1e0] sm:$0xff] %vm98, 0.0
    %161 = vst.msk [vmem:[#allocation2 + $0x1e8] sm:$0xff] %vm98, 0.0
    %162 = vst.msk [vmem:[#allocation2 + $0x1f0] sm:$0x3] %vm101, 0.0
    %163 = vst.msk [vmem:[#allocation2 + $0x1f8] sm:$0xff] %vm98, 0.0
    %164 = vst.msk [vmem:[#allocation2 + $0x200] sm:$0xff] %vm98, 0.0
    %165 = vst.msk [vmem:[#allocation2 + $0x208] sm:$0x3] %vm101, 0.0
    %166 = vst.msk [vmem:[#allocation2 + $0x210] sm:$0xff] %vm98, 0.0
    %167 = vst.msk [vmem:[#allocation2 + $0x218] sm:$0xff] %vm98, 0.0
    %168 = vst.msk [vmem:[#allocation2 + $0x220] sm:$0x3] %vm101, 0.0
    %169 = vst.msk [vmem:[#allocation2 + $0x228] sm:$0xff] %vm98, 0.0
    %170 = vst.msk [vmem:[#allocation2 + $0x230] sm:$0xff] %vm98, 0.0
    %171 = vst.msk [vmem:[#allocation2 + $0x238] sm:$0x3] %vm101, 0.0
    %172 = vst.msk [vmem:[#allocation2 + $0x240] sm:$0xff] %vm98, 0.0
    %173 = vst.msk [vmem:[#allocation2 + $0x248] sm:$0xff] %vm98, 0.0
    %174 = vst.msk [vmem:[#allocation2 + $0x250] sm:$0x3] %vm101, 0.0
    %175 = vst.msk [vmem:[#allocation2 + $0x258] sm:$0xff] %vm98, 0.0
    %176 = vst.msk [vmem:[#allocation2 + $0x260] sm:$0xff] %vm98, 0.0
    %177 = vst.msk [vmem:[#allocation2 + $0x268] sm:$0x3] %vm101, 0.0
    %178 = vst.msk [vmem:[#allocation2 + $0x270] sm:$0xff] %vm98, 0.0
    %179 = vst.msk [vmem:[#allocation2 + $0x278] sm:$0xff] %vm98, 0.0
    %180 = vst.msk [vmem:[#allocation2 + $0x280] sm:$0x3] %vm101, 0.0
    %181 = vst.msk [vmem:[#allocation2 + $0x288] sm:$0xff] %vm98, 0.0
    %182 = vst.msk [vmem:[#allocation2 + $0x290] sm:$0xff] %vm98, 0.0
    %183 = vst.msk [vmem:[#allocation2 + $0x298] sm:$0x3] %vm101, 0.0
    %184 = vst.msk [vmem:[#allocation2 + $0x2a0] sm:$0xff] %vm98, 0.0
    %185 = vst.msk [vmem:[#allocation2 + $0x2a8] sm:$0xff] %vm98, 0.0
    %186 = vst.msk [vmem:[#allocation2 + $0x2b0] sm:$0x3] %vm101, 0.0
    %187 = vst.msk [vmem:[#allocation2 + $0x2b8] sm:$0xff] %vm98, 0.0
    %188 = vst.msk [vmem:[#allocation2 + $0x2c0] sm:$0xff] %vm98, 0.0
    %189 = vst.msk [vmem:[#allocation2 + $0x2c8] sm:$0x3] %vm101, 0.0
    %190 = vst.msk [vmem:[#allocation2 + $0x2d0] sm:$0xff] %vm98, 0.0
    %191 = vst.msk [vmem:[#allocation2 + $0x2d8] sm:$0xff] %vm98, 0.0
    %192 = vst.msk [vmem:[#allocation2 + $0x2e0] sm:$0x3] %vm101, 0.0
    %193 = vst.msk [vmem:[#allocation2 + $0x2e8] sm:$0xff] %vm98, 0.0
    %194 = vst.msk [vmem:[#allocation2 + $0x2f0] sm:$0xff] %vm98, 0.0
    %195 = vst.msk [vmem:[#allocation2 + $0x2f8] sm:$0x3] %vm101, 0.0
    %196 = vst.msk [vmem:[#allocation2 + $0x300] sm:$0xff] %vm98, 0.0
    %197 = vst.msk [vmem:[#allocation2 + $0x308] sm:$0xff] %vm98, 0.0
    %198 = vst.msk [vmem:[#allocation2 + $0x310] sm:$0x3] %vm101, 0.0
    %199 = vst.msk [vmem:[#allocation2 + $0x318] sm:$0xff] %vm98, 0.0
    %200 = vst.msk [vmem:[#allocation2 + $0x320] sm:$0xff] %vm98, 0.0
    %201 = vst.msk [vmem:[#allocation2 + $0x328] sm:$0x3] %vm101, 0.0
    %202 = vst.msk [vmem:[#allocation2 + $0x330] sm:$0xff] %vm98, 0.0
    %203 = vst.msk [vmem:[#allocation2 + $0x338] sm:$0xff] %vm98, 0.0
    %204 = vst.msk [vmem:[#allocation2 + $0x340] sm:$0x3] %vm101, 0.0
    %205 = vst.msk [vmem:[#allocation2 + $0x348] sm:$0xff] %vm98, 0.0
    %206 = vst.msk [vmem:[#allocation2 + $0x350] sm:$0xff] %vm98, 0.0
    %207 = vst.msk [vmem:[#allocation2 + $0x358] sm:$0x3] %vm101, 0.0
    %s208 = scalar_lea.vmem [#allocation2], 24
    %209 = vst.msk [vmem:[%s208 + $0x1] sm:$0xff] %vm98, %v34
    %210 = vst.msk [vmem:[%s208 + $0x9] sm:$0xff] %vm98, %v35
    %211 = vst.msk [vmem:[%s208 + $0x19] sm:$0xff] %vm98, %v36
    %212 = vst.msk [vmem:[%s208 + $0x21] sm:$0xff] %vm98, %v37
    %213 = vst.msk [vmem:[%s208 + $0x31] sm:$0xff] %vm98, %v38
    %214 = vst.msk [vmem:[%s208 + $0x39] sm:$0xff] %vm98, %v39
    %215 = vst.msk [vmem:[%s208 + $0x49] sm:$0xff] %vm98, %v40
    %216 = vst.msk [vmem:[%s208 + $0x51] sm:$0xff] %vm98, %v41
    %217 = vst.msk [vmem:[%s208 + $0x61] sm:$0xff] %vm98, %v42
    %218 = vst.msk [vmem:[%s208 + $0x69] sm:$0xff] %vm98, %v43
    %219 = vst.msk [vmem:[%s208 + $0x79] sm:$0xff] %vm98, %v44
    %220 = vst.msk [vmem:[%s208 + $0x81] sm:$0xff] %vm98, %v45
    %221 = vst.msk [vmem:[%s208 + $0x91] sm:$0xff] %vm98, %v46
    %222 = vst.msk [vmem:[%s208 + $0x99] sm:$0xff] %vm98, %v47
    %223 = vst.msk [vmem:[%s208 + $0xa9] sm:$0xff] %vm98, %v48
    %224 = vst.msk [vmem:[%s208 + $0xb1] sm:$0xff] %vm98, %v49
    %225 = vst.msk [vmem:[%s208 + $0xc1] sm:$0xff] %vm98, %v50
    %226 = vst.msk [vmem:[%s208 + $0xc9] sm:$0xff] %vm98, %v51
    %227 = vst.msk [vmem:[%s208 + $0xd9] sm:$0xff] %vm98, %v52
    %228 = vst.msk [vmem:[%s208 + $0xe1] sm:$0xff] %vm98, %v53
    %229 = vst.msk [vmem:[%s208 + $0xf1] sm:$0xff] %vm98, %v54
    %230 = vst.msk [vmem:[%s208 + $0xf9] sm:$0xff] %vm98, %v55
    %231 = vst.msk [vmem:[%s208 + $0x109] sm:$0xff] %vm98, %v56
    %232 = vst.msk [vmem:[%s208 + $0x111] sm:$0xff] %vm98, %v57
    %233 = vst.msk [vmem:[%s208 + $0x121] sm:$0xff] %vm98, %v58
    %234 = vst.msk [vmem:[%s208 + $0x129] sm:$0xff] %vm98, %v59
    %235 = vst.msk [vmem:[%s208 + $0x139] sm:$0xff] %vm98, %v60
    %236 = vst.msk [vmem:[%s208 + $0x141] sm:$0xff] %vm98, %v61
    %237 = vst.msk [vmem:[%s208 + $0x151] sm:$0xff] %vm98, %v62
    %238 = vst.msk [vmem:[%s208 + $0x159] sm:$0xff] %vm98, %v63
    %239 = vst.msk [vmem:[%s208 + $0x169] sm:$0xff] %vm98, %v64
    %240 = vst.msk [vmem:[%s208 + $0x171] sm:$0xff] %vm98, %v65
    %241 = vst.msk [vmem:[%s208 + $0x1b1] sm:$0xff] %vm98, %v66
    %242 = vst.msk [vmem:[%s208 + $0x1b9] sm:$0xff] %vm98, %v67
    %243 = vst.msk [vmem:[%s208 + $0x1c9] sm:$0xff] %vm98, %v68
    %244 = vst.msk [vmem:[%s208 + $0x1d1] sm:$0xff] %vm98, %v69
    %245 = vst.msk [vmem:[%s208 + $0x1e1] sm:$0xff] %vm98, %v70
    %246 = vst.msk [vmem:[%s208 + $0x1e9] sm:$0xff] %vm98, %v71
    %247 = vst.msk [vmem:[%s208 + $0x1f9] sm:$0xff] %vm98, %v72
    %248 = vst.msk [vmem:[%s208 + $0x201] sm:$0xff] %vm98, %v73
    %249 = vst.msk [vmem:[%s208 + $0x211] sm:$0xff] %vm98, %v74
    %250 = vst.msk [vmem:[%s208 + $0x219] sm:$0xff] %vm98, %v75
    %251 = vst.msk [vmem:[%s208 + $0x229] sm:$0xff] %vm98, %v76
    %252 = vst.msk [vmem:[%s208 + $0x231] sm:$0xff] %vm98, %v77
    %253 = vst.msk [vmem:[%s208 + $0x241] sm:$0xff] %vm98, %v78
    %254 = vst.msk [vmem:[%s208 + $0x249] sm:$0xff] %vm98, %v79
    %255 = vst.msk [vmem:[%s208 + $0x259] sm:$0xff] %vm98, %v80
    %256 = vst.msk [vmem:[%s208 + $0x261] sm:$0xff] %vm98, %v81
    %257 = vst.msk [vmem:[%s208 + $0x271] sm:$0xff] %vm98, %v82
    %258 = vst.msk [vmem:[%s208 + $0x279] sm:$0xff] %vm98, %v83
    %259 = vst.msk [vmem:[%s208 + $0x289] sm:$0xff] %vm98, %v84
    %260 = vst.msk [vmem:[%s208 + $0x291] sm:$0xff] %vm98, %v85
    %261 = vst.msk [vmem:[%s208 + $0x2a1] sm:$0xff] %vm98, %v86
    %262 = vst.msk [vmem:[%s208 + $0x2a9] sm:$0xff] %vm98, %v87
    %263 = vst.msk [vmem:[%s208 + $0x2b9] sm:$0xff] %vm98, %v88
    %264 = vst.msk [vmem:[%s208 + $0x2c1] sm:$0xff] %vm98, %v89
    %265 = vst.msk [vmem:[%s208 + $0x2d1] sm:$0xff] %vm98, %v90
    %266 = vst.msk [vmem:[%s208 + $0x2d9] sm:$0xff] %vm98, %v91
    %267 = vst.msk [vmem:[%s208 + $0x2e9] sm:$0xff] %vm98, %v92
    %268 = vst.msk [vmem:[%s208 + $0x2f1] sm:$0xff] %vm98, %v93
    %269 = vst.msk [vmem:[%s208 + $0x301] sm:$0xff] %vm98, %v94
    %270 = vst.msk [vmem:[%s208 + $0x309] sm:$0xff] %vm98, %v95
    %271 = vst.msk [vmem:[%s208 + $0x319] sm:$0xff] %vm98, %v96
    %272 = vst.msk [vmem:[%s208 + $0x321] sm:$0xff] %vm98, %v97
    %v273 = vld [vmem:[#allocation2] sm:$0xff]
    %v274 = vld [vmem:[#allocation2 + $0x8] sm:$0xff]
    %v275 = vld [vmem:[#allocation2 + $0x18] sm:$0xff]
    %v276 = vld [vmem:[#allocation2 + $0x20] sm:$0xff]
    %v277 = vld [vmem:[#allocation2 + $0x30] sm:$0xff]
    %v278 = vld [vmem:[#allocation2 + $0x38] sm:$0xff]
    %v279 = vld [vmem:[#allocation2 + $0x48] sm:$0xff]
    %v280 = vld [vmem:[#allocation2 + $0x50] sm:$0xff]
    %v281 = vld [vmem:[#allocation2 + $0x60] sm:$0xff]
    %v282 = vld [vmem:[#allocation2 + $0x68] sm:$0xff]
    %v283 = vld [vmem:[#allocation2 + $0x78] sm:$0xff]
    %v284 = vld [vmem:[#allocation2 + $0x80] sm:$0xff]
    %v285 = vld [vmem:[#allocation2 + $0x90] sm:$0xff]
    %v286 = vld [vmem:[#allocation2 + $0x98] sm:$0xff]
    %v287 = vld [vmem:[#allocation2 + $0xa8] sm:$0xff]
    %v288 = vld [vmem:[#allocation2 + $0xb0] sm:$0xff]
    %v289 = vld [vmem:[#allocation2 + $0xc0] sm:$0xff]
    %v290 = vld [vmem:[#allocation2 + $0xc8] sm:$0xff]
    %v291 = vld [vmem:[#allocation2 + $0xd8] sm:$0xff]
    %v292 = vld [vmem:[#allocation2 + $0xe0] sm:$0xff]
    %v293 = vld [vmem:[#allocation2 + $0xf0] sm:$0xff]
    %v294 = vld [vmem:[#allocation2 + $0xf8] sm:$0xff]
    %v295 = vld [vmem:[#allocation2 + $0x108] sm:$0xff]
    %v296 = vld [vmem:[#allocation2 + $0x110] sm:$0xff]
    %v297 = vld [vmem:[#allocation2 + $0x120] sm:$0xff]
    %v298 = vld [vmem:[#allocation2 + $0x128] sm:$0xff]
    %v299 = vld [vmem:[#allocation2 + $0x138] sm:$0xff]
    %v300 = vld [vmem:[#allocation2 + $0x140] sm:$0xff]
    %v301 = vld [vmem:[#allocation2 + $0x150] sm:$0xff]
    %v302 = vld [vmem:[#allocation2 + $0x158] sm:$0xff]
    %v303 = vld [vmem:[#allocation2 + $0x168] sm:$0xff]
    %v304 = vld [vmem:[#allocation2 + $0x170] sm:$0xff]
    %v305 = vld [vmem:[#allocation2 + $0x1b0] sm:$0xff]
    %v306 = vld [vmem:[#allocation2 + $0x1b8] sm:$0xff]
    %v307 = vld [vmem:[#allocation2 + $0x1c8] sm:$0xff]
    %v308 = vld [vmem:[#allocation2 + $0x1d0] sm:$0xff]
    %v309 = vld [vmem:[#allocation2 + $0x1e0] sm:$0xff]
    %v310 = vld [vmem:[#allocation2 + $0x1e8] sm:$0xff]
    %v311 = vld [vmem:[#allocation2 + $0x1f8] sm:$0xff]
    %v312 = vld [vmem:[#allocation2 + $0x200] sm:$0xff]
    %v313 = vld [vmem:[#allocation2 + $0x210] sm:$0xff]
    %v314 = vld [vmem:[#allocation2 + $0x218] sm:$0xff]
    %v315 = vld [vmem:[#allocation2 + $0x228] sm:$0xff]
    %v316 = vld [vmem:[#allocation2 + $0x230] sm:$0xff]
    %v317 = vld [vmem:[#allocation2 + $0x240] sm:$0xff]
    %v318 = vld [vmem:[#allocation2 + $0x248] sm:$0xff]
    %v319 = vld [vmem:[#allocation2 + $0x258] sm:$0xff]
    %v320 = vld [vmem:[#allocation2 + $0x260] sm:$0xff]
    %v321 = vld [vmem:[#allocation2 + $0x270] sm:$0xff]
    %v322 = vld [vmem:[#allocation2 + $0x278] sm:$0xff]
    %v323 = vld [vmem:[#allocation2 + $0x288] sm:$0xff]
    %v324 = vld [vmem:[#allocation2 + $0x290] sm:$0xff]
    %v325 = vld [vmem:[#allocation2 + $0x2a0] sm:$0xff]
    %v326 = vld [vmem:[#allocation2 + $0x2a8] sm:$0xff]
    %v327 = vld [vmem:[#allocation2 + $0x2b8] sm:$0xff]
    %v328 = vld [vmem:[#allocation2 + $0x2c0] sm:$0xff]
    %v329 = vld [vmem:[#allocation2 + $0x2d0] sm:$0xff]
    %v330 = vld [vmem:[#allocation2 + $0x2d8] sm:$0xff]
    %v331 = vld [vmem:[#allocation2 + $0x2e8] sm:$0xff]
    %v332 = vld [vmem:[#allocation2 + $0x2f0] sm:$0xff]
    %v333 = vld [vmem:[#allocation2 + $0x300] sm:$0xff]
    %v334 = vld [vmem:[#allocation2 + $0x308] sm:$0xff]
    %v335 = vld [vmem:[#allocation2 + $0x318] sm:$0xff]
    %v336 = vld [vmem:[#allocation2 + $0x320] sm:$0xff]
    %337 = vst.msk [vmem:[#allocation3] sm:$0xff] %vm98, %v273
    %338 = vst.msk [vmem:[#allocation3 + $0x8] sm:$0xff] %vm98, %v274
    %339 = vst.msk [vmem:[#allocation3 + $0x10] sm:$0xff] %vm98, %v275
    %340 = vst.msk [vmem:[#allocation3 + $0x18] sm:$0xff] %vm98, %v276
    %341 = vst.msk [vmem:[#allocation3 + $0x20] sm:$0xff] %vm98, %v277
    %342 = vst.msk [vmem:[#allocation3 + $0x28] sm:$0xff] %vm98, %v278
    %343 = vst.msk [vmem:[#allocation3 + $0x30] sm:$0xff] %vm98, %v279
    %344 = vst.msk [vmem:[#allocation3 + $0x38] sm:$0xff] %vm98, %v280
    %345 = vst.msk [vmem:[#allocation3 + $0x40] sm:$0xff] %vm98, %v281
    %346 = vst.msk [vmem:[#allocation3 + $0x48] sm:$0xff] %vm98, %v282
    %347 = vst.msk [vmem:[#allocation3 + $0x50] sm:$0xff] %vm98, %v283
    %348 = vst.msk [vmem:[#allocation3 + $0x58] sm:$0xff] %vm98, %v284
    %349 = vst.msk [vmem:[#allocation3 + $0x60] sm:$0xff] %vm98, %v285
    %350 = vst.msk [vmem:[#allocation3 + $0x68] sm:$0xff] %vm98, %v286
    %351 = vst.msk [vmem:[#allocation3 + $0x70] sm:$0xff] %vm98, %v287
    %352 = vst.msk [vmem:[#allocation3 + $0x78] sm:$0xff] %vm98, %v288
    %353 = vst.msk [vmem:[#allocation3 + $0x80] sm:$0xff] %vm98, %v289
    %354 = vst.msk [vmem:[#allocation3 + $0x88] sm:$0xff] %vm98, %v290
    %355 = vst.msk [vmem:[#allocation3 + $0x90] sm:$0xff] %vm98, %v291
    %356 = vst.msk [vmem:[#allocation3 + $0x98] sm:$0xff] %vm98, %v292
    %357 = vst.msk [vmem:[#allocation3 + $0xa0] sm:$0xff] %vm98, %v293
    %358 = vst.msk [vmem:[#allocation3 + $0xa8] sm:$0xff] %vm98, %v294
    %359 = vst.msk [vmem:[#allocation3 + $0xb0] sm:$0xff] %vm98, %v295
    %360 = vst.msk [vmem:[#allocation3 + $0xb8] sm:$0xff] %vm98, %v296
    %361 = vst.msk [vmem:[#allocation3 + $0xc0] sm:$0xff] %vm98, %v297
    %362 = vst.msk [vmem:[#allocation3 + $0xc8] sm:$0xff] %vm98, %v298
    %363 = vst.msk [vmem:[#allocation3 + $0xd0] sm:$0xff] %vm98, %v299
    %364 = vst.msk [vmem:[#allocation3 + $0xd8] sm:$0xff] %vm98, %v300
    %365 = vst.msk [vmem:[#allocation3 + $0xe0] sm:$0xff] %vm98, %v301
    %366 = vst.msk [vmem:[#allocation3 + $0xe8] sm:$0xff] %vm98, %v302
    %367 = vst.msk [vmem:[#allocation3 + $0xf0] sm:$0xff] %vm98, %v303
    %368 = vst.msk [vmem:[#allocation3 + $0xf8] sm:$0xff] %vm98, %v304
    %369 = vst.msk [vmem:[#allocation3 + $0x100] sm:$0xff] %vm98, %v305
    %370 = vst.msk [vmem:[#allocation3 + $0x108] sm:$0xff] %vm98, %v306
    %371 = vst.msk [vmem:[#allocation3 + $0x110] sm:$0xff] %vm98, %v307
    %372 = vst.msk [vmem:[#allocation3 + $0x118] sm:$0xff] %vm98, %v308
    %373 = vst.msk [vmem:[#allocation3 + $0x120] sm:$0xff] %vm98, %v309
    %374 = vst.msk [vmem:[#allocation3 + $0x128] sm:$0xff] %vm98, %v310
    %375 = vst.msk [vmem:[#allocation3 + $0x130] sm:$0xff] %vm98, %v311
    %376 = vst.msk [vmem:[#allocation3 + $0x138] sm:$0xff] %vm98, %v312
    %377 = vst.msk [vmem:[#allocation3 + $0x140] sm:$0xff] %vm98, %v313
    %378 = vst.msk [vmem:[#allocation3 + $0x148] sm:$0xff] %vm98, %v314
    %379 = vst.msk [vmem:[#allocation3 + $0x150] sm:$0xff] %vm98, %v315
    %380 = vst.msk [vmem:[#allocation3 + $0x158] sm:$0xff] %vm98, %v316
    %381 = vst.msk [vmem:[#allocation3 + $0x160] sm:$0xff] %vm98, %v317
    %382 = vst.msk [vmem:[#allocation3 + $0x168] sm:$0xff] %vm98, %v318
    %383 = vst.msk [vmem:[#allocation3 + $0x170] sm:$0xff] %vm98, %v319
    %384 = vst.msk [vmem:[#allocation3 + $0x178] sm:$0xff] %vm98, %v320
    %385 = vst.msk [vmem:[#allocation3 + $0x180] sm:$0xff] %vm98, %v321
    %386 = vst.msk [vmem:[#allocation3 + $0x188] sm:$0xff] %vm98, %v322
    %387 = vst.msk [vmem:[#allocation3 + $0x190] sm:$0xff] %vm98, %v323
    %388 = vst.msk [vmem:[#allocation3 + $0x198] sm:$0xff] %vm98, %v324
    %389 = vst.msk [vmem:[#allocation3 + $0x1a0] sm:$0xff] %vm98, %v325
    %390 = vst.msk [vmem:[#allocation3 + $0x1a8] sm:$0xff] %vm98, %v326
    %391 = vst.msk [vmem:[#allocation3 + $0x1b0] sm:$0xff] %vm98, %v327
    %392 = vst.msk [vmem:[#allocation3 + $0x1b8] sm:$0xff] %vm98, %v328
    %393 = vst.msk [vmem:[#allocation3 + $0x1c0] sm:$0xff] %vm98, %v329
    %394 = vst.msk [vmem:[#allocation3 + $0x1c8] sm:$0xff] %vm98, %v330
    %395 = vst.msk [vmem:[#allocation3 + $0x1d0] sm:$0xff] %vm98, %v331
    %396 = vst.msk [vmem:[#allocation3 + $0x1d8] sm:$0xff] %vm98, %v332
    %397 = vst.msk [vmem:[#allocation3 + $0x1e0] sm:$0xff] %vm98, %v333
    %398 = vst.msk [vmem:[#allocation3 + $0x1e8] sm:$0xff] %vm98, %v334
    %399 = vst.msk [vmem:[#allocation3 + $0x1f0] sm:$0xff] %vm98, %v335
    %400 = vst.msk [vmem:[#allocation3 + $0x1f8] sm:$0xff] %vm98, %v336
    %v401 = vld [vmem:[#allocation2 + $0x1] sm:$0xff]
    %v402 = vld [vmem:[#allocation2 + $0x9] sm:$0xff]
    %v403 = vld [vmem:[#allocation2 + $0x19] sm:$0xff]
    %v404 = vld [vmem:[#allocation2 + $0x21] sm:$0xff]
    %v405 = vld [vmem:[#allocation2 + $0x31] sm:$0xff]
    %v406 = vld [vmem:[#allocation2 + $0x39] sm:$0xff]
    %v407 = vld [vmem:[#allocation2 + $0x49] sm:$0xff]
    %v408 = vld [vmem:[#allocation2 + $0x51] sm:$0xff]
    %v409 = vld [vmem:[#allocation2 + $0x61] sm:$0xff]
    %v410 = vld [vmem:[#allocation2 + $0x69] sm:$0xff]
    %v411 = vld [vmem:[#allocation2 + $0x79] sm:$0xff]
    %v412 = vld [vmem:[#allocation2 + $0x81] sm:$0xff]
    %v413 = vld [vmem:[#allocation2 + $0x91] sm:$0xff]
    %v414 = vld [vmem:[#allocation2 + $0x99] sm:$0xff]
    %v415 = vld [vmem:[#allocation2 + $0xa9] sm:$0xff]
    %v416 = vld [vmem:[#allocation2 + $0xb1] sm:$0xff]
    %v417 = vld [vmem:[#allocation2 + $0xc1] sm:$0xff]
    %v418 = vld [vmem:[#allocation2 + $0xc9] sm:$0xff]
    %v419 = vld [vmem:[#allocation2 + $0xd9] sm:$0xff]
    %v420 = vld [vmem:[#allocation2 + $0xe1] sm:$0xff]
    %v421 = vld [vmem:[#allocation2 + $0xf1] sm:$0xff]
    %v422 = vld [vmem:[#allocation2 + $0xf9] sm:$0xff]
    %v423 = vld [vmem:[#allocation2 + $0x109] sm:$0xff]
    %v424 = vld [vmem:[#allocation2 + $0x111] sm:$0xff]
    %v425 = vld [vmem:[#allocation2 + $0x121] sm:$0xff]
    %v426 = vld [vmem:[#allocation2 + $0x129] sm:$0xff]
    %v427 = vld [vmem:[#allocation2 + $0x139] sm:$0xff]
    %v428 = vld [vmem:[#allocation2 + $0x141] sm:$0xff]
    %v429 = vld [vmem:[#allocation2 + $0x151] sm:$0xff]
    %v430 = vld [vmem:[#allocation2 + $0x159] sm:$0xff]
    %v431 = vld [vmem:[#allocation2 + $0x169] sm:$0xff]
    %v432 = vld [vmem:[#allocation2 + $0x171] sm:$0xff]
    %v433 = vld [vmem:[#allocation2 + $0x1b1] sm:$0xff]
    %v434 = vld [vmem:[#allocation2 + $0x1b9] sm:$0xff]
    %v435 = vld [vmem:[#allocation2 + $0x1c9] sm:$0xff]
    %v436 = vld [vmem:[#allocation2 + $0x1d1] sm:$0xff]
    %v437 = vld [vmem:[#allocation2 + $0x1e1] sm:$0xff]
    %v438 = vld [vmem:[#allocation2 + $0x1e9] sm:$0xff]
    %v439 = vld [vmem:[#allocation2 + $0x1f9] sm:$0xff]
    %v440 = vld [vmem:[#allocation2 + $0x201] sm:$0xff]
    %v441 = vld [vmem:[#allocation2 + $0x211] sm:$0xff]
    %v442 = vld [vmem:[#allocation2 + $0x219] sm:$0xff]
    %v443 = vld [vmem:[#allocation2 + $0x229] sm:$0xff]
    %v444 = vld [vmem:[#allocation2 + $0x231] sm:$0xff]
    %v445 = vld [vmem:[#allocation2 + $0x241] sm:$0xff]
    %v446 = vld [vmem:[#allocation2 + $0x249] sm:$0xff]
    %v447 = vld [vmem:[#allocation2 + $0x259] sm:$0xff]
    %v448 = vld [vmem:[#allocation2 + $0x261] sm:$0xff]
    %v449 = vld [vmem:[#allocation2 + $0x271] sm:$0xff]
    %v450 = vld [vmem:[#allocation2 + $0x279] sm:$0xff]
    %v451 = vld [vmem:[#allocation2 + $0x289] sm:$0xff]
    %v452 = vld [vmem:[#allocation2 + $0x291] sm:$0xff]
    %v453 = vld [vmem:[#allocation2 + $0x2a1] sm:$0xff]
    %v454 = vld [vmem:[#allocation2 + $0x2a9] sm:$0xff]
    %v455 = vld [vmem:[#allocation2 + $0x2b9] sm:$0xff]
    %v456 = vld [vmem:[#allocation2 + $0x2c1] sm:$0xff]
    %v457 = vld [vmem:[#allocation2 + $0x2d1] sm:$0xff]
    %v458 = vld [vmem:[#allocation2 + $0x2d9] sm:$0xff]
    %v459 = vld [vmem:[#allocation2 + $0x2e9] sm:$0xff]
    %v460 = vld [vmem:[#allocation2 + $0x2f1] sm:$0xff]
    %v461 = vld [vmem:[#allocation2 + $0x301] sm:$0xff]
    %v462 = vld [vmem:[#allocation2 + $0x309] sm:$0xff]
    %v463 = vld [vmem:[#allocation2 + $0x319] sm:$0xff]
    %v464 = vld [vmem:[#allocation2 + $0x321] sm:$0xff]
    %529 = vrot.lane.b32.xlu0 %v401, 4
    %v530 = vpop.permute.xlu0 %529
    %531 = vrot.lane.b32.xlu0 %v402, 4
    %v532 = vpop.permute.xlu0 %531
    %533 = vrot.lane.b32.xlu0 %v403, 4
    %v534 = vpop.permute.xlu0 %533
    %535 = vrot.lane.b32.xlu0 %v404, 4
    %v536 = vpop.permute.xlu0 %535
    %537 = vrot.lane.b32.xlu0 %v405, 4
    %v538 = vpop.permute.xlu0 %537
    %539 = vrot.lane.b32.xlu0 %v406, 4
    %v540 = vpop.permute.xlu0 %539
    %541 = vrot.lane.b32.xlu0 %v407, 4
    %v542 = vpop.permute.xlu0 %541
    %543 = vrot.lane.b32.xlu0 %v408, 4
    %v544 = vpop.permute.xlu0 %543
    %545 = vrot.lane.b32.xlu0 %v409, 4
    %v546 = vpop.permute.xlu0 %545
    %547 = vrot.lane.b32.xlu0 %v410, 4
    %v548 = vpop.permute.xlu0 %547
    %549 = vrot.lane.b32.xlu0 %v411, 4
    %v550 = vpop.permute.xlu0 %549
    %551 = vrot.lane.b32.xlu0 %v412, 4
    %v552 = vpop.permute.xlu0 %551
    %553 = vrot.lane.b32.xlu0 %v413, 4
    %v554 = vpop.permute.xlu0 %553
    %555 = vrot.lane.b32.xlu0 %v414, 4
    %v556 = vpop.permute.xlu0 %555
    %557 = vrot.lane.b32.xlu0 %v415, 4
    %v558 = vpop.permute.xlu0 %557
    %559 = vrot.lane.b32.xlu0 %v416, 4
    %v560 = vpop.permute.xlu0 %559
    %561 = vrot.lane.b32.xlu0 %v417, 4
    %v562 = vpop.permute.xlu0 %561
    %563 = vrot.lane.b32.xlu0 %v418, 4
    %v564 = vpop.permute.xlu0 %563
    %565 = vrot.lane.b32.xlu0 %v419, 4
    %v566 = vpop.permute.xlu0 %565
    %567 = vrot.lane.b32.xlu0 %v420, 4
    %v568 = vpop.permute.xlu0 %567
    %569 = vrot.lane.b32.xlu0 %v421, 4
    %v570 = vpop.permute.xlu0 %569
    %571 = vrot.lane.b32.xlu0 %v422, 4
    %v572 = vpop.permute.xlu0 %571
    %573 = vrot.lane.b32.xlu0 %v423, 4
    %v574 = vpop.permute.xlu0 %573
    %575 = vrot.lane.b32.xlu0 %v424, 4
    %v576 = vpop.permute.xlu0 %575
    %577 = vrot.lane.b32.xlu0 %v425, 4
    %v578 = vpop.permute.xlu0 %577
    %579 = vrot.lane.b32.xlu0 %v426, 4
    %v580 = vpop.permute.xlu0 %579
    %581 = vrot.lane.b32.xlu0 %v427, 4
    %v582 = vpop.permute.xlu0 %581
    %583 = vrot.lane.b32.xlu0 %v428, 4
    %v584 = vpop.permute.xlu0 %583
    %585 = vrot.lane.b32.xlu0 %v429, 4
    %v586 = vpop.permute.xlu0 %585
    %587 = vrot.lane.b32.xlu0 %v430, 4
    %v588 = vpop.permute.xlu0 %587
    %589 = vrot.lane.b32.xlu0 %v431, 4
    %v590 = vpop.permute.xlu0 %589
    %591 = vrot.lane.b32.xlu0 %v432, 4
    %v592 = vpop.permute.xlu0 %591
    %593 = vrot.lane.b32.xlu0 %v433, 4
    %v594 = vpop.permute.xlu0 %593
    %595 = vrot.lane.b32.xlu0 %v434, 4
    %v596 = vpop.permute.xlu0 %595
    %597 = vrot.lane.b32.xlu0 %v435, 4
    %v598 = vpop.permute.xlu0 %597
    %599 = vrot.lane.b32.xlu0 %v436, 4
    %v600 = vpop.permute.xlu0 %599
    %601 = vrot.lane.b32.xlu0 %v437, 4
    %v602 = vpop.permute.xlu0 %601
    %603 = vrot.lane.b32.xlu0 %v438, 4
    %v604 = vpop.permute.xlu0 %603
    %605 = vrot.lane.b32.xlu0 %v439, 4
    %v606 = vpop.permute.xlu0 %605
    %607 = vrot.lane.b32.xlu0 %v440, 4
    %v608 = vpop.permute.xlu0 %607
    %609 = vrot.lane.b32.xlu0 %v441, 4
    %v610 = vpop.permute.xlu0 %609
    %611 = vrot.lane.b32.xlu0 %v442, 4
    %v612 = vpop.permute.xlu0 %611
    %613 = vrot.lane.b32.xlu0 %v443, 4
    %v614 = vpop.permute.xlu0 %613
    %615 = vrot.lane.b32.xlu0 %v444, 4
    %v616 = vpop.permute.xlu0 %615
    %617 = vrot.lane.b32.xlu0 %v445, 4
    %v618 = vpop.permute.xlu0 %617
    %619 = vrot.lane.b32.xlu0 %v446, 4
    %v620 = vpop.permute.xlu0 %619
    %621 = vrot.lane.b32.xlu0 %v447, 4
    %v622 = vpop.permute.xlu0 %621
    %623 = vrot.lane.b32.xlu0 %v448, 4
    %v624 = vpop.permute.xlu0 %623
    %625 = vrot.lane.b32.xlu0 %v449, 4
    %v626 = vpop.permute.xlu0 %625
    %627 = vrot.lane.b32.xlu0 %v450, 4
    %v628 = vpop.permute.xlu0 %627
    %629 = vrot.lane.b32.xlu0 %v451, 4
    %v630 = vpop.permute.xlu0 %629
    %631 = vrot.lane.b32.xlu0 %v452, 4
    %v632 = vpop.permute.xlu0 %631
    %633 = vrot.lane.b32.xlu0 %v453, 4
    %v634 = vpop.permute.xlu0 %633
    %635 = vrot.lane.b32.xlu0 %v454, 4
    %v636 = vpop.permute.xlu0 %635
    %637 = vrot.lane.b32.xlu0 %v455, 4
    %v638 = vpop.permute.xlu0 %637
    %639 = vrot.lane.b32.xlu0 %v456, 4
    %v640 = vpop.permute.xlu0 %639
    %641 = vrot.lane.b32.xlu0 %v457, 4
    %v642 = vpop.permute.xlu0 %641
    %643 = vrot.lane.b32.xlu0 %v458, 4
    %v644 = vpop.permute.xlu0 %643
    %645 = vrot.lane.b32.xlu0 %v459, 4
    %v646 = vpop.permute.xlu0 %645
    %647 = vrot.lane.b32.xlu0 %v460, 4
    %v648 = vpop.permute.xlu0 %647
    %649 = vrot.lane.b32.xlu0 %v461, 4
    %v650 = vpop.permute.xlu0 %649
    %651 = vrot.lane.b32.xlu0 %v462, 4
    %v652 = vpop.permute.xlu0 %651
    %653 = vrot.lane.b32.xlu0 %v463, 4
    %v654 = vpop.permute.xlu0 %653
    %655 = vrot.lane.b32.xlu0 %v464, 4
    %v656 = vpop.permute.xlu0 %655
    %vm721 = vcmask 64544
    %722 = vst.msk [vmem:[#allocation3] sm:$0xff] %vm721, %v530
    %723 = vst.msk [vmem:[#allocation3 + $0x8] sm:$0xff] %vm721, %v532
    %724 = vst.msk [vmem:[#allocation3 + $0x10] sm:$0xff] %vm721, %v534
    %725 = vst.msk [vmem:[#allocation3 + $0x18] sm:$0xff] %vm721, %v536
    %726 = vst.msk [vmem:[#allocation3 + $0x20] sm:$0xff] %vm721, %v538
    %727 = vst.msk [vmem:[#allocation3 + $0x28] sm:$0xff] %vm721, %v540
    %728 = vst.msk [vmem:[#allocation3 + $0x30] sm:$0xff] %vm721, %v542
    %729 = vst.msk [vmem:[#allocation3 + $0x38] sm:$0xff] %vm721, %v544
    %730 = vst.msk [vmem:[#allocation3 + $0x40] sm:$0xff] %vm721, %v546
    %731 = vst.msk [vmem:[#allocation3 + $0x48] sm:$0xff] %vm721, %v548
    %732 = vst.msk [vmem:[#allocation3 + $0x50] sm:$0xff] %vm721, %v550
    %733 = vst.msk [vmem:[#allocation3 + $0x58] sm:$0xff] %vm721, %v552
    %734 = vst.msk [vmem:[#allocation3 + $0x60] sm:$0xff] %vm721, %v554
    %735 = vst.msk [vmem:[#allocation3 + $0x68] sm:$0xff] %vm721, %v556
    %736 = vst.msk [vmem:[#allocation3 + $0x70] sm:$0xff] %vm721, %v558
    %737 = vst.msk [vmem:[#allocation3 + $0x78] sm:$0xff] %vm721, %v560
    %738 = vst.msk [vmem:[#allocation3 + $0x80] sm:$0xff] %vm721, %v562
    %739 = vst.msk [vmem:[#allocation3 + $0x88] sm:$0xff] %vm721, %v564
    %740 = vst.msk [vmem:[#allocation3 + $0x90] sm:$0xff] %vm721, %v566
    %741 = vst.msk [vmem:[#allocation3 + $0x98] sm:$0xff] %vm721, %v568
    %742 = vst.msk [vmem:[#allocation3 + $0xa0] sm:$0xff] %vm721, %v570
    %743 = vst.msk [vmem:[#allocation3 + $0xa8] sm:$0xff] %vm721, %v572
    %744 = vst.msk [vmem:[#allocation3 + $0xb0] sm:$0xff] %vm721, %v574
    %745 = vst.msk [vmem:[#allocation3 + $0xb8] sm:$0xff] %vm721, %v576
    %746 = vst.msk [vmem:[#allocation3 + $0xc0] sm:$0xff] %vm721, %v578
    %747 = vst.msk [vmem:[#allocation3 + $0xc8] sm:$0xff] %vm721, %v580
    %748 = vst.msk [vmem:[#allocation3 + $0xd0] sm:$0xff] %vm721, %v582
    %749 = vst.msk [vmem:[#allocation3 + $0xd8] sm:$0xff] %vm721, %v584
    %750 = vst.msk [vmem:[#allocation3 + $0xe0] sm:$0xff] %vm721, %v586
    %751 = vst.msk [vmem:[#allocation3 + $0xe8] sm:$0xff] %vm721, %v588
    %752 = vst.msk [vmem:[#allocation3 + $0xf0] sm:$0xff] %vm721, %v590
    %753 = vst.msk [vmem:[#allocation3 + $0xf8] sm:$0xff] %vm721, %v592
    %754 = vst.msk [vmem:[#allocation3 + $0x100] sm:$0xff] %vm721, %v594
    %755 = vst.msk [vmem:[#allocation3 + $0x108] sm:$0xff] %vm721, %v596
    %756 = vst.msk [vmem:[#allocation3 + $0x110] sm:$0xff] %vm721, %v598
    %757 = vst.msk [vmem:[#allocation3 + $0x118] sm:$0xff] %vm721, %v600
    %758 = vst.msk [vmem:[#allocation3 + $0x120] sm:$0xff] %vm721, %v602
    %759 = vst.msk [vmem:[#allocation3 + $0x128] sm:$0xff] %vm721, %v604
    %760 = vst.msk [vmem:[#allocation3 + $0x130] sm:$0xff] %vm721, %v606
    %761 = vst.msk [vmem:[#allocation3 + $0x138] sm:$0xff] %vm721, %v608
    %762 = vst.msk [vmem:[#allocation3 + $0x140] sm:$0xff] %vm721, %v610
    %763 = vst.msk [vmem:[#allocation3 + $0x148] sm:$0xff] %vm721, %v612
    %764 = vst.msk [vmem:[#allocation3 + $0x150] sm:$0xff] %vm721, %v614
    %765 = vst.msk [vmem:[#allocation3 + $0x158] sm:$0xff] %vm721, %v616
    %766 = vst.msk [vmem:[#allocation3 + $0x160] sm:$0xff] %vm721, %v618
    %767 = vst.msk [vmem:[#allocation3 + $0x168] sm:$0xff] %vm721, %v620
    %768 = vst.msk [vmem:[#allocation3 + $0x170] sm:$0xff] %vm721, %v622
    %769 = vst.msk [vmem:[#allocation3 + $0x178] sm:$0xff] %vm721, %v624
    %770 = vst.msk [vmem:[#allocation3 + $0x180] sm:$0xff] %vm721, %v626
    %771 = vst.msk [vmem:[#allocation3 + $0x188] sm:$0xff] %vm721, %v628
    %772 = vst.msk [vmem:[#allocation3 + $0x190] sm:$0xff] %vm721, %v630
    %773 = vst.msk [vmem:[#allocation3 + $0x198] sm:$0xff] %vm721, %v632
    %774 = vst.msk [vmem:[#allocation3 + $0x1a0] sm:$0xff] %vm721, %v634
    %775 = vst.msk [vmem:[#allocation3 + $0x1a8] sm:$0xff] %vm721, %v636
    %776 = vst.msk [vmem:[#allocation3 + $0x1b0] sm:$0xff] %vm721, %v638
    %777 = vst.msk [vmem:[#allocation3 + $0x1b8] sm:$0xff] %vm721, %v640
    %778 = vst.msk [vmem:[#allocation3 + $0x1c0] sm:$0xff] %vm721, %v642
    %779 = vst.msk [vmem:[#allocation3 + $0x1c8] sm:$0xff] %vm721, %v644
    %780 = vst.msk [vmem:[#allocation3 + $0x1d0] sm:$0xff] %vm721, %v646
    %781 = vst.msk [vmem:[#allocation3 + $0x1d8] sm:$0xff] %vm721, %v648
    %782 = vst.msk [vmem:[#allocation3 + $0x1e0] sm:$0xff] %vm721, %v650
    %783 = vst.msk [vmem:[#allocation3 + $0x1e8] sm:$0xff] %vm721, %v652
    %784 = vst.msk [vmem:[#allocation3 + $0x1f0] sm:$0xff] %vm721, %v654
    %785 = vst.msk [vmem:[#allocation3 + $0x1f8] sm:$0xff] %vm721, %v656
    %v786 = vld [vmem:[#allocation2 + $0x2] sm:$0xff]
    %v787 = vld [vmem:[#allocation2 + $0xa] sm:$0xff]
    %v788 = vld [vmem:[#allocation2 + $0x1a] sm:$0xff]
    %v789 = vld [vmem:[#allocation2 + $0x22] sm:$0xff]
    %v790 = vld [vmem:[#allocation2 + $0x32] sm:$0xff]
    %v791 = vld [vmem:[#allocation2 + $0x3a] sm:$0xff]
    %v792 = vld [vmem:[#allocation2 + $0x4a] sm:$0xff]
    %v793 = vld [vmem:[#allocation2 + $0x52] sm:$0xff]
    %v794 = vld [vmem:[#allocation2 + $0x62] sm:$0xff]
    %v795 = vld [vmem:[#allocation2 + $0x6a] sm:$0xff]
    %v796 = vld [vmem:[#allocation2 + $0x7a] sm:$0xff]
    %v797 = vld [vmem:[#allocation2 + $0x82] sm:$0xff]
    %v798 = vld [vmem:[#allocation2 + $0x92] sm:$0xff]
    %v799 = vld [vmem:[#allocation2 + $0x9a] sm:$0xff]
    %v800 = vld [vmem:[#allocation2 + $0xaa] sm:$0xff]
    %v801 = vld [vmem:[#allocation2 + $0xb2] sm:$0xff]
    %v802 = vld [vmem:[#allocation2 + $0xc2] sm:$0xff]
    %v803 = vld [vmem:[#allocation2 + $0xca] sm:$0xff]
    %v804 = vld [vmem:[#allocation2 + $0xda] sm:$0xff]
    %v805 = vld [vmem:[#allocation2 + $0xe2] sm:$0xff]
    %v806 = vld [vmem:[#allocation2 + $0xf2] sm:$0xff]
    %v807 = vld [vmem:[#allocation2 + $0xfa] sm:$0xff]
    %v808 = vld [vmem:[#allocation2 + $0x10a] sm:$0xff]
    %v809 = vld [vmem:[#allocation2 + $0x112] sm:$0xff]
    %v810 = vld [vmem:[#allocation2 + $0x122] sm:$0xff]
    %v811 = vld [vmem:[#allocation2 + $0x12a] sm:$0xff]
    %v812 = vld [vmem:[#allocation2 + $0x13a] sm:$0xff]
    %v813 = vld [vmem:[#allocation2 + $0x142] sm:$0xff]
    %v814 = vld [vmem:[#allocation2 + $0x152] sm:$0xff]
    %v815 = vld [vmem:[#allocation2 + $0x15a] sm:$0xff]
    %v816 = vld [vmem:[#allocation2 + $0x16a] sm:$0xff]
    %v817 = vld [vmem:[#allocation2 + $0x172] sm:$0xff]
    %v818 = vld [vmem:[#allocation2 + $0x1b2] sm:$0xff]
    %v819 = vld [vmem:[#allocation2 + $0x1ba] sm:$0xff]
    %v820 = vld [vmem:[#allocation2 + $0x1ca] sm:$0xff]
    %v821 = vld [vmem:[#allocation2 + $0x1d2] sm:$0xff]
    %v822 = vld [vmem:[#allocation2 + $0x1e2] sm:$0xff]
    %v823 = vld [vmem:[#allocation2 + $0x1ea] sm:$0xff]
    %v824 = vld [vmem:[#allocation2 + $0x1fa] sm:$0xff]
    %v825 = vld [vmem:[#allocation2 + $0x202] sm:$0xff]
    %v826 = vld [vmem:[#allocation2 + $0x212] sm:$0xff]
    %v827 = vld [vmem:[#allocation2 + $0x21a] sm:$0xff]
    %v828 = vld [vmem:[#allocation2 + $0x22a] sm:$0xff]
    %v829 = vld [vmem:[#allocation2 + $0x232] sm:$0xff]
    %v830 = vld [vmem:[#allocation2 + $0x242] sm:$0xff]
    %v831 = vld [vmem:[#allocation2 + $0x24a] sm:$0xff]
    %v832 = vld [vmem:[#allocation2 + $0x25a] sm:$0xff]
    %v833 = vld [vmem:[#allocation2 + $0x262] sm:$0xff]
    %v834 = vld [vmem:[#allocation2 + $0x272] sm:$0xff]
    %v835 = vld [vmem:[#allocation2 + $0x27a] sm:$0xff]
    %v836 = vld [vmem:[#allocation2 + $0x28a] sm:$0xff]
    %v837 = vld [vmem:[#allocation2 + $0x292] sm:$0xff]
    %v838 = vld [vmem:[#allocation2 + $0x2a2] sm:$0xff]
    %v839 = vld [vmem:[#allocation2 + $0x2aa] sm:$0xff]
    %v840 = vld [vmem:[#allocation2 + $0x2ba] sm:$0xff]
    %v841 = vld [vmem:[#allocation2 + $0x2c2] sm:$0xff]
    %v842 = vld [vmem:[#allocation2 + $0x2d2] sm:$0xff]
    %v843 = vld [vmem:[#allocation2 + $0x2da] sm:$0xff]
    %v844 = vld [vmem:[#allocation2 + $0x2ea] sm:$0xff]
    %v845 = vld [vmem:[#allocation2 + $0x2f2] sm:$0xff]
    %v846 = vld [vmem:[#allocation2 + $0x302] sm:$0xff]
    %v847 = vld [vmem:[#allocation2 + $0x30a] sm:$0xff]
    %v848 = vld [vmem:[#allocation2 + $0x31a] sm:$0xff]
    %v849 = vld [vmem:[#allocation2 + $0x322] sm:$0xff]
    %914 = vrot.lane.b32.xlu0 %v786, 8
    %v915 = vpop.permute.xlu0 %914
    %916 = vrot.lane.b32.xlu0 %v787, 8
    %v917 = vpop.permute.xlu0 %916
    %918 = vrot.lane.b32.xlu0 %v788, 8
    %v919 = vpop.permute.xlu0 %918
    %920 = vrot.lane.b32.xlu0 %v789, 8
    %v921 = vpop.permute.xlu0 %920
    %922 = vrot.lane.b32.xlu0 %v790, 8
    %v923 = vpop.permute.xlu0 %922
    %924 = vrot.lane.b32.xlu0 %v791, 8
    %v925 = vpop.permute.xlu0 %924
    %926 = vrot.lane.b32.xlu0 %v792, 8
    %v927 = vpop.permute.xlu0 %926
    %928 = vrot.lane.b32.xlu0 %v793, 8
    %v929 = vpop.permute.xlu0 %928
    %930 = vrot.lane.b32.xlu0 %v794, 8
    %v931 = vpop.permute.xlu0 %930
    %932 = vrot.lane.b32.xlu0 %v795, 8
    %v933 = vpop.permute.xlu0 %932
    %934 = vrot.lane.b32.xlu0 %v796, 8
    %v935 = vpop.permute.xlu0 %934
    %936 = vrot.lane.b32.xlu0 %v797, 8
    %v937 = vpop.permute.xlu0 %936
    %938 = vrot.lane.b32.xlu0 %v798, 8
    %v939 = vpop.permute.xlu0 %938
    %940 = vrot.lane.b32.xlu0 %v799, 8
    %v941 = vpop.permute.xlu0 %940
    %942 = vrot.lane.b32.xlu0 %v800, 8
    %v943 = vpop.permute.xlu0 %942
    %944 = vrot.lane.b32.xlu0 %v801, 8
    %v945 = vpop.permute.xlu0 %944
    %946 = vrot.lane.b32.xlu0 %v802, 8
    %v947 = vpop.permute.xlu0 %946
    %948 = vrot.lane.b32.xlu0 %v803, 8
    %v949 = vpop.permute.xlu0 %948
    %950 = vrot.lane.b32.xlu0 %v804, 8
    %v951 = vpop.permute.xlu0 %950
    %952 = vrot.lane.b32.xlu0 %v805, 8
    %v953 = vpop.permute.xlu0 %952
    %954 = vrot.lane.b32.xlu0 %v806, 8
    %v955 = vpop.permute.xlu0 %954
    %956 = vrot.lane.b32.xlu0 %v807, 8
    %v957 = vpop.permute.xlu0 %956
    %958 = vrot.lane.b32.xlu0 %v808, 8
    %v959 = vpop.permute.xlu0 %958
    %960 = vrot.lane.b32.xlu0 %v809, 8
    %v961 = vpop.permute.xlu0 %960
    %962 = vrot.lane.b32.xlu0 %v810, 8
    %v963 = vpop.permute.xlu0 %962
    %964 = vrot.lane.b32.xlu0 %v811, 8
    %v965 = vpop.permute.xlu0 %964
    %966 = vrot.lane.b32.xlu0 %v812, 8
    %v967 = vpop.permute.xlu0 %966
    %968 = vrot.lane.b32.xlu0 %v813, 8
    %v969 = vpop.permute.xlu0 %968
    %970 = vrot.lane.b32.xlu0 %v814, 8
    %v971 = vpop.permute.xlu0 %970
    %972 = vrot.lane.b32.xlu0 %v815, 8
    %v973 = vpop.permute.xlu0 %972
    %974 = vrot.lane.b32.xlu0 %v816, 8
    %v975 = vpop.permute.xlu0 %974
    %976 = vrot.lane.b32.xlu0 %v817, 8
    %v977 = vpop.permute.xlu0 %976
    %978 = vrot.lane.b32.xlu0 %v818, 8
    %v979 = vpop.permute.xlu0 %978
    %980 = vrot.lane.b32.xlu0 %v819, 8
    %v981 = vpop.permute.xlu0 %980
    %982 = vrot.lane.b32.xlu0 %v820, 8
    %v983 = vpop.permute.xlu0 %982
    %984 = vrot.lane.b32.xlu0 %v821, 8
    %v985 = vpop.permute.xlu0 %984
    %986 = vrot.lane.b32.xlu0 %v822, 8
    %v987 = vpop.permute.xlu0 %986
    %988 = vrot.lane.b32.xlu0 %v823, 8
    %v989 = vpop.permute.xlu0 %988
    %990 = vrot.lane.b32.xlu0 %v824, 8
    %v991 = vpop.permute.xlu0 %990
    %992 = vrot.lane.b32.xlu0 %v825, 8
    %v993 = vpop.permute.xlu0 %992
    %994 = vrot.lane.b32.xlu0 %v826, 8
    %v995 = vpop.permute.xlu0 %994
    %996 = vrot.lane.b32.xlu0 %v827, 8
    %v997 = vpop.permute.xlu0 %996
    %998 = vrot.lane.b32.xlu0 %v828, 8
    %v999 = vpop.permute.xlu0 %998
    %1000 = vrot.lane.b32.xlu0 %v829, 8
    %v1001 = vpop.permute.xlu0 %1000
    %1002 = vrot.lane.b32.xlu0 %v830, 8
    %v1003 = vpop.permute.xlu0 %1002
    %1004 = vrot.lane.b32.xlu0 %v831, 8
    %v1005 = vpop.permute.xlu0 %1004
    %1006 = vrot.lane.b32.xlu0 %v832, 8
    %v1007 = vpop.permute.xlu0 %1006
    %1008 = vrot.lane.b32.xlu0 %v833, 8
    %v1009 = vpop.permute.xlu0 %1008
    %1010 = vrot.lane.b32.xlu0 %v834, 8
    %v1011 = vpop.permute.xlu0 %1010
    %1012 = vrot.lane.b32.xlu0 %v835, 8
    %v1013 = vpop.permute.xlu0 %1012
    %1014 = vrot.lane.b32.xlu0 %v836, 8
    %v1015 = vpop.permute.xlu0 %1014
    %1016 = vrot.lane.b32.xlu0 %v837, 8
    %v1017 = vpop.permute.xlu0 %1016
    %1018 = vrot.lane.b32.xlu0 %v838, 8
    %v1019 = vpop.permute.xlu0 %1018
    %1020 = vrot.lane.b32.xlu0 %v839, 8
    %v1021 = vpop.permute.xlu0 %1020
    %1022 = vrot.lane.b32.xlu0 %v840, 8
    %v1023 = vpop.permute.xlu0 %1022
    %1024 = vrot.lane.b32.xlu0 %v841, 8
    %v1025 = vpop.permute.xlu0 %1024
    %1026 = vrot.lane.b32.xlu0 %v842, 8
    %v1027 = vpop.permute.xlu0 %1026
    %1028 = vrot.lane.b32.xlu0 %v843, 8
    %v1029 = vpop.permute.xlu0 %1028
    %1030 = vrot.lane.b32.xlu0 %v844, 8
    %v1031 = vpop.permute.xlu0 %1030
    %1032 = vrot.lane.b32.xlu0 %v845, 8
    %v1033 = vpop.permute.xlu0 %1032
    %1034 = vrot.lane.b32.xlu0 %v846, 8
    %v1035 = vpop.permute.xlu0 %1034
    %1036 = vrot.lane.b32.xlu0 %v847, 8
    %v1037 = vpop.permute.xlu0 %1036
    %1038 = vrot.lane.b32.xlu0 %v848, 8
    %v1039 = vpop.permute.xlu0 %1038
    %1040 = vrot.lane.b32.xlu0 %v849, 8
    %v1041 = vpop.permute.xlu0 %1040
    %vm1106 = vcmask 97344
    %1107 = vst.msk [vmem:[#allocation3] sm:$0xff] %vm1106, %v915
    %1108 = vst.msk [vmem:[#allocation3 + $0x8] sm:$0xff] %vm1106, %v917
    %1109 = vst.msk [vmem:[#allocation3 + $0x10] sm:$0xff] %vm1106, %v919
    %1110 = vst.msk [vmem:[#allocation3 + $0x18] sm:$0xff] %vm1106, %v921
    %1111 = vst.msk [vmem:[#allocation3 + $0x20] sm:$0xff] %vm1106, %v923
    %1112 = vst.msk [vmem:[#allocation3 + $0x28] sm:$0xff] %vm1106, %v925
    %1113 = vst.msk [vmem:[#allocation3 + $0x30] sm:$0xff] %vm1106, %v927
    %1114 = vst.msk [vmem:[#allocation3 + $0x38] sm:$0xff] %vm1106, %v929
    %1115 = vst.msk [vmem:[#allocation3 + $0x40] sm:$0xff] %vm1106, %v931
    %1116 = vst.msk [vmem:[#allocation3 + $0x48] sm:$0xff] %vm1106, %v933
    %1117 = vst.msk [vmem:[#allocation3 + $0x50] sm:$0xff] %vm1106, %v935
    %1118 = vst.msk [vmem:[#allocation3 + $0x58] sm:$0xff] %vm1106, %v937
    %1119 = vst.msk [vmem:[#allocation3 + $0x60] sm:$0xff] %vm1106, %v939
    %1120 = vst.msk [vmem:[#allocation3 + $0x68] sm:$0xff] %vm1106, %v941
    %1121 = vst.msk [vmem:[#allocation3 + $0x70] sm:$0xff] %vm1106, %v943
    %1122 = vst.msk [vmem:[#allocation3 + $0x78] sm:$0xff] %vm1106, %v945
    %1123 = vst.msk [vmem:[#allocation3 + $0x80] sm:$0xff] %vm1106, %v947
    %1124 = vst.msk [vmem:[#allocation3 + $0x88] sm:$0xff] %vm1106, %v949
    %1125 = vst.msk [vmem:[#allocation3 + $0x90] sm:$0xff] %vm1106, %v951
    %1126 = vst.msk [vmem:[#allocation3 + $0x98] sm:$0xff] %vm1106, %v953
    %1127 = vst.msk [vmem:[#allocation3 + $0xa0] sm:$0xff] %vm1106, %v955
    %1128 = vst.msk [vmem:[#allocation3 + $0xa8] sm:$0xff] %vm1106, %v957
    %1129 = vst.msk [vmem:[#allocation3 + $0xb0] sm:$0xff] %vm1106, %v959
    %1130 = vst.msk [vmem:[#allocation3 + $0xb8] sm:$0xff] %vm1106, %v961
    %1131 = vst.msk [vmem:[#allocation3 + $0xc0] sm:$0xff] %vm1106, %v963
    %1132 = vst.msk [vmem:[#allocation3 + $0xc8] sm:$0xff] %vm1106, %v965
    %1133 = vst.msk [vmem:[#allocation3 + $0xd0] sm:$0xff] %vm1106, %v967
    %1134 = vst.msk [vmem:[#allocation3 + $0xd8] sm:$0xff] %vm1106, %v969
    %1135 = vst.msk [vmem:[#allocation3 + $0xe0] sm:$0xff] %vm1106, %v971
    %1136 = vst.msk [vmem:[#allocation3 + $0xe8] sm:$0xff] %vm1106, %v973
    %1137 = vst.msk [vmem:[#allocation3 + $0xf0] sm:$0xff] %vm1106, %v975
    %1138 = vst.msk [vmem:[#allocation3 + $0xf8] sm:$0xff] %vm1106, %v977
    %1139 = vst.msk [vmem:[#allocation3 + $0x100] sm:$0xff] %vm1106, %v979
    %1140 = vst.msk [vmem:[#allocation3 + $0x108] sm:$0xff] %vm1106, %v981
    %1141 = vst.msk [vmem:[#allocation3 + $0x110] sm:$0xff] %vm1106, %v983
    %1142 = vst.msk [vmem:[#allocation3 + $0x118] sm:$0xff] %vm1106, %v985
    %1143 = vst.msk [vmem:[#allocation3 + $0x120] sm:$0xff] %vm1106, %v987
    %1144 = vst.msk [vmem:[#allocation3 + $0x128] sm:$0xff] %vm1106, %v989
    %1145 = vst.msk [vmem:[#allocation3 + $0x130] sm:$0xff] %vm1106, %v991
    %1146 = vst.msk [vmem:[#allocation3 + $0x138] sm:$0xff] %vm1106, %v993
    %1147 = vst.msk [vmem:[#allocation3 + $0x140] sm:$0xff] %vm1106, %v995
    %1148 = vst.msk [vmem:[#allocation3 + $0x148] sm:$0xff] %vm1106, %v997
    %1149 = vst.msk [vmem:[#allocation3 + $0x150] sm:$0xff] %vm1106, %v999
    %1150 = vst.msk [vmem:[#allocation3 + $0x158] sm:$0xff] %vm1106, %v1001
    %1151 = vst.msk [vmem:[#allocation3 + $0x160] sm:$0xff] %vm1106, %v1003
    %1152 = vst.msk [vmem:[#allocation3 + $0x168] sm:$0xff] %vm1106, %v1005
    %1153 = vst.msk [vmem:[#allocation3 + $0x170] sm:$0xff] %vm1106, %v1007
    %1154 = vst.msk [vmem:[#allocation3 + $0x178] sm:$0xff] %vm1106, %v1009
    %1155 = vst.msk [vmem:[#allocation3 + $0x180] sm:$0xff] %vm1106, %v1011
    %1156 = vst.msk [vmem:[#allocation3 + $0x188] sm:$0xff] %vm1106, %v1013
    %1157 = vst.msk [vmem:[#allocation3 + $0x190] sm:$0xff] %vm1106, %v1015
    %1158 = vst.msk [vmem:[#allocation3 + $0x198] sm:$0xff] %vm1106, %v1017
    %1159 = vst.msk [vmem:[#allocation3 + $0x1a0] sm:$0xff] %vm1106, %v1019
    %1160 = vst.msk [vmem:[#allocation3 + $0x1a8] sm:$0xff] %vm1106, %v1021
    %1161 = vst.msk [vmem:[#allocation3 + $0x1b0] sm:$0xff] %vm1106, %v1023
    %1162 = vst.msk [vmem:[#allocation3 + $0x1b8] sm:$0xff] %vm1106, %v1025
    %1163 = vst.msk [vmem:[#allocation3 + $0x1c0] sm:$0xff] %vm1106, %v1027
    %1164 = vst.msk [vmem:[#allocation3 + $0x1c8] sm:$0xff] %vm1106, %v1029
    %1165 = vst.msk [vmem:[#allocation3 + $0x1d0] sm:$0xff] %vm1106, %v1031
    %1166 = vst.msk [vmem:[#allocation3 + $0x1d8] sm:$0xff] %vm1106, %v1033
    %1167 = vst.msk [vmem:[#allocation3 + $0x1e0] sm:$0xff] %vm1106, %v1035
    %1168 = vst.msk [vmem:[#allocation3 + $0x1e8] sm:$0xff] %vm1106, %v1037
    %1169 = vst.msk [vmem:[#allocation3 + $0x1f0] sm:$0xff] %vm1106, %v1039
    %1170 = vst.msk [vmem:[#allocation3 + $0x1f8] sm:$0xff] %vm1106, %v1041
    %v1171 = vld [vmem:[%s208] sm:$0xff]
    %v1172 = vld [vmem:[%s208 + $0x8] sm:$0xff]
    %v1173 = vld [vmem:[%s208 + $0x18] sm:$0xff]
    %v1174 = vld [vmem:[%s208 + $0x20] sm:$0xff]
    %v1175 = vld [vmem:[%s208 + $0x30] sm:$0xff]
    %v1176 = vld [vmem:[%s208 + $0x38] sm:$0xff]
    %v1177 = vld [vmem:[%s208 + $0x48] sm:$0xff]
    %v1178 = vld [vmem:[%s208 + $0x50] sm:$0xff]
    %v1179 = vld [vmem:[%s208 + $0x60] sm:$0xff]
    %v1180 = vld [vmem:[%s208 + $0x68] sm:$0xff]
    %v1181 = vld [vmem:[%s208 + $0x78] sm:$0xff]
    %v1182 = vld [vmem:[%s208 + $0x80] sm:$0xff]
    %v1183 = vld [vmem:[%s208 + $0x90] sm:$0xff]
    %v1184 = vld [vmem:[%s208 + $0x98] sm:$0xff]
    %v1185 = vld [vmem:[%s208 + $0xa8] sm:$0xff]
    %v1186 = vld [vmem:[%s208 + $0xb0] sm:$0xff]
    %v1187 = vld [vmem:[%s208 + $0xc0] sm:$0xff]
    %v1188 = vld [vmem:[%s208 + $0xc8] sm:$0xff]
    %v1189 = vld [vmem:[%s208 + $0xd8] sm:$0xff]
    %v1190 = vld [vmem:[%s208 + $0xe0] sm:$0xff]
    %v1191 = vld [vmem:[%s208 + $0xf0] sm:$0xff]
    %v1192 = vld [vmem:[%s208 + $0xf8] sm:$0xff]
    %v1193 = vld [vmem:[%s208 + $0x108] sm:$0xff]
    %v1194 = vld [vmem:[%s208 + $0x110] sm:$0xff]
    %v1195 = vld [vmem:[%s208 + $0x120] sm:$0xff]
    %v1196 = vld [vmem:[%s208 + $0x128] sm:$0xff]
    %v1197 = vld [vmem:[%s208 + $0x138] sm:$0xff]
    %v1198 = vld [vmem:[%s208 + $0x140] sm:$0xff]
    %v1199 = vld [vmem:[%s208 + $0x150] sm:$0xff]
    %v1200 = vld [vmem:[%s208 + $0x158] sm:$0xff]
    %v1201 = vld [vmem:[%s208 + $0x168] sm:$0xff]
    %v1202 = vld [vmem:[%s208 + $0x170] sm:$0xff]
    %v1203 = vld [vmem:[%s208 + $0x1b0] sm:$0xff]
    %v1204 = vld [vmem:[%s208 + $0x1b8] sm:$0xff]
    %v1205 = vld [vmem:[%s208 + $0x1c8] sm:$0xff]
    %v1206 = vld [vmem:[%s208 + $0x1d0] sm:$0xff]
    %v1207 = vld [vmem:[%s208 + $0x1e0] sm:$0xff]
    %v1208 = vld [vmem:[%s208 + $0x1e8] sm:$0xff]
    %v1209 = vld [vmem:[%s208 + $0x1f8] sm:$0xff]
    %v1210 = vld [vmem:[%s208 + $0x200] sm:$0xff]
    %v1211 = vld [vmem:[%s208 + $0x210] sm:$0xff]
    %v1212 = vld [vmem:[%s208 + $0x218] sm:$0xff]
    %v1213 = vld [vmem:[%s208 + $0x228] sm:$0xff]
    %v1214 = vld [vmem:[%s208 + $0x230] sm:$0xff]
    %v1215 = vld [vmem:[%s208 + $0x240] sm:$0xff]
    %v1216 = vld [vmem:[%s208 + $0x248] sm:$0xff]
    %v1217 = vld [vmem:[%s208 + $0x258] sm:$0xff]
    %v1218 = vld [vmem:[%s208 + $0x260] sm:$0xff]
    %v1219 = vld [vmem:[%s208 + $0x270] sm:$0xff]
    %v1220 = vld [vmem:[%s208 + $0x278] sm:$0xff]
    %v1221 = vld [vmem:[%s208 + $0x288] sm:$0xff]
    %v1222 = vld [vmem:[%s208 + $0x290] sm:$0xff]
    %v1223 = vld [vmem:[%s208 + $0x2a0] sm:$0xff]
    %v1224 = vld [vmem:[%s208 + $0x2a8] sm:$0xff]
    %v1225 = vld [vmem:[%s208 + $0x2b8] sm:$0xff]
    %v1226 = vld [vmem:[%s208 + $0x2c0] sm:$0xff]
    %v1227 = vld [vmem:[%s208 + $0x2d0] sm:$0xff]
    %v1228 = vld [vmem:[%s208 + $0x2d8] sm:$0xff]
    %v1229 = vld [vmem:[%s208 + $0x2e8] sm:$0xff]
    %v1230 = vld [vmem:[%s208 + $0x2f0] sm:$0xff]
    %v1231 = vld [vmem:[%s208 + $0x300] sm:$0xff]
    %v1232 = vld [vmem:[%s208 + $0x308] sm:$0xff]
    %v1233 = vld [vmem:[%s208 + $0x318] sm:$0xff]
    %v1234 = vld [vmem:[%s208 + $0x320] sm:$0xff]
    %1299 = vrot.lane.b32.xlu0 %v1171, 12
    %v1300 = vpop.permute.xlu0 %1299
    %1301 = vrot.lane.b32.xlu0 %v1172, 12
    %v1302 = vpop.permute.xlu0 %1301
    %1303 = vrot.lane.b32.xlu0 %v1173, 12
    %v1304 = vpop.permute.xlu0 %1303
    %1305 = vrot.lane.b32.xlu0 %v1174, 12
    %v1306 = vpop.permute.xlu0 %1305
    %1307 = vrot.lane.b32.xlu0 %v1175, 12
    %v1308 = vpop.permute.xlu0 %1307
    %1309 = vrot.lane.b32.xlu0 %v1176, 12
    %v1310 = vpop.permute.xlu0 %1309
    %1311 = vrot.lane.b32.xlu0 %v1177, 12
    %v1312 = vpop.permute.xlu0 %1311
    %1313 = vrot.lane.b32.xlu0 %v1178, 12
    %v1314 = vpop.permute.xlu0 %1313
    %1315 = vrot.lane.b32.xlu0 %v1179, 12
    %v1316 = vpop.permute.xlu0 %1315
    %1317 = vrot.lane.b32.xlu0 %v1180, 12
    %v1318 = vpop.permute.xlu0 %1317
    %1319 = vrot.lane.b32.xlu0 %v1181, 12
    %v1320 = vpop.permute.xlu0 %1319
    %1321 = vrot.lane.b32.xlu0 %v1182, 12
    %v1322 = vpop.permute.xlu0 %1321
    %1323 = vrot.lane.b32.xlu0 %v1183, 12
    %v1324 = vpop.permute.xlu0 %1323
    %1325 = vrot.lane.b32.xlu0 %v1184, 12
    %v1326 = vpop.permute.xlu0 %1325
    %1327 = vrot.lane.b32.xlu0 %v1185, 12
    %v1328 = vpop.permute.xlu0 %1327
    %1329 = vrot.lane.b32.xlu0 %v1186, 12
    %v1330 = vpop.permute.xlu0 %1329
    %1331 = vrot.lane.b32.xlu0 %v1187, 12
    %v1332 = vpop.permute.xlu0 %1331
    %1333 = vrot.lane.b32.xlu0 %v1188, 12
    %v1334 = vpop.permute.xlu0 %1333
    %1335 = vrot.lane.b32.xlu0 %v1189, 12
    %v1336 = vpop.permute.xlu0 %1335
    %1337 = vrot.lane.b32.xlu0 %v1190, 12
    %v1338 = vpop.permute.xlu0 %1337
    %1339 = vrot.lane.b32.xlu0 %v1191, 12
    %v1340 = vpop.permute.xlu0 %1339
    %1341 = vrot.lane.b32.xlu0 %v1192, 12
    %v1342 = vpop.permute.xlu0 %1341
    %1343 = vrot.lane.b32.xlu0 %v1193, 12
    %v1344 = vpop.permute.xlu0 %1343
    %1345 = vrot.lane.b32.xlu0 %v1194, 12
    %v1346 = vpop.permute.xlu0 %1345
    %1347 = vrot.lane.b32.xlu0 %v1195, 12
    %v1348 = vpop.permute.xlu0 %1347
    %1349 = vrot.lane.b32.xlu0 %v1196, 12
    %v1350 = vpop.permute.xlu0 %1349
    %1351 = vrot.lane.b32.xlu0 %v1197, 12
    %v1352 = vpop.permute.xlu0 %1351
    %1353 = vrot.lane.b32.xlu0 %v1198, 12
    %v1354 = vpop.permute.xlu0 %1353
    %1355 = vrot.lane.b32.xlu0 %v1199, 12
    %v1356 = vpop.permute.xlu0 %1355
    %1357 = vrot.lane.b32.xlu0 %v1200, 12
    %v1358 = vpop.permute.xlu0 %1357
    %1359 = vrot.lane.b32.xlu0 %v1201, 12
    %v1360 = vpop.permute.xlu0 %1359
    %1361 = vrot.lane.b32.xlu0 %v1202, 12
    %v1362 = vpop.permute.xlu0 %1361
    %1363 = vrot.lane.b32.xlu0 %v1203, 12
    %v1364 = vpop.permute.xlu0 %1363
    %1365 = vrot.lane.b32.xlu0 %v1204, 12
    %v1366 = vpop.permute.xlu0 %1365
    %1367 = vrot.lane.b32.xlu0 %v1205, 12
    %v1368 = vpop.permute.xlu0 %1367
    %1369 = vrot.lane.b32.xlu0 %v1206, 12
    %v1370 = vpop.permute.xlu0 %1369
    %1371 = vrot.lane.b32.xlu0 %v1207, 12
    %v1372 = vpop.permute.xlu0 %1371
    %1373 = vrot.lane.b32.xlu0 %v1208, 12
    %v1374 = vpop.permute.xlu0 %1373
    %1375 = vrot.lane.b32.xlu0 %v1209, 12
    %v1376 = vpop.permute.xlu0 %1375
    %1377 = vrot.lane.b32.xlu0 %v1210, 12
    %v1378 = vpop.permute.xlu0 %1377
    %1379 = vrot.lane.b32.xlu0 %v1211, 12
    %v1380 = vpop.permute.xlu0 %1379
    %1381 = vrot.lane.b32.xlu0 %v1212, 12
    %v1382 = vpop.permute.xlu0 %1381
    %1383 = vrot.lane.b32.xlu0 %v1213, 12
    %v1384 = vpop.permute.xlu0 %1383
    %1385 = vrot.lane.b32.xlu0 %v1214, 12
    %v1386 = vpop.permute.xlu0 %1385
    %1387 = vrot.lane.b32.xlu0 %v1215, 12
    %v1388 = vpop.permute.xlu0 %1387
    %1389 = vrot.lane.b32.xlu0 %v1216, 12
    %v1390 = vpop.permute.xlu0 %1389
    %1391 = vrot.lane.b32.xlu0 %v1217, 12
    %v1392 = vpop.permute.xlu0 %1391
    %1393 = vrot.lane.b32.xlu0 %v1218, 12
    %v1394 = vpop.permute.xlu0 %1393
    %1395 = vrot.lane.b32.xlu0 %v1219, 12
    %v1396 = vpop.permute.xlu0 %1395
    %1397 = vrot.lane.b32.xlu0 %v1220, 12
    %v1398 = vpop.permute.xlu0 %1397
    %1399 = vrot.lane.b32.xlu0 %v1221, 12
    %v1400 = vpop.permute.xlu0 %1399
    %1401 = vrot.lane.b32.xlu0 %v1222, 12
    %v1402 = vpop.permute.xlu0 %1401
    %1403 = vrot.lane.b32.xlu0 %v1223, 12
    %v1404 = vpop.permute.xlu0 %1403
    %1405 = vrot.lane.b32.xlu0 %v1224, 12
    %v1406 = vpop.permute.xlu0 %1405
    %1407 = vrot.lane.b32.xlu0 %v1225, 12
    %v1408 = vpop.permute.xlu0 %1407
    %1409 = vrot.lane.b32.xlu0 %v1226, 12
    %v1410 = vpop.permute.xlu0 %1409
    %1411 = vrot.lane.b32.xlu0 %v1227, 12
    %v1412 = vpop.permute.xlu0 %1411
    %1413 = vrot.lane.b32.xlu0 %v1228, 12
    %v1414 = vpop.permute.xlu0 %1413
    %1415 = vrot.lane.b32.xlu0 %v1229, 12
    %v1416 = vpop.permute.xlu0 %1415
    %1417 = vrot.lane.b32.xlu0 %v1230, 12
    %v1418 = vpop.permute.xlu0 %1417
    %1419 = vrot.lane.b32.xlu0 %v1231, 12
    %v1420 = vpop.permute.xlu0 %1419
    %1421 = vrot.lane.b32.xlu0 %v1232, 12
    %v1422 = vpop.permute.xlu0 %1421
    %1423 = vrot.lane.b32.xlu0 %v1233, 12
    %v1424 = vpop.permute.xlu0 %1423
    %1425 = vrot.lane.b32.xlu0 %v1234, 12
    %v1426 = vpop.permute.xlu0 %1425
    %vm1491 = vcmask 130144
    %1492 = vst.msk [vmem:[#allocation3] sm:$0xff] %vm1491, %v1300
    %1493 = vst.msk [vmem:[#allocation3 + $0x8] sm:$0xff] %vm1491, %v1302
    %1494 = vst.msk [vmem:[#allocation3 + $0x10] sm:$0xff] %vm1491, %v1304
    %1495 = vst.msk [vmem:[#allocation3 + $0x18] sm:$0xff] %vm1491, %v1306
    %1496 = vst.msk [vmem:[#allocation3 + $0x20] sm:$0xff] %vm1491, %v1308
    %1497 = vst.msk [vmem:[#allocation3 + $0x28] sm:$0xff] %vm1491, %v1310
    %1498 = vst.msk [vmem:[#allocation3 + $0x30] sm:$0xff] %vm1491, %v1312
    %1499 = vst.msk [vmem:[#allocation3 + $0x38] sm:$0xff] %vm1491, %v1314
    %1500 = vst.msk [vmem:[#allocation3 + $0x40] sm:$0xff] %vm1491, %v1316
    %1501 = vst.msk [vmem:[#allocation3 + $0x48] sm:$0xff] %vm1491, %v1318
    %1502 = vst.msk [vmem:[#allocation3 + $0x50] sm:$0xff] %vm1491, %v1320
    %1503 = vst.msk [vmem:[#allocation3 + $0x58] sm:$0xff] %vm1491, %v1322
    %1504 = vst.msk [vmem:[#allocation3 + $0x60] sm:$0xff] %vm1491, %v1324
    %1505 = vst.msk [vmem:[#allocation3 + $0x68] sm:$0xff] %vm1491, %v1326
    %1506 = vst.msk [vmem:[#allocation3 + $0x70] sm:$0xff] %vm1491, %v1328
    %1507 = vst.msk [vmem:[#allocation3 + $0x78] sm:$0xff] %vm1491, %v1330
    %1508 = vst.msk [vmem:[#allocation3 + $0x80] sm:$0xff] %vm1491, %v1332
    %1509 = vst.msk [vmem:[#allocation3 + $0x88] sm:$0xff] %vm1491, %v1334
    %1510 = vst.msk [vmem:[#allocation3 + $0x90] sm:$0xff] %vm1491, %v1336
    %1511 = vst.msk [vmem:[#allocation3 + $0x98] sm:$0xff] %vm1491, %v1338
    %1512 = vst.msk [vmem:[#allocation3 + $0xa0] sm:$0xff] %vm1491, %v1340
    %1513 = vst.msk [vmem:[#allocation3 + $0xa8] sm:$0xff] %vm1491, %v1342
    %1514 = vst.msk [vmem:[#allocation3 + $0xb0] sm:$0xff] %vm1491, %v1344
    %1515 = vst.msk [vmem:[#allocation3 + $0xb8] sm:$0xff] %vm1491, %v1346
    %1516 = vst.msk [vmem:[#allocation3 + $0xc0] sm:$0xff] %vm1491, %v1348
    %1517 = vst.msk [vmem:[#allocation3 + $0xc8] sm:$0xff] %vm1491, %v1350
    %1518 = vst.msk [vmem:[#allocation3 + $0xd0] sm:$0xff] %vm1491, %v1352
    %1519 = vst.msk [vmem:[#allocation3 + $0xd8] sm:$0xff] %vm1491, %v1354
    %1520 = vst.msk [vmem:[#allocation3 + $0xe0] sm:$0xff] %vm1491, %v1356
    %1521 = vst.msk [vmem:[#allocation3 + $0xe8] sm:$0xff] %vm1491, %v1358
    %1522 = vst.msk [vmem:[#allocation3 + $0xf0] sm:$0xff] %vm1491, %v1360
    %1523 = vst.msk [vmem:[#allocation3 + $0xf8] sm:$0xff] %vm1491, %v1362
    %1524 = vst.msk [vmem:[#allocation3 + $0x100] sm:$0xff] %vm1491, %v1364
    %1525 = vst.msk [vmem:[#allocation3 + $0x108] sm:$0xff] %vm1491, %v1366
    %1526 = vst.msk [vmem:[#allocation3 + $0x110] sm:$0xff] %vm1491, %v1368
    %1527 = vst.msk [vmem:[#allocation3 + $0x118] sm:$0xff] %vm1491, %v1370
    %1528 = vst.msk [vmem:[#allocation3 + $0x120] sm:$0xff] %vm1491, %v1372
    %1529 = vst.msk [vmem:[#allocation3 + $0x128] sm:$0xff] %vm1491, %v1374
    %1530 = vst.msk [vmem:[#allocation3 + $0x130] sm:$0xff] %vm1491, %v1376
    %1531 = vst.msk [vmem:[#allocation3 + $0x138] sm:$0xff] %vm1491, %v1378
    %1532 = vst.msk [vmem:[#allocation3 + $0x140] sm:$0xff] %vm1491, %v1380
    %1533 = vst.msk [vmem:[#allocation3 + $0x148] sm:$0xff] %vm1491, %v1382
    %1534 = vst.msk [vmem:[#allocation3 + $0x150] sm:$0xff] %vm1491, %v1384
    %1535 = vst.msk [vmem:[#allocation3 + $0x158] sm:$0xff] %vm1491, %v1386
    %1536 = vst.msk [vmem:[#allocation3 + $0x160] sm:$0xff] %vm1491, %v1388
    %1537 = vst.msk [vmem:[#allocation3 + $0x168] sm:$0xff] %vm1491, %v1390
    %1538 = vst.msk [vmem:[#allocation3 + $0x170] sm:$0xff] %vm1491, %v1392
    %1539 = vst.msk [vmem:[#allocation3 + $0x178] sm:$0xff] %vm1491, %v1394
    %1540 = vst.msk [vmem:[#allocation3 + $0x180] sm:$0xff] %vm1491, %v1396
    %1541 = vst.msk [vmem:[#allocation3 + $0x188] sm:$0xff] %vm1491, %v1398
    %1542 = vst.msk [vmem:[#allocation3 + $0x190] sm:$0xff] %vm1491, %v1400
    %1543 = vst.msk [vmem:[#allocation3 + $0x198] sm:$0xff] %vm1491, %v1402
    %1544 = vst.msk [vmem:[#allocation3 + $0x1a0] sm:$0xff] %vm1491, %v1404
    %1545 = vst.msk [vmem:[#allocation3 + $0x1a8] sm:$0xff] %vm1491, %v1406
    %1546 = vst.msk [vmem:[#allocation3 + $0x1b0] sm:$0xff] %vm1491, %v1408
    %1547 = vst.msk [vmem:[#allocation3 + $0x1b8] sm:$0xff] %vm1491, %v1410
    %1548 = vst.msk [vmem:[#allocation3 + $0x1c0] sm:$0xff] %vm1491, %v1412
    %1549 = vst.msk [vmem:[#allocation3 + $0x1c8] sm:$0xff] %vm1491, %v1414
    %1550 = vst.msk [vmem:[#allocation3 + $0x1d0] sm:$0xff] %vm1491, %v1416
    %1551 = vst.msk [vmem:[#allocation3 + $0x1d8] sm:$0xff] %vm1491, %v1418
    %1552 = vst.msk [vmem:[#allocation3 + $0x1e0] sm:$0xff] %vm1491, %v1420
    %1553 = vst.msk [vmem:[#allocation3 + $0x1e8] sm:$0xff] %vm1491, %v1422
    %1554 = vst.msk [vmem:[#allocation3 + $0x1f0] sm:$0xff] %vm1491, %v1424
    %1555 = vst.msk [vmem:[#allocation3 + $0x1f8] sm:$0xff] %vm1491, %v1426
    %v1556 = vld [vmem:[%s208 + $0x1] sm:$0xff]
    %v1557 = vld [vmem:[%s208 + $0x9] sm:$0xff]
    %v1558 = vld [vmem:[%s208 + $0x19] sm:$0xff]
    %v1559 = vld [vmem:[%s208 + $0x21] sm:$0xff]
    %v1560 = vld [vmem:[%s208 + $0x31] sm:$0xff]
    %v1561 = vld [vmem:[%s208 + $0x39] sm:$0xff]
    %v1562 = vld [vmem:[%s208 + $0x49] sm:$0xff]
    %v1563 = vld [vmem:[%s208 + $0x51] sm:$0xff]
    %v1564 = vld [vmem:[%s208 + $0x61] sm:$0xff]
    %v1565 = vld [vmem:[%s208 + $0x69] sm:$0xff]
    %v1566 = vld [vmem:[%s208 + $0x79] sm:$0xff]
    %v1567 = vld [vmem:[%s208 + $0x81] sm:$0xff]
    %v1568 = vld [vmem:[%s208 + $0x91] sm:$0xff]
    %v1569 = vld [vmem:[%s208 + $0x99] sm:$0xff]
    %v1570 = vld [vmem:[%s208 + $0xa9] sm:$0xff]
    %v1571 = vld [vmem:[%s208 + $0xb1] sm:$0xff]
    %v1572 = vld [vmem:[%s208 + $0xc1] sm:$0xff]
    %v1573 = vld [vmem:[%s208 + $0xc9] sm:$0xff]
    %v1574 = vld [vmem:[%s208 + $0xd9] sm:$0xff]
    %v1575 = vld [vmem:[%s208 + $0xe1] sm:$0xff]
    %v1576 = vld [vmem:[%s208 + $0xf1] sm:$0xff]
    %v1577 = vld [vmem:[%s208 + $0xf9] sm:$0xff]
    %v1578 = vld [vmem:[%s208 + $0x109] sm:$0xff]
    %v1579 = vld [vmem:[%s208 + $0x111] sm:$0xff]
    %v1580 = vld [vmem:[%s208 + $0x121] sm:$0xff]
    %v1581 = vld [vmem:[%s208 + $0x129] sm:$0xff]
    %v1582 = vld [vmem:[%s208 + $0x139] sm:$0xff]
    %v1583 = vld [vmem:[%s208 + $0x141] sm:$0xff]
    %v1584 = vld [vmem:[%s208 + $0x151] sm:$0xff]
    %v1585 = vld [vmem:[%s208 + $0x159] sm:$0xff]
    %v1586 = vld [vmem:[%s208 + $0x169] sm:$0xff]
    %v1587 = vld [vmem:[%s208 + $0x171] sm:$0xff]
    %v1588 = vld [vmem:[%s208 + $0x1b1] sm:$0xff]
    %v1589 = vld [vmem:[%s208 + $0x1b9] sm:$0xff]
    %v1590 = vld [vmem:[%s208 + $0x1c9] sm:$0xff]
    %v1591 = vld [vmem:[%s208 + $0x1d1] sm:$0xff]
    %v1592 = vld [vmem:[%s208 + $0x1e1] sm:$0xff]
    %v1593 = vld [vmem:[%s208 + $0x1e9] sm:$0xff]
    %v1594 = vld [vmem:[%s208 + $0x1f9] sm:$0xff]
    %v1595 = vld [vmem:[%s208 + $0x201] sm:$0xff]
    %v1596 = vld [vmem:[%s208 + $0x211] sm:$0xff]
    %v1597 = vld [vmem:[%s208 + $0x219] sm:$0xff]
    %v1598 = vld [vmem:[%s208 + $0x229] sm:$0xff]
    %v1599 = vld [vmem:[%s208 + $0x231] sm:$0xff]
    %v1600 = vld [vmem:[%s208 + $0x241] sm:$0xff]
    %v1601 = vld [vmem:[%s208 + $0x249] sm:$0xff]
    %v1602 = vld [vmem:[%s208 + $0x259] sm:$0xff]
    %v1603 = vld [vmem:[%s208 + $0x261] sm:$0xff]
    %v1604 = vld [vmem:[%s208 + $0x271] sm:$0xff]
    %v1605 = vld [vmem:[%s208 + $0x279] sm:$0xff]
    %v1606 = vld [vmem:[%s208 + $0x289] sm:$0xff]
    %v1607 = vld [vmem:[%s208 + $0x291] sm:$0xff]
    %v1608 = vld [vmem:[%s208 + $0x2a1] sm:$0xff]
    %v1609 = vld [vmem:[%s208 + $0x2a9] sm:$0xff]
    %v1610 = vld [vmem:[%s208 + $0x2b9] sm:$0xff]
    %v1611 = vld [vmem:[%s208 + $0x2c1] sm:$0xff]
    %v1612 = vld [vmem:[%s208 + $0x2d1] sm:$0xff]
    %v1613 = vld [vmem:[%s208 + $0x2d9] sm:$0xff]
    %v1614 = vld [vmem:[%s208 + $0x2e9] sm:$0xff]
    %v1615 = vld [vmem:[%s208 + $0x2f1] sm:$0xff]
    %v1616 = vld [vmem:[%s208 + $0x301] sm:$0xff]
    %v1617 = vld [vmem:[%s208 + $0x309] sm:$0xff]
    %v1618 = vld [vmem:[%s208 + $0x319] sm:$0xff]
    %v1619 = vld [vmem:[%s208 + $0x321] sm:$0xff]
    %1684 = vrot.lane.b32.xlu0 %v1556, 16
    %v1685 = vpop.permute.xlu0 %1684
    %1686 = vrot.lane.b32.xlu0 %v1557, 16
    %v1687 = vpop.permute.xlu0 %1686
    %1688 = vrot.lane.b32.xlu0 %v1558, 16
    %v1689 = vpop.permute.xlu0 %1688
    %1690 = vrot.lane.b32.xlu0 %v1559, 16
    %v1691 = vpop.permute.xlu0 %1690
    %1692 = vrot.lane.b32.xlu0 %v1560, 16
    %v1693 = vpop.permute.xlu0 %1692
    %1694 = vrot.lane.b32.xlu0 %v1561, 16
    %v1695 = vpop.permute.xlu0 %1694
    %1696 = vrot.lane.b32.xlu0 %v1562, 16
    %v1697 = vpop.permute.xlu0 %1696
    %1698 = vrot.lane.b32.xlu0 %v1563, 16
    %v1699 = vpop.permute.xlu0 %1698
    %1700 = vrot.lane.b32.xlu0 %v1564, 16
    %v1701 = vpop.permute.xlu0 %1700
    %1702 = vrot.lane.b32.xlu0 %v1565, 16
    %v1703 = vpop.permute.xlu0 %1702
    %1704 = vrot.lane.b32.xlu0 %v1566, 16
    %v1705 = vpop.permute.xlu0 %1704
    %1706 = vrot.lane.b32.xlu0 %v1567, 16
    %v1707 = vpop.permute.xlu0 %1706
    %1708 = vrot.lane.b32.xlu0 %v1568, 16
    %v1709 = vpop.permute.xlu0 %1708
    %1710 = vrot.lane.b32.xlu0 %v1569, 16
    %v1711 = vpop.permute.xlu0 %1710
    %1712 = vrot.lane.b32.xlu0 %v1570, 16
    %v1713 = vpop.permute.xlu0 %1712
    %1714 = vrot.lane.b32.xlu0 %v1571, 16
    %v1715 = vpop.permute.xlu0 %1714
    %1716 = vrot.lane.b32.xlu0 %v1572, 16
    %v1717 = vpop.permute.xlu0 %1716
    %1718 = vrot.lane.b32.xlu0 %v1573, 16
    %v1719 = vpop.permute.xlu0 %1718
    %1720 = vrot.lane.b32.xlu0 %v1574, 16
    %v1721 = vpop.permute.xlu0 %1720
    %1722 = vrot.lane.b32.xlu0 %v1575, 16
    %v1723 = vpop.permute.xlu0 %1722
    %1724 = vrot.lane.b32.xlu0 %v1576, 16
    %v1725 = vpop.permute.xlu0 %1724
    %1726 = vrot.lane.b32.xlu0 %v1577, 16
    %v1727 = vpop.permute.xlu0 %1726
    %1728 = vrot.lane.b32.xlu0 %v1578, 16
    %v1729 = vpop.permute.xlu0 %1728
    %1730 = vrot.lane.b32.xlu0 %v1579, 16
    %v1731 = vpop.permute.xlu0 %1730
    %1732 = vrot.lane.b32.xlu0 %v1580, 16
    %v1733 = vpop.permute.xlu0 %1732
    %1734 = vrot.lane.b32.xlu0 %v1581, 16
    %v1735 = vpop.permute.xlu0 %1734
    %1736 = vrot.lane.b32.xlu0 %v1582, 16
    %v1737 = vpop.permute.xlu0 %1736
    %1738 = vrot.lane.b32.xlu0 %v1583, 16
    %v1739 = vpop.permute.xlu0 %1738
    %1740 = vrot.lane.b32.xlu0 %v1584, 16
    %v1741 = vpop.permute.xlu0 %1740
    %1742 = vrot.lane.b32.xlu0 %v1585, 16
    %v1743 = vpop.permute.xlu0 %1742
    %1744 = vrot.lane.b32.xlu0 %v1586, 16
    %v1745 = vpop.permute.xlu0 %1744
    %1746 = vrot.lane.b32.xlu0 %v1587, 16
    %v1747 = vpop.permute.xlu0 %1746
    %1748 = vrot.lane.b32.xlu0 %v1588, 16
    %v1749 = vpop.permute.xlu0 %1748
    %1750 = vrot.lane.b32.xlu0 %v1589, 16
    %v1751 = vpop.permute.xlu0 %1750
    %1752 = vrot.lane.b32.xlu0 %v1590, 16
    %v1753 = vpop.permute.xlu0 %1752
    %1754 = vrot.lane.b32.xlu0 %v1591, 16
    %v1755 = vpop.permute.xlu0 %1754
    %1756 = vrot.lane.b32.xlu0 %v1592, 16
    %v1757 = vpop.permute.xlu0 %1756
    %1758 = vrot.lane.b32.xlu0 %v1593, 16
    %v1759 = vpop.permute.xlu0 %1758
    %1760 = vrot.lane.b32.xlu0 %v1594, 16
    %v1761 = vpop.permute.xlu0 %1760
    %1762 = vrot.lane.b32.xlu0 %v1595, 16
    %v1763 = vpop.permute.xlu0 %1762
    %1764 = vrot.lane.b32.xlu0 %v1596, 16
    %v1765 = vpop.permute.xlu0 %1764
    %1766 = vrot.lane.b32.xlu0 %v1597, 16
    %v1767 = vpop.permute.xlu0 %1766
    %1768 = vrot.lane.b32.xlu0 %v1598, 16
    %v1769 = vpop.permute.xlu0 %1768
    %1770 = vrot.lane.b32.xlu0 %v1599, 16
    %v1771 = vpop.permute.xlu0 %1770
    %1772 = vrot.lane.b32.xlu0 %v1600, 16
    %v1773 = vpop.permute.xlu0 %1772
    %1774 = vrot.lane.b32.xlu0 %v1601, 16
    %v1775 = vpop.permute.xlu0 %1774
    %1776 = vrot.lane.b32.xlu0 %v1602, 16
    %v1777 = vpop.permute.xlu0 %1776
    %1778 = vrot.lane.b32.xlu0 %v1603, 16
    %v1779 = vpop.permute.xlu0 %1778
    %1780 = vrot.lane.b32.xlu0 %v1604, 16
    %v1781 = vpop.permute.xlu0 %1780
    %1782 = vrot.lane.b32.xlu0 %v1605, 16
    %v1783 = vpop.permute.xlu0 %1782
    %1784 = vrot.lane.b32.xlu0 %v1606, 16
    %v1785 = vpop.permute.xlu0 %1784
    %1786 = vrot.lane.b32.xlu0 %v1607, 16
    %v1787 = vpop.permute.xlu0 %1786
    %1788 = vrot.lane.b32.xlu0 %v1608, 16
    %v1789 = vpop.permute.xlu0 %1788
    %1790 = vrot.lane.b32.xlu0 %v1609, 16
    %v1791 = vpop.permute.xlu0 %1790
    %1792 = vrot.lane.b32.xlu0 %v1610, 16
    %v1793 = vpop.permute.xlu0 %1792
    %1794 = vrot.lane.b32.xlu0 %v1611, 16
    %v1795 = vpop.permute.xlu0 %1794
    %1796 = vrot.lane.b32.xlu0 %v1612, 16
    %v1797 = vpop.permute.xlu0 %1796
    %1798 = vrot.lane.b32.xlu0 %v1613, 16
    %v1799 = vpop.permute.xlu0 %1798
    %1800 = vrot.lane.b32.xlu0 %v1614, 16
    %v1801 = vpop.permute.xlu0 %1800
    %1802 = vrot.lane.b32.xlu0 %v1615, 16
    %v1803 = vpop.permute.xlu0 %1802
    %1804 = vrot.lane.b32.xlu0 %v1616, 16
    %v1805 = vpop.permute.xlu0 %1804
    %1806 = vrot.lane.b32.xlu0 %v1617, 16
    %v1807 = vpop.permute.xlu0 %1806
    %1808 = vrot.lane.b32.xlu0 %v1618, 16
    %v1809 = vpop.permute.xlu0 %1808
    %1810 = vrot.lane.b32.xlu0 %v1619, 16
    %v1811 = vpop.permute.xlu0 %1810
    %vm1876 = vcmask 162944
    %1877 = vst.msk [vmem:[#allocation3] sm:$0xff] %vm1876, %v1685
    %1878 = vst.msk [vmem:[#allocation3 + $0x8] sm:$0xff] %vm1876, %v1687
    %1879 = vst.msk [vmem:[#allocation3 + $0x10] sm:$0xff] %vm1876, %v1689
    %1880 = vst.msk [vmem:[#allocation3 + $0x18] sm:$0xff] %vm1876, %v1691
    %1881 = vst.msk [vmem:[#allocation3 + $0x20] sm:$0xff] %vm1876, %v1693
    %1882 = vst.msk [vmem:[#allocation3 + $0x28] sm:$0xff] %vm1876, %v1695
    %1883 = vst.msk [vmem:[#allocation3 + $0x30] sm:$0xff] %vm1876, %v1697
    %1884 = vst.msk [vmem:[#allocation3 + $0x38] sm:$0xff] %vm1876, %v1699
    %1885 = vst.msk [vmem:[#allocation3 + $0x40] sm:$0xff] %vm1876, %v1701
    %1886 = vst.msk [vmem:[#allocation3 + $0x48] sm:$0xff] %vm1876, %v1703
    %1887 = vst.msk [vmem:[#allocation3 + $0x50] sm:$0xff] %vm1876, %v1705
    %1888 = vst.msk [vmem:[#allocation3 + $0x58] sm:$0xff] %vm1876, %v1707
    %1889 = vst.msk [vmem:[#allocation3 + $0x60] sm:$0xff] %vm1876, %v1709
    %1890 = vst.msk [vmem:[#allocation3 + $0x68] sm:$0xff] %vm1876, %v1711
    %1891 = vst.msk [vmem:[#allocation3 + $0x70] sm:$0xff] %vm1876, %v1713
    %1892 = vst.msk [vmem:[#allocation3 + $0x78] sm:$0xff] %vm1876, %v1715
    %1893 = vst.msk [vmem:[#allocation3 + $0x80] sm:$0xff] %vm1876, %v1717
    %1894 = vst.msk [vmem:[#allocation3 + $0x88] sm:$0xff] %vm1876, %v1719
    %1895 = vst.msk [vmem:[#allocation3 + $0x90] sm:$0xff] %vm1876, %v1721
    %1896 = vst.msk [vmem:[#allocation3 + $0x98] sm:$0xff] %vm1876, %v1723
    %1897 = vst.msk [vmem:[#allocation3 + $0xa0] sm:$0xff] %vm1876, %v1725
    %1898 = vst.msk [vmem:[#allocation3 + $0xa8] sm:$0xff] %vm1876, %v1727
    %1899 = vst.msk [vmem:[#allocation3 + $0xb0] sm:$0xff] %vm1876, %v1729
    %1900 = vst.msk [vmem:[#allocation3 + $0xb8] sm:$0xff] %vm1876, %v1731
    %1901 = vst.msk [vmem:[#allocation3 + $0xc0] sm:$0xff] %vm1876, %v1733
    %1902 = vst.msk [vmem:[#allocation3 + $0xc8] sm:$0xff] %vm1876, %v1735
    %1903 = vst.msk [vmem:[#allocation3 + $0xd0] sm:$0xff] %vm1876, %v1737
    %1904 = vst.msk [vmem:[#allocation3 + $0xd8] sm:$0xff] %vm1876, %v1739
    %1905 = vst.msk [vmem:[#allocation3 + $0xe0] sm:$0xff] %vm1876, %v1741
    %1906 = vst.msk [vmem:[#allocation3 + $0xe8] sm:$0xff] %vm1876, %v1743
    %1907 = vst.msk [vmem:[#allocation3 + $0xf0] sm:$0xff] %vm1876, %v1745
    %1908 = vst.msk [vmem:[#allocation3 + $0xf8] sm:$0xff] %vm1876, %v1747
    %1909 = vst.msk [vmem:[#allocation3 + $0x100] sm:$0xff] %vm1876, %v1749
    %1910 = vst.msk [vmem:[#allocation3 + $0x108] sm:$0xff] %vm1876, %v1751
    %1911 = vst.msk [vmem:[#allocation3 + $0x110] sm:$0xff] %vm1876, %v1753
    %1912 = vst.msk [vmem:[#allocation3 + $0x118] sm:$0xff] %vm1876, %v1755
    %1913 = vst.msk [vmem:[#allocation3 + $0x120] sm:$0xff] %vm1876, %v1757
    %1914 = vst.msk [vmem:[#allocation3 + $0x128] sm:$0xff] %vm1876, %v1759
    %1915 = vst.msk [vmem:[#allocation3 + $0x130] sm:$0xff] %vm1876, %v1761
    %1916 = vst.msk [vmem:[#allocation3 + $0x138] sm:$0xff] %vm1876, %v1763
    %1917 = vst.msk [vmem:[#allocation3 + $0x140] sm:$0xff] %vm1876, %v1765
    %1918 = vst.msk [vmem:[#allocation3 + $0x148] sm:$0xff] %vm1876, %v1767
    %1919 = vst.msk [vmem:[#allocation3 + $0x150] sm:$0xff] %vm1876, %v1769
    %1920 = vst.msk [vmem:[#allocation3 + $0x158] sm:$0xff] %vm1876, %v1771
    %1921 = vst.msk [vmem:[#allocation3 + $0x160] sm:$0xff] %vm1876, %v1773
    %1922 = vst.msk [vmem:[#allocation3 + $0x168] sm:$0xff] %vm1876, %v1775
    %1923 = vst.msk [vmem:[#allocation3 + $0x170] sm:$0xff] %vm1876, %v1777
    %1924 = vst.msk [vmem:[#allocation3 + $0x178] sm:$0xff] %vm1876, %v1779
    %1925 = vst.msk [vmem:[#allocation3 + $0x180] sm:$0xff] %vm1876, %v1781
    %1926 = vst.msk [vmem:[#allocation3 + $0x188] sm:$0xff] %vm1876, %v1783
    %1927 = vst.msk [vmem:[#allocation3 + $0x190] sm:$0xff] %vm1876, %v1785
    %1928 = vst.msk [vmem:[#allocation3 + $0x198] sm:$0xff] %vm1876, %v1787
    %1929 = vst.msk [vmem:[#allocation3 + $0x1a0] sm:$0xff] %vm1876, %v1789
    %1930 = vst.msk [vmem:[#allocation3 + $0x1a8] sm:$0xff] %vm1876, %v1791
    %1931 = vst.msk [vmem:[#allocation3 + $0x1b0] sm:$0xff] %vm1876, %v1793
    %1932 = vst.msk [vmem:[#allocation3 + $0x1b8] sm:$0xff] %vm1876, %v1795
    %1933 = vst.msk [vmem:[#allocation3 + $0x1c0] sm:$0xff] %vm1876, %v1797
    %1934 = vst.msk [vmem:[#allocation3 + $0x1c8] sm:$0xff] %vm1876, %v1799
    %1935 = vst.msk [vmem:[#allocation3 + $0x1d0] sm:$0xff] %vm1876, %v1801
    %1936 = vst.msk [vmem:[#allocation3 + $0x1d8] sm:$0xff] %vm1876, %v1803
    %1937 = vst.msk [vmem:[#allocation3 + $0x1e0] sm:$0xff] %vm1876, %v1805
    %1938 = vst.msk [vmem:[#allocation3 + $0x1e8] sm:$0xff] %vm1876, %v1807
    %1939 = vst.msk [vmem:[#allocation3 + $0x1f0] sm:$0xff] %vm1876, %v1809
    %1940 = vst.msk [vmem:[#allocation3 + $0x1f8] sm:$0xff] %vm1876, %v1811
    %v1941 = vld [vmem:[%s208 + $0x2] sm:$0xff]
    %v1942 = vld [vmem:[%s208 + $0xa] sm:$0xff]
    %v1943 = vld [vmem:[%s208 + $0x1a] sm:$0xff]
    %v1944 = vld [vmem:[%s208 + $0x22] sm:$0xff]
    %v1945 = vld [vmem:[%s208 + $0x32] sm:$0xff]
    %v1946 = vld [vmem:[%s208 + $0x3a] sm:$0xff]
    %v1947 = vld [vmem:[%s208 + $0x4a] sm:$0xff]
    %v1948 = vld [vmem:[%s208 + $0x52] sm:$0xff]
    %v1949 = vld [vmem:[%s208 + $0x62] sm:$0xff]
    %v1950 = vld [vmem:[%s208 + $0x6a] sm:$0xff]
    %v1951 = vld [vmem:[%s208 + $0x7a] sm:$0xff]
    %v1952 = vld [vmem:[%s208 + $0x82] sm:$0xff]
    %v1953 = vld [vmem:[%s208 + $0x92] sm:$0xff]
    %v1954 = vld [vmem:[%s208 + $0x9a] sm:$0xff]
    %v1955 = vld [vmem:[%s208 + $0xaa] sm:$0xff]
    %v1956 = vld [vmem:[%s208 + $0xb2] sm:$0xff]
    %v1957 = vld [vmem:[%s208 + $0xc2] sm:$0xff]
    %v1958 = vld [vmem:[%s208 + $0xca] sm:$0xff]
    %v1959 = vld [vmem:[%s208 + $0xda] sm:$0xff]
    %v1960 = vld [vmem:[%s208 + $0xe2] sm:$0xff]
    %v1961 = vld [vmem:[%s208 + $0xf2] sm:$0xff]
    %v1962 = vld [vmem:[%s208 + $0xfa] sm:$0xff]
    %v1963 = vld [vmem:[%s208 + $0x10a] sm:$0xff]
    %v1964 = vld [vmem:[%s208 + $0x112] sm:$0xff]
    %v1965 = vld [vmem:[%s208 + $0x122] sm:$0xff]
    %v1966 = vld [vmem:[%s208 + $0x12a] sm:$0xff]
    %v1967 = vld [vmem:[%s208 + $0x13a] sm:$0xff]
    %v1968 = vld [vmem:[%s208 + $0x142] sm:$0xff]
    %v1969 = vld [vmem:[%s208 + $0x152] sm:$0xff]
    %v1970 = vld [vmem:[%s208 + $0x15a] sm:$0xff]
    %v1971 = vld [vmem:[%s208 + $0x16a] sm:$0xff]
    %v1972 = vld [vmem:[%s208 + $0x172] sm:$0xff]
    %v1973 = vld [vmem:[%s208 + $0x1b2] sm:$0xff]
    %v1974 = vld [vmem:[%s208 + $0x1ba] sm:$0xff]
    %v1975 = vld [vmem:[%s208 + $0x1ca] sm:$0xff]
    %v1976 = vld [vmem:[%s208 + $0x1d2] sm:$0xff]
    %v1977 = vld [vmem:[%s208 + $0x1e2] sm:$0xff]
    %v1978 = vld [vmem:[%s208 + $0x1ea] sm:$0xff]
    %v1979 = vld [vmem:[%s208 + $0x1fa] sm:$0xff]
    %v1980 = vld [vmem:[%s208 + $0x202] sm:$0xff]
    %v1981 = vld [vmem:[%s208 + $0x212] sm:$0xff]
    %v1982 = vld [vmem:[%s208 + $0x21a] sm:$0xff]
    %v1983 = vld [vmem:[%s208 + $0x22a] sm:$0xff]
    %v1984 = vld [vmem:[%s208 + $0x232] sm:$0xff]
    %v1985 = vld [vmem:[%s208 + $0x242] sm:$0xff]
    %v1986 = vld [vmem:[%s208 + $0x24a] sm:$0xff]
    %v1987 = vld [vmem:[%s208 + $0x25a] sm:$0xff]
    %v1988 = vld [vmem:[%s208 + $0x262] sm:$0xff]
    %v1989 = vld [vmem:[%s208 + $0x272] sm:$0xff]
    %v1990 = vld [vmem:[%s208 + $0x27a] sm:$0xff]
    %v1991 = vld [vmem:[%s208 + $0x28a] sm:$0xff]
    %v1992 = vld [vmem:[%s208 + $0x292] sm:$0xff]
    %v1993 = vld [vmem:[%s208 + $0x2a2] sm:$0xff]
    %v1994 = vld [vmem:[%s208 + $0x2aa] sm:$0xff]
    %v1995 = vld [vmem:[%s208 + $0x2ba] sm:$0xff]
    %v1996 = vld [vmem:[%s208 + $0x2c2] sm:$0xff]
    %v1997 = vld [vmem:[%s208 + $0x2d2] sm:$0xff]
    %v1998 = vld [vmem:[%s208 + $0x2da] sm:$0xff]
    %v1999 = vld [vmem:[%s208 + $0x2ea] sm:$0xff]
    %v2000 = vld [vmem:[%s208 + $0x2f2] sm:$0xff]
    %v2001 = vld [vmem:[%s208 + $0x302] sm:$0xff]
    %v2002 = vld [vmem:[%s208 + $0x30a] sm:$0xff]
    %v2003 = vld [vmem:[%s208 + $0x31a] sm:$0xff]
    %v2004 = vld [vmem:[%s208 + $0x322] sm:$0xff]
    %2069 = vrot.lane.b32.xlu0 %v1941, 20
    %v2070 = vpop.permute.xlu0 %2069
    %2071 = vrot.lane.b32.xlu0 %v1942, 20
    %v2072 = vpop.permute.xlu0 %2071
    %2073 = vrot.lane.b32.xlu0 %v1943, 20
    %v2074 = vpop.permute.xlu0 %2073
    %2075 = vrot.lane.b32.xlu0 %v1944, 20
    %v2076 = vpop.permute.xlu0 %2075
    %2077 = vrot.lane.b32.xlu0 %v1945, 20
    %v2078 = vpop.permute.xlu0 %2077
    %2079 = vrot.lane.b32.xlu0 %v1946, 20
    %v2080 = vpop.permute.xlu0 %2079
    %2081 = vrot.lane.b32.xlu0 %v1947, 20
    %v2082 = vpop.permute.xlu0 %2081
    %2083 = vrot.lane.b32.xlu0 %v1948, 20
    %v2084 = vpop.permute.xlu0 %2083
    %2085 = vrot.lane.b32.xlu0 %v1949, 20
    %v2086 = vpop.permute.xlu0 %2085
    %2087 = vrot.lane.b32.xlu0 %v1950, 20
    %v2088 = vpop.permute.xlu0 %2087
    %2089 = vrot.lane.b32.xlu0 %v1951, 20
    %v2090 = vpop.permute.xlu0 %2089
    %2091 = vrot.lane.b32.xlu0 %v1952, 20
    %v2092 = vpop.permute.xlu0 %2091
    %2093 = vrot.lane.b32.xlu0 %v1953, 20
    %v2094 = vpop.permute.xlu0 %2093
    %2095 = vrot.lane.b32.xlu0 %v1954, 20
    %v2096 = vpop.permute.xlu0 %2095
    %2097 = vrot.lane.b32.xlu0 %v1955, 20
    %v2098 = vpop.permute.xlu0 %2097
    %2099 = vrot.lane.b32.xlu0 %v1956, 20
    %v2100 = vpop.permute.xlu0 %2099
    %2101 = vrot.lane.b32.xlu0 %v1957, 20
    %v2102 = vpop.permute.xlu0 %2101
    %2103 = vrot.lane.b32.xlu0 %v1958, 20
    %v2104 = vpop.permute.xlu0 %2103
    %2105 = vrot.lane.b32.xlu0 %v1959, 20
    %v2106 = vpop.permute.xlu0 %2105
    %2107 = vrot.lane.b32.xlu0 %v1960, 20
    %v2108 = vpop.permute.xlu0 %2107
    %2109 = vrot.lane.b32.xlu0 %v1961, 20
    %v2110 = vpop.permute.xlu0 %2109
    %2111 = vrot.lane.b32.xlu0 %v1962, 20
    %v2112 = vpop.permute.xlu0 %2111
    %2113 = vrot.lane.b32.xlu0 %v1963, 20
    %v2114 = vpop.permute.xlu0 %2113
    %2115 = vrot.lane.b32.xlu0 %v1964, 20
    %v2116 = vpop.permute.xlu0 %2115
    %2117 = vrot.lane.b32.xlu0 %v1965, 20
    %v2118 = vpop.permute.xlu0 %2117
    %2119 = vrot.lane.b32.xlu0 %v1966, 20
    %v2120 = vpop.permute.xlu0 %2119
    %2121 = vrot.lane.b32.xlu0 %v1967, 20
    %v2122 = vpop.permute.xlu0 %2121
    %2123 = vrot.lane.b32.xlu0 %v1968, 20
    %v2124 = vpop.permute.xlu0 %2123
    %2125 = vrot.lane.b32.xlu0 %v1969, 20
    %v2126 = vpop.permute.xlu0 %2125
    %2127 = vrot.lane.b32.xlu0 %v1970, 20
    %v2128 = vpop.permute.xlu0 %2127
    %2129 = vrot.lane.b32.xlu0 %v1971, 20
    %v2130 = vpop.permute.xlu0 %2129
    %2131 = vrot.lane.b32.xlu0 %v1972, 20
    %v2132 = vpop.permute.xlu0 %2131
    %2133 = vrot.lane.b32.xlu0 %v1973, 20
    %v2134 = vpop.permute.xlu0 %2133
    %2135 = vrot.lane.b32.xlu0 %v1974, 20
    %v2136 = vpop.permute.xlu0 %2135
    %2137 = vrot.lane.b32.xlu0 %v1975, 20
    %v2138 = vpop.permute.xlu0 %2137
    %2139 = vrot.lane.b32.xlu0 %v1976, 20
    %v2140 = vpop.permute.xlu0 %2139
    %2141 = vrot.lane.b32.xlu0 %v1977, 20
    %v2142 = vpop.permute.xlu0 %2141
    %2143 = vrot.lane.b32.xlu0 %v1978, 20
    %v2144 = vpop.permute.xlu0 %2143
    %2145 = vrot.lane.b32.xlu0 %v1979, 20
    %v2146 = vpop.permute.xlu0 %2145
    %2147 = vrot.lane.b32.xlu0 %v1980, 20
    %v2148 = vpop.permute.xlu0 %2147
    %2149 = vrot.lane.b32.xlu0 %v1981, 20
    %v2150 = vpop.permute.xlu0 %2149
    %2151 = vrot.lane.b32.xlu0 %v1982, 20
    %v2152 = vpop.permute.xlu0 %2151
    %2153 = vrot.lane.b32.xlu0 %v1983, 20
    %v2154 = vpop.permute.xlu0 %2153
    %2155 = vrot.lane.b32.xlu0 %v1984, 20
    %v2156 = vpop.permute.xlu0 %2155
    %2157 = vrot.lane.b32.xlu0 %v1985, 20
    %v2158 = vpop.permute.xlu0 %2157
    %2159 = vrot.lane.b32.xlu0 %v1986, 20
    %v2160 = vpop.permute.xlu0 %2159
    %2161 = vrot.lane.b32.xlu0 %v1987, 20
    %v2162 = vpop.permute.xlu0 %2161
    %2163 = vrot.lane.b32.xlu0 %v1988, 20
    %v2164 = vpop.permute.xlu0 %2163
    %2165 = vrot.lane.b32.xlu0 %v1989, 20
    %v2166 = vpop.permute.xlu0 %2165
    %2167 = vrot.lane.b32.xlu0 %v1990, 20
    %v2168 = vpop.permute.xlu0 %2167
    %2169 = vrot.lane.b32.xlu0 %v1991, 20
    %v2170 = vpop.permute.xlu0 %2169
    %2171 = vrot.lane.b32.xlu0 %v1992, 20
    %v2172 = vpop.permute.xlu0 %2171
    %2173 = vrot.lane.b32.xlu0 %v1993, 20
    %v2174 = vpop.permute.xlu0 %2173
    %2175 = vrot.lane.b32.xlu0 %v1994, 20
    %v2176 = vpop.permute.xlu0 %2175
    %2177 = vrot.lane.b32.xlu0 %v1995, 20
    %v2178 = vpop.permute.xlu0 %2177
    %2179 = vrot.lane.b32.xlu0 %v1996, 20
    %v2180 = vpop.permute.xlu0 %2179
    %2181 = vrot.lane.b32.xlu0 %v1997, 20
    %v2182 = vpop.permute.xlu0 %2181
    %2183 = vrot.lane.b32.xlu0 %v1998, 20
    %v2184 = vpop.permute.xlu0 %2183
    %2185 = vrot.lane.b32.xlu0 %v1999, 20
    %v2186 = vpop.permute.xlu0 %2185
    %2187 = vrot.lane.b32.xlu0 %v2000, 20
    %v2188 = vpop.permute.xlu0 %2187
    %2189 = vrot.lane.b32.xlu0 %v2001, 20
    %v2190 = vpop.permute.xlu0 %2189
    %2191 = vrot.lane.b32.xlu0 %v2002, 20
    %v2192 = vpop.permute.xlu0 %2191
    %2193 = vrot.lane.b32.xlu0 %v2003, 20
    %v2194 = vpop.permute.xlu0 %2193
    %2195 = vrot.lane.b32.xlu0 %v2004, 20
    %v2196 = vpop.permute.xlu0 %2195
    %vm2261 = vcmask 195744
    %2262 = vst.msk [vmem:[#allocation3] sm:$0xff] %vm2261, %v2070
    %2263 = vst.msk [vmem:[#allocation3 + $0x8] sm:$0xff] %vm2261, %v2072
    %2264 = vst.msk [vmem:[#allocation3 + $0x10] sm:$0xff] %vm2261, %v2074
    %2265 = vst.msk [vmem:[#allocation3 + $0x18] sm:$0xff] %vm2261, %v2076
    %2266 = vst.msk [vmem:[#allocation3 + $0x20] sm:$0xff] %vm2261, %v2078
    %2267 = vst.msk [vmem:[#allocation3 + $0x28] sm:$0xff] %vm2261, %v2080
    %2268 = vst.msk [vmem:[#allocation3 + $0x30] sm:$0xff] %vm2261, %v2082
    %2269 = vst.msk [vmem:[#allocation3 + $0x38] sm:$0xff] %vm2261, %v2084
    %2270 = vst.msk [vmem:[#allocation3 + $0x40] sm:$0xff] %vm2261, %v2086
    %2271 = vst.msk [vmem:[#allocation3 + $0x48] sm:$0xff] %vm2261, %v2088
    %2272 = vst.msk [vmem:[#allocation3 + $0x50] sm:$0xff] %vm2261, %v2090
    %2273 = vst.msk [vmem:[#allocation3 + $0x58] sm:$0xff] %vm2261, %v2092
    %2274 = vst.msk [vmem:[#allocation3 + $0x60] sm:$0xff] %vm2261, %v2094
    %2275 = vst.msk [vmem:[#allocation3 + $0x68] sm:$0xff] %vm2261, %v2096
    %2276 = vst.msk [vmem:[#allocation3 + $0x70] sm:$0xff] %vm2261, %v2098
    %2277 = vst.msk [vmem:[#allocation3 + $0x78] sm:$0xff] %vm2261, %v2100
    %2278 = vst.msk [vmem:[#allocation3 + $0x80] sm:$0xff] %vm2261, %v2102
    %2279 = vst.msk [vmem:[#allocation3 + $0x88] sm:$0xff] %vm2261, %v2104
    %2280 = vst.msk [vmem:[#allocation3 + $0x90] sm:$0xff] %vm2261, %v2106
    %2281 = vst.msk [vmem:[#allocation3 + $0x98] sm:$0xff] %vm2261, %v2108
    %2282 = vst.msk [vmem:[#allocation3 + $0xa0] sm:$0xff] %vm2261, %v2110
    %2283 = vst.msk [vmem:[#allocation3 + $0xa8] sm:$0xff] %vm2261, %v2112
    %2284 = vst.msk [vmem:[#allocation3 + $0xb0] sm:$0xff] %vm2261, %v2114
    %2285 = vst.msk [vmem:[#allocation3 + $0xb8] sm:$0xff] %vm2261, %v2116
    %2286 = vst.msk [vmem:[#allocation3 + $0xc0] sm:$0xff] %vm2261, %v2118
    %2287 = vst.msk [vmem:[#allocation3 + $0xc8] sm:$0xff] %vm2261, %v2120
    %2288 = vst.msk [vmem:[#allocation3 + $0xd0] sm:$0xff] %vm2261, %v2122
    %2289 = vst.msk [vmem:[#allocation3 + $0xd8] sm:$0xff] %vm2261, %v2124
    %2290 = vst.msk [vmem:[#allocation3 + $0xe0] sm:$0xff] %vm2261, %v2126
    %2291 = vst.msk [vmem:[#allocation3 + $0xe8] sm:$0xff] %vm2261, %v2128
    %2292 = vst.msk [vmem:[#allocation3 + $0xf0] sm:$0xff] %vm2261, %v2130
    %2293 = vst.msk [vmem:[#allocation3 + $0xf8] sm:$0xff] %vm2261, %v2132
    %2294 = vst.msk [vmem:[#allocation3 + $0x100] sm:$0xff] %vm2261, %v2134
    %2295 = vst.msk [vmem:[#allocation3 + $0x108] sm:$0xff] %vm2261, %v2136
    %2296 = vst.msk [vmem:[#allocation3 + $0x110] sm:$0xff] %vm2261, %v2138
    %2297 = vst.msk [vmem:[#allocation3 + $0x118] sm:$0xff] %vm2261, %v2140
    %2298 = vst.msk [vmem:[#allocation3 + $0x120] sm:$0xff] %vm2261, %v2142
    %2299 = vst.msk [vmem:[#allocation3 + $0x128] sm:$0xff] %vm2261, %v2144
    %2300 = vst.msk [vmem:[#allocation3 + $0x130] sm:$0xff] %vm2261, %v2146
    %2301 = vst.msk [vmem:[#allocation3 + $0x138] sm:$0xff] %vm2261, %v2148
    %2302 = vst.msk [vmem:[#allocation3 + $0x140] sm:$0xff] %vm2261, %v2150
    %2303 = vst.msk [vmem:[#allocation3 + $0x148] sm:$0xff] %vm2261, %v2152
    %2304 = vst.msk [vmem:[#allocation3 + $0x150] sm:$0xff] %vm2261, %v2154
    %2305 = vst.msk [vmem:[#allocation3 + $0x158] sm:$0xff] %vm2261, %v2156
    %2306 = vst.msk [vmem:[#allocation3 + $0x160] sm:$0xff] %vm2261, %v2158
    %2307 = vst.msk [vmem:[#allocation3 + $0x168] sm:$0xff] %vm2261, %v2160
    %2308 = vst.msk [vmem:[#allocation3 + $0x170] sm:$0xff] %vm2261, %v2162
    %2309 = vst.msk [vmem:[#allocation3 + $0x178] sm:$0xff] %vm2261, %v2164
    %2310 = vst.msk [vmem:[#allocation3 + $0x180] sm:$0xff] %vm2261, %v2166
    %2311 = vst.msk [vmem:[#allocation3 + $0x188] sm:$0xff] %vm2261, %v2168
    %2312 = vst.msk [vmem:[#allocation3 + $0x190] sm:$0xff] %vm2261, %v2170
    %2313 = vst.msk [vmem:[#allocation3 + $0x198] sm:$0xff] %vm2261, %v2172
    %2314 = vst.msk [vmem:[#allocation3 + $0x1a0] sm:$0xff] %vm2261, %v2174
    %2315 = vst.msk [vmem:[#allocation3 + $0x1a8] sm:$0xff] %vm2261, %v2176
    %2316 = vst.msk [vmem:[#allocation3 + $0x1b0] sm:$0xff] %vm2261, %v2178
    %2317 = vst.msk [vmem:[#allocation3 + $0x1b8] sm:$0xff] %vm2261, %v2180
    %2318 = vst.msk [vmem:[#allocation3 + $0x1c0] sm:$0xff] %vm2261, %v2182
    %2319 = vst.msk [vmem:[#allocation3 + $0x1c8] sm:$0xff] %vm2261, %v2184
    %2320 = vst.msk [vmem:[#allocation3 + $0x1d0] sm:$0xff] %vm2261, %v2186
    %2321 = vst.msk [vmem:[#allocation3 + $0x1d8] sm:$0xff] %vm2261, %v2188
    %2322 = vst.msk [vmem:[#allocation3 + $0x1e0] sm:$0xff] %vm2261, %v2190
    %2323 = vst.msk [vmem:[#allocation3 + $0x1e8] sm:$0xff] %vm2261, %v2192
    %2324 = vst.msk [vmem:[#allocation3 + $0x1f0] sm:$0xff] %vm2261, %v2194
    %2325 = vst.msk [vmem:[#allocation3 + $0x1f8] sm:$0xff] %vm2261, %v2196
    %s2326 = scalar_lea.vmem [#allocation2], 48
    %v2327 = vld [vmem:[%s2326] sm:$0xff]
    %v2328 = vld [vmem:[%s2326 + $0x8] sm:$0xff]
    %v2329 = vld [vmem:[%s2326 + $0x18] sm:$0xff]
    %v2330 = vld [vmem:[%s2326 + $0x20] sm:$0xff]
    %v2331 = vld [vmem:[%s2326 + $0x30] sm:$0xff]
    %v2332 = vld [vmem:[%s2326 + $0x38] sm:$0xff]
    %v2333 = vld [vmem:[%s2326 + $0x48] sm:$0xff]
    %v2334 = vld [vmem:[%s2326 + $0x50] sm:$0xff]
    %v2335 = vld [vmem:[%s2326 + $0x60] sm:$0xff]
    %v2336 = vld [vmem:[%s2326 + $0x68] sm:$0xff]
    %v2337 = vld [vmem:[%s2326 + $0x78] sm:$0xff]
    %v2338 = vld [vmem:[%s2326 + $0x80] sm:$0xff]
    %v2339 = vld [vmem:[%s2326 + $0x90] sm:$0xff]
    %v2340 = vld [vmem:[%s2326 + $0x98] sm:$0xff]
    %v2341 = vld [vmem:[%s2326 + $0xa8] sm:$0xff]
    %v2342 = vld [vmem:[%s2326 + $0xb0] sm:$0xff]
    %v2343 = vld [vmem:[%s2326 + $0xc0] sm:$0xff]
    %v2344 = vld [vmem:[%s2326 + $0xc8] sm:$0xff]
    %v2345 = vld [vmem:[%s2326 + $0xd8] sm:$0xff]
    %v2346 = vld [vmem:[%s2326 + $0xe0] sm:$0xff]
    %v2347 = vld [vmem:[%s2326 + $0xf0] sm:$0xff]
    %v2348 = vld [vmem:[%s2326 + $0xf8] sm:$0xff]
    %v2349 = vld [vmem:[%s2326 + $0x108] sm:$0xff]
    %v2350 = vld [vmem:[%s2326 + $0x110] sm:$0xff]
    %v2351 = vld [vmem:[%s2326 + $0x120] sm:$0xff]
    %v2352 = vld [vmem:[%s2326 + $0x128] sm:$0xff]
    %v2353 = vld [vmem:[%s2326 + $0x138] sm:$0xff]
    %v2354 = vld [vmem:[%s2326 + $0x140] sm:$0xff]
    %v2355 = vld [vmem:[%s2326 + $0x150] sm:$0xff]
    %v2356 = vld [vmem:[%s2326 + $0x158] sm:$0xff]
    %v2357 = vld [vmem:[%s2326 + $0x168] sm:$0xff]
    %v2358 = vld [vmem:[%s2326 + $0x170] sm:$0xff]
    %v2359 = vld [vmem:[%s2326 + $0x1b0] sm:$0xff]
    %v2360 = vld [vmem:[%s2326 + $0x1b8] sm:$0xff]
    %v2361 = vld [vmem:[%s2326 + $0x1c8] sm:$0xff]
    %v2362 = vld [vmem:[%s2326 + $0x1d0] sm:$0xff]
    %v2363 = vld [vmem:[%s2326 + $0x1e0] sm:$0xff]
    %v2364 = vld [vmem:[%s2326 + $0x1e8] sm:$0xff]
    %v2365 = vld [vmem:[%s2326 + $0x1f8] sm:$0xff]
    %v2366 = vld [vmem:[%s2326 + $0x200] sm:$0xff]
    %v2367 = vld [vmem:[%s2326 + $0x210] sm:$0xff]
    %v2368 = vld [vmem:[%s2326 + $0x218] sm:$0xff]
    %v2369 = vld [vmem:[%s2326 + $0x228] sm:$0xff]
    %v2370 = vld [vmem:[%s2326 + $0x230] sm:$0xff]
    %v2371 = vld [vmem:[%s2326 + $0x240] sm:$0xff]
    %v2372 = vld [vmem:[%s2326 + $0x248] sm:$0xff]
    %v2373 = vld [vmem:[%s2326 + $0x258] sm:$0xff]
    %v2374 = vld [vmem:[%s2326 + $0x260] sm:$0xff]
    %v2375 = vld [vmem:[%s2326 + $0x270] sm:$0xff]
    %v2376 = vld [vmem:[%s2326 + $0x278] sm:$0xff]
    %v2377 = vld [vmem:[%s2326 + $0x288] sm:$0xff]
    %v2378 = vld [vmem:[%s2326 + $0x290] sm:$0xff]
    %v2379 = vld [vmem:[%s2326 + $0x2a0] sm:$0xff]
    %v2380 = vld [vmem:[%s2326 + $0x2a8] sm:$0xff]
    %v2381 = vld [vmem:[%s2326 + $0x2b8] sm:$0xff]
    %v2382 = vld [vmem:[%s2326 + $0x2c0] sm:$0xff]
    %v2383 = vld [vmem:[%s2326 + $0x2d0] sm:$0xff]
    %v2384 = vld [vmem:[%s2326 + $0x2d8] sm:$0xff]
    %v2385 = vld [vmem:[%s2326 + $0x2e8] sm:$0xff]
    %v2386 = vld [vmem:[%s2326 + $0x2f0] sm:$0xff]
    %v2387 = vld [vmem:[%s2326 + $0x300] sm:$0xff]
    %v2388 = vld [vmem:[%s2326 + $0x308] sm:$0xff]
    %v2389 = vld [vmem:[%s2326 + $0x318] sm:$0xff]
    %v2390 = vld [vmem:[%s2326 + $0x320] sm:$0xff]
    %2455 = vrot.lane.b32.xlu0 %v2327, 24
    %v2456 = vpop.permute.xlu0 %2455
    %2457 = vrot.lane.b32.xlu0 %v2328, 24
    %v2458 = vpop.permute.xlu0 %2457
    %2459 = vrot.lane.b32.xlu0 %v2329, 24
    %v2460 = vpop.permute.xlu0 %2459
    %2461 = vrot.lane.b32.xlu0 %v2330, 24
    %v2462 = vpop.permute.xlu0 %2461
    %2463 = vrot.lane.b32.xlu0 %v2331, 24
    %v2464 = vpop.permute.xlu0 %2463
    %2465 = vrot.lane.b32.xlu0 %v2332, 24
    %v2466 = vpop.permute.xlu0 %2465
    %2467 = vrot.lane.b32.xlu0 %v2333, 24
    %v2468 = vpop.permute.xlu0 %2467
    %2469 = vrot.lane.b32.xlu0 %v2334, 24
    %v2470 = vpop.permute.xlu0 %2469
    %2471 = vrot.lane.b32.xlu0 %v2335, 24
    %v2472 = vpop.permute.xlu0 %2471
    %2473 = vrot.lane.b32.xlu0 %v2336, 24
    %v2474 = vpop.permute.xlu0 %2473
    %2475 = vrot.lane.b32.xlu0 %v2337, 24
    %v2476 = vpop.permute.xlu0 %2475
    %2477 = vrot.lane.b32.xlu0 %v2338, 24
    %v2478 = vpop.permute.xlu0 %2477
    %2479 = vrot.lane.b32.xlu0 %v2339, 24
    %v2480 = vpop.permute.xlu0 %2479
    %2481 = vrot.lane.b32.xlu0 %v2340, 24
    %v2482 = vpop.permute.xlu0 %2481
    %2483 = vrot.lane.b32.xlu0 %v2341, 24
    %v2484 = vpop.permute.xlu0 %2483
    %2485 = vrot.lane.b32.xlu0 %v2342, 24
    %v2486 = vpop.permute.xlu0 %2485
    %2487 = vrot.lane.b32.xlu0 %v2343, 24
    %v2488 = vpop.permute.xlu0 %2487
    %2489 = vrot.lane.b32.xlu0 %v2344, 24
    %v2490 = vpop.permute.xlu0 %2489
    %2491 = vrot.lane.b32.xlu0 %v2345, 24
    %v2492 = vpop.permute.xlu0 %2491
    %2493 = vrot.lane.b32.xlu0 %v2346, 24
    %v2494 = vpop.permute.xlu0 %2493
    %2495 = vrot.lane.b32.xlu0 %v2347, 24
    %v2496 = vpop.permute.xlu0 %2495
    %2497 = vrot.lane.b32.xlu0 %v2348, 24
    %v2498 = vpop.permute.xlu0 %2497
    %2499 = vrot.lane.b32.xlu0 %v2349, 24
    %v2500 = vpop.permute.xlu0 %2499
    %2501 = vrot.lane.b32.xlu0 %v2350, 24
    %v2502 = vpop.permute.xlu0 %2501
    %2503 = vrot.lane.b32.xlu0 %v2351, 24
    %v2504 = vpop.permute.xlu0 %2503
    %2505 = vrot.lane.b32.xlu0 %v2352, 24
    %v2506 = vpop.permute.xlu0 %2505
    %2507 = vrot.lane.b32.xlu0 %v2353, 24
    %v2508 = vpop.permute.xlu0 %2507
    %2509 = vrot.lane.b32.xlu0 %v2354, 24
    %v2510 = vpop.permute.xlu0 %2509
    %2511 = vrot.lane.b32.xlu0 %v2355, 24
    %v2512 = vpop.permute.xlu0 %2511
    %2513 = vrot.lane.b32.xlu0 %v2356, 24
    %v2514 = vpop.permute.xlu0 %2513
    %2515 = vrot.lane.b32.xlu0 %v2357, 24
    %v2516 = vpop.permute.xlu0 %2515
    %2517 = vrot.lane.b32.xlu0 %v2358, 24
    %v2518 = vpop.permute.xlu0 %2517
    %2519 = vrot.lane.b32.xlu0 %v2359, 24
    %v2520 = vpop.permute.xlu0 %2519
    %2521 = vrot.lane.b32.xlu0 %v2360, 24
    %v2522 = vpop.permute.xlu0 %2521
    %2523 = vrot.lane.b32.xlu0 %v2361, 24
    %v2524 = vpop.permute.xlu0 %2523
    %2525 = vrot.lane.b32.xlu0 %v2362, 24
    %v2526 = vpop.permute.xlu0 %2525
    %2527 = vrot.lane.b32.xlu0 %v2363, 24
    %v2528 = vpop.permute.xlu0 %2527
    %2529 = vrot.lane.b32.xlu0 %v2364, 24
    %v2530 = vpop.permute.xlu0 %2529
    %2531 = vrot.lane.b32.xlu0 %v2365, 24
    %v2532 = vpop.permute.xlu0 %2531
    %2533 = vrot.lane.b32.xlu0 %v2366, 24
    %v2534 = vpop.permute.xlu0 %2533
    %2535 = vrot.lane.b32.xlu0 %v2367, 24
    %v2536 = vpop.permute.xlu0 %2535
    %2537 = vrot.lane.b32.xlu0 %v2368, 24
    %v2538 = vpop.permute.xlu0 %2537
    %2539 = vrot.lane.b32.xlu0 %v2369, 24
    %v2540 = vpop.permute.xlu0 %2539
    %2541 = vrot.lane.b32.xlu0 %v2370, 24
    %v2542 = vpop.permute.xlu0 %2541
    %2543 = vrot.lane.b32.xlu0 %v2371, 24
    %v2544 = vpop.permute.xlu0 %2543
    %2545 = vrot.lane.b32.xlu0 %v2372, 24
    %v2546 = vpop.permute.xlu0 %2545
    %2547 = vrot.lane.b32.xlu0 %v2373, 24
    %v2548 = vpop.permute.xlu0 %2547
    %2549 = vrot.lane.b32.xlu0 %v2374, 24
    %v2550 = vpop.permute.xlu0 %2549
    %2551 = vrot.lane.b32.xlu0 %v2375, 24
    %v2552 = vpop.permute.xlu0 %2551
    %2553 = vrot.lane.b32.xlu0 %v2376, 24
    %v2554 = vpop.permute.xlu0 %2553
    %2555 = vrot.lane.b32.xlu0 %v2377, 24
    %v2556 = vpop.permute.xlu0 %2555
    %2557 = vrot.lane.b32.xlu0 %v2378, 24
    %v2558 = vpop.permute.xlu0 %2557
    %2559 = vrot.lane.b32.xlu0 %v2379, 24
    %v2560 = vpop.permute.xlu0 %2559
    %2561 = vrot.lane.b32.xlu0 %v2380, 24
    %v2562 = vpop.permute.xlu0 %2561
    %2563 = vrot.lane.b32.xlu0 %v2381, 24
    %v2564 = vpop.permute.xlu0 %2563
    %2565 = vrot.lane.b32.xlu0 %v2382, 24
    %v2566 = vpop.permute.xlu0 %2565
    %2567 = vrot.lane.b32.xlu0 %v2383, 24
    %v2568 = vpop.permute.xlu0 %2567
    %2569 = vrot.lane.b32.xlu0 %v2384, 24
    %v2570 = vpop.permute.xlu0 %2569
    %2571 = vrot.lane.b32.xlu0 %v2385, 24
    %v2572 = vpop.permute.xlu0 %2571
    %2573 = vrot.lane.b32.xlu0 %v2386, 24
    %v2574 = vpop.permute.xlu0 %2573
    %2575 = vrot.lane.b32.xlu0 %v2387, 24
    %v2576 = vpop.permute.xlu0 %2575
    %2577 = vrot.lane.b32.xlu0 %v2388, 24
    %v2578 = vpop.permute.xlu0 %2577
    %2579 = vrot.lane.b32.xlu0 %v2389, 24
    %v2580 = vpop.permute.xlu0 %2579
    %2581 = vrot.lane.b32.xlu0 %v2390, 24
    %v2582 = vpop.permute.xlu0 %2581
    %vm2647 = vcmask 228544
    %2648 = vst.msk [vmem:[#allocation3] sm:$0xff] %vm2647, %v2456
    %2649 = vst.msk [vmem:[#allocation3 + $0x8] sm:$0xff] %vm2647, %v2458
    %2650 = vst.msk [vmem:[#allocation3 + $0x10] sm:$0xff] %vm2647, %v2460
    %2651 = vst.msk [vmem:[#allocation3 + $0x18] sm:$0xff] %vm2647, %v2462
    %2652 = vst.msk [vmem:[#allocation3 + $0x20] sm:$0xff] %vm2647, %v2464
    %2653 = vst.msk [vmem:[#allocation3 + $0x28] sm:$0xff] %vm2647, %v2466
    %2654 = vst.msk [vmem:[#allocation3 + $0x30] sm:$0xff] %vm2647, %v2468
    %2655 = vst.msk [vmem:[#allocation3 + $0x38] sm:$0xff] %vm2647, %v2470
    %2656 = vst.msk [vmem:[#allocation3 + $0x40] sm:$0xff] %vm2647, %v2472
    %2657 = vst.msk [vmem:[#allocation3 + $0x48] sm:$0xff] %vm2647, %v2474
    %2658 = vst.msk [vmem:[#allocation3 + $0x50] sm:$0xff] %vm2647, %v2476
    %2659 = vst.msk [vmem:[#allocation3 + $0x58] sm:$0xff] %vm2647, %v2478
    %2660 = vst.msk [vmem:[#allocation3 + $0x60] sm:$0xff] %vm2647, %v2480
    %2661 = vst.msk [vmem:[#allocation3 + $0x68] sm:$0xff] %vm2647, %v2482
    %2662 = vst.msk [vmem:[#allocation3 + $0x70] sm:$0xff] %vm2647, %v2484
    %2663 = vst.msk [vmem:[#allocation3 + $0x78] sm:$0xff] %vm2647, %v2486
    %2664 = vst.msk [vmem:[#allocation3 + $0x80] sm:$0xff] %vm2647, %v2488
    %2665 = vst.msk [vmem:[#allocation3 + $0x88] sm:$0xff] %vm2647, %v2490
    %2666 = vst.msk [vmem:[#allocation3 + $0x90] sm:$0xff] %vm2647, %v2492
    %2667 = vst.msk [vmem:[#allocation3 + $0x98] sm:$0xff] %vm2647, %v2494
    %2668 = vst.msk [vmem:[#allocation3 + $0xa0] sm:$0xff] %vm2647, %v2496
    %2669 = vst.msk [vmem:[#allocation3 + $0xa8] sm:$0xff] %vm2647, %v2498
    %2670 = vst.msk [vmem:[#allocation3 + $0xb0] sm:$0xff] %vm2647, %v2500
    %2671 = vst.msk [vmem:[#allocation3 + $0xb8] sm:$0xff] %vm2647, %v2502
    %2672 = vst.msk [vmem:[#allocation3 + $0xc0] sm:$0xff] %vm2647, %v2504
    %2673 = vst.msk [vmem:[#allocation3 + $0xc8] sm:$0xff] %vm2647, %v2506
    %2674 = vst.msk [vmem:[#allocation3 + $0xd0] sm:$0xff] %vm2647, %v2508
    %2675 = vst.msk [vmem:[#allocation3 + $0xd8] sm:$0xff] %vm2647, %v2510
    %2676 = vst.msk [vmem:[#allocation3 + $0xe0] sm:$0xff] %vm2647, %v2512
    %2677 = vst.msk [vmem:[#allocation3 + $0xe8] sm:$0xff] %vm2647, %v2514
    %2678 = vst.msk [vmem:[#allocation3 + $0xf0] sm:$0xff] %vm2647, %v2516
    %2679 = vst.msk [vmem:[#allocation3 + $0xf8] sm:$0xff] %vm2647, %v2518
    %2680 = vst.msk [vmem:[#allocation3 + $0x100] sm:$0xff] %vm2647, %v2520
    %2681 = vst.msk [vmem:[#allocation3 + $0x108] sm:$0xff] %vm2647, %v2522
    %2682 = vst.msk [vmem:[#allocation3 + $0x110] sm:$0xff] %vm2647, %v2524
    %2683 = vst.msk [vmem:[#allocation3 + $0x118] sm:$0xff] %vm2647, %v2526
    %2684 = vst.msk [vmem:[#allocation3 + $0x120] sm:$0xff] %vm2647, %v2528
    %2685 = vst.msk [vmem:[#allocation3 + $0x128] sm:$0xff] %vm2647, %v2530
    %2686 = vst.msk [vmem:[#allocation3 + $0x130] sm:$0xff] %vm2647, %v2532
    %2687 = vst.msk [vmem:[#allocation3 + $0x138] sm:$0xff] %vm2647, %v2534
    %2688 = vst.msk [vmem:[#allocation3 + $0x140] sm:$0xff] %vm2647, %v2536
    %2689 = vst.msk [vmem:[#allocation3 + $0x148] sm:$0xff] %vm2647, %v2538
    %2690 = vst.msk [vmem:[#allocation3 + $0x150] sm:$0xff] %vm2647, %v2540
    %2691 = vst.msk [vmem:[#allocation3 + $0x158] sm:$0xff] %vm2647, %v2542
    %2692 = vst.msk [vmem:[#allocation3 + $0x160] sm:$0xff] %vm2647, %v2544
    %2693 = vst.msk [vmem:[#allocation3 + $0x168] sm:$0xff] %vm2647, %v2546
    %2694 = vst.msk [vmem:[#allocation3 + $0x170] sm:$0xff] %vm2647, %v2548
    %2695 = vst.msk [vmem:[#allocation3 + $0x178] sm:$0xff] %vm2647, %v2550
    %2696 = vst.msk [vmem:[#allocation3 + $0x180] sm:$0xff] %vm2647, %v2552
    %2697 = vst.msk [vmem:[#allocation3 + $0x188] sm:$0xff] %vm2647, %v2554
    %2698 = vst.msk [vmem:[#allocation3 + $0x190] sm:$0xff] %vm2647, %v2556
    %2699 = vst.msk [vmem:[#allocation3 + $0x198] sm:$0xff] %vm2647, %v2558
    %2700 = vst.msk [vmem:[#allocation3 + $0x1a0] sm:$0xff] %vm2647, %v2560
    %2701 = vst.msk [vmem:[#allocation3 + $0x1a8] sm:$0xff] %vm2647, %v2562
    %2702 = vst.msk [vmem:[#allocation3 + $0x1b0] sm:$0xff] %vm2647, %v2564
    %2703 = vst.msk [vmem:[#allocation3 + $0x1b8] sm:$0xff] %vm2647, %v2566
    %2704 = vst.msk [vmem:[#allocation3 + $0x1c0] sm:$0xff] %vm2647, %v2568
    %2705 = vst.msk [vmem:[#allocation3 + $0x1c8] sm:$0xff] %vm2647, %v2570
    %2706 = vst.msk [vmem:[#allocation3 + $0x1d0] sm:$0xff] %vm2647, %v2572
    %2707 = vst.msk [vmem:[#allocation3 + $0x1d8] sm:$0xff] %vm2647, %v2574
    %2708 = vst.msk [vmem:[#allocation3 + $0x1e0] sm:$0xff] %vm2647, %v2576
    %2709 = vst.msk [vmem:[#allocation3 + $0x1e8] sm:$0xff] %vm2647, %v2578
    %2710 = vst.msk [vmem:[#allocation3 + $0x1f0] sm:$0xff] %vm2647, %v2580
    %2711 = vst.msk [vmem:[#allocation3 + $0x1f8] sm:$0xff] %vm2647, %v2582
    %v2712 = vld [vmem:[%s2326 + $0x1] sm:$0xff]
    %v2713 = vld [vmem:[%s2326 + $0x9] sm:$0xff]
    %v2714 = vld [vmem:[%s2326 + $0x19] sm:$0xff]
    %v2715 = vld [vmem:[%s2326 + $0x21] sm:$0xff]
    %v2716 = vld [vmem:[%s2326 + $0x31] sm:$0xff]
    %v2717 = vld [vmem:[%s2326 + $0x39] sm:$0xff]
    %v2718 = vld [vmem:[%s2326 + $0x49] sm:$0xff]
    %v2719 = vld [vmem:[%s2326 + $0x51] sm:$0xff]
    %v2720 = vld [vmem:[%s2326 + $0x61] sm:$0xff]
    %v2721 = vld [vmem:[%s2326 + $0x69] sm:$0xff]
    %v2722 = vld [vmem:[%s2326 + $0x79] sm:$0xff]
    %v2723 = vld [vmem:[%s2326 + $0x81] sm:$0xff]
    %v2724 = vld [vmem:[%s2326 + $0x91] sm:$0xff]
    %v2725 = vld [vmem:[%s2326 + $0x99] sm:$0xff]
    %v2726 = vld [vmem:[%s2326 + $0xa9] sm:$0xff]
    %v2727 = vld [vmem:[%s2326 + $0xb1] sm:$0xff]
    %v2728 = vld [vmem:[%s2326 + $0xc1] sm:$0xff]
    %v2729 = vld [vmem:[%s2326 + $0xc9] sm:$0xff]
    %v2730 = vld [vmem:[%s2326 + $0xd9] sm:$0xff]
    %v2731 = vld [vmem:[%s2326 + $0xe1] sm:$0xff]
    %v2732 = vld [vmem:[%s2326 + $0xf1] sm:$0xff]
    %v2733 = vld [vmem:[%s2326 + $0xf9] sm:$0xff]
    %v2734 = vld [vmem:[%s2326 + $0x109] sm:$0xff]
    %v2735 = vld [vmem:[%s2326 + $0x111] sm:$0xff]
    %v2736 = vld [vmem:[%s2326 + $0x121] sm:$0xff]
    %v2737 = vld [vmem:[%s2326 + $0x129] sm:$0xff]
    %v2738 = vld [vmem:[%s2326 + $0x139] sm:$0xff]
    %v2739 = vld [vmem:[%s2326 + $0x141] sm:$0xff]
    %v2740 = vld [vmem:[%s2326 + $0x151] sm:$0xff]
    %v2741 = vld [vmem:[%s2326 + $0x159] sm:$0xff]
    %v2742 = vld [vmem:[%s2326 + $0x169] sm:$0xff]
    %v2743 = vld [vmem:[%s2326 + $0x171] sm:$0xff]
    %v2744 = vld [vmem:[%s2326 + $0x1b1] sm:$0xff]
    %v2745 = vld [vmem:[%s2326 + $0x1b9] sm:$0xff]
    %v2746 = vld [vmem:[%s2326 + $0x1c9] sm:$0xff]
    %v2747 = vld [vmem:[%s2326 + $0x1d1] sm:$0xff]
    %v2748 = vld [vmem:[%s2326 + $0x1e1] sm:$0xff]
    %v2749 = vld [vmem:[%s2326 + $0x1e9] sm:$0xff]
    %v2750 = vld [vmem:[%s2326 + $0x1f9] sm:$0xff]
    %v2751 = vld [vmem:[%s2326 + $0x201] sm:$0xff]
    %v2752 = vld [vmem:[%s2326 + $0x211] sm:$0xff]
    %v2753 = vld [vmem:[%s2326 + $0x219] sm:$0xff]
    %v2754 = vld [vmem:[%s2326 + $0x229] sm:$0xff]
    %v2755 = vld [vmem:[%s2326 + $0x231] sm:$0xff]
    %v2756 = vld [vmem:[%s2326 + $0x241] sm:$0xff]
    %v2757 = vld [vmem:[%s2326 + $0x249] sm:$0xff]
    %v2758 = vld [vmem:[%s2326 + $0x259] sm:$0xff]
    %v2759 = vld [vmem:[%s2326 + $0x261] sm:$0xff]
    %v2760 = vld [vmem:[%s2326 + $0x271] sm:$0xff]
    %v2761 = vld [vmem:[%s2326 + $0x279] sm:$0xff]
    %v2762 = vld [vmem:[%s2326 + $0x289] sm:$0xff]
    %v2763 = vld [vmem:[%s2326 + $0x291] sm:$0xff]
    %v2764 = vld [vmem:[%s2326 + $0x2a1] sm:$0xff]
    %v2765 = vld [vmem:[%s2326 + $0x2a9] sm:$0xff]
    %v2766 = vld [vmem:[%s2326 + $0x2b9] sm:$0xff]
    %v2767 = vld [vmem:[%s2326 + $0x2c1] sm:$0xff]
    %v2768 = vld [vmem:[%s2326 + $0x2d1] sm:$0xff]
    %v2769 = vld [vmem:[%s2326 + $0x2d9] sm:$0xff]
    %v2770 = vld [vmem:[%s2326 + $0x2e9] sm:$0xff]
    %v2771 = vld [vmem:[%s2326 + $0x2f1] sm:$0xff]
    %v2772 = vld [vmem:[%s2326 + $0x301] sm:$0xff]
    %v2773 = vld [vmem:[%s2326 + $0x309] sm:$0xff]
    %v2774 = vld [vmem:[%s2326 + $0x319] sm:$0xff]
    %v2775 = vld [vmem:[%s2326 + $0x321] sm:$0xff]
    %2840 = vrot.lane.b32.xlu0 %v2712, 28
    %v2841 = vpop.permute.xlu0 %2840
    %2842 = vrot.lane.b32.xlu0 %v2713, 28
    %v2843 = vpop.permute.xlu0 %2842
    %2844 = vrot.lane.b32.xlu0 %v2714, 28
    %v2845 = vpop.permute.xlu0 %2844
    %2846 = vrot.lane.b32.xlu0 %v2715, 28
    %v2847 = vpop.permute.xlu0 %2846
    %2848 = vrot.lane.b32.xlu0 %v2716, 28
    %v2849 = vpop.permute.xlu0 %2848
    %2850 = vrot.lane.b32.xlu0 %v2717, 28
    %v2851 = vpop.permute.xlu0 %2850
    %2852 = vrot.lane.b32.xlu0 %v2718, 28
    %v2853 = vpop.permute.xlu0 %2852
    %2854 = vrot.lane.b32.xlu0 %v2719, 28
    %v2855 = vpop.permute.xlu0 %2854
    %2856 = vrot.lane.b32.xlu0 %v2720, 28
    %v2857 = vpop.permute.xlu0 %2856
    %2858 = vrot.lane.b32.xlu0 %v2721, 28
    %v2859 = vpop.permute.xlu0 %2858
    %2860 = vrot.lane.b32.xlu0 %v2722, 28
    %v2861 = vpop.permute.xlu0 %2860
    %2862 = vrot.lane.b32.xlu0 %v2723, 28
    %v2863 = vpop.permute.xlu0 %2862
    %2864 = vrot.lane.b32.xlu0 %v2724, 28
    %v2865 = vpop.permute.xlu0 %2864
    %2866 = vrot.lane.b32.xlu0 %v2725, 28
    %v2867 = vpop.permute.xlu0 %2866
    %2868 = vrot.lane.b32.xlu0 %v2726, 28
    %v2869 = vpop.permute.xlu0 %2868
    %2870 = vrot.lane.b32.xlu0 %v2727, 28
    %v2871 = vpop.permute.xlu0 %2870
    %2872 = vrot.lane.b32.xlu0 %v2728, 28
    %v2873 = vpop.permute.xlu0 %2872
    %2874 = vrot.lane.b32.xlu0 %v2729, 28
    %v2875 = vpop.permute.xlu0 %2874
    %2876 = vrot.lane.b32.xlu0 %v2730, 28
    %v2877 = vpop.permute.xlu0 %2876
    %2878 = vrot.lane.b32.xlu0 %v2731, 28
    %v2879 = vpop.permute.xlu0 %2878
    %2880 = vrot.lane.b32.xlu0 %v2732, 28
    %v2881 = vpop.permute.xlu0 %2880
    %2882 = vrot.lane.b32.xlu0 %v2733, 28
    %v2883 = vpop.permute.xlu0 %2882
    %2884 = vrot.lane.b32.xlu0 %v2734, 28
    %v2885 = vpop.permute.xlu0 %2884
    %2886 = vrot.lane.b32.xlu0 %v2735, 28
    %v2887 = vpop.permute.xlu0 %2886
    %2888 = vrot.lane.b32.xlu0 %v2736, 28
    %v2889 = vpop.permute.xlu0 %2888
    %2890 = vrot.lane.b32.xlu0 %v2737, 28
    %v2891 = vpop.permute.xlu0 %2890
    %2892 = vrot.lane.b32.xlu0 %v2738, 28
    %v2893 = vpop.permute.xlu0 %2892
    %2894 = vrot.lane.b32.xlu0 %v2739, 28
    %v2895 = vpop.permute.xlu0 %2894
    %2896 = vrot.lane.b32.xlu0 %v2740, 28
    %v2897 = vpop.permute.xlu0 %2896
    %2898 = vrot.lane.b32.xlu0 %v2741, 28
    %v2899 = vpop.permute.xlu0 %2898
    %2900 = vrot.lane.b32.xlu0 %v2742, 28
    %v2901 = vpop.permute.xlu0 %2900
    %2902 = vrot.lane.b32.xlu0 %v2743, 28
    %v2903 = vpop.permute.xlu0 %2902
    %2904 = vrot.lane.b32.xlu0 %v2744, 28
    %v2905 = vpop.permute.xlu0 %2904
    %2906 = vrot.lane.b32.xlu0 %v2745, 28
    %v2907 = vpop.permute.xlu0 %2906
    %2908 = vrot.lane.b32.xlu0 %v2746, 28
    %v2909 = vpop.permute.xlu0 %2908
    %2910 = vrot.lane.b32.xlu0 %v2747, 28
    %v2911 = vpop.permute.xlu0 %2910
    %2912 = vrot.lane.b32.xlu0 %v2748, 28
    %v2913 = vpop.permute.xlu0 %2912
    %2914 = vrot.lane.b32.xlu0 %v2749, 28
    %v2915 = vpop.permute.xlu0 %2914
    %2916 = vrot.lane.b32.xlu0 %v2750, 28
    %v2917 = vpop.permute.xlu0 %2916
    %2918 = vrot.lane.b32.xlu0 %v2751, 28
    %v2919 = vpop.permute.xlu0 %2918
    %2920 = vrot.lane.b32.xlu0 %v2752, 28
    %v2921 = vpop.permute.xlu0 %2920
    %2922 = vrot.lane.b32.xlu0 %v2753, 28
    %v2923 = vpop.permute.xlu0 %2922
    %2924 = vrot.lane.b32.xlu0 %v2754, 28
    %v2925 = vpop.permute.xlu0 %2924
    %2926 = vrot.lane.b32.xlu0 %v2755, 28
    %v2927 = vpop.permute.xlu0 %2926
    %2928 = vrot.lane.b32.xlu0 %v2756, 28
    %v2929 = vpop.permute.xlu0 %2928
    %2930 = vrot.lane.b32.xlu0 %v2757, 28
    %v2931 = vpop.permute.xlu0 %2930
    %2932 = vrot.lane.b32.xlu0 %v2758, 28
    %v2933 = vpop.permute.xlu0 %2932
    %2934 = vrot.lane.b32.xlu0 %v2759, 28
    %v2935 = vpop.permute.xlu0 %2934
    %2936 = vrot.lane.b32.xlu0 %v2760, 28
    %v2937 = vpop.permute.xlu0 %2936
    %2938 = vrot.lane.b32.xlu0 %v2761, 28
    %v2939 = vpop.permute.xlu0 %2938
    %2940 = vrot.lane.b32.xlu0 %v2762, 28
    %v2941 = vpop.permute.xlu0 %2940
    %2942 = vrot.lane.b32.xlu0 %v2763, 28
    %v2943 = vpop.permute.xlu0 %2942
    %2944 = vrot.lane.b32.xlu0 %v2764, 28
    %v2945 = vpop.permute.xlu0 %2944
    %2946 = vrot.lane.b32.xlu0 %v2765, 28
    %v2947 = vpop.permute.xlu0 %2946
    %2948 = vrot.lane.b32.xlu0 %v2766, 28
    %v2949 = vpop.permute.xlu0 %2948
    %2950 = vrot.lane.b32.xlu0 %v2767, 28
    %v2951 = vpop.permute.xlu0 %2950
    %2952 = vrot.lane.b32.xlu0 %v2768, 28
    %v2953 = vpop.permute.xlu0 %2952
    %2954 = vrot.lane.b32.xlu0 %v2769, 28
    %v2955 = vpop.permute.xlu0 %2954
    %2956 = vrot.lane.b32.xlu0 %v2770, 28
    %v2957 = vpop.permute.xlu0 %2956
    %2958 = vrot.lane.b32.xlu0 %v2771, 28
    %v2959 = vpop.permute.xlu0 %2958
    %2960 = vrot.lane.b32.xlu0 %v2772, 28
    %v2961 = vpop.permute.xlu0 %2960
    %2962 = vrot.lane.b32.xlu0 %v2773, 28
    %v2963 = vpop.permute.xlu0 %2962
    %2964 = vrot.lane.b32.xlu0 %v2774, 28
    %v2965 = vpop.permute.xlu0 %2964
    %2966 = vrot.lane.b32.xlu0 %v2775, 28
    %v2967 = vpop.permute.xlu0 %2966
    %vm3032 = vcmask 261344
    %3033 = vst.msk [vmem:[#allocation3] sm:$0xff] %vm3032, %v2841
    %3034 = vst.msk [vmem:[#allocation3 + $0x8] sm:$0xff] %vm3032, %v2843
    %3035 = vst.msk [vmem:[#allocation3 + $0x10] sm:$0xff] %vm3032, %v2845
    %3036 = vst.msk [vmem:[#allocation3 + $0x18] sm:$0xff] %vm3032, %v2847
    %3037 = vst.msk [vmem:[#allocation3 + $0x20] sm:$0xff] %vm3032, %v2849
    %3038 = vst.msk [vmem:[#allocation3 + $0x28] sm:$0xff] %vm3032, %v2851
    %3039 = vst.msk [vmem:[#allocation3 + $0x30] sm:$0xff] %vm3032, %v2853
    %3040 = vst.msk [vmem:[#allocation3 + $0x38] sm:$0xff] %vm3032, %v2855
    %3041 = vst.msk [vmem:[#allocation3 + $0x40] sm:$0xff] %vm3032, %v2857
    %3042 = vst.msk [vmem:[#allocation3 + $0x48] sm:$0xff] %vm3032, %v2859
    %3043 = vst.msk [vmem:[#allocation3 + $0x50] sm:$0xff] %vm3032, %v2861
    %3044 = vst.msk [vmem:[#allocation3 + $0x58] sm:$0xff] %vm3032, %v2863
    %3045 = vst.msk [vmem:[#allocation3 + $0x60] sm:$0xff] %vm3032, %v2865
    %3046 = vst.msk [vmem:[#allocation3 + $0x68] sm:$0xff] %vm3032, %v2867
    %3047 = vst.msk [vmem:[#allocation3 + $0x70] sm:$0xff] %vm3032, %v2869
    %3048 = vst.msk [vmem:[#allocation3 + $0x78] sm:$0xff] %vm3032, %v2871
    %3049 = vst.msk [vmem:[#allocation3 + $0x80] sm:$0xff] %vm3032, %v2873
    %3050 = vst.msk [vmem:[#allocation3 + $0x88] sm:$0xff] %vm3032, %v2875
    %3051 = vst.msk [vmem:[#allocation3 + $0x90] sm:$0xff] %vm3032, %v2877
    %3052 = vst.msk [vmem:[#allocation3 + $0x98] sm:$0xff] %vm3032, %v2879
    %3053 = vst.msk [vmem:[#allocation3 + $0xa0] sm:$0xff] %vm3032, %v2881
    %3054 = vst.msk [vmem:[#allocation3 + $0xa8] sm:$0xff] %vm3032, %v2883
    %3055 = vst.msk [vmem:[#allocation3 + $0xb0] sm:$0xff] %vm3032, %v2885
    %3056 = vst.msk [vmem:[#allocation3 + $0xb8] sm:$0xff] %vm3032, %v2887
    %3057 = vst.msk [vmem:[#allocation3 + $0xc0] sm:$0xff] %vm3032, %v2889
    %3058 = vst.msk [vmem:[#allocation3 + $0xc8] sm:$0xff] %vm3032, %v2891
    %3059 = vst.msk [vmem:[#allocation3 + $0xd0] sm:$0xff] %vm3032, %v2893
    %3060 = vst.msk [vmem:[#allocation3 + $0xd8] sm:$0xff] %vm3032, %v2895
    %3061 = vst.msk [vmem:[#allocation3 + $0xe0] sm:$0xff] %vm3032, %v2897
    %3062 = vst.msk [vmem:[#allocation3 + $0xe8] sm:$0xff] %vm3032, %v2899
    %3063 = vst.msk [vmem:[#allocation3 + $0xf0] sm:$0xff] %vm3032, %v2901
    %3064 = vst.msk [vmem:[#allocation3 + $0xf8] sm:$0xff] %vm3032, %v2903
    %3065 = vst.msk [vmem:[#allocation3 + $0x100] sm:$0xff] %vm3032, %v2905
    %3066 = vst.msk [vmem:[#allocation3 + $0x108] sm:$0xff] %vm3032, %v2907
    %3067 = vst.msk [vmem:[#allocation3 + $0x110] sm:$0xff] %vm3032, %v2909
    %3068 = vst.msk [vmem:[#allocation3 + $0x118] sm:$0xff] %vm3032, %v2911
    %3069 = vst.msk [vmem:[#allocation3 + $0x120] sm:$0xff] %vm3032, %v2913
    %3070 = vst.msk [vmem:[#allocation3 + $0x128] sm:$0xff] %vm3032, %v2915
    %3071 = vst.msk [vmem:[#allocation3 + $0x130] sm:$0xff] %vm3032, %v2917
    %3072 = vst.msk [vmem:[#allocation3 + $0x138] sm:$0xff] %vm3032, %v2919
    %3073 = vst.msk [vmem:[#allocation3 + $0x140] sm:$0xff] %vm3032, %v2921
    %3074 = vst.msk [vmem:[#allocation3 + $0x148] sm:$0xff] %vm3032, %v2923
    %3075 = vst.msk [vmem:[#allocation3 + $0x150] sm:$0xff] %vm3032, %v2925
    %3076 = vst.msk [vmem:[#allocation3 + $0x158] sm:$0xff] %vm3032, %v2927
    %3077 = vst.msk [vmem:[#allocation3 + $0x160] sm:$0xff] %vm3032, %v2929
    %3078 = vst.msk [vmem:[#allocation3 + $0x168] sm:$0xff] %vm3032, %v2931
    %3079 = vst.msk [vmem:[#allocation3 + $0x170] sm:$0xff] %vm3032, %v2933
    %3080 = vst.msk [vmem:[#allocation3 + $0x178] sm:$0xff] %vm3032, %v2935
    %3081 = vst.msk [vmem:[#allocation3 + $0x180] sm:$0xff] %vm3032, %v2937
    %3082 = vst.msk [vmem:[#allocation3 + $0x188] sm:$0xff] %vm3032, %v2939
    %3083 = vst.msk [vmem:[#allocation3 + $0x190] sm:$0xff] %vm3032, %v2941
    %3084 = vst.msk [vmem:[#allocation3 + $0x198] sm:$0xff] %vm3032, %v2943
    %3085 = vst.msk [vmem:[#allocation3 + $0x1a0] sm:$0xff] %vm3032, %v2945
    %3086 = vst.msk [vmem:[#allocation3 + $0x1a8] sm:$0xff] %vm3032, %v2947
    %3087 = vst.msk [vmem:[#allocation3 + $0x1b0] sm:$0xff] %vm3032, %v2949
    %3088 = vst.msk [vmem:[#allocation3 + $0x1b8] sm:$0xff] %vm3032, %v2951
    %3089 = vst.msk [vmem:[#allocation3 + $0x1c0] sm:$0xff] %vm3032, %v2953
    %3090 = vst.msk [vmem:[#allocation3 + $0x1c8] sm:$0xff] %vm3032, %v2955
    %3091 = vst.msk [vmem:[#allocation3 + $0x1d0] sm:$0xff] %vm3032, %v2957
    %3092 = vst.msk [vmem:[#allocation3 + $0x1d8] sm:$0xff] %vm3032, %v2959
    %3093 = vst.msk [vmem:[#allocation3 + $0x1e0] sm:$0xff] %vm3032, %v2961
    %3094 = vst.msk [vmem:[#allocation3 + $0x1e8] sm:$0xff] %vm3032, %v2963
    %3095 = vst.msk [vmem:[#allocation3 + $0x1f0] sm:$0xff] %vm3032, %v2965
    %3096 = vst.msk [vmem:[#allocation3 + $0x1f8] sm:$0xff] %vm3032, %v2967
    %v3097 = vld [vmem:[%s2326 + $0x2] sm:$0xff]
    %v3098 = vld [vmem:[%s2326 + $0xa] sm:$0xff]
    %v3099 = vld [vmem:[%s2326 + $0x1a] sm:$0xff]
    %v3100 = vld [vmem:[%s2326 + $0x22] sm:$0xff]
    %v3101 = vld [vmem:[%s2326 + $0x32] sm:$0xff]
    %v3102 = vld [vmem:[%s2326 + $0x3a] sm:$0xff]
    %v3103 = vld [vmem:[%s2326 + $0x4a] sm:$0xff]
    %v3104 = vld [vmem:[%s2326 + $0x52] sm:$0xff]
    %v3105 = vld [vmem:[%s2326 + $0x62] sm:$0xff]
    %v3106 = vld [vmem:[%s2326 + $0x6a] sm:$0xff]
    %v3107 = vld [vmem:[%s2326 + $0x7a] sm:$0xff]
    %v3108 = vld [vmem:[%s2326 + $0x82] sm:$0xff]
    %v3109 = vld [vmem:[%s2326 + $0x92] sm:$0xff]
    %v3110 = vld [vmem:[%s2326 + $0x9a] sm:$0xff]
    %v3111 = vld [vmem:[%s2326 + $0xaa] sm:$0xff]
    %v3112 = vld [vmem:[%s2326 + $0xb2] sm:$0xff]
    %v3113 = vld [vmem:[%s2326 + $0xc2] sm:$0xff]
    %v3114 = vld [vmem:[%s2326 + $0xca] sm:$0xff]
    %v3115 = vld [vmem:[%s2326 + $0xda] sm:$0xff]
    %v3116 = vld [vmem:[%s2326 + $0xe2] sm:$0xff]
    %v3117 = vld [vmem:[%s2326 + $0xf2] sm:$0xff]
    %v3118 = vld [vmem:[%s2326 + $0xfa] sm:$0xff]
    %v3119 = vld [vmem:[%s2326 + $0x10a] sm:$0xff]
    %v3120 = vld [vmem:[%s2326 + $0x112] sm:$0xff]
    %v3121 = vld [vmem:[%s2326 + $0x122] sm:$0xff]
    %v3122 = vld [vmem:[%s2326 + $0x12a] sm:$0xff]
    %v3123 = vld [vmem:[%s2326 + $0x13a] sm:$0xff]
    %v3124 = vld [vmem:[%s2326 + $0x142] sm:$0xff]
    %v3125 = vld [vmem:[%s2326 + $0x152] sm:$0xff]
    %v3126 = vld [vmem:[%s2326 + $0x15a] sm:$0xff]
    %v3127 = vld [vmem:[%s2326 + $0x16a] sm:$0xff]
    %v3128 = vld [vmem:[%s2326 + $0x172] sm:$0xff]
    %v3129 = vld [vmem:[%s2326 + $0x1b2] sm:$0xff]
    %v3130 = vld [vmem:[%s2326 + $0x1ba] sm:$0xff]
    %v3131 = vld [vmem:[%s2326 + $0x1ca] sm:$0xff]
    %v3132 = vld [vmem:[%s2326 + $0x1d2] sm:$0xff]
    %v3133 = vld [vmem:[%s2326 + $0x1e2] sm:$0xff]
    %v3134 = vld [vmem:[%s2326 + $0x1ea] sm:$0xff]
    %v3135 = vld [vmem:[%s2326 + $0x1fa] sm:$0xff]
    %v3136 = vld [vmem:[%s2326 + $0x202] sm:$0xff]
    %v3137 = vld [vmem:[%s2326 + $0x212] sm:$0xff]
    %v3138 = vld [vmem:[%s2326 + $0x21a] sm:$0xff]
    %v3139 = vld [vmem:[%s2326 + $0x22a] sm:$0xff]
    %v3140 = vld [vmem:[%s2326 + $0x232] sm:$0xff]
    %v3141 = vld [vmem:[%s2326 + $0x242] sm:$0xff]
    %v3142 = vld [vmem:[%s2326 + $0x24a] sm:$0xff]
    %v3143 = vld [vmem:[%s2326 + $0x25a] sm:$0xff]
    %v3144 = vld [vmem:[%s2326 + $0x262] sm:$0xff]
    %v3145 = vld [vmem:[%s2326 + $0x272] sm:$0xff]
    %v3146 = vld [vmem:[%s2326 + $0x27a] sm:$0xff]
    %v3147 = vld [vmem:[%s2326 + $0x28a] sm:$0xff]
    %v3148 = vld [vmem:[%s2326 + $0x292] sm:$0xff]
    %v3149 = vld [vmem:[%s2326 + $0x2a2] sm:$0xff]
    %v3150 = vld [vmem:[%s2326 + $0x2aa] sm:$0xff]
    %v3151 = vld [vmem:[%s2326 + $0x2ba] sm:$0xff]
    %v3152 = vld [vmem:[%s2326 + $0x2c2] sm:$0xff]
    %v3153 = vld [vmem:[%s2326 + $0x2d2] sm:$0xff]
    %v3154 = vld [vmem:[%s2326 + $0x2da] sm:$0xff]
    %v3155 = vld [vmem:[%s2326 + $0x2ea] sm:$0xff]
    %v3156 = vld [vmem:[%s2326 + $0x2f2] sm:$0xff]
    %v3157 = vld [vmem:[%s2326 + $0x302] sm:$0xff]
    %v3158 = vld [vmem:[%s2326 + $0x30a] sm:$0xff]
    %v3159 = vld [vmem:[%s2326 + $0x31a] sm:$0xff]
    %v3160 = vld [vmem:[%s2326 + $0x322] sm:$0xff]
    %3225 = vrot.lane.b32.xlu0 %v3097, 32
    %v3226 = vpop.permute.xlu0 %3225
    %3227 = vrot.lane.b32.xlu0 %v3098, 32
    %v3228 = vpop.permute.xlu0 %3227
    %3229 = vrot.lane.b32.xlu0 %v3099, 32
    %v3230 = vpop.permute.xlu0 %3229
    %3231 = vrot.lane.b32.xlu0 %v3100, 32
    %v3232 = vpop.permute.xlu0 %3231
    %3233 = vrot.lane.b32.xlu0 %v3101, 32
    %v3234 = vpop.permute.xlu0 %3233
    %3235 = vrot.lane.b32.xlu0 %v3102, 32
    %v3236 = vpop.permute.xlu0 %3235
    %3237 = vrot.lane.b32.xlu0 %v3103, 32
    %v3238 = vpop.permute.xlu0 %3237
    %3239 = vrot.lane.b32.xlu0 %v3104, 32
    %v3240 = vpop.permute.xlu0 %3239
    %3241 = vrot.lane.b32.xlu0 %v3105, 32
    %v3242 = vpop.permute.xlu0 %3241
    %3243 = vrot.lane.b32.xlu0 %v3106, 32
    %v3244 = vpop.permute.xlu0 %3243
    %3245 = vrot.lane.b32.xlu0 %v3107, 32
    %v3246 = vpop.permute.xlu0 %3245
    %3247 = vrot.lane.b32.xlu0 %v3108, 32
    %v3248 = vpop.permute.xlu0 %3247
    %3249 = vrot.lane.b32.xlu0 %v3109, 32
    %v3250 = vpop.permute.xlu0 %3249
    %3251 = vrot.lane.b32.xlu0 %v3110, 32
    %v3252 = vpop.permute.xlu0 %3251
    %3253 = vrot.lane.b32.xlu0 %v3111, 32
    %v3254 = vpop.permute.xlu0 %3253
    %3255 = vrot.lane.b32.xlu0 %v3112, 32
    %v3256 = vpop.permute.xlu0 %3255
    %3257 = vrot.lane.b32.xlu0 %v3113, 32
    %v3258 = vpop.permute.xlu0 %3257
    %3259 = vrot.lane.b32.xlu0 %v3114, 32
    %v3260 = vpop.permute.xlu0 %3259
    %3261 = vrot.lane.b32.xlu0 %v3115, 32
    %v3262 = vpop.permute.xlu0 %3261
    %3263 = vrot.lane.b32.xlu0 %v3116, 32
    %v3264 = vpop.permute.xlu0 %3263
    %3265 = vrot.lane.b32.xlu0 %v3117, 32
    %v3266 = vpop.permute.xlu0 %3265
    %3267 = vrot.lane.b32.xlu0 %v3118, 32
    %v3268 = vpop.permute.xlu0 %3267
    %3269 = vrot.lane.b32.xlu0 %v3119, 32
    %v3270 = vpop.permute.xlu0 %3269
    %3271 = vrot.lane.b32.xlu0 %v3120, 32
    %v3272 = vpop.permute.xlu0 %3271
    %3273 = vrot.lane.b32.xlu0 %v3121, 32
    %v3274 = vpop.permute.xlu0 %3273
    %3275 = vrot.lane.b32.xlu0 %v3122, 32
    %v3276 = vpop.permute.xlu0 %3275
    %3277 = vrot.lane.b32.xlu0 %v3123, 32
    %v3278 = vpop.permute.xlu0 %3277
    %3279 = vrot.lane.b32.xlu0 %v3124, 32
    %v3280 = vpop.permute.xlu0 %3279
    %3281 = vrot.lane.b32.xlu0 %v3125, 32
    %v3282 = vpop.permute.xlu0 %3281
    %3283 = vrot.lane.b32.xlu0 %v3126, 32
    %v3284 = vpop.permute.xlu0 %3283
    %3285 = vrot.lane.b32.xlu0 %v3127, 32
    %v3286 = vpop.permute.xlu0 %3285
    %3287 = vrot.lane.b32.xlu0 %v3128, 32
    %v3288 = vpop.permute.xlu0 %3287
    %3289 = vrot.lane.b32.xlu0 %v3129, 32
    %v3290 = vpop.permute.xlu0 %3289
    %3291 = vrot.lane.b32.xlu0 %v3130, 32
    %v3292 = vpop.permute.xlu0 %3291
    %3293 = vrot.lane.b32.xlu0 %v3131, 32
    %v3294 = vpop.permute.xlu0 %3293
    %3295 = vrot.lane.b32.xlu0 %v3132, 32
    %v3296 = vpop.permute.xlu0 %3295
    %3297 = vrot.lane.b32.xlu0 %v3133, 32
    %v3298 = vpop.permute.xlu0 %3297
    %3299 = vrot.lane.b32.xlu0 %v3134, 32
    %v3300 = vpop.permute.xlu0 %3299
    %3301 = vrot.lane.b32.xlu0 %v3135, 32
    %v3302 = vpop.permute.xlu0 %3301
    %3303 = vrot.lane.b32.xlu0 %v3136, 32
    %v3304 = vpop.permute.xlu0 %3303
    %3305 = vrot.lane.b32.xlu0 %v3137, 32
    %v3306 = vpop.permute.xlu0 %3305
    %3307 = vrot.lane.b32.xlu0 %v3138, 32
    %v3308 = vpop.permute.xlu0 %3307
    %3309 = vrot.lane.b32.xlu0 %v3139, 32
    %v3310 = vpop.permute.xlu0 %3309
    %3311 = vrot.lane.b32.xlu0 %v3140, 32
    %v3312 = vpop.permute.xlu0 %3311
    %3313 = vrot.lane.b32.xlu0 %v3141, 32
    %v3314 = vpop.permute.xlu0 %3313
    %3315 = vrot.lane.b32.xlu0 %v3142, 32
    %v3316 = vpop.permute.xlu0 %3315
    %3317 = vrot.lane.b32.xlu0 %v3143, 32
    %v3318 = vpop.permute.xlu0 %3317
    %3319 = vrot.lane.b32.xlu0 %v3144, 32
    %v3320 = vpop.permute.xlu0 %3319
    %3321 = vrot.lane.b32.xlu0 %v3145, 32
    %v3322 = vpop.permute.xlu0 %3321
    %3323 = vrot.lane.b32.xlu0 %v3146, 32
    %v3324 = vpop.permute.xlu0 %3323
    %3325 = vrot.lane.b32.xlu0 %v3147, 32
    %v3326 = vpop.permute.xlu0 %3325
    %3327 = vrot.lane.b32.xlu0 %v3148, 32
    %v3328 = vpop.permute.xlu0 %3327
    %3329 = vrot.lane.b32.xlu0 %v3149, 32
    %v3330 = vpop.permute.xlu0 %3329
    %3331 = vrot.lane.b32.xlu0 %v3150, 32
    %v3332 = vpop.permute.xlu0 %3331
    %3333 = vrot.lane.b32.xlu0 %v3151, 32
    %v3334 = vpop.permute.xlu0 %3333
    %3335 = vrot.lane.b32.xlu0 %v3152, 32
    %v3336 = vpop.permute.xlu0 %3335
    %3337 = vrot.lane.b32.xlu0 %v3153, 32
    %v3338 = vpop.permute.xlu0 %3337
    %3339 = vrot.lane.b32.xlu0 %v3154, 32
    %v3340 = vpop.permute.xlu0 %3339
    %3341 = vrot.lane.b32.xlu0 %v3155, 32
    %v3342 = vpop.permute.xlu0 %3341
    %3343 = vrot.lane.b32.xlu0 %v3156, 32
    %v3344 = vpop.permute.xlu0 %3343
    %3345 = vrot.lane.b32.xlu0 %v3157, 32
    %v3346 = vpop.permute.xlu0 %3345
    %3347 = vrot.lane.b32.xlu0 %v3158, 32
    %v3348 = vpop.permute.xlu0 %3347
    %3349 = vrot.lane.b32.xlu0 %v3159, 32
    %v3350 = vpop.permute.xlu0 %3349
    %3351 = vrot.lane.b32.xlu0 %v3160, 32
    %v3352 = vpop.permute.xlu0 %3351
    %vm3417 = vcmask 294144
    %3418 = vst.msk [vmem:[#allocation3] sm:$0xff] %vm3417, %v3226
    %3419 = vst.msk [vmem:[#allocation3 + $0x8] sm:$0xff] %vm3417, %v3228
    %3420 = vst.msk [vmem:[#allocation3 + $0x10] sm:$0xff] %vm3417, %v3230
    %3421 = vst.msk [vmem:[#allocation3 + $0x18] sm:$0xff] %vm3417, %v3232
    %3422 = vst.msk [vmem:[#allocation3 + $0x20] sm:$0xff] %vm3417, %v3234
    %3423 = vst.msk [vmem:[#allocation3 + $0x28] sm:$0xff] %vm3417, %v3236
    %3424 = vst.msk [vmem:[#allocation3 + $0x30] sm:$0xff] %vm3417, %v3238
    %3425 = vst.msk [vmem:[#allocation3 + $0x38] sm:$0xff] %vm3417, %v3240
    %3426 = vst.msk [vmem:[#allocation3 + $0x40] sm:$0xff] %vm3417, %v3242
    %3427 = vst.msk [vmem:[#allocation3 + $0x48] sm:$0xff] %vm3417, %v3244
    %3428 = vst.msk [vmem:[#allocation3 + $0x50] sm:$0xff] %vm3417, %v3246
    %3429 = vst.msk [vmem:[#allocation3 + $0x58] sm:$0xff] %vm3417, %v3248
    %3430 = vst.msk [vmem:[#allocation3 + $0x60] sm:$0xff] %vm3417, %v3250
    %3431 = vst.msk [vmem:[#allocation3 + $0x68] sm:$0xff] %vm3417, %v3252
    %3432 = vst.msk [vmem:[#allocation3 + $0x70] sm:$0xff] %vm3417, %v3254
    %3433 = vst.msk [vmem:[#allocation3 + $0x78] sm:$0xff] %vm3417, %v3256
    %3434 = vst.msk [vmem:[#allocation3 + $0x80] sm:$0xff] %vm3417, %v3258
    %3435 = vst.msk [vmem:[#allocation3 + $0x88] sm:$0xff] %vm3417, %v3260
    %3436 = vst.msk [vmem:[#allocation3 + $0x90] sm:$0xff] %vm3417, %v3262
    %3437 = vst.msk [vmem:[#allocation3 + $0x98] sm:$0xff] %vm3417, %v3264
    %3438 = vst.msk [vmem:[#allocation3 + $0xa0] sm:$0xff] %vm3417, %v3266
    %3439 = vst.msk [vmem:[#allocation3 + $0xa8] sm:$0xff] %vm3417, %v3268
    %3440 = vst.msk [vmem:[#allocation3 + $0xb0] sm:$0xff] %vm3417, %v3270
    %3441 = vst.msk [vmem:[#allocation3 + $0xb8] sm:$0xff] %vm3417, %v3272
    %3442 = vst.msk [vmem:[#allocation3 + $0xc0] sm:$0xff] %vm3417, %v3274
    %3443 = vst.msk [vmem:[#allocation3 + $0xc8] sm:$0xff] %vm3417, %v3276
    %3444 = vst.msk [vmem:[#allocation3 + $0xd0] sm:$0xff] %vm3417, %v3278
    %3445 = vst.msk [vmem:[#allocation3 + $0xd8] sm:$0xff] %vm3417, %v3280
    %3446 = vst.msk [vmem:[#allocation3 + $0xe0] sm:$0xff] %vm3417, %v3282
    %3447 = vst.msk [vmem:[#allocation3 + $0xe8] sm:$0xff] %vm3417, %v3284
    %3448 = vst.msk [vmem:[#allocation3 + $0xf0] sm:$0xff] %vm3417, %v3286
    %3449 = vst.msk [vmem:[#allocation3 + $0xf8] sm:$0xff] %vm3417, %v3288
    %3450 = vst.msk [vmem:[#allocation3 + $0x100] sm:$0xff] %vm3417, %v3290
    %3451 = vst.msk [vmem:[#allocation3 + $0x108] sm:$0xff] %vm3417, %v3292
    %3452 = vst.msk [vmem:[#allocation3 + $0x110] sm:$0xff] %vm3417, %v3294
    %3453 = vst.msk [vmem:[#allocation3 + $0x118] sm:$0xff] %vm3417, %v3296
    %3454 = vst.msk [vmem:[#allocation3 + $0x120] sm:$0xff] %vm3417, %v3298
    %3455 = vst.msk [vmem:[#allocation3 + $0x128] sm:$0xff] %vm3417, %v3300
    %3456 = vst.msk [vmem:[#allocation3 + $0x130] sm:$0xff] %vm3417, %v3302
    %3457 = vst.msk [vmem:[#allocation3 + $0x138] sm:$0xff] %vm3417, %v3304
    %3458 = vst.msk [vmem:[#allocation3 + $0x140] sm:$0xff] %vm3417, %v3306
    %3459 = vst.msk [vmem:[#allocation3 + $0x148] sm:$0xff] %vm3417, %v3308
    %3460 = vst.msk [vmem:[#allocation3 + $0x150] sm:$0xff] %vm3417, %v3310
    %3461 = vst.msk [vmem:[#allocation3 + $0x158] sm:$0xff] %vm3417, %v3312
    %3462 = vst.msk [vmem:[#allocation3 + $0x160] sm:$0xff] %vm3417, %v3314
    %3463 = vst.msk [vmem:[#allocation3 + $0x168] sm:$0xff] %vm3417, %v3316
    %3464 = vst.msk [vmem:[#allocation3 + $0x170] sm:$0xff] %vm3417, %v3318
    %3465 = vst.msk [vmem:[#allocation3 + $0x178] sm:$0xff] %vm3417, %v3320
    %3466 = vst.msk [vmem:[#allocation3 + $0x180] sm:$0xff] %vm3417, %v3322
    %3467 = vst.msk [vmem:[#allocation3 + $0x188] sm:$0xff] %vm3417, %v3324
    %3468 = vst.msk [vmem:[#allocation3 + $0x190] sm:$0xff] %vm3417, %v3326
    %3469 = vst.msk [vmem:[#allocation3 + $0x198] sm:$0xff] %vm3417, %v3328
    %3470 = vst.msk [vmem:[#allocation3 + $0x1a0] sm:$0xff] %vm3417, %v3330
    %3471 = vst.msk [vmem:[#allocation3 + $0x1a8] sm:$0xff] %vm3417, %v3332
    %3472 = vst.msk [vmem:[#allocation3 + $0x1b0] sm:$0xff] %vm3417, %v3334
    %3473 = vst.msk [vmem:[#allocation3 + $0x1b8] sm:$0xff] %vm3417, %v3336
    %3474 = vst.msk [vmem:[#allocation3 + $0x1c0] sm:$0xff] %vm3417, %v3338
    %3475 = vst.msk [vmem:[#allocation3 + $0x1c8] sm:$0xff] %vm3417, %v3340
    %3476 = vst.msk [vmem:[#allocation3 + $0x1d0] sm:$0xff] %vm3417, %v3342
    %3477 = vst.msk [vmem:[#allocation3 + $0x1d8] sm:$0xff] %vm3417, %v3344
    %3478 = vst.msk [vmem:[#allocation3 + $0x1e0] sm:$0xff] %vm3417, %v3346
    %3479 = vst.msk [vmem:[#allocation3 + $0x1e8] sm:$0xff] %vm3417, %v3348
    %3480 = vst.msk [vmem:[#allocation3 + $0x1f0] sm:$0xff] %vm3417, %v3350
    %3481 = vst.msk [vmem:[#allocation3 + $0x1f8] sm:$0xff] %vm3417, %v3352
    %v3482 = vld [vmem:[#allocation3] sm:$0xff]
    %v3483 = vld [vmem:[#allocation3 + $0x8] sm:$0xff]
    %v3484 = vld [vmem:[#allocation3 + $0x10] sm:$0xff]
    %v3485 = vld [vmem:[#allocation3 + $0x18] sm:$0xff]
    %v3486 = vld [vmem:[#allocation3 + $0x20] sm:$0xff]
    %v3487 = vld [vmem:[#allocation3 + $0x28] sm:$0xff]
    %v3488 = vld [vmem:[#allocation3 + $0x30] sm:$0xff]
    %v3489 = vld [vmem:[#allocation3 + $0x38] sm:$0xff]
    %v3490 = vld [vmem:[#allocation3 + $0x40] sm:$0xff]
    %v3491 = vld [vmem:[#allocation3 + $0x48] sm:$0xff]
    %v3492 = vld [vmem:[#allocation3 + $0x50] sm:$0xff]
    %v3493 = vld [vmem:[#allocation3 + $0x58] sm:$0xff]
    %v3494 = vld [vmem:[#allocation3 + $0x60] sm:$0xff]
    %v3495 = vld [vmem:[#allocation3 + $0x68] sm:$0xff]
    %v3496 = vld [vmem:[#allocation3 + $0x70] sm:$0xff]
    %v3497 = vld [vmem:[#allocation3 + $0x78] sm:$0xff]
    %v3498 = vld [vmem:[#allocation3 + $0x80] sm:$0xff]
    %v3499 = vld [vmem:[#allocation3 + $0x88] sm:$0xff]
    %v3500 = vld [vmem:[#allocation3 + $0x90] sm:$0xff]
    %v3501 = vld [vmem:[#allocation3 + $0x98] sm:$0xff]
    %v3502 = vld [vmem:[#allocation3 + $0xa0] sm:$0xff]
    %v3503 = vld [vmem:[#allocation3 + $0xa8] sm:$0xff]
    %v3504 = vld [vmem:[#allocation3 + $0xb0] sm:$0xff]
    %v3505 = vld [vmem:[#allocation3 + $0xb8] sm:$0xff]
    %v3506 = vld [vmem:[#allocation3 + $0xc0] sm:$0xff]
    %v3507 = vld [vmem:[#allocation3 + $0xc8] sm:$0xff]
    %v3508 = vld [vmem:[#allocation3 + $0xd0] sm:$0xff]
    %v3509 = vld [vmem:[#allocation3 + $0xd8] sm:$0xff]
    %v3510 = vld [vmem:[#allocation3 + $0xe0] sm:$0xff]
    %v3511 = vld [vmem:[#allocation3 + $0xe8] sm:$0xff]
    %v3512 = vld [vmem:[#allocation3 + $0xf0] sm:$0xff]
    %v3513 = vld [vmem:[#allocation3 + $0xf8] sm:$0xff]
    %v3514 = vld [vmem:[#allocation3 + $0x100] sm:$0xff]
    %v3515 = vld [vmem:[#allocation3 + $0x108] sm:$0xff]
    %v3516 = vld [vmem:[#allocation3 + $0x110] sm:$0xff]
    %v3517 = vld [vmem:[#allocation3 + $0x118] sm:$0xff]
    %v3518 = vld [vmem:[#allocation3 + $0x120] sm:$0xff]
    %v3519 = vld [vmem:[#allocation3 + $0x128] sm:$0xff]
    %v3520 = vld [vmem:[#allocation3 + $0x130] sm:$0xff]
    %v3521 = vld [vmem:[#allocation3 + $0x138] sm:$0xff]
    %v3522 = vld [vmem:[#allocation3 + $0x140] sm:$0xff]
    %v3523 = vld [vmem:[#allocation3 + $0x148] sm:$0xff]
    %v3524 = vld [vmem:[#allocation3 + $0x150] sm:$0xff]
    %v3525 = vld [vmem:[#allocation3 + $0x158] sm:$0xff]
    %v3526 = vld [vmem:[#allocation3 + $0x160] sm:$0xff]
    %v3527 = vld [vmem:[#allocation3 + $0x168] sm:$0xff]
    %v3528 = vld [vmem:[#allocation3 + $0x170] sm:$0xff]
    %v3529 = vld [vmem:[#allocation3 + $0x178] sm:$0xff]
    %v3530 = vld [vmem:[#allocation3 + $0x180] sm:$0xff]
    %v3531 = vld [vmem:[#allocation3 + $0x188] sm:$0xff]
    %v3532 = vld [vmem:[#allocation3 + $0x190] sm:$0xff]
    %v3533 = vld [vmem:[#allocation3 + $0x198] sm:$0xff]
    %v3534 = vld [vmem:[#allocation3 + $0x1a0] sm:$0xff]
    %v3535 = vld [vmem:[#allocation3 + $0x1a8] sm:$0xff]
    %v3536 = vld [vmem:[#allocation3 + $0x1b0] sm:$0xff]
    %v3537 = vld [vmem:[#allocation3 + $0x1b8] sm:$0xff]
    %v3538 = vld [vmem:[#allocation3 + $0x1c0] sm:$0xff]
    %v3539 = vld [vmem:[#allocation3 + $0x1c8] sm:$0xff]
    %v3540 = vld [vmem:[#allocation3 + $0x1d0] sm:$0xff]
    %v3541 = vld [vmem:[#allocation3 + $0x1d8] sm:$0xff]
    %v3542 = vld [vmem:[#allocation3 + $0x1e0] sm:$0xff]
    %v3543 = vld [vmem:[#allocation3 + $0x1e8] sm:$0xff]
    %v3544 = vld [vmem:[#allocation3 + $0x1f0] sm:$0xff]
    %v3545 = vld [vmem:[#allocation3 + $0x1f8] sm:$0xff]
    %v3546 = vpack.c.bf16 %v3483, %v3482
    %v3547 = vpack.c.bf16 %v3485, %v3484
    %v3548 = vpack.c.bf16 %v3487, %v3486
    %v3549 = vpack.c.bf16 %v3489, %v3488
    %v3550 = vpack.c.bf16 %v3491, %v3490
    %v3551 = vpack.c.bf16 %v3493, %v3492
    %v3552 = vpack.c.bf16 %v3495, %v3494
    %v3553 = vpack.c.bf16 %v3497, %v3496
    %v3554 = vpack.c.bf16 %v3499, %v3498
    %v3555 = vpack.c.bf16 %v3501, %v3500
    %v3556 = vpack.c.bf16 %v3503, %v3502
    %v3557 = vpack.c.bf16 %v3505, %v3504
    %v3558 = vpack.c.bf16 %v3507, %v3506
    %v3559 = vpack.c.bf16 %v3509, %v3508
    %v3560 = vpack.c.bf16 %v3511, %v3510
    %v3561 = vpack.c.bf16 %v3513, %v3512
    %v3562 = vpack.c.bf16 %v3515, %v3514
    %v3563 = vpack.c.bf16 %v3517, %v3516
    %v3564 = vpack.c.bf16 %v3519, %v3518
    %v3565 = vpack.c.bf16 %v3521, %v3520
    %v3566 = vpack.c.bf16 %v3523, %v3522
    %v3567 = vpack.c.bf16 %v3525, %v3524
    %v3568 = vpack.c.bf16 %v3527, %v3526
    %v3569 = vpack.c.bf16 %v3529, %v3528
    %v3570 = vpack.c.bf16 %v3531, %v3530
    %v3571 = vpack.c.bf16 %v3533, %v3532
    %v3572 = vpack.c.bf16 %v3535, %v3534
    %v3573 = vpack.c.bf16 %v3537, %v3536
    %v3574 = vpack.c.bf16 %v3539, %v3538
    %v3575 = vpack.c.bf16 %v3541, %v3540
    %v3576 = vpack.c.bf16 %v3543, %v3542
    %v3577 = vpack.c.bf16 %v3545, %v3544
    %v3578 = vld [vmem:[%s1] sm:$0xf]
    %v3579 = vld [vmem:[%s1 + $0x4] sm:$0xf]
    %v3580 = vld [vmem:[%s1 + $0x8] sm:$0xf]
    %v3581 = vld [vmem:[%s1 + $0xc] sm:$0xf]
    %v3582 = vld [vmem:[%s1 + $0x10] sm:$0x3]
    %v3583 = vld [vmem:[%s2] sm:$0x1]
    %v3585 = vlaneseq
    %v3586 = vshrl.u32 %v3585, 7
    %v3587 = vsub.s32 0, %v3586
    %v3588 = vrot.slane %v3583, %v3587
    %v3595 = vunpack.c.l.b16 %v3578
    %v3596 = vunpack.c.l.b16 %v3579
    %v3597 = vunpack.c.l.b16 %v3580
    %v3598 = vunpack.c.l.b16 %v3581
    %v3599 = vunpack.c.l.b16 %v3582
    %v3600 = vpack.c.b16 %v3596, %v3595
    %v3601 = vpack.c.b16 %v3598, %v3597
    %v3602 = vpack.c.b16 %v3599, %v3599
    %vm3605 = vcmask 293888
    %v3607 = vsel %vm3605, %v3546, 0
    %v3610 = vsel %vm3605, %v3547, 0
    %v3613 = vsel %vm3605, %v3548, 0
    %v3616 = vsel %vm3605, %v3549, 0
    %v3619 = vsel %vm3605, %v3550, 0
    %v3622 = vsel %vm3605, %v3551, 0
    %v3625 = vsel %vm3605, %v3552, 0
    %v3628 = vsel %vm3605, %v3553, 0
    %v3631 = vsel %vm3605, %v3554, 0
    %v3634 = vsel %vm3605, %v3555, 0
    %v3637 = vsel %vm3605, %v3556, 0
    %v3640 = vsel %vm3605, %v3557, 0
    %v3643 = vsel %vm3605, %v3558, 0
    %v3646 = vsel %vm3605, %v3559, 0
    %v3649 = vsel %vm3605, %v3560, 0
    %v3652 = vsel %vm3605, %v3561, 0
    %v3655 = vsel %vm3605, %v3562, 0
    %v3658 = vsel %vm3605, %v3563, 0
    %v3661 = vsel %vm3605, %v3564, 0
    %v3664 = vsel %vm3605, %v3565, 0
    %v3667 = vsel %vm3605, %v3566, 0
    %v3670 = vsel %vm3605, %v3567, 0
    %v3673 = vsel %vm3605, %v3568, 0
    %v3676 = vsel %vm3605, %v3569, 0
    %v3679 = vsel %vm3605, %v3570, 0
    %v3682 = vsel %vm3605, %v3571, 0
    %v3685 = vsel %vm3605, %v3572, 0
    %v3688 = vsel %vm3605, %v3573, 0
    %v3691 = vsel %vm3605, %v3574, 0
    %v3694 = vsel %vm3605, %v3575, 0
    %v3697 = vsel %vm3605, %v3576, 0
    %v3700 = vsel %vm3605, %v3577, 0
    %vm3702 = vcmask 1041408
    %v3704 = vsel %vm3702, %v3602, 0
    %3706 = vmatprep.subr.bf16.mxu0 0
    %3707 = vmatpush1.bf16.msra.mxu0 %v3600
    %3708 = vmatprep.subr.bf16.mxu0 0
    %3709 = vmatpush1.bf16.msra.mxu0 %v3601
    %3710 = vmatprep.subr.bf16.mxu0 0
    %3711 = vmatpush1.bf16.msra.mxu0 %v3704
    %3712 = vmatprep.subr.bf16.mxu0 0
    %3713 = vmatpush1.bf16.msra.mxu0 0
    %3714 = vmatprep.subr.bf16.mxu0 0
    %3715 = vmatpush1.bf16.msra.mxu0 0
    %3716 = vmatprep.subr.bf16.mxu0 0
    %3717 = vmatpush1.bf16.msra.mxu0 0
    %3718 = vmatprep.subr.bf16.mxu0 0
    %3719 = vmatpush1.bf16.msra.mxu0 0
    %3720 = vmatprep.subr.bf16.mxu0 0
    %3721 = vmatpush1.bf16.msra.mxu0 0
    %3722 = vmatprep.subr.bf16.mxu0 0
    %3723 = vmatpush1.bf16.msra.mxu0 0
    %3724 = vmatprep.subr.bf16.mxu0 0
    %3725 = vmatpush1.bf16.msra.mxu0 0
    %3726 = vmatprep.subr.bf16.mxu0 0
    %3727 = vmatpush1.bf16.msra.mxu0 0
    %3728 = vmatprep.subr.bf16.mxu0 0
    %3729 = vmatpush1.bf16.msra.mxu0 0
    %3730 = vmatprep.subr.bf16.mxu0 0
    %3731 = vmatpush1.bf16.msra.mxu0 0
    %3732 = vmatprep.subr.bf16.mxu0 0
    %3733 = vmatpush1.bf16.msra.mxu0 0
    %3734 = vmatprep.subr.bf16.mxu0 0
    %3735 = vmatpush1.bf16.msra.mxu0 0
    %3736 = vmatprep.subr.bf16.mxu0 0
    %3737 = vmatpush1.bf16.msra.mxu0 0
    %3738 = vmatprep.mubr.bf16.mxu0 0
    %3739 = vmatmul.mubr.bf16.gmra.mrb[0].mxu0 %v3607
    %v3740 = vpop.f32.mrb[0].mxu0
    %v3741 = vadd.f32 %v3588, %v3740
    %v3742 = vpop.f32.mrb[0].mxu0
    %v3743 = vpop.f32.mrb[0].mxu0
    %v3744 = vadd.f32 %v3588, %v3743
    %v3745 = vpop.f32.mrb[0].mxu0
    %3746 = vmatprep.mubr.bf16.mxu0 0
    %3747 = vmatmul.mubr.bf16.gmra.mrb[0].mxu0 %v3610
    %v3748 = vpop.f32.mrb[0].mxu0
    %v3749 = vadd.f32 %v3588, %v3748
    %v3750 = vpop.f32.mrb[0].mxu0
    %v3751 = vpop.f32.mrb[0].mxu0
    %v3752 = vadd.f32 %v3588, %v3751
    %v3753 = vpop.f32.mrb[0].mxu0
    %3754 = vmatprep.mubr.bf16.mxu0 0
    %3755 = vmatmul.mubr.bf16.gmra.mrb[0].mxu0 %v3613
    %v3756 = vpop.f32.mrb[0].mxu0
    %v3757 = vadd.f32 %v3588, %v3756
    %v3758 = vpop.f32.mrb[0].mxu0
    %v3759 = vpop.f32.mrb[0].mxu0
    %v3760 = vadd.f32 %v3588, %v3759
    %v3761 = vpop.f32.mrb[0].mxu0
    %3762 = vmatprep.mubr.bf16.mxu0 0
    %3763 = vmatmul.mubr.bf16.gmra.mrb[0].mxu0 %v3616
    %v3764 = vpop.f32.mrb[0].mxu0
    %v3765 = vadd.f32 %v3588, %v3764
    %v3766 = vpop.f32.mrb[0].mxu0
    %v3767 = vpop.f32.mrb[0].mxu0
    %v3768 = vadd.f32 %v3588, %v3767
    %v3769 = vpop.f32.mrb[0].mxu0
    %3770 = vmatprep.mubr.bf16.mxu0 0
    %3771 = vmatmul.mubr.bf16.gmra.mrb[0].mxu0 %v3619
    %v3772 = vpop.f32.mrb[0].mxu0
    %v3773 = vadd.f32 %v3588, %v3772
    %v3774 = vpop.f32.mrb[0].mxu0
    %v3775 = vpop.f32.mrb[0].mxu0
    %v3776 = vadd.f32 %v3588, %v3775
    %v3777 = vpop.f32.mrb[0].mxu0
    %3778 = vmatprep.mubr.bf16.mxu0 0
    %3779 = vmatmul.mubr.bf16.gmra.mrb[0].mxu0 %v3622
    %v3780 = vpop.f32.mrb[0].mxu0
    %v3781 = vadd.f32 %v3588, %v3780
    %v3782 = vpop.f32.mrb[0].mxu0
    %v3783 = vpop.f32.mrb[0].mxu0
    %v3784 = vadd.f32 %v3588, %v3783
    %v3785 = vpop.f32.mrb[0].mxu0
    %3786 = vmatprep.mubr.bf16.mxu0 0
    %3787 = vmatmul.mubr.bf16.gmra.mrb[0].mxu0 %v3625
    %v3788 = vpop.f32.mrb[0].mxu0
    %v3789 = vadd.f32 %v3588, %v3788
    %v3790 = vpop.f32.mrb[0].mxu0
    %v3791 = vpop.f32.mrb[0].mxu0
    %v3792 = vadd.f32 %v3588, %v3791
    %v3793 = vpop.f32.mrb[0].mxu0
    %3794 = vmatprep.mubr.bf16.mxu0 0
    %3795 = vmatmul.mubr.bf16.gmra.mrb[0].mxu0 %v3628
    %v3796 = vpop.f32.mrb[0].mxu0
    %v3797 = vadd.f32 %v3588, %v3796
    %v3798 = vpop.f32.mrb[0].mxu0
    %v3799 = vpop.f32.mrb[0].mxu0
    %v3800 = vadd.f32 %v3588, %v3799
    %v3801 = vpop.f32.mrb[0].mxu0
    %3802 = vmatprep.mubr.bf16.mxu0 0
    %3803 = vmatmul.mubr.bf16.gmra.mrb[0].mxu0 %v3631
    %v3804 = vpop.f32.mrb[0].mxu0
    %v3805 = vadd.f32 %v3588, %v3804
    %v3806 = vpop.f32.mrb[0].mxu0
    %v3807 = vpop.f32.mrb[0].mxu0
    %v3808 = vadd.f32 %v3588, %v3807
    %v3809 = vpop.f32.mrb[0].mxu0
    %3810 = vmatprep.mubr.bf16.mxu0 0
    %3811 = vmatmul.mubr.bf16.gmra.mrb[0].mxu0 %v3634
    %v3812 = vpop.f32.mrb[0].mxu0
    %v3813 = vadd.f32 %v3588, %v3812
    %v3814 = vpop.f32.mrb[0].mxu0
    %v3815 = vpop.f32.mrb[0].mxu0
    %v3816 = vadd.f32 %v3588, %v3815
    %v3817 = vpop.f32.mrb[0].mxu0
    %3818 = vmatprep.mubr.bf16.mxu0 0
    %3819 = vmatmul.mubr.bf16.gmra.mrb[0].mxu0 %v3637
    %v3820 = vpop.f32.mrb[0].mxu0
    %v3821 = vadd.f32 %v3588, %v3820
    %v3822 = vpop.f32.mrb[0].mxu0
    %v3823 = vpop.f32.mrb[0].mxu0
    %v3824 = vadd.f32 %v3588, %v3823
    %v3825 = vpop.f32.mrb[0].mxu0
    %3826 = vmatprep.mubr.bf16.mxu0 0
    %3827 = vmatmul.mubr.bf16.gmra.mrb[0].mxu0 %v3640
    %v3828 = vpop.f32.mrb[0].mxu0
    %v3829 = vadd.f32 %v3588, %v3828
    %v3830 = vpop.f32.mrb[0].mxu0
    %v3831 = vpop.f32.mrb[0].mxu0
    %v3832 = vadd.f32 %v3588, %v3831
    %v3833 = vpop.f32.mrb[0].mxu0
    %3834 = vmatprep.mubr.bf16.mxu0 0
    %3835 = vmatmul.mubr.bf16.gmra.mrb[0].mxu0 %v3643
    %v3836 = vpop.f32.mrb[0].mxu0
    %v3837 = vadd.f32 %v3588, %v3836
    %v3838 = vpop.f32.mrb[0].mxu0
    %v3839 = vpop.f32.mrb[0].mxu0
    %v3840 = vadd.f32 %v3588, %v3839
    %v3841 = vpop.f32.mrb[0].mxu0
    %3842 = vmatprep.mubr.bf16.mxu0 0
    %3843 = vmatmul.mubr.bf16.gmra.mrb[0].mxu0 %v3646
    %v3844 = vpop.f32.mrb[0].mxu0
    %v3845 = vadd.f32 %v3588, %v3844
    %v3846 = vpop.f32.mrb[0].mxu0
    %v3847 = vpop.f32.mrb[0].mxu0
    %v3848 = vadd.f32 %v3588, %v3847
    %v3849 = vpop.f32.mrb[0].mxu0
    %3850 = vmatprep.mubr.bf16.mxu0 0
    %3851 = vmatmul.mubr.bf16.gmra.mrb[0].mxu0 %v3649
    %v3852 = vpop.f32.mrb[0].mxu0
    %v3853 = vadd.f32 %v3588, %v3852
    %v3854 = vpop.f32.mrb[0].mxu0
    %v3855 = vpop.f32.mrb[0].mxu0
    %v3856 = vadd.f32 %v3588, %v3855
    %v3857 = vpop.f32.mrb[0].mxu0
    %3858 = vmatprep.mubr.bf16.mxu0 0
    %3859 = vmatmul.mubr.bf16.gmra.mrb[0].mxu0 %v3652
    %v3860 = vpop.f32.mrb[0].mxu0
    %v3861 = vadd.f32 %v3588, %v3860
    %v3862 = vpop.f32.mrb[0].mxu0
    %v3863 = vpop.f32.mrb[0].mxu0
    %v3864 = vadd.f32 %v3588, %v3863
    %v3865 = vpop.f32.mrb[0].mxu0
    %3866 = vmatprep.mubr.bf16.mxu0 0
    %3867 = vmatmul.mubr.bf16.gmra.mrb[0].mxu0 %v3655
    %v3868 = vpop.f32.mrb[0].mxu0
    %v3869 = vadd.f32 %v3588, %v3868
    %v3870 = vpop.f32.mrb[0].mxu0
    %v3871 = vpop.f32.mrb[0].mxu0
    %v3872 = vadd.f32 %v3588, %v3871
    %v3873 = vpop.f32.mrb[0].mxu0
    %3874 = vmatprep.mubr.bf16.mxu0 0
    %3875 = vmatmul.mubr.bf16.gmra.mrb[0].mxu0 %v3658
    %v3876 = vpop.f32.mrb[0].mxu0
    %v3877 = vadd.f32 %v3588, %v3876
    %v3878 = vpop.f32.mrb[0].mxu0
    %v3879 = vpop.f32.mrb[0].mxu0
    %v3880 = vadd.f32 %v3588, %v3879
    %v3881 = vpop.f32.mrb[0].mxu0
    %3882 = vmatprep.mubr.bf16.mxu0 0
    %3883 = vmatmul.mubr.bf16.gmra.mrb[0].mxu0 %v3661
    %v3884 = vpop.f32.mrb[0].mxu0
    %v3885 = vadd.f32 %v3588, %v3884
    %v3886 = vpop.f32.mrb[0].mxu0
    %v3887 = vpop.f32.mrb[0].mxu0
    %v3888 = vadd.f32 %v3588, %v3887
    %v3889 = vpop.f32.mrb[0].mxu0
    %3890 = vmatprep.mubr.bf16.mxu0 0
    %3891 = vmatmul.mubr.bf16.gmra.mrb[0].mxu0 %v3664
    %v3892 = vpop.f32.mrb[0].mxu0
    %v3893 = vadd.f32 %v3588, %v3892
    %v3894 = vpop.f32.mrb[0].mxu0
    %v3895 = vpop.f32.mrb[0].mxu0
    %v3896 = vadd.f32 %v3588, %v3895
    %v3897 = vpop.f32.mrb[0].mxu0
    %3898 = vmatprep.mubr.bf16.mxu0 0
    %3899 = vmatmul.mubr.bf16.gmra.mrb[0].mxu0 %v3667
    %v3900 = vpop.f32.mrb[0].mxu0
    %v3901 = vadd.f32 %v3588, %v3900
    %v3902 = vpop.f32.mrb[0].mxu0
    %v3903 = vpop.f32.mrb[0].mxu0
    %v3904 = vadd.f32 %v3588, %v3903
    %v3905 = vpop.f32.mrb[0].mxu0
    %3906 = vmatprep.mubr.bf16.mxu0 0
    %3907 = vmatmul.mubr.bf16.gmra.mrb[0].mxu0 %v3670
    %v3908 = vpop.f32.mrb[0].mxu0
    %v3909 = vadd.f32 %v3588, %v3908
    %v3910 = vpop.f32.mrb[0].mxu0
    %v3911 = vpop.f32.mrb[0].mxu0
    %v3912 = vadd.f32 %v3588, %v3911
    %v3913 = vpop.f32.mrb[0].mxu0
    %3914 = vmatprep.mubr.bf16.mxu0 0
    %3915 = vmatmul.mubr.bf16.gmra.mrb[0].mxu0 %v3673
    %v3916 = vpop.f32.mrb[0].mxu0
    %v3917 = vadd.f32 %v3588, %v3916
    %v3918 = vpop.f32.mrb[0].mxu0
    %v3919 = vpop.f32.mrb[0].mxu0
    %v3920 = vadd.f32 %v3588, %v3919
    %v3921 = vpop.f32.mrb[0].mxu0
    %3922 = vmatprep.mubr.bf16.mxu0 0
    %3923 = vmatmul.mubr.bf16.gmra.mrb[0].mxu0 %v3676
    %v3924 = vpop.f32.mrb[0].mxu0
    %v3925 = vadd.f32 %v3588, %v3924
    %v3926 = vpop.f32.mrb[0].mxu0
    %v3927 = vpop.f32.mrb[0].mxu0
    %v3928 = vadd.f32 %v3588, %v3927
    %v3929 = vpop.f32.mrb[0].mxu0
    %3930 = vmatprep.mubr.bf16.mxu0 0
    %3931 = vmatmul.mubr.bf16.gmra.mrb[0].mxu0 %v3679
    %v3932 = vpop.f32.mrb[0].mxu0
    %v3933 = vadd.f32 %v3588, %v3932
    %v3934 = vpop.f32.mrb[0].mxu0
    %v3935 = vpop.f32.mrb[0].mxu0
    %v3936 = vadd.f32 %v3588, %v3935
    %v3937 = vpop.f32.mrb[0].mxu0
    %3938 = vmatprep.mubr.bf16.mxu0 0
    %3939 = vmatmul.mubr.bf16.gmra.mrb[0].mxu0 %v3682
    %v3940 = vpop.f32.mrb[0].mxu0
    %v3941 = vadd.f32 %v3588, %v3940
    %v3942 = vpop.f32.mrb[0].mxu0
    %v3943 = vpop.f32.mrb[0].mxu0
    %v3944 = vadd.f32 %v3588, %v3943
    %v3945 = vpop.f32.mrb[0].mxu0
    %3946 = vmatprep.mubr.bf16.mxu0 0
    %3947 = vmatmul.mubr.bf16.gmra.mrb[0].mxu0 %v3685
    %v3948 = vpop.f32.mrb[0].mxu0
    %v3949 = vadd.f32 %v3588, %v3948
    %v3950 = vpop.f32.mrb[0].mxu0
    %v3951 = vpop.f32.mrb[0].mxu0
    %v3952 = vadd.f32 %v3588, %v3951
    %v3953 = vpop.f32.mrb[0].mxu0
    %3954 = vmatprep.mubr.bf16.mxu0 0
    %3955 = vmatmul.mubr.bf16.gmra.mrb[0].mxu0 %v3688
    %v3956 = vpop.f32.mrb[0].mxu0
    %v3957 = vadd.f32 %v3588, %v3956
    %v3958 = vpop.f32.mrb[0].mxu0
    %v3959 = vpop.f32.mrb[0].mxu0
    %v3960 = vadd.f32 %v3588, %v3959
    %v3961 = vpop.f32.mrb[0].mxu0
    %3962 = vmatprep.mubr.bf16.mxu0 0
    %3963 = vmatmul.mubr.bf16.gmra.mrb[0].mxu0 %v3691
    %v3964 = vpop.f32.mrb[0].mxu0
    %v3965 = vadd.f32 %v3588, %v3964
    %v3966 = vpop.f32.mrb[0].mxu0
    %v3967 = vpop.f32.mrb[0].mxu0
    %v3968 = vadd.f32 %v3588, %v3967
    %v3969 = vpop.f32.mrb[0].mxu0
    %3970 = vmatprep.mubr.bf16.mxu0 0
    %3971 = vmatmul.mubr.bf16.gmra.mrb[0].mxu0 %v3694
    %v3972 = vpop.f32.mrb[0].mxu0
    %v3973 = vadd.f32 %v3588, %v3972
    %v3974 = vpop.f32.mrb[0].mxu0
    %v3975 = vpop.f32.mrb[0].mxu0
    %v3976 = vadd.f32 %v3588, %v3975
    %v3977 = vpop.f32.mrb[0].mxu0
    %3978 = vmatprep.mubr.bf16.mxu0 0
    %3979 = vmatmul.mubr.bf16.gmra.mrb[0].mxu0 %v3697
    %v3980 = vpop.f32.mrb[0].mxu0
    %v3981 = vadd.f32 %v3588, %v3980
    %v3982 = vpop.f32.mrb[0].mxu0
    %v3983 = vpop.f32.mrb[0].mxu0
    %v3984 = vadd.f32 %v3588, %v3983
    %v3985 = vpop.f32.mrb[0].mxu0
    %3986 = vmatprep.mubr.bf16.mxu0 0
    %3987 = vmatmul.mubr.bf16.gmra.mrb[0].mxu0 %v3700
    %v3988 = vpop.f32.mrb[0].mxu0
    %v3989 = vadd.f32 %v3588, %v3988
    %v3990 = vpop.f32.mrb[0].mxu0
    %v3991 = vpop.f32.mrb[0].mxu0
    %v3992 = vadd.f32 %v3588, %v3991
    %v3993 = vpop.f32.mrb[0].mxu0
    %3994 = vdwg.mxu0
    %v3995 = vmax.f32 %v3741, 0.0
    %v3996 = vmax.f32 %v3744, 0.0
    %v3997 = vmax.f32 %v3749, 0.0
    %v3998 = vmax.f32 %v3752, 0.0
    %v3999 = vmax.f32 %v3757, 0.0
    %v4000 = vmax.f32 %v3760, 0.0
    %v4001 = vmax.f32 %v3765, 0.0
    %v4002 = vmax.f32 %v3768, 0.0
    %v4003 = vmax.f32 %v3773, 0.0
    %v4004 = vmax.f32 %v3776, 0.0
    %v4005 = vmax.f32 %v3781, 0.0
    %v4006 = vmax.f32 %v3784, 0.0
    %v4007 = vmax.f32 %v3789, 0.0
    %v4008 = vmax.f32 %v3792, 0.0
    %v4009 = vmax.f32 %v3797, 0.0
    %v4010 = vmax.f32 %v3800, 0.0
    %v4011 = vmax.f32 %v3805, 0.0
    %v4012 = vmax.f32 %v3808, 0.0
    %v4013 = vmax.f32 %v3813, 0.0
    %v4014 = vmax.f32 %v3816, 0.0
    %v4015 = vmax.f32 %v3821, 0.0
    %v4016 = vmax.f32 %v3824, 0.0
    %v4017 = vmax.f32 %v3829, 0.0
    %v4018 = vmax.f32 %v3832, 0.0
    %v4019 = vmax.f32 %v3837, 0.0
    %v4020 = vmax.f32 %v3840, 0.0
    %v4021 = vmax.f32 %v3845, 0.0
    %v4022 = vmax.f32 %v3848, 0.0
    %v4023 = vmax.f32 %v3853, 0.0
    %v4024 = vmax.f32 %v3856, 0.0
    %v4025 = vmax.f32 %v3861, 0.0
    %v4026 = vmax.f32 %v3864, 0.0
    %v4027 = vmax.f32 %v3869, 0.0
    %v4028 = vmax.f32 %v3872, 0.0
    %v4029 = vmax.f32 %v3877, 0.0
    %v4030 = vmax.f32 %v3880, 0.0
    %v4031 = vmax.f32 %v3885, 0.0
    %v4032 = vmax.f32 %v3888, 0.0
    %v4033 = vmax.f32 %v3893, 0.0
    %v4034 = vmax.f32 %v3896, 0.0
    %v4035 = vmax.f32 %v3901, 0.0
    %v4036 = vmax.f32 %v3904, 0.0
    %v4037 = vmax.f32 %v3909, 0.0
    %v4038 = vmax.f32 %v3912, 0.0
    %v4039 = vmax.f32 %v3917, 0.0
    %v4040 = vmax.f32 %v3920, 0.0
    %v4041 = vmax.f32 %v3925, 0.0
    %v4042 = vmax.f32 %v3928, 0.0
    %v4043 = vmax.f32 %v3933, 0.0
    %v4044 = vmax.f32 %v3936, 0.0
    %v4045 = vmax.f32 %v3941, 0.0
    %v4046 = vmax.f32 %v3944, 0.0
    %v4047 = vmax.f32 %v3949, 0.0
    %v4048 = vmax.f32 %v3952, 0.0
    %v4049 = vmax.f32 %v3957, 0.0
    %v4050 = vmax.f32 %v3960, 0.0
    %v4051 = vmax.f32 %v3965, 0.0
    %v4052 = vmax.f32 %v3968, 0.0
    %v4053 = vmax.f32 %v3973, 0.0
    %v4054 = vmax.f32 %v3976, 0.0
    %v4055 = vmax.f32 %v3981, 0.0
    %v4056 = vmax.f32 %v3984, 0.0
    %v4057 = vmax.f32 %v3989, 0.0
    %v4058 = vmax.f32 %v3992, 0.0
    %v4059 = vmax.f32 %v3995, %v3997
    %v4060 = vmax.f32 %v3996, %v3998
    %v4061 = vmax.f32 %v3999, %v4001
    %v4062 = vmax.f32 %v4000, %v4002
    %v4063 = vmax.f32 %v4003, %v4005
    %v4064 = vmax.f32 %v4004, %v4006
    %v4065 = vmax.f32 %v4007, %v4009
    %v4066 = vmax.f32 %v4008, %v4010
    %v4067 = vmax.f32 %v4011, %v4013
    %v4068 = vmax.f32 %v4012, %v4014
    %v4069 = vmax.f32 %v4015, %v4017
    %v4070 = vmax.f32 %v4016, %v4018
    %v4071 = vmax.f32 %v4019, %v4021
    %v4072 = vmax.f32 %v4020, %v4022
    %v4073 = vmax.f32 %v4023, %v4025
    %v4074 = vmax.f32 %v4024, %v4026
    %v4075 = vmax.f32 %v4027, %v4029
    %v4076 = vmax.f32 %v4028, %v4030
    %v4077 = vmax.f32 %v4031, %v4033
    %v4078 = vmax.f32 %v4032, %v4034
    %v4079 = vmax.f32 %v4035, %v4037
    %v4080 = vmax.f32 %v4036, %v4038
    %v4081 = vmax.f32 %v4039, %v4041
    %v4082 = vmax.f32 %v4040, %v4042
    %v4083 = vmax.f32 %v4043, %v4045
    %v4084 = vmax.f32 %v4044, %v4046
    %v4085 = vmax.f32 %v4047, %v4049
    %v4086 = vmax.f32 %v4048, %v4050
    %v4087 = vmax.f32 %v4051, %v4053
    %v4088 = vmax.f32 %v4052, %v4054
    %v4089 = vmax.f32 %v4055, %v4057
    %v4090 = vmax.f32 %v4056, %v4058
    %v4123 = vcombine.high %v4059, %v4059
    %v4125 = vunpack.c.l.s4 1983009808
    %v4126 = vunpack.c.0.s8 %v4125
    %v4127 = vlaneseq
    %v4128 = vshrl.u32 %v4127, 7
    %v4129 = vsub.s32 %v4126, %v4128
    %v4130 = vrot.slane %v4059, %v4129
    %v4132 = vunpack.c.l.s4 1983009808
    %v4133 = vunpack.c.0.s8 %v4132
    %v4134 = vlaneseq
    %v4135 = vshrl.u32 %v4134, 7
    %v4136 = vsub.s32 %v4133, %v4135
    %v4137 = vrot.slane %v4123, %v4136
    %v4138 = vcombine.high %v4130, %v4130
    %v4139 = vcombine.high %v4137, %v4137
    %v4140 = vcombine.high %v4060, %v4060
    %v4142 = vunpack.c.l.s4 1983009808
    %v4143 = vunpack.c.0.s8 %v4142
    %v4144 = vlaneseq
    %v4145 = vshrl.u32 %v4144, 7
    %v4146 = vsub.s32 %v4143, %v4145
    %v4147 = vrot.slane %v4060, %v4146
    %v4149 = vunpack.c.l.s4 1983009808
    %v4150 = vunpack.c.0.s8 %v4149
    %v4151 = vlaneseq
    %v4152 = vshrl.u32 %v4151, 7
    %v4153 = vsub.s32 %v4150, %v4152
    %v4154 = vrot.slane %v4140, %v4153
    %v4155 = vcombine.high %v4147, %v4147
    %v4156 = vcombine.high %v4154, %v4154
    %v4157 = vcombine.high %v4061, %v4061
    %v4159 = vunpack.c.l.s4 1983009808
    %v4160 = vunpack.c.0.s8 %v4159
    %v4161 = vlaneseq
    %v4162 = vshrl.u32 %v4161, 7
    %v4163 = vsub.s32 %v4160, %v4162
    %v4164 = vrot.slane %v4061, %v4163
    %v4166 = vunpack.c.l.s4 1983009808
    %v4167 = vunpack.c.0.s8 %v4166
    %v4168 = vlaneseq
    %v4169 = vshrl.u32 %v4168, 7
    %v4170 = vsub.s32 %v4167, %v4169
    %v4171 = vrot.slane %v4157, %v4170
    %v4172 = vcombine.high %v4164, %v4164
    %v4173 = vcombine.high %v4171, %v4171
    %v4174 = vcombine.high %v4062, %v4062
    %v4176 = vunpack.c.l.s4 1983009808
    %v4177 = vunpack.c.0.s8 %v4176
    %v4178 = vlaneseq
    %v4179 = vshrl.u32 %v4178, 7
    %v4180 = vsub.s32 %v4177, %v4179
    %v4181 = vrot.slane %v4062, %v4180
    %v4183 = vunpack.c.l.s4 1983009808
    %v4184 = vunpack.c.0.s8 %v4183
    %v4185 = vlaneseq
    %v4186 = vshrl.u32 %v4185, 7
    %v4187 = vsub.s32 %v4184, %v4186
    %v4188 = vrot.slane %v4174, %v4187
    %v4189 = vcombine.high %v4181, %v4181
    %v4190 = vcombine.high %v4188, %v4188
    %v4191 = vcombine.high %v4063, %v4063
    %v4193 = vunpack.c.l.s4 1983009808
    %v4194 = vunpack.c.0.s8 %v4193
    %v4195 = vlaneseq
    %v4196 = vshrl.u32 %v4195, 7
    %v4197 = vsub.s32 %v4194, %v4196
    %v4198 = vrot.slane %v4063, %v4197
    %v4200 = vunpack.c.l.s4 1983009808
    %v4201 = vunpack.c.0.s8 %v4200
    %v4202 = vlaneseq
    %v4203 = vshrl.u32 %v4202, 7
    %v4204 = vsub.s32 %v4201, %v4203
    %v4205 = vrot.slane %v4191, %v4204
    %v4206 = vcombine.high %v4198, %v4198
    %v4207 = vcombine.high %v4205, %v4205
    %v4208 = vcombine.high %v4064, %v4064
    %v4210 = vunpack.c.l.s4 1983009808
    %v4211 = vunpack.c.0.s8 %v4210
    %v4212 = vlaneseq
    %v4213 = vshrl.u32 %v4212, 7
    %v4214 = vsub.s32 %v4211, %v4213
    %v4215 = vrot.slane %v4064, %v4214
    %v4217 = vunpack.c.l.s4 1983009808
    %v4218 = vunpack.c.0.s8 %v4217
    %v4219 = vlaneseq
    %v4220 = vshrl.u32 %v4219, 7
    %v4221 = vsub.s32 %v4218, %v4220
    %v4222 = vrot.slane %v4208, %v4221
    %v4223 = vcombine.high %v4215, %v4215
    %v4224 = vcombine.high %v4222, %v4222
    %v4225 = vcombine.high %v4065, %v4065
    %v4227 = vunpack.c.l.s4 1983009808
    %v4228 = vunpack.c.0.s8 %v4227
    %v4229 = vlaneseq
    %v4230 = vshrl.u32 %v4229, 7
    %v4231 = vsub.s32 %v4228, %v4230
    %v4232 = vrot.slane %v4065, %v4231
    %v4234 = vunpack.c.l.s4 1983009808
    %v4235 = vunpack.c.0.s8 %v4234
    %v4236 = vlaneseq
    %v4237 = vshrl.u32 %v4236, 7
    %v4238 = vsub.s32 %v4235, %v4237
    %v4239 = vrot.slane %v4225, %v4238
    %v4240 = vcombine.high %v4232, %v4232
    %v4241 = vcombine.high %v4239, %v4239
    %v4242 = vcombine.high %v4066, %v4066
    %v4244 = vunpack.c.l.s4 1983009808
    %v4245 = vunpack.c.0.s8 %v4244
    %v4246 = vlaneseq
    %v4247 = vshrl.u32 %v4246, 7
    %v4248 = vsub.s32 %v4245, %v4247
    %v4249 = vrot.slane %v4066, %v4248
    %v4251 = vunpack.c.l.s4 1983009808
    %v4252 = vunpack.c.0.s8 %v4251
    %v4253 = vlaneseq
    %v4254 = vshrl.u32 %v4253, 7
    %v4255 = vsub.s32 %v4252, %v4254
    %v4256 = vrot.slane %v4242, %v4255
    %v4257 = vcombine.high %v4249, %v4249
    %v4258 = vcombine.high %v4256, %v4256
    %v4259 = vcombine.high %v4067, %v4067
    %v4261 = vunpack.c.l.s4 1983009808
    %v4262 = vunpack.c.0.s8 %v4261
    %v4263 = vlaneseq
    %v4264 = vshrl.u32 %v4263, 7
    %v4265 = vsub.s32 %v4262, %v4264
    %v4266 = vrot.slane %v4067, %v4265
    %v4268 = vunpack.c.l.s4 1983009808
    %v4269 = vunpack.c.0.s8 %v4268
    %v4270 = vlaneseq
    %v4271 = vshrl.u32 %v4270, 7
    %v4272 = vsub.s32 %v4269, %v4271
    %v4273 = vrot.slane %v4259, %v4272
    %v4274 = vcombine.high %v4266, %v4266
    %v4275 = vcombine.high %v4273, %v4273
    %v4276 = vcombine.high %v4068, %v4068
    %v4278 = vunpack.c.l.s4 1983009808
    %v4279 = vunpack.c.0.s8 %v4278
    %v4280 = vlaneseq
    %v4281 = vshrl.u32 %v4280, 7
    %v4282 = vsub.s32 %v4279, %v4281
    %v4283 = vrot.slane %v4068, %v4282
    %v4285 = vunpack.c.l.s4 1983009808
    %v4286 = vunpack.c.0.s8 %v4285
    %v4287 = vlaneseq
    %v4288 = vshrl.u32 %v4287, 7
    %v4289 = vsub.s32 %v4286, %v4288
    %v4290 = vrot.slane %v4276, %v4289
    %v4291 = vcombine.high %v4283, %v4283
    %v4292 = vcombine.high %v4290, %v4290
    %v4293 = vcombine.high %v4069, %v4069
    %v4295 = vunpack.c.l.s4 1983009808
    %v4296 = vunpack.c.0.s8 %v4295
    %v4297 = vlaneseq
    %v4298 = vshrl.u32 %v4297, 7
    %v4299 = vsub.s32 %v4296, %v4298
    %v4300 = vrot.slane %v4069, %v4299
    %v4302 = vunpack.c.l.s4 1983009808
    %v4303 = vunpack.c.0.s8 %v4302
    %v4304 = vlaneseq
    %v4305 = vshrl.u32 %v4304, 7
    %v4306 = vsub.s32 %v4303, %v4305
    %v4307 = vrot.slane %v4293, %v4306
    %v4308 = vcombine.high %v4300, %v4300
    %v4309 = vcombine.high %v4307, %v4307
    %v4310 = vcombine.high %v4070, %v4070
    %v4312 = vunpack.c.l.s4 1983009808
    %v4313 = vunpack.c.0.s8 %v4312
    %v4314 = vlaneseq
    %v4315 = vshrl.u32 %v4314, 7
    %v4316 = vsub.s32 %v4313, %v4315
    %v4317 = vrot.slane %v4070, %v4316
    %v4319 = vunpack.c.l.s4 1983009808
    %v4320 = vunpack.c.0.s8 %v4319
    %v4321 = vlaneseq
    %v4322 = vshrl.u32 %v4321, 7
    %v4323 = vsub.s32 %v4320, %v4322
    %v4324 = vrot.slane %v4310, %v4323
    %v4325 = vcombine.high %v4317, %v4317
    %v4326 = vcombine.high %v4324, %v4324
    %v4327 = vcombine.high %v4071, %v4071
    %v4329 = vunpack.c.l.s4 1983009808
    %v4330 = vunpack.c.0.s8 %v4329
    %v4331 = vlaneseq
    %v4332 = vshrl.u32 %v4331, 7
    %v4333 = vsub.s32 %v4330, %v4332
    %v4334 = vrot.slane %v4071, %v4333
    %v4336 = vunpack.c.l.s4 1983009808
    %v4337 = vunpack.c.0.s8 %v4336
    %v4338 = vlaneseq
    %v4339 = vshrl.u32 %v4338, 7
    %v4340 = vsub.s32 %v4337, %v4339
    %v4341 = vrot.slane %v4327, %v4340
    %v4342 = vcombine.high %v4334, %v4334
    %v4343 = vcombine.high %v4341, %v4341
    %v4344 = vcombine.high %v4072, %v4072
    %v4346 = vunpack.c.l.s4 1983009808
    %v4347 = vunpack.c.0.s8 %v4346
    %v4348 = vlaneseq
    %v4349 = vshrl.u32 %v4348, 7
    %v4350 = vsub.s32 %v4347, %v4349
    %v4351 = vrot.slane %v4072, %v4350
    %v4353 = vunpack.c.l.s4 1983009808
    %v4354 = vunpack.c.0.s8 %v4353
    %v4355 = vlaneseq
    %v4356 = vshrl.u32 %v4355, 7
    %v4357 = vsub.s32 %v4354, %v4356
    %v4358 = vrot.slane %v4344, %v4357
    %v4359 = vcombine.high %v4351, %v4351
    %v4360 = vcombine.high %v4358, %v4358
    %v4361 = vcombine.high %v4073, %v4073
    %v4363 = vunpack.c.l.s4 1983009808
    %v4364 = vunpack.c.0.s8 %v4363
    %v4365 = vlaneseq
    %v4366 = vshrl.u32 %v4365, 7
    %v4367 = vsub.s32 %v4364, %v4366
    %v4368 = vrot.slane %v4073, %v4367
    %v4370 = vunpack.c.l.s4 1983009808
    %v4371 = vunpack.c.0.s8 %v4370
    %v4372 = vlaneseq
    %v4373 = vshrl.u32 %v4372, 7
    %v4374 = vsub.s32 %v4371, %v4373
    %v4375 = vrot.slane %v4361, %v4374
    %v4376 = vcombine.high %v4368, %v4368
    %v4377 = vcombine.high %v4375, %v4375
    %v4378 = vcombine.high %v4074, %v4074
    %v4380 = vunpack.c.l.s4 1983009808
    %v4381 = vunpack.c.0.s8 %v4380
    %v4382 = vlaneseq
    %v4383 = vshrl.u32 %v4382, 7
    %v4384 = vsub.s32 %v4381, %v4383
    %v4385 = vrot.slane %v4074, %v4384
    %v4387 = vunpack.c.l.s4 1983009808
    %v4388 = vunpack.c.0.s8 %v4387
    %v4389 = vlaneseq
    %v4390 = vshrl.u32 %v4389, 7
    %v4391 = vsub.s32 %v4388, %v4390
    %v4392 = vrot.slane %v4378, %v4391
    %v4393 = vcombine.high %v4385, %v4385
    %v4394 = vcombine.high %v4392, %v4392
    %v4395 = vcombine.high %v4075, %v4075
    %v4397 = vunpack.c.l.s4 1983009808
    %v4398 = vunpack.c.0.s8 %v4397
    %v4399 = vlaneseq
    %v4400 = vshrl.u32 %v4399, 7
    %v4401 = vsub.s32 %v4398, %v4400
    %v4402 = vrot.slane %v4075, %v4401
    %v4404 = vunpack.c.l.s4 1983009808
    %v4405 = vunpack.c.0.s8 %v4404
    %v4406 = vlaneseq
    %v4407 = vshrl.u32 %v4406, 7
    %v4408 = vsub.s32 %v4405, %v4407
    %v4409 = vrot.slane %v4395, %v4408
    %v4410 = vcombine.high %v4402, %v4402
    %v4411 = vcombine.high %v4409, %v4409
    %v4412 = vcombine.high %v4076, %v4076
    %v4414 = vunpack.c.l.s4 1983009808
    %v4415 = vunpack.c.0.s8 %v4414
    %v4416 = vlaneseq
    %v4417 = vshrl.u32 %v4416, 7
    %v4418 = vsub.s32 %v4415, %v4417
    %v4419 = vrot.slane %v4076, %v4418
    %v4421 = vunpack.c.l.s4 1983009808
    %v4422 = vunpack.c.0.s8 %v4421
    %v4423 = vlaneseq
    %v4424 = vshrl.u32 %v4423, 7
    %v4425 = vsub.s32 %v4422, %v4424
    %v4426 = vrot.slane %v4412, %v4425
    %v4427 = vcombine.high %v4419, %v4419
    %v4428 = vcombine.high %v4426, %v4426
    %v4429 = vcombine.high %v4077, %v4077
    %v4431 = vunpack.c.l.s4 1983009808
    %v4432 = vunpack.c.0.s8 %v4431
    %v4433 = vlaneseq
    %v4434 = vshrl.u32 %v4433, 7
    %v4435 = vsub.s32 %v4432, %v4434
    %v4436 = vrot.slane %v4077, %v4435
    %v4438 = vunpack.c.l.s4 1983009808
    %v4439 = vunpack.c.0.s8 %v4438
    %v4440 = vlaneseq
    %v4441 = vshrl.u32 %v4440, 7
    %v4442 = vsub.s32 %v4439, %v4441
    %v4443 = vrot.slane %v4429, %v4442
    %v4444 = vcombine.high %v4436, %v4436
    %v4445 = vcombine.high %v4443, %v4443
    %v4446 = vcombine.high %v4078, %v4078
    %v4448 = vunpack.c.l.s4 1983009808
    %v4449 = vunpack.c.0.s8 %v4448
    %v4450 = vlaneseq
    %v4451 = vshrl.u32 %v4450, 7
    %v4452 = vsub.s32 %v4449, %v4451
    %v4453 = vrot.slane %v4078, %v4452
    %v4455 = vunpack.c.l.s4 1983009808
    %v4456 = vunpack.c.0.s8 %v4455
    %v4457 = vlaneseq
    %v4458 = vshrl.u32 %v4457, 7
    %v4459 = vsub.s32 %v4456, %v4458
    %v4460 = vrot.slane %v4446, %v4459
    %v4461 = vcombine.high %v4453, %v4453
    %v4462 = vcombine.high %v4460, %v4460
    %v4463 = vcombine.high %v4079, %v4079
    %v4465 = vunpack.c.l.s4 1983009808
    %v4466 = vunpack.c.0.s8 %v4465
    %v4467 = vlaneseq
    %v4468 = vshrl.u32 %v4467, 7
    %v4469 = vsub.s32 %v4466, %v4468
    %v4470 = vrot.slane %v4079, %v4469
    %v4472 = vunpack.c.l.s4 1983009808
    %v4473 = vunpack.c.0.s8 %v4472
    %v4474 = vlaneseq
    %v4475 = vshrl.u32 %v4474, 7
    %v4476 = vsub.s32 %v4473, %v4475
    %v4477 = vrot.slane %v4463, %v4476
    %v4478 = vcombine.high %v4470, %v4470
    %v4479 = vcombine.high %v4477, %v4477
    %v4480 = vcombine.high %v4080, %v4080
    %v4482 = vunpack.c.l.s4 1983009808
    %v4483 = vunpack.c.0.s8 %v4482
    %v4484 = vlaneseq
    %v4485 = vshrl.u32 %v4484, 7
    %v4486 = vsub.s32 %v4483, %v4485
    %v4487 = vrot.slane %v4080, %v4486
    %v4489 = vunpack.c.l.s4 1983009808
    %v4490 = vunpack.c.0.s8 %v4489
    %v4491 = vlaneseq
    %v4492 = vshrl.u32 %v4491, 7
    %v4493 = vsub.s32 %v4490, %v4492
    %v4494 = vrot.slane %v4480, %v4493
    %v4495 = vcombine.high %v4487, %v4487
    %v4496 = vcombine.high %v4494, %v4494
    %v4497 = vcombine.high %v4081, %v4081
    %v4499 = vunpack.c.l.s4 1983009808
    %v4500 = vunpack.c.0.s8 %v4499
    %v4501 = vlaneseq
    %v4502 = vshrl.u32 %v4501, 7
    %v4503 = vsub.s32 %v4500, %v4502
    %v4504 = vrot.slane %v4081, %v4503
    %v4506 = vunpack.c.l.s4 1983009808
    %v4507 = vunpack.c.0.s8 %v4506
    %v4508 = vlaneseq
    %v4509 = vshrl.u32 %v4508, 7
    %v4510 = vsub.s32 %v4507, %v4509
    %v4511 = vrot.slane %v4497, %v4510
    %v4512 = vcombine.high %v4504, %v4504
    %v4513 = vcombine.high %v4511, %v4511
    %v4514 = vcombine.high %v4082, %v4082
    %v4516 = vunpack.c.l.s4 1983009808
    %v4517 = vunpack.c.0.s8 %v4516
    %v4518 = vlaneseq
    %v4519 = vshrl.u32 %v4518, 7
    %v4520 = vsub.s32 %v4517, %v4519
    %v4521 = vrot.slane %v4082, %v4520
    %v4523 = vunpack.c.l.s4 1983009808
    %v4524 = vunpack.c.0.s8 %v4523
    %v4525 = vlaneseq
    %v4526 = vshrl.u32 %v4525, 7
    %v4527 = vsub.s32 %v4524, %v4526
    %v4528 = vrot.slane %v4514, %v4527
    %v4529 = vcombine.high %v4521, %v4521
    %v4530 = vcombine.high %v4528, %v4528
    %v4531 = vcombine.high %v4083, %v4083
    %v4533 = vunpack.c.l.s4 1983009808
    %v4534 = vunpack.c.0.s8 %v4533
    %v4535 = vlaneseq
    %v4536 = vshrl.u32 %v4535, 7
    %v4537 = vsub.s32 %v4534, %v4536
    %v4538 = vrot.slane %v4083, %v4537
    %v4540 = vunpack.c.l.s4 1983009808
    %v4541 = vunpack.c.0.s8 %v4540
    %v4542 = vlaneseq
    %v4543 = vshrl.u32 %v4542, 7
    %v4544 = vsub.s32 %v4541, %v4543
    %v4545 = vrot.slane %v4531, %v4544
    %v4546 = vcombine.high %v4538, %v4538
    %v4547 = vcombine.high %v4545, %v4545
    %v4548 = vcombine.high %v4084, %v4084
    %v4550 = vunpack.c.l.s4 1983009808
    %v4551 = vunpack.c.0.s8 %v4550
    %v4552 = vlaneseq
    %v4553 = vshrl.u32 %v4552, 7
    %v4554 = vsub.s32 %v4551, %v4553
    %v4555 = vrot.slane %v4084, %v4554
    %v4557 = vunpack.c.l.s4 1983009808
    %v4558 = vunpack.c.0.s8 %v4557
    %v4559 = vlaneseq
    %v4560 = vshrl.u32 %v4559, 7
    %v4561 = vsub.s32 %v4558, %v4560
    %v4562 = vrot.slane %v4548, %v4561
    %v4563 = vcombine.high %v4555, %v4555
    %v4564 = vcombine.high %v4562, %v4562
    %v4565 = vcombine.high %v4085, %v4085
    %v4567 = vunpack.c.l.s4 1983009808
    %v4568 = vunpack.c.0.s8 %v4567
    %v4569 = vlaneseq
    %v4570 = vshrl.u32 %v4569, 7
    %v4571 = vsub.s32 %v4568, %v4570
    %v4572 = vrot.slane %v4085, %v4571
    %v4574 = vunpack.c.l.s4 1983009808
    %v4575 = vunpack.c.0.s8 %v4574
    %v4576 = vlaneseq
    %v4577 = vshrl.u32 %v4576, 7
    %v4578 = vsub.s32 %v4575, %v4577
    %v4579 = vrot.slane %v4565, %v4578
    %v4580 = vcombine.high %v4572, %v4572
    %v4581 = vcombine.high %v4579, %v4579
    %v4582 = vcombine.high %v4086, %v4086
    %v4584 = vunpack.c.l.s4 1983009808
    %v4585 = vunpack.c.0.s8 %v4584
    %v4586 = vlaneseq
    %v4587 = vshrl.u32 %v4586, 7
    %v4588 = vsub.s32 %v4585, %v4587
    %v4589 = vrot.slane %v4086, %v4588
    %v4591 = vunpack.c.l.s4 1983009808
    %v4592 = vunpack.c.0.s8 %v4591
    %v4593 = vlaneseq
    %v4594 = vshrl.u32 %v4593, 7
    %v4595 = vsub.s32 %v4592, %v4594
    %v4596 = vrot.slane %v4582, %v4595
    %v4597 = vcombine.high %v4589, %v4589
    %v4598 = vcombine.high %v4596, %v4596
    %v4599 = vcombine.high %v4087, %v4087
    %v4601 = vunpack.c.l.s4 1983009808
    %v4602 = vunpack.c.0.s8 %v4601
    %v4603 = vlaneseq
    %v4604 = vshrl.u32 %v4603, 7
    %v4605 = vsub.s32 %v4602, %v4604
    %v4606 = vrot.slane %v4087, %v4605
    %v4608 = vunpack.c.l.s4 1983009808
    %v4609 = vunpack.c.0.s8 %v4608
    %v4610 = vlaneseq
    %v4611 = vshrl.u32 %v4610, 7
    %v4612 = vsub.s32 %v4609, %v4611
    %v4613 = vrot.slane %v4599, %v4612
    %v4614 = vcombine.high %v4606, %v4606
    %v4615 = vcombine.high %v4613, %v4613
    %v4616 = vcombine.high %v4088, %v4088
    %v4618 = vunpack.c.l.s4 1983009808
    %v4619 = vunpack.c.0.s8 %v4618
    %v4620 = vlaneseq
    %v4621 = vshrl.u32 %v4620, 7
    %v4622 = vsub.s32 %v4619, %v4621
    %v4623 = vrot.slane %v4088, %v4622
    %v4625 = vunpack.c.l.s4 1983009808
    %v4626 = vunpack.c.0.s8 %v4625
    %v4627 = vlaneseq
    %v4628 = vshrl.u32 %v4627, 7
    %v4629 = vsub.s32 %v4626, %v4628
    %v4630 = vrot.slane %v4616, %v4629
    %v4631 = vcombine.high %v4623, %v4623
    %v4632 = vcombine.high %v4630, %v4630
    %v4633 = vcombine.high %v4089, %v4089
    %v4635 = vunpack.c.l.s4 1983009808
    %v4636 = vunpack.c.0.s8 %v4635
    %v4637 = vlaneseq
    %v4638 = vshrl.u32 %v4637, 7
    %v4639 = vsub.s32 %v4636, %v4638
    %v4640 = vrot.slane %v4089, %v4639
    %v4642 = vunpack.c.l.s4 1983009808
    %v4643 = vunpack.c.0.s8 %v4642
    %v4644 = vlaneseq
    %v4645 = vshrl.u32 %v4644, 7
    %v4646 = vsub.s32 %v4643, %v4645
    %v4647 = vrot.slane %v4633, %v4646
    %v4648 = vcombine.high %v4640, %v4640
    %v4649 = vcombine.high %v4647, %v4647
    %v4650 = vcombine.high %v4090, %v4090
    %v4652 = vunpack.c.l.s4 1983009808
    %v4653 = vunpack.c.0.s8 %v4652
    %v4654 = vlaneseq
    %v4655 = vshrl.u32 %v4654, 7
    %v4656 = vsub.s32 %v4653, %v4655
    %v4657 = vrot.slane %v4090, %v4656
    %v4659 = vunpack.c.l.s4 1983009808
    %v4660 = vunpack.c.0.s8 %v4659
    %v4661 = vlaneseq
    %v4662 = vshrl.u32 %v4661, 7
    %v4663 = vsub.s32 %v4660, %v4662
    %v4664 = vrot.slane %v4650, %v4663
    %v4665 = vcombine.high %v4657, %v4657
    %v4666 = vcombine.high %v4664, %v4664
    %v4795 = vrot.slane %v4130, 7
    %v4796 = vrot.slane %v4795, 2
    %v4797 = vrot.slane %v4138, 7
    %v4798 = vrot.slane %v4797, 2
    %v4799 = vrot.slane %v4137, 7
    %v4800 = vrot.slane %v4799, 2
    %v4801 = vrot.slane %v4139, 7
    %v4802 = vrot.slane %v4801, 2
    %v4803 = vrot.slane %v4147, 7
    %v4804 = vrot.slane %v4803, 2
    %v4805 = vrot.slane %v4155, 7
    %v4806 = vrot.slane %v4805, 2
    %v4807 = vrot.slane %v4154, 7
    %v4808 = vrot.slane %v4807, 2
    %v4809 = vrot.slane %v4156, 7
    %v4810 = vrot.slane %v4809, 2
    %v4811 = vrot.slane %v4164, 7
    %v4812 = vrot.slane %v4811, 2
    %v4813 = vrot.slane %v4172, 7
    %v4814 = vrot.slane %v4813, 2
    %v4815 = vrot.slane %v4171, 7
    %v4816 = vrot.slane %v4815, 2
    %v4817 = vrot.slane %v4173, 7
    %v4818 = vrot.slane %v4817, 2
    %v4819 = vrot.slane %v4181, 7
    %v4820 = vrot.slane %v4819, 2
    %v4821 = vrot.slane %v4189, 7
    %v4822 = vrot.slane %v4821, 2
    %v4823 = vrot.slane %v4188, 7
    %v4824 = vrot.slane %v4823, 2
    %v4825 = vrot.slane %v4190, 7
    %v4826 = vrot.slane %v4825, 2
    %v4827 = vrot.slane %v4198, 7
    %v4828 = vrot.slane %v4827, 2
    %v4829 = vrot.slane %v4206, 7
    %v4830 = vrot.slane %v4829, 2
    %v4831 = vrot.slane %v4205, 7
    %v4832 = vrot.slane %v4831, 2
    %v4833 = vrot.slane %v4207, 7
    %v4834 = vrot.slane %v4833, 2
    %v4835 = vrot.slane %v4215, 7
    %v4836 = vrot.slane %v4835, 2
    %v4837 = vrot.slane %v4223, 7
    %v4838 = vrot.slane %v4837, 2
    %v4839 = vrot.slane %v4222, 7
    %v4840 = vrot.slane %v4839, 2
    %v4841 = vrot.slane %v4224, 7
    %v4842 = vrot.slane %v4841, 2
    %v4843 = vrot.slane %v4232, 7
    %v4844 = vrot.slane %v4843, 2
    %v4845 = vrot.slane %v4240, 7
    %v4846 = vrot.slane %v4845, 2
    %v4847 = vrot.slane %v4239, 7
    %v4848 = vrot.slane %v4847, 2
    %v4849 = vrot.slane %v4241, 7
    %v4850 = vrot.slane %v4849, 2
    %v4851 = vrot.slane %v4249, 7
    %v4852 = vrot.slane %v4851, 2
    %v4853 = vrot.slane %v4257, 7
    %v4854 = vrot.slane %v4853, 2
    %v4855 = vrot.slane %v4256, 7
    %v4856 = vrot.slane %v4855, 2
    %v4857 = vrot.slane %v4258, 7
    %v4858 = vrot.slane %v4857, 2
    %v4859 = vrot.slane %v4266, 7
    %v4860 = vrot.slane %v4859, 2
    %v4861 = vrot.slane %v4274, 7
    %v4862 = vrot.slane %v4861, 2
    %v4863 = vrot.slane %v4273, 7
    %v4864 = vrot.slane %v4863, 2
    %v4865 = vrot.slane %v4275, 7
    %v4866 = vrot.slane %v4865, 2
    %v4867 = vrot.slane %v4283, 7
    %v4868 = vrot.slane %v4867, 2
    %v4869 = vrot.slane %v4291, 7
    %v4870 = vrot.slane %v4869, 2
    %v4871 = vrot.slane %v4290, 7
    %v4872 = vrot.slane %v4871, 2
    %v4873 = vrot.slane %v4292, 7
    %v4874 = vrot.slane %v4873, 2
    %v4875 = vrot.slane %v4300, 7
    %v4876 = vrot.slane %v4875, 2
    %v4877 = vrot.slane %v4308, 7
    %v4878 = vrot.slane %v4877, 2
    %v4879 = vrot.slane %v4307, 7
    %v4880 = vrot.slane %v4879, 2
    %v4881 = vrot.slane %v4309, 7
    %v4882 = vrot.slane %v4881, 2
    %v4883 = vrot.slane %v4317, 7
    %v4884 = vrot.slane %v4883, 2
    %v4885 = vrot.slane %v4325, 7
    %v4886 = vrot.slane %v4885, 2
    %v4887 = vrot.slane %v4324, 7
    %v4888 = vrot.slane %v4887, 2
    %v4889 = vrot.slane %v4326, 7
    %v4890 = vrot.slane %v4889, 2
    %v4891 = vrot.slane %v4334, 7
    %v4892 = vrot.slane %v4891, 2
    %v4893 = vrot.slane %v4342, 7
    %v4894 = vrot.slane %v4893, 2
    %v4895 = vrot.slane %v4341, 7
    %v4896 = vrot.slane %v4895, 2
    %v4897 = vrot.slane %v4343, 7
    %v4898 = vrot.slane %v4897, 2
    %v4899 = vrot.slane %v4351, 7
    %v4900 = vrot.slane %v4899, 2
    %v4901 = vrot.slane %v4359, 7
    %v4902 = vrot.slane %v4901, 2
    %v4903 = vrot.slane %v4358, 7
    %v4904 = vrot.slane %v4903, 2
    %v4905 = vrot.slane %v4360, 7
    %v4906 = vrot.slane %v4905, 2
    %v4907 = vrot.slane %v4368, 7
    %v4908 = vrot.slane %v4907, 2
    %v4909 = vrot.slane %v4376, 7
    %v4910 = vrot.slane %v4909, 2
    %v4911 = vrot.slane %v4375, 7
    %v4912 = vrot.slane %v4911, 2
    %v4913 = vrot.slane %v4377, 7
    %v4914 = vrot.slane %v4913, 2
    %v4915 = vrot.slane %v4385, 7
    %v4916 = vrot.slane %v4915, 2
    %v4917 = vrot.slane %v4393, 7
    %v4918 = vrot.slane %v4917, 2
    %v4919 = vrot.slane %v4392, 7
    %v4920 = vrot.slane %v4919, 2
    %v4921 = vrot.slane %v4394, 7
    %v4922 = vrot.slane %v4921, 2
    %v4923 = vrot.slane %v4402, 7
    %v4924 = vrot.slane %v4923, 2
    %v4925 = vrot.slane %v4410, 7
    %v4926 = vrot.slane %v4925, 2
    %v4927 = vrot.slane %v4409, 7
    %v4928 = vrot.slane %v4927, 2
    %v4929 = vrot.slane %v4411, 7
    %v4930 = vrot.slane %v4929, 2
    %v4931 = vrot.slane %v4419, 7
    %v4932 = vrot.slane %v4931, 2
    %v4933 = vrot.slane %v4427, 7
    %v4934 = vrot.slane %v4933, 2
    %v4935 = vrot.slane %v4426, 7
    %v4936 = vrot.slane %v4935, 2
    %v4937 = vrot.slane %v4428, 7
    %v4938 = vrot.slane %v4937, 2
    %v4939 = vrot.slane %v4436, 7
    %v4940 = vrot.slane %v4939, 2
    %v4941 = vrot.slane %v4444, 7
    %v4942 = vrot.slane %v4941, 2
    %v4943 = vrot.slane %v4443, 7
    %v4944 = vrot.slane %v4943, 2
    %v4945 = vrot.slane %v4445, 7
    %v4946 = vrot.slane %v4945, 2
    %v4947 = vrot.slane %v4453, 7
    %v4948 = vrot.slane %v4947, 2
    %v4949 = vrot.slane %v4461, 7
    %v4950 = vrot.slane %v4949, 2
    %v4951 = vrot.slane %v4460, 7
    %v4952 = vrot.slane %v4951, 2
    %v4953 = vrot.slane %v4462, 7
    %v4954 = vrot.slane %v4953, 2
    %v4955 = vrot.slane %v4470, 7
    %v4956 = vrot.slane %v4955, 2
    %v4957 = vrot.slane %v4478, 7
    %v4958 = vrot.slane %v4957, 2
    %v4959 = vrot.slane %v4477, 7
    %v4960 = vrot.slane %v4959, 2
    %v4961 = vrot.slane %v4479, 7
    %v4962 = vrot.slane %v4961, 2
    %v4963 = vrot.slane %v4487, 7
    %v4964 = vrot.slane %v4963, 2
    %v4965 = vrot.slane %v4495, 7
    %v4966 = vrot.slane %v4965, 2
    %v4967 = vrot.slane %v4494, 7
    %v4968 = vrot.slane %v4967, 2
    %v4969 = vrot.slane %v4496, 7
    %v4970 = vrot.slane %v4969, 2
    %v4971 = vrot.slane %v4504, 7
    %v4972 = vrot.slane %v4971, 2
    %v4973 = vrot.slane %v4512, 7
    %v4974 = vrot.slane %v4973, 2
    %v4975 = vrot.slane %v4511, 7
    %v4976 = vrot.slane %v4975, 2
    %v4977 = vrot.slane %v4513, 7
    %v4978 = vrot.slane %v4977, 2
    %v4979 = vrot.slane %v4521, 7
    %v4980 = vrot.slane %v4979, 2
    %v4981 = vrot.slane %v4529, 7
    %v4982 = vrot.slane %v4981, 2
    %v4983 = vrot.slane %v4528, 7
    %v4984 = vrot.slane %v4983, 2
    %v4985 = vrot.slane %v4530, 7
    %v4986 = vrot.slane %v4985, 2
    %v4987 = vrot.slane %v4538, 7
    %v4988 = vrot.slane %v4987, 2
    %v4989 = vrot.slane %v4546, 7
    %v4990 = vrot.slane %v4989, 2
    %v4991 = vrot.slane %v4545, 7
    %v4992 = vrot.slane %v4991, 2
    %v4993 = vrot.slane %v4547, 7
    %v4994 = vrot.slane %v4993, 2
    %v4995 = vrot.slane %v4555, 7
    %v4996 = vrot.slane %v4995, 2
    %v4997 = vrot.slane %v4563, 7
    %v4998 = vrot.slane %v4997, 2
    %v4999 = vrot.slane %v4562, 7
    %v5000 = vrot.slane %v4999, 2
    %v5001 = vrot.slane %v4564, 7
    %v5002 = vrot.slane %v5001, 2
    %v5003 = vrot.slane %v4572, 7
    %v5004 = vrot.slane %v5003, 2
    %v5005 = vrot.slane %v4580, 7
    %v5006 = vrot.slane %v5005, 2
    %v5007 = vrot.slane %v4579, 7
    %v5008 = vrot.slane %v5007, 2
    %v5009 = vrot.slane %v4581, 7
    %v5010 = vrot.slane %v5009, 2
    %v5011 = vrot.slane %v4589, 7
    %v5012 = vrot.slane %v5011, 2
    %v5013 = vrot.slane %v4597, 7
    %v5014 = vrot.slane %v5013, 2
    %v5015 = vrot.slane %v4596, 7
    %v5016 = vrot.slane %v5015, 2
    %v5017 = vrot.slane %v4598, 7
    %v5018 = vrot.slane %v5017, 2
    %v5019 = vrot.slane %v4606, 7
    %v5020 = vrot.slane %v5019, 2
    %v5021 = vrot.slane %v4614, 7
    %v5022 = vrot.slane %v5021, 2
    %v5023 = vrot.slane %v4613, 7
    %v5024 = vrot.slane %v5023, 2
    %v5025 = vrot.slane %v4615, 7
    %v5026 = vrot.slane %v5025, 2
    %v5027 = vrot.slane %v4623, 7
    %v5028 = vrot.slane %v5027, 2
    %v5029 = vrot.slane %v4631, 7
    %v5030 = vrot.slane %v5029, 2
    %v5031 = vrot.slane %v4630, 7
    %v5032 = vrot.slane %v5031, 2
    %v5033 = vrot.slane %v4632, 7
    %v5034 = vrot.slane %v5033, 2
    %v5035 = vrot.slane %v4640, 7
    %v5036 = vrot.slane %v5035, 2
    %v5037 = vrot.slane %v4648, 7
    %v5038 = vrot.slane %v5037, 2
    %v5039 = vrot.slane %v4647, 7
    %v5040 = vrot.slane %v5039, 2
    %v5041 = vrot.slane %v4649, 7
    %v5042 = vrot.slane %v5041, 2
    %v5043 = vrot.slane %v4657, 7
    %v5044 = vrot.slane %v5043, 2
    %v5045 = vrot.slane %v4665, 7
    %v5046 = vrot.slane %v5045, 2
    %v5047 = vrot.slane %v4664, 7
    %v5048 = vrot.slane %v5047, 2
    %v5049 = vrot.slane %v4666, 7
    %v5050 = vrot.slane %v5049, 2
    %v5179 = vmax.f32 %v4130, %v4796
    %v5180 = vmax.f32 %v4138, %v4798
    %v5181 = vmax.f32 %v4137, %v4800
    %v5182 = vmax.f32 %v4139, %v4802
    %v5183 = vmax.f32 %v4147, %v4804
    %v5184 = vmax.f32 %v4155, %v4806
    %v5185 = vmax.f32 %v4154, %v4808
    %v5186 = vmax.f32 %v4156, %v4810
    %v5187 = vmax.f32 %v4164, %v4812
    %v5188 = vmax.f32 %v4172, %v4814
    %v5189 = vmax.f32 %v4171, %v4816
    %v5190 = vmax.f32 %v4173, %v4818
    %v5191 = vmax.f32 %v4181, %v4820
    %v5192 = vmax.f32 %v4189, %v4822
    %v5193 = vmax.f32 %v4188, %v4824
    %v5194 = vmax.f32 %v4190, %v4826
    %v5195 = vmax.f32 %v4198, %v4828
    %v5196 = vmax.f32 %v4206, %v4830
    %v5197 = vmax.f32 %v4205, %v4832
    %v5198 = vmax.f32 %v4207, %v4834
    %v5199 = vmax.f32 %v4215, %v4836
    %v5200 = vmax.f32 %v4223, %v4838
    %v5201 = vmax.f32 %v4222, %v4840
    %v5202 = vmax.f32 %v4224, %v4842
    %v5203 = vmax.f32 %v4232, %v4844
    %v5204 = vmax.f32 %v4240, %v4846
    %v5205 = vmax.f32 %v4239, %v4848
    %v5206 = vmax.f32 %v4241, %v4850
    %v5207 = vmax.f32 %v4249, %v4852
    %v5208 = vmax.f32 %v4257, %v4854
    %v5209 = vmax.f32 %v4256, %v4856
    %v5210 = vmax.f32 %v4258, %v4858
    %v5211 = vmax.f32 %v4266, %v4860
    %v5212 = vmax.f32 %v4274, %v4862
    %v5213 = vmax.f32 %v4273, %v4864
    %v5214 = vmax.f32 %v4275, %v4866
    %v5215 = vmax.f32 %v4283, %v4868
    %v5216 = vmax.f32 %v4291, %v4870
    %v5217 = vmax.f32 %v4290, %v4872
    %v5218 = vmax.f32 %v4292, %v4874
    %v5219 = vmax.f32 %v4300, %v4876
    %v5220 = vmax.f32 %v4308, %v4878
    %v5221 = vmax.f32 %v4307, %v4880
    %v5222 = vmax.f32 %v4309, %v4882
    %v5223 = vmax.f32 %v4317, %v4884
    %v5224 = vmax.f32 %v4325, %v4886
    %v5225 = vmax.f32 %v4324, %v4888
    %v5226 = vmax.f32 %v4326, %v4890
    %v5227 = vmax.f32 %v4334, %v4892
    %v5228 = vmax.f32 %v4342, %v4894
    %v5229 = vmax.f32 %v4341, %v4896
    %v5230 = vmax.f32 %v4343, %v4898
    %v5231 = vmax.f32 %v4351, %v4900
    %v5232 = vmax.f32 %v4359, %v4902
    %v5233 = vmax.f32 %v4358, %v4904
    %v5234 = vmax.f32 %v4360, %v4906
    %v5235 = vmax.f32 %v4368, %v4908
    %v5236 = vmax.f32 %v4376, %v4910
    %v5237 = vmax.f32 %v4375, %v4912
    %v5238 = vmax.f32 %v4377, %v4914
    %v5239 = vmax.f32 %v4385, %v4916
    %v5240 = vmax.f32 %v4393, %v4918
    %v5241 = vmax.f32 %v4392, %v4920
    %v5242 = vmax.f32 %v4394, %v4922
    %v5243 = vmax.f32 %v4402, %v4924
    %v5244 = vmax.f32 %v4410, %v4926
    %v5245 = vmax.f32 %v4409, %v4928
    %v5246 = vmax.f32 %v4411, %v4930
    %v5247 = vmax.f32 %v4419, %v4932
    %v5248 = vmax.f32 %v4427, %v4934
    %v5249 = vmax.f32 %v4426, %v4936
    %v5250 = vmax.f32 %v4428, %v4938
    %v5251 = vmax.f32 %v4436, %v4940
    %v5252 = vmax.f32 %v4444, %v4942
    %v5253 = vmax.f32 %v4443, %v4944
    %v5254 = vmax.f32 %v4445, %v4946
    %v5255 = vmax.f32 %v4453, %v4948
    %v5256 = vmax.f32 %v4461, %v4950
    %v5257 = vmax.f32 %v4460, %v4952
    %v5258 = vmax.f32 %v4462, %v4954
    %v5259 = vmax.f32 %v4470, %v4956
    %v5260 = vmax.f32 %v4478, %v4958
    %v5261 = vmax.f32 %v4477, %v4960
    %v5262 = vmax.f32 %v4479, %v4962
    %v5263 = vmax.f32 %v4487, %v4964
    %v5264 = vmax.f32 %v4495, %v4966
    %v5265 = vmax.f32 %v4494, %v4968
    %v5266 = vmax.f32 %v4496, %v4970
    %v5267 = vmax.f32 %v4504, %v4972
    %v5268 = vmax.f32 %v4512, %v4974
    %v5269 = vmax.f32 %v4511, %v4976
    %v5270 = vmax.f32 %v4513, %v4978
    %v5271 = vmax.f32 %v4521, %v4980
    %v5272 = vmax.f32 %v4529, %v4982
    %v5273 = vmax.f32 %v4528, %v4984
    %v5274 = vmax.f32 %v4530, %v4986
    %v5275 = vmax.f32 %v4538, %v4988
    %v5276 = vmax.f32 %v4546, %v4990
    %v5277 = vmax.f32 %v4545, %v4992
    %v5278 = vmax.f32 %v4547, %v4994
    %v5279 = vmax.f32 %v4555, %v4996
    %v5280 = vmax.f32 %v4563, %v4998
    %v5281 = vmax.f32 %v4562, %v5000
    %v5282 = vmax.f32 %v4564, %v5002
    %v5283 = vmax.f32 %v4572, %v5004
    %v5284 = vmax.f32 %v4580, %v5006
    %v5285 = vmax.f32 %v4579, %v5008
    %v5286 = vmax.f32 %v4581, %v5010
    %v5287 = vmax.f32 %v4589, %v5012
    %v5288 = vmax.f32 %v4597, %v5014
    %v5289 = vmax.f32 %v4596, %v5016
    %v5290 = vmax.f32 %v4598, %v5018
    %v5291 = vmax.f32 %v4606, %v5020
    %v5292 = vmax.f32 %v4614, %v5022
    %v5293 = vmax.f32 %v4613, %v5024
    %v5294 = vmax.f32 %v4615, %v5026
    %v5295 = vmax.f32 %v4623, %v5028
    %v5296 = vmax.f32 %v4631, %v5030
    %v5297 = vmax.f32 %v4630, %v5032
    %v5298 = vmax.f32 %v4632, %v5034
    %v5299 = vmax.f32 %v4640, %v5036
    %v5300 = vmax.f32 %v4648, %v5038
    %v5301 = vmax.f32 %v4647, %v5040
    %v5302 = vmax.f32 %v4649, %v5042
    %v5303 = vmax.f32 %v4657, %v5044
    %v5304 = vmax.f32 %v4665, %v5046
    %v5305 = vmax.f32 %v4664, %v5048
    %v5306 = vmax.f32 %v4666, %v5050
    %vm5307 = vcmask 261120
    %5308 = vst.msk [vmem:[#allocation4] sm:$0xff] %vm5307, 0.0
    %vm5309 = vcmask 254976
    %5310 = vst.msk [vmem:[#allocation4 + $0x8] sm:$0x3] %vm5309, 0.0
    %5311 = vst.msk [vmem:[#allocation4 + $0x10] sm:$0xff] %vm5307, 0.0
    %5312 = vst.msk [vmem:[#allocation4 + $0x18] sm:$0x3] %vm5309, 0.0
    %5313 = vst.msk [vmem:[#allocation4 + $0x20] sm:$0xff] %vm5307, 0.0
    %5314 = vst.msk [vmem:[#allocation4 + $0x28] sm:$0x3] %vm5309, 0.0
    %5315 = vst.msk [vmem:[#allocation4 + $0x30] sm:$0xff] %vm5307, 0.0
    %5316 = vst.msk [vmem:[#allocation4 + $0x38] sm:$0x3] %vm5309, 0.0
    %5317 = vst.msk [vmem:[#allocation4 + $0x40] sm:$0xff] %vm5307, 0.0
    %5318 = vst.msk [vmem:[#allocation4 + $0x48] sm:$0x3] %vm5309, 0.0
    %5319 = vst.msk [vmem:[#allocation4 + $0x50] sm:$0xff] %vm5307, 0.0
    %5320 = vst.msk [vmem:[#allocation4 + $0x58] sm:$0x3] %vm5309, 0.0
    %5321 = vst.msk [vmem:[#allocation4 + $0x60] sm:$0xff] %vm5307, 0.0
    %5322 = vst.msk [vmem:[#allocation4 + $0x68] sm:$0x3] %vm5309, 0.0
    %5323 = vst.msk [vmem:[#allocation4 + $0x70] sm:$0xff] %vm5307, 0.0
    %5324 = vst.msk [vmem:[#allocation4 + $0x78] sm:$0x3] %vm5309, 0.0
    %5325 = vst.msk [vmem:[#allocation4 + $0x80] sm:$0xff] %vm5307, 0.0
    %5326 = vst.msk [vmem:[#allocation4 + $0x88] sm:$0x3] %vm5309, 0.0
    %5327 = vst.msk [vmem:[#allocation4 + $0x90] sm:$0xff] %vm5307, 0.0
    %5328 = vst.msk [vmem:[#allocation4 + $0x98] sm:$0x3] %vm5309, 0.0
    %5329 = vst.msk [vmem:[#allocation4 + $0xa0] sm:$0xff] %vm5307, 0.0
    %5330 = vst.msk [vmem:[#allocation4 + $0xa8] sm:$0x3] %vm5309, 0.0
    %5331 = vst.msk [vmem:[#allocation4 + $0xb0] sm:$0xff] %vm5307, 0.0
    %5332 = vst.msk [vmem:[#allocation4 + $0xb8] sm:$0x3] %vm5309, 0.0
    %5333 = vst.msk [vmem:[#allocation4 + $0xc0] sm:$0xff] %vm5307, 0.0
    %5334 = vst.msk [vmem:[#allocation4 + $0xc8] sm:$0x3] %vm5309, 0.0
    %5335 = vst.msk [vmem:[#allocation4 + $0xd0] sm:$0xff] %vm5307, 0.0
    %5336 = vst.msk [vmem:[#allocation4 + $0xd8] sm:$0x3] %vm5309, 0.0
    %5337 = vst.msk [vmem:[#allocation4 + $0xe0] sm:$0xff] %vm5307, 0.0
    %5338 = vst.msk [vmem:[#allocation4 + $0xe8] sm:$0x3] %vm5309, 0.0
    %5339 = vst.msk [vmem:[#allocation4 + $0xf0] sm:$0xff] %vm5307, 0.0
    %5340 = vst.msk [vmem:[#allocation4 + $0xf8] sm:$0x3] %vm5309, 0.0
    %5341 = vst.msk [vmem:[#allocation4 + $0x100] sm:$0xff] %vm5307, 0.0
    %5342 = vst.msk [vmem:[#allocation4 + $0x108] sm:$0x3] %vm5309, 0.0
    %5343 = vst.msk [vmem:[#allocation4 + $0x110] sm:$0xff] %vm5307, 0.0
    %5344 = vst.msk [vmem:[#allocation4 + $0x118] sm:$0x3] %vm5309, 0.0
    %5345 = vst.msk [vmem:[#allocation4 + $0x120] sm:$0xff] %vm5307, 0.0
    %5346 = vst.msk [vmem:[#allocation4 + $0x128] sm:$0x3] %vm5309, 0.0
    %5347 = vst.msk [vmem:[#allocation4 + $0x130] sm:$0xff] %vm5307, 0.0
    %5348 = vst.msk [vmem:[#allocation4 + $0x138] sm:$0x3] %vm5309, 0.0
    %v5477 = vlaneseq
    %v5478 = vshrl.u32 %v5477, 7
    %v5479 = vsub.s32 0, %v5478
    %v5480 = vrot.slane %v5179, %v5479
    %v5481 = vlaneseq
    %v5482 = vshrl.u32 %v5481, 7
    %v5483 = vsub.s32 0, %v5482
    %v5484 = vrot.slane %v5180, %v5483
    %v5485 = vlaneseq
    %v5486 = vshrl.u32 %v5485, 7
    %v5487 = vsub.s32 0, %v5486
    %v5488 = vrot.slane %v5181, %v5487
    %v5489 = vlaneseq
    %v5490 = vshrl.u32 %v5489, 7
    %v5491 = vsub.s32 0, %v5490
    %v5492 = vrot.slane %v5182, %v5491
    %v5493 = vlaneseq
    %v5494 = vshrl.u32 %v5493, 7
    %v5495 = vsub.s32 0, %v5494
    %v5496 = vrot.slane %v5183, %v5495
    %v5497 = vlaneseq
    %v5498 = vshrl.u32 %v5497, 7
    %v5499 = vsub.s32 0, %v5498
    %v5500 = vrot.slane %v5184, %v5499
    %v5501 = vlaneseq
    %v5502 = vshrl.u32 %v5501, 7
    %v5503 = vsub.s32 0, %v5502
    %v5504 = vrot.slane %v5185, %v5503
    %v5505 = vlaneseq
    %v5506 = vshrl.u32 %v5505, 7
    %v5507 = vsub.s32 0, %v5506
    %v5508 = vrot.slane %v5186, %v5507
    %v5509 = vlaneseq
    %v5510 = vshrl.u32 %v5509, 7
    %v5511 = vsub.s32 0, %v5510
    %v5512 = vrot.slane %v5187, %v5511
    %v5513 = vlaneseq
    %v5514 = vshrl.u32 %v5513, 7
    %v5515 = vsub.s32 0, %v5514
    %v5516 = vrot.slane %v5188, %v5515
    %v5517 = vlaneseq
    %v5518 = vshrl.u32 %v5517, 7
    %v5519 = vsub.s32 0, %v5518
    %v5520 = vrot.slane %v5189, %v5519
    %v5521 = vlaneseq
    %v5522 = vshrl.u32 %v5521, 7
    %v5523 = vsub.s32 0, %v5522
    %v5524 = vrot.slane %v5190, %v5523
    %v5525 = vlaneseq
    %v5526 = vshrl.u32 %v5525, 7
    %v5527 = vsub.s32 0, %v5526
    %v5528 = vrot.slane %v5191, %v5527
    %v5529 = vlaneseq
    %v5530 = vshrl.u32 %v5529, 7
    %v5531 = vsub.s32 0, %v5530
    %v5532 = vrot.slane %v5192, %v5531
    %v5533 = vlaneseq
    %v5534 = vshrl.u32 %v5533, 7
    %v5535 = vsub.s32 0, %v5534
    %v5536 = vrot.slane %v5193, %v5535
    %v5537 = vlaneseq
    %v5538 = vshrl.u32 %v5537, 7
    %v5539 = vsub.s32 0, %v5538
    %v5540 = vrot.slane %v5194, %v5539
    %v5541 = vlaneseq
    %v5542 = vshrl.u32 %v5541, 7
    %v5543 = vsub.s32 0, %v5542
    %v5544 = vrot.slane %v5195, %v5543
    %v5545 = vlaneseq
    %v5546 = vshrl.u32 %v5545, 7
    %v5547 = vsub.s32 0, %v5546
    %v5548 = vrot.slane %v5196, %v5547
    %v5549 = vlaneseq
    %v5550 = vshrl.u32 %v5549, 7
    %v5551 = vsub.s32 0, %v5550
    %v5552 = vrot.slane %v5197, %v5551
    %v5553 = vlaneseq
    %v5554 = vshrl.u32 %v5553, 7
    %v5555 = vsub.s32 0, %v5554
    %v5556 = vrot.slane %v5198, %v5555
    %v5557 = vlaneseq
    %v5558 = vshrl.u32 %v5557, 7
    %v5559 = vsub.s32 0, %v5558
    %v5560 = vrot.slane %v5199, %v5559
    %v5561 = vlaneseq
    %v5562 = vshrl.u32 %v5561, 7
    %v5563 = vsub.s32 0, %v5562
    %v5564 = vrot.slane %v5200, %v5563
    %v5565 = vlaneseq
    %v5566 = vshrl.u32 %v5565, 7
    %v5567 = vsub.s32 0, %v5566
    %v5568 = vrot.slane %v5201, %v5567
    %v5569 = vlaneseq
    %v5570 = vshrl.u32 %v5569, 7
    %v5571 = vsub.s32 0, %v5570
    %v5572 = vrot.slane %v5202, %v5571
    %v5573 = vlaneseq
    %v5574 = vshrl.u32 %v5573, 7
    %v5575 = vsub.s32 0, %v5574
    %v5576 = vrot.slane %v5203, %v5575
    %v5577 = vlaneseq
    %v5578 = vshrl.u32 %v5577, 7
    %v5579 = vsub.s32 0, %v5578
    %v5580 = vrot.slane %v5204, %v5579
    %v5581 = vlaneseq
    %v5582 = vshrl.u32 %v5581, 7
    %v5583 = vsub.s32 0, %v5582
    %v5584 = vrot.slane %v5205, %v5583
    %v5585 = vlaneseq
    %v5586 = vshrl.u32 %v5585, 7
    %v5587 = vsub.s32 0, %v5586
    %v5588 = vrot.slane %v5206, %v5587
    %v5589 = vlaneseq
    %v5590 = vshrl.u32 %v5589, 7
    %v5591 = vsub.s32 0, %v5590
    %v5592 = vrot.slane %v5207, %v5591
    %v5593 = vlaneseq
    %v5594 = vshrl.u32 %v5593, 7
    %v5595 = vsub.s32 0, %v5594
    %v5596 = vrot.slane %v5208, %v5595
    %v5597 = vlaneseq
    %v5598 = vshrl.u32 %v5597, 7
    %v5599 = vsub.s32 0, %v5598
    %v5600 = vrot.slane %v5209, %v5599
    %v5601 = vlaneseq
    %v5602 = vshrl.u32 %v5601, 7
    %v5603 = vsub.s32 0, %v5602
    %v5604 = vrot.slane %v5210, %v5603
    %v5605 = vlaneseq
    %v5606 = vshrl.u32 %v5605, 7
    %v5607 = vsub.s32 0, %v5606
    %v5608 = vrot.slane %v5211, %v5607
    %v5609 = vlaneseq
    %v5610 = vshrl.u32 %v5609, 7
    %v5611 = vsub.s32 0, %v5610
    %v5612 = vrot.slane %v5212, %v5611
    %v5613 = vlaneseq
    %v5614 = vshrl.u32 %v5613, 7
    %v5615 = vsub.s32 0, %v5614
    %v5616 = vrot.slane %v5213, %v5615
    %v5617 = vlaneseq
    %v5618 = vshrl.u32 %v5617, 7
    %v5619 = vsub.s32 0, %v5618
    %v5620 = vrot.slane %v5214, %v5619
    %v5621 = vlaneseq
    %v5622 = vshrl.u32 %v5621, 7
    %v5623 = vsub.s32 0, %v5622
    %v5624 = vrot.slane %v5215, %v5623
    %v5625 = vlaneseq
    %v5626 = vshrl.u32 %v5625, 7
    %v5627 = vsub.s32 0, %v5626
    %v5628 = vrot.slane %v5216, %v5627
    %v5629 = vlaneseq
    %v5630 = vshrl.u32 %v5629, 7
    %v5631 = vsub.s32 0, %v5630
    %v5632 = vrot.slane %v5217, %v5631
    %v5633 = vlaneseq
    %v5634 = vshrl.u32 %v5633, 7
    %v5635 = vsub.s32 0, %v5634
    %v5636 = vrot.slane %v5218, %v5635
    %v5637 = vlaneseq
    %v5638 = vshrl.u32 %v5637, 7
    %v5639 = vsub.s32 0, %v5638
    %v5640 = vrot.slane %v5219, %v5639
    %v5641 = vlaneseq
    %v5642 = vshrl.u32 %v5641, 7
    %v5643 = vsub.s32 0, %v5642
    %v5644 = vrot.slane %v5220, %v5643
    %v5645 = vlaneseq
    %v5646 = vshrl.u32 %v5645, 7
    %v5647 = vsub.s32 0, %v5646
    %v5648 = vrot.slane %v5221, %v5647
    %v5649 = vlaneseq
    %v5650 = vshrl.u32 %v5649, 7
    %v5651 = vsub.s32 0, %v5650
    %v5652 = vrot.slane %v5222, %v5651
    %v5653 = vlaneseq
    %v5654 = vshrl.u32 %v5653, 7
    %v5655 = vsub.s32 0, %v5654
    %v5656 = vrot.slane %v5223, %v5655
    %v5657 = vlaneseq
    %v5658 = vshrl.u32 %v5657, 7
    %v5659 = vsub.s32 0, %v5658
    %v5660 = vrot.slane %v5224, %v5659
    %v5661 = vlaneseq
    %v5662 = vshrl.u32 %v5661, 7
    %v5663 = vsub.s32 0, %v5662
    %v5664 = vrot.slane %v5225, %v5663
    %v5665 = vlaneseq
    %v5666 = vshrl.u32 %v5665, 7
    %v5667 = vsub.s32 0, %v5666
    %v5668 = vrot.slane %v5226, %v5667
    %v5669 = vlaneseq
    %v5670 = vshrl.u32 %v5669, 7
    %v5671 = vsub.s32 0, %v5670
    %v5672 = vrot.slane %v5227, %v5671
    %v5673 = vlaneseq
    %v5674 = vshrl.u32 %v5673, 7
    %v5675 = vsub.s32 0, %v5674
    %v5676 = vrot.slane %v5228, %v5675
    %v5677 = vlaneseq
    %v5678 = vshrl.u32 %v5677, 7
    %v5679 = vsub.s32 0, %v5678
    %v5680 = vrot.slane %v5229, %v5679
    %v5681 = vlaneseq
    %v5682 = vshrl.u32 %v5681, 7
    %v5683 = vsub.s32 0, %v5682
    %v5684 = vrot.slane %v5230, %v5683
    %v5685 = vlaneseq
    %v5686 = vshrl.u32 %v5685, 7
    %v5687 = vsub.s32 0, %v5686
    %v5688 = vrot.slane %v5231, %v5687
    %v5689 = vlaneseq
    %v5690 = vshrl.u32 %v5689, 7
    %v5691 = vsub.s32 0, %v5690
    %v5692 = vrot.slane %v5232, %v5691
    %v5693 = vlaneseq
    %v5694 = vshrl.u32 %v5693, 7
    %v5695 = vsub.s32 0, %v5694
    %v5696 = vrot.slane %v5233, %v5695
    %v5697 = vlaneseq
    %v5698 = vshrl.u32 %v5697, 7
    %v5699 = vsub.s32 0, %v5698
    %v5700 = vrot.slane %v5234, %v5699
    %v5701 = vlaneseq
    %v5702 = vshrl.u32 %v5701, 7
    %v5703 = vsub.s32 0, %v5702
    %v5704 = vrot.slane %v5235, %v5703
    %v5705 = vlaneseq
    %v5706 = vshrl.u32 %v5705, 7
    %v5707 = vsub.s32 0, %v5706
    %v5708 = vrot.slane %v5236, %v5707
    %v5709 = vlaneseq
    %v5710 = vshrl.u32 %v5709, 7
    %v5711 = vsub.s32 0, %v5710
    %v5712 = vrot.slane %v5237, %v5711
    %v5713 = vlaneseq
    %v5714 = vshrl.u32 %v5713, 7
    %v5715 = vsub.s32 0, %v5714
    %v5716 = vrot.slane %v5238, %v5715
    %v5717 = vlaneseq
    %v5718 = vshrl.u32 %v5717, 7
    %v5719 = vsub.s32 0, %v5718
    %v5720 = vrot.slane %v5239, %v5719
    %v5721 = vlaneseq
    %v5722 = vshrl.u32 %v5721, 7
    %v5723 = vsub.s32 0, %v5722
    %v5724 = vrot.slane %v5240, %v5723
    %v5725 = vlaneseq
    %v5726 = vshrl.u32 %v5725, 7
    %v5727 = vsub.s32 0, %v5726
    %v5728 = vrot.slane %v5241, %v5727
    %v5729 = vlaneseq
    %v5730 = vshrl.u32 %v5729, 7
    %v5731 = vsub.s32 0, %v5730
    %v5732 = vrot.slane %v5242, %v5731
    %v5733 = vlaneseq
    %v5734 = vshrl.u32 %v5733, 7
    %v5735 = vsub.s32 0, %v5734
    %v5736 = vrot.slane %v5243, %v5735
    %v5737 = vlaneseq
    %v5738 = vshrl.u32 %v5737, 7
    %v5739 = vsub.s32 0, %v5738
    %v5740 = vrot.slane %v5244, %v5739
    %v5741 = vlaneseq
    %v5742 = vshrl.u32 %v5741, 7
    %v5743 = vsub.s32 0, %v5742
    %v5744 = vrot.slane %v5245, %v5743
    %v5745 = vlaneseq
    %v5746 = vshrl.u32 %v5745, 7
    %v5747 = vsub.s32 0, %v5746
    %v5748 = vrot.slane %v5246, %v5747
    %v5749 = vlaneseq
    %v5750 = vshrl.u32 %v5749, 7
    %v5751 = vsub.s32 0, %v5750
    %v5752 = vrot.slane %v5247, %v5751
    %v5753 = vlaneseq
    %v5754 = vshrl.u32 %v5753, 7
    %v5755 = vsub.s32 0, %v5754
    %v5756 = vrot.slane %v5248, %v5755
    %v5757 = vlaneseq
    %v5758 = vshrl.u32 %v5757, 7
    %v5759 = vsub.s32 0, %v5758
    %v5760 = vrot.slane %v5249, %v5759
    %v5761 = vlaneseq
    %v5762 = vshrl.u32 %v5761, 7
    %v5763 = vsub.s32 0, %v5762
    %v5764 = vrot.slane %v5250, %v5763
    %v5765 = vlaneseq
    %v5766 = vshrl.u32 %v5765, 7
    %v5767 = vsub.s32 0, %v5766
    %v5768 = vrot.slane %v5251, %v5767
    %v5769 = vlaneseq
    %v5770 = vshrl.u32 %v5769, 7
    %v5771 = vsub.s32 0, %v5770
    %v5772 = vrot.slane %v5252, %v5771
    %v5773 = vlaneseq
    %v5774 = vshrl.u32 %v5773, 7
    %v5775 = vsub.s32 0, %v5774
    %v5776 = vrot.slane %v5253, %v5775
    %v5777 = vlaneseq
    %v5778 = vshrl.u32 %v5777, 7
    %v5779 = vsub.s32 0, %v5778
    %v5780 = vrot.slane %v5254, %v5779
    %v5781 = vlaneseq
    %v5782 = vshrl.u32 %v5781, 7
    %v5783 = vsub.s32 0, %v5782
    %v5784 = vrot.slane %v5255, %v5783
    %v5785 = vlaneseq
    %v5786 = vshrl.u32 %v5785, 7
    %v5787 = vsub.s32 0, %v5786
    %v5788 = vrot.slane %v5256, %v5787
    %v5789 = vlaneseq
    %v5790 = vshrl.u32 %v5789, 7
    %v5791 = vsub.s32 0, %v5790
    %v5792 = vrot.slane %v5257, %v5791
    %v5793 = vlaneseq
    %v5794 = vshrl.u32 %v5793, 7
    %v5795 = vsub.s32 0, %v5794
    %v5796 = vrot.slane %v5258, %v5795
    %v5797 = vlaneseq
    %v5798 = vshrl.u32 %v5797, 7
    %v5799 = vsub.s32 0, %v5798
    %v5800 = vrot.slane %v5259, %v5799
    %v5801 = vlaneseq
    %v5802 = vshrl.u32 %v5801, 7
    %v5803 = vsub.s32 0, %v5802
    %v5804 = vrot.slane %v5260, %v5803
    %v5805 = vlaneseq
    %v5806 = vshrl.u32 %v5805, 7
    %v5807 = vsub.s32 0, %v5806
    %v5808 = vrot.slane %v5261, %v5807
    %v5809 = vlaneseq
    %v5810 = vshrl.u32 %v5809, 7
    %v5811 = vsub.s32 0, %v5810
    %v5812 = vrot.slane %v5262, %v5811
    %v5813 = vlaneseq
    %v5814 = vshrl.u32 %v5813, 7
    %v5815 = vsub.s32 0, %v5814
    %v5816 = vrot.slane %v5263, %v5815
    %v5817 = vlaneseq
    %v5818 = vshrl.u32 %v5817, 7
    %v5819 = vsub.s32 0, %v5818
    %v5820 = vrot.slane %v5264, %v5819
    %v5821 = vlaneseq
    %v5822 = vshrl.u32 %v5821, 7
    %v5823 = vsub.s32 0, %v5822
    %v5824 = vrot.slane %v5265, %v5823
    %v5825 = vlaneseq
    %v5826 = vshrl.u32 %v5825, 7
    %v5827 = vsub.s32 0, %v5826
    %v5828 = vrot.slane %v5266, %v5827
    %v5829 = vlaneseq
    %v5830 = vshrl.u32 %v5829, 7
    %v5831 = vsub.s32 0, %v5830
    %v5832 = vrot.slane %v5267, %v5831
    %v5833 = vlaneseq
    %v5834 = vshrl.u32 %v5833, 7
    %v5835 = vsub.s32 0, %v5834
    %v5836 = vrot.slane %v5268, %v5835
    %v5837 = vlaneseq
    %v5838 = vshrl.u32 %v5837, 7
    %v5839 = vsub.s32 0, %v5838
    %v5840 = vrot.slane %v5269, %v5839
    %v5841 = vlaneseq
    %v5842 = vshrl.u32 %v5841, 7
    %v5843 = vsub.s32 0, %v5842
    %v5844 = vrot.slane %v5270, %v5843
    %v5845 = vlaneseq
    %v5846 = vshrl.u32 %v5845, 7
    %v5847 = vsub.s32 0, %v5846
    %v5848 = vrot.slane %v5271, %v5847
    %v5849 = vlaneseq
    %v5850 = vshrl.u32 %v5849, 7
    %v5851 = vsub.s32 0, %v5850
    %v5852 = vrot.slane %v5272, %v5851
    %v5853 = vlaneseq
    %v5854 = vshrl.u32 %v5853, 7
    %v5855 = vsub.s32 0, %v5854
    %v5856 = vrot.slane %v5273, %v5855
    %v5857 = vlaneseq
    %v5858 = vshrl.u32 %v5857, 7
    %v5859 = vsub.s32 0, %v5858
    %v5860 = vrot.slane %v5274, %v5859
    %v5861 = vlaneseq
    %v5862 = vshrl.u32 %v5861, 7
    %v5863 = vsub.s32 0, %v5862
    %v5864 = vrot.slane %v5275, %v5863
    %v5865 = vlaneseq
    %v5866 = vshrl.u32 %v5865, 7
    %v5867 = vsub.s32 0, %v5866
    %v5868 = vrot.slane %v5276, %v5867
    %v5869 = vlaneseq
    %v5870 = vshrl.u32 %v5869, 7
    %v5871 = vsub.s32 0, %v5870
    %v5872 = vrot.slane %v5277, %v5871
    %v5873 = vlaneseq
    %v5874 = vshrl.u32 %v5873, 7
    %v5875 = vsub.s32 0, %v5874
    %v5876 = vrot.slane %v5278, %v5875
    %v5877 = vlaneseq
    %v5878 = vshrl.u32 %v5877, 7
    %v5879 = vsub.s32 0, %v5878
    %v5880 = vrot.slane %v5279, %v5879
    %v5881 = vlaneseq
    %v5882 = vshrl.u32 %v5881, 7
    %v5883 = vsub.s32 0, %v5882
    %v5884 = vrot.slane %v5280, %v5883
    %v5885 = vlaneseq
    %v5886 = vshrl.u32 %v5885, 7
    %v5887 = vsub.s32 0, %v5886
    %v5888 = vrot.slane %v5281, %v5887
    %v5889 = vlaneseq
    %v5890 = vshrl.u32 %v5889, 7
    %v5891 = vsub.s32 0, %v5890
    %v5892 = vrot.slane %v5282, %v5891
    %v5893 = vlaneseq
    %v5894 = vshrl.u32 %v5893, 7
    %v5895 = vsub.s32 0, %v5894
    %v5896 = vrot.slane %v5283, %v5895
    %v5897 = vlaneseq
    %v5898 = vshrl.u32 %v5897, 7
    %v5899 = vsub.s32 0, %v5898
    %v5900 = vrot.slane %v5284, %v5899
    %v5901 = vlaneseq
    %v5902 = vshrl.u32 %v5901, 7
    %v5903 = vsub.s32 0, %v5902
    %v5904 = vrot.slane %v5285, %v5903
    %v5905 = vlaneseq
    %v5906 = vshrl.u32 %v5905, 7
    %v5907 = vsub.s32 0, %v5906
    %v5908 = vrot.slane %v5286, %v5907
    %v5909 = vlaneseq
    %v5910 = vshrl.u32 %v5909, 7
    %v5911 = vsub.s32 0, %v5910
    %v5912 = vrot.slane %v5287, %v5911
    %v5913 = vlaneseq
    %v5914 = vshrl.u32 %v5913, 7
    %v5915 = vsub.s32 0, %v5914
    %v5916 = vrot.slane %v5288, %v5915
    %v5917 = vlaneseq
    %v5918 = vshrl.u32 %v5917, 7
    %v5919 = vsub.s32 0, %v5918
    %v5920 = vrot.slane %v5289, %v5919
    %v5921 = vlaneseq
    %v5922 = vshrl.u32 %v5921, 7
    %v5923 = vsub.s32 0, %v5922
    %v5924 = vrot.slane %v5290, %v5923
    %v5925 = vlaneseq
    %v5926 = vshrl.u32 %v5925, 7
    %v5927 = vsub.s32 0, %v5926
    %v5928 = vrot.slane %v5291, %v5927
    %v5929 = vlaneseq
    %v5930 = vshrl.u32 %v5929, 7
    %v5931 = vsub.s32 0, %v5930
    %v5932 = vrot.slane %v5292, %v5931
    %v5933 = vlaneseq
    %v5934 = vshrl.u32 %v5933, 7
    %v5935 = vsub.s32 0, %v5934
    %v5936 = vrot.slane %v5293, %v5935
    %v5937 = vlaneseq
    %v5938 = vshrl.u32 %v5937, 7
    %v5939 = vsub.s32 0, %v5938
    %v5940 = vrot.slane %v5294, %v5939
    %v5941 = vlaneseq
    %v5942 = vshrl.u32 %v5941, 7
    %v5943 = vsub.s32 0, %v5942
    %v5944 = vrot.slane %v5295, %v5943
    %v5945 = vlaneseq
    %v5946 = vshrl.u32 %v5945, 7
    %v5947 = vsub.s32 0, %v5946
    %v5948 = vrot.slane %v5296, %v5947
    %v5949 = vlaneseq
    %v5950 = vshrl.u32 %v5949, 7
    %v5951 = vsub.s32 0, %v5950
    %v5952 = vrot.slane %v5297, %v5951
    %v5953 = vlaneseq
    %v5954 = vshrl.u32 %v5953, 7
    %v5955 = vsub.s32 0, %v5954
    %v5956 = vrot.slane %v5298, %v5955
    %v5957 = vlaneseq
    %v5958 = vshrl.u32 %v5957, 7
    %v5959 = vsub.s32 0, %v5958
    %v5960 = vrot.slane %v5299, %v5959
    %v5961 = vlaneseq
    %v5962 = vshrl.u32 %v5961, 7
    %v5963 = vsub.s32 0, %v5962
    %v5964 = vrot.slane %v5300, %v5963
    %v5965 = vlaneseq
    %v5966 = vshrl.u32 %v5965, 7
    %v5967 = vsub.s32 0, %v5966
    %v5968 = vrot.slane %v5301, %v5967
    %v5969 = vlaneseq
    %v5970 = vshrl.u32 %v5969, 7
    %v5971 = vsub.s32 0, %v5970
    %v5972 = vrot.slane %v5302, %v5971
    %v5973 = vlaneseq
    %v5974 = vshrl.u32 %v5973, 7
    %v5975 = vsub.s32 0, %v5974
    %v5976 = vrot.slane %v5303, %v5975
    %v5977 = vlaneseq
    %v5978 = vshrl.u32 %v5977, 7
    %v5979 = vsub.s32 0, %v5978
    %v5980 = vrot.slane %v5304, %v5979
    %v5981 = vlaneseq
    %v5982 = vshrl.u32 %v5981, 7
    %v5983 = vsub.s32 0, %v5982
    %v5984 = vrot.slane %v5305, %v5983
    %v5985 = vlaneseq
    %v5986 = vshrl.u32 %v5985, 7
    %v5987 = vsub.s32 0, %v5986
    %v5988 = vrot.slane %v5306, %v5987
    %vm5989 = vcmask 1041409
    %v5990 = vsel %vm5989, %v5484, %v5480
    %vm5991 = vcmask 1042434
    %v5992 = vsel %vm5991, %v5488, %v5990
    %vm5993 = vcmask 1043459
    %v5994 = vsel %vm5993, %v5492, %v5992
    %vm5995 = vcmask 1044484
    %v5996 = vsel %vm5995, %v5496, %v5994
    %vm5997 = vcmask 1045509
    %v5998 = vsel %vm5997, %v5500, %v5996
    %vm5999 = vcmask 1046534
    %v6000 = vsel %vm5999, %v5504, %v5998
    %vm6001 = vcmask 1047559
    %v6002 = vsel %vm6001, %v5508, %v6000
    %v6003 = vsel %vm5989, %v5516, %v5512
    %v6004 = vsel %vm5991, %v5520, %v6003
    %v6005 = vsel %vm5993, %v5524, %v6004
    %v6006 = vsel %vm5995, %v5528, %v6005
    %v6007 = vsel %vm5997, %v5532, %v6006
    %v6008 = vsel %vm5999, %v5536, %v6007
    %v6009 = vsel %vm6001, %v5540, %v6008
    %v6010 = vsel %vm5989, %v5548, %v5544
    %v6011 = vsel %vm5991, %v5552, %v6010
    %v6012 = vsel %vm5993, %v5556, %v6011
    %v6013 = vsel %vm5995, %v5560, %v6012
    %v6014 = vsel %vm5997, %v5564, %v6013
    %v6015 = vsel %vm5999, %v5568, %v6014
    %v6016 = vsel %vm6001, %v5572, %v6015
    %v6017 = vsel %vm5989, %v5580, %v5576
    %v6018 = vsel %vm5991, %v5584, %v6017
    %v6019 = vsel %vm5993, %v5588, %v6018
    %v6020 = vsel %vm5995, %v5592, %v6019
    %v6021 = vsel %vm5997, %v5596, %v6020
    %v6022 = vsel %vm5999, %v5600, %v6021
    %v6023 = vsel %vm6001, %v5604, %v6022
    %v6024 = vsel %vm5989, %v5612, %v5608
    %v6025 = vsel %vm5991, %v5616, %v6024
    %v6026 = vsel %vm5993, %v5620, %v6025
    %v6027 = vsel %vm5995, %v5624, %v6026
    %v6028 = vsel %vm5997, %v5628, %v6027
    %v6029 = vsel %vm5999, %v5632, %v6028
    %v6030 = vsel %vm6001, %v5636, %v6029
    %v6031 = vsel %vm5989, %v5644, %v5640
    %v6032 = vsel %vm5991, %v5648, %v6031
    %v6033 = vsel %vm5993, %v5652, %v6032
    %v6034 = vsel %vm5995, %v5656, %v6033
    %v6035 = vsel %vm5997, %v5660, %v6034
    %v6036 = vsel %vm5999, %v5664, %v6035
    %v6037 = vsel %vm6001, %v5668, %v6036
    %v6038 = vsel %vm5989, %v5676, %v5672
    %v6039 = vsel %vm5991, %v5680, %v6038
    %v6040 = vsel %vm5993, %v5684, %v6039
    %v6041 = vsel %vm5995, %v5688, %v6040
    %v6042 = vsel %vm5997, %v5692, %v6041
    %v6043 = vsel %vm5999, %v5696, %v6042
    %v6044 = vsel %vm6001, %v5700, %v6043
    %v6045 = vsel %vm5989, %v5708, %v5704
    %v6046 = vsel %vm5991, %v5712, %v6045
    %v6047 = vsel %vm5993, %v5716, %v6046
    %v6048 = vsel %vm5995, %v5720, %v6047
    %v6049 = vsel %vm5997, %v5724, %v6048
    %v6050 = vsel %vm5999, %v5728, %v6049
    %v6051 = vsel %vm6001, %v5732, %v6050
    %v6052 = vsel %vm5989, %v5740, %v5736
    %v6053 = vsel %vm5991, %v5744, %v6052
    %v6054 = vsel %vm5993, %v5748, %v6053
    %v6055 = vsel %vm5995, %v5752, %v6054
    %v6056 = vsel %vm5997, %v5756, %v6055
    %v6057 = vsel %vm5999, %v5760, %v6056
    %v6058 = vsel %vm6001, %v5764, %v6057
    %v6059 = vsel %vm5989, %v5772, %v5768
    %v6060 = vsel %vm5991, %v5776, %v6059
    %v6061 = vsel %vm5993, %v5780, %v6060
    %v6062 = vsel %vm5995, %v5784, %v6061
    %v6063 = vsel %vm5997, %v5788, %v6062
    %v6064 = vsel %vm5999, %v5792, %v6063
    %v6065 = vsel %vm6001, %v5796, %v6064
    %v6066 = vsel %vm5989, %v5804, %v5800
    %v6067 = vsel %vm5991, %v5808, %v6066
    %v6068 = vsel %vm5993, %v5812, %v6067
    %v6069 = vsel %vm5995, %v5816, %v6068
    %v6070 = vsel %vm5997, %v5820, %v6069
    %v6071 = vsel %vm5999, %v5824, %v6070
    %v6072 = vsel %vm6001, %v5828, %v6071
    %v6073 = vsel %vm5989, %v5836, %v5832
    %v6074 = vsel %vm5991, %v5840, %v6073
    %v6075 = vsel %vm5993, %v5844, %v6074
    %v6076 = vsel %vm5995, %v5848, %v6075
    %v6077 = vsel %vm5997, %v5852, %v6076
    %v6078 = vsel %vm5999, %v5856, %v6077
    %v6079 = vsel %vm6001, %v5860, %v6078
    %v6080 = vsel %vm5989, %v5868, %v5864
    %v6081 = vsel %vm5991, %v5872, %v6080
    %v6082 = vsel %vm5993, %v5876, %v6081
    %v6083 = vsel %vm5995, %v5880, %v6082
    %v6084 = vsel %vm5997, %v5884, %v6083
    %v6085 = vsel %vm5999, %v5888, %v6084
    %v6086 = vsel %vm6001, %v5892, %v6085
    %v6087 = vsel %vm5989, %v5900, %v5896
    %v6088 = vsel %vm5991, %v5904, %v6087
    %v6089 = vsel %vm5993, %v5908, %v6088
    %v6090 = vsel %vm5995, %v5912, %v6089
    %v6091 = vsel %vm5997, %v5916, %v6090
    %v6092 = vsel %vm5999, %v5920, %v6091
    %v6093 = vsel %vm6001, %v5924, %v6092
    %v6094 = vsel %vm5989, %v5932, %v5928
    %v6095 = vsel %vm5991, %v5936, %v6094
    %v6096 = vsel %vm5993, %v5940, %v6095
    %v6097 = vsel %vm5995, %v5944, %v6096
    %v6098 = vsel %vm5997, %v5948, %v6097
    %v6099 = vsel %vm5999, %v5952, %v6098
    %v6100 = vsel %vm6001, %v5956, %v6099
    %v6101 = vsel %vm5989, %v5964, %v5960
    %v6102 = vsel %vm5991, %v5968, %v6101
    %v6103 = vsel %vm5993, %v5972, %v6102
    %v6104 = vsel %vm5995, %v5976, %v6103
    %v6105 = vsel %vm5997, %v5980, %v6104
    %v6106 = vsel %vm5999, %v5984, %v6105
    %v6107 = vsel %vm6001, %v5988, %v6106
    %s6124 = scalar_lea.vmem [#allocation4], 16
    %6125 = vst.msk [vmem:[%s6124 + $0x1] sm:$0xff] %vm5307, %v6002
    %6126 = vst.msk [vmem:[%s6124 + $0x11] sm:$0xff] %vm5307, %v6009
    %6127 = vst.msk [vmem:[%s6124 + $0x21] sm:$0xff] %vm5307, %v6016
    %6128 = vst.msk [vmem:[%s6124 + $0x31] sm:$0xff] %vm5307, %v6023
    %6129 = vst.msk [vmem:[%s6124 + $0x41] sm:$0xff] %vm5307, %v6030
    %6130 = vst.msk [vmem:[%s6124 + $0x51] sm:$0xff] %vm5307, %v6037
    %6131 = vst.msk [vmem:[%s6124 + $0x61] sm:$0xff] %vm5307, %v6044
    %6132 = vst.msk [vmem:[%s6124 + $0x71] sm:$0xff] %vm5307, %v6051
    %6133 = vst.msk [vmem:[%s6124 + $0xa1] sm:$0xff] %vm5307, %v6058
    %6134 = vst.msk [vmem:[%s6124 + $0xb1] sm:$0xff] %vm5307, %v6065
    %6135 = vst.msk [vmem:[%s6124 + $0xc1] sm:$0xff] %vm5307, %v6072
    %6136 = vst.msk [vmem:[%s6124 + $0xd1] sm:$0xff] %vm5307, %v6079
    %6137 = vst.msk [vmem:[%s6124 + $0xe1] sm:$0xff] %vm5307, %v6086
    %6138 = vst.msk [vmem:[%s6124 + $0xf1] sm:$0xff] %vm5307, %v6093
    %6139 = vst.msk [vmem:[%s6124 + $0x101] sm:$0xff] %vm5307, %v6100
    %6140 = vst.msk [vmem:[%s6124 + $0x111] sm:$0xff] %vm5307, %v6107
    %v6141 = vld [vmem:[#allocation4] sm:$0xff]
    %v6142 = vld [vmem:[#allocation4 + $0x10] sm:$0xff]
    %v6143 = vld [vmem:[#allocation4 + $0x20] sm:$0xff]
    %v6144 = vld [vmem:[#allocation4 + $0x30] sm:$0xff]
    %v6145 = vld [vmem:[#allocation4 + $0x40] sm:$0xff]
    %v6146 = vld [vmem:[#allocation4 + $0x50] sm:$0xff]
    %v6147 = vld [vmem:[#allocation4 + $0x60] sm:$0xff]
    %v6148 = vld [vmem:[#allocation4 + $0x70] sm:$0xff]
    %v6149 = vld [vmem:[#allocation4 + $0xa0] sm:$0xff]
    %v6150 = vld [vmem:[#allocation4 + $0xb0] sm:$0xff]
    %v6151 = vld [vmem:[#allocation4 + $0xc0] sm:$0xff]
    %v6152 = vld [vmem:[#allocation4 + $0xd0] sm:$0xff]
    %v6153 = vld [vmem:[#allocation4 + $0xe0] sm:$0xff]
    %v6154 = vld [vmem:[#allocation4 + $0xf0] sm:$0xff]
    %v6155 = vld [vmem:[#allocation4 + $0x100] sm:$0xff]
    %v6156 = vld [vmem:[#allocation4 + $0x110] sm:$0xff]
    %6157 = vst.msk [vmem:[#allocation5] sm:$0xff] %vm5307, %v6141
    %6158 = vst.msk [vmem:[#allocation5 + $0x18] sm:$0xff] %vm5307, %v6142
    %6159 = vst.msk [vmem:[#allocation5 + $0x30] sm:$0xff] %vm5307, %v6143
    %6160 = vst.msk [vmem:[#allocation5 + $0x48] sm:$0xff] %vm5307, %v6144
    %6161 = vst.msk [vmem:[#allocation5 + $0x60] sm:$0xff] %vm5307, %v6145
    %6162 = vst.msk [vmem:[#allocation5 + $0x78] sm:$0xff] %vm5307, %v6146
    %6163 = vst.msk [vmem:[#allocation5 + $0x90] sm:$0xff] %vm5307, %v6147
    %6164 = vst.msk [vmem:[#allocation5 + $0xa8] sm:$0xff] %vm5307, %v6148
    %6165 = vst.msk [vmem:[#allocation5 + $0xc0] sm:$0xff] %vm5307, %v6149
    %6166 = vst.msk [vmem:[#allocation5 + $0xd8] sm:$0xff] %vm5307, %v6150
    %6167 = vst.msk [vmem:[#allocation5 + $0xf0] sm:$0xff] %vm5307, %v6151
    %6168 = vst.msk [vmem:[#allocation5 + $0x108] sm:$0xff] %vm5307, %v6152
    %6169 = vst.msk [vmem:[#allocation5 + $0x120] sm:$0xff] %vm5307, %v6153
    %6170 = vst.msk [vmem:[#allocation5 + $0x138] sm:$0xff] %vm5307, %v6154
    %6171 = vst.msk [vmem:[#allocation5 + $0x150] sm:$0xff] %vm5307, %v6155
    %6172 = vst.msk [vmem:[#allocation5 + $0x168] sm:$0xff] %vm5307, %v6156
    %v6173 = vld [vmem:[#allocation4 + $0x1] sm:$0xff]
    %v6174 = vld [vmem:[#allocation4 + $0x11] sm:$0xff]
    %v6175 = vld [vmem:[#allocation4 + $0x21] sm:$0xff]
    %v6176 = vld [vmem:[#allocation4 + $0x31] sm:$0xff]
    %v6177 = vld [vmem:[#allocation4 + $0x41] sm:$0xff]
    %v6178 = vld [vmem:[#allocation4 + $0x51] sm:$0xff]
    %v6179 = vld [vmem:[#allocation4 + $0x61] sm:$0xff]
    %v6180 = vld [vmem:[#allocation4 + $0x71] sm:$0xff]
    %v6181 = vld [vmem:[#allocation4 + $0xa1] sm:$0xff]
    %v6182 = vld [vmem:[#allocation4 + $0xb1] sm:$0xff]
    %v6183 = vld [vmem:[#allocation4 + $0xc1] sm:$0xff]
    %v6184 = vld [vmem:[#allocation4 + $0xd1] sm:$0xff]
    %v6185 = vld [vmem:[#allocation4 + $0xe1] sm:$0xff]
    %v6186 = vld [vmem:[#allocation4 + $0xf1] sm:$0xff]
    %v6187 = vld [vmem:[#allocation4 + $0x101] sm:$0xff]
    %v6188 = vld [vmem:[#allocation4 + $0x111] sm:$0xff]
    %6205 = vrot.lane.b32.xlu0 %v6173, 32
    %v6206 = vpop.permute.xlu0 %6205
    %6207 = vrot.lane.b32.xlu0 %v6174, 32
    %v6208 = vpop.permute.xlu0 %6207
    %6209 = vrot.lane.b32.xlu0 %v6175, 32
    %v6210 = vpop.permute.xlu0 %6209
    %6211 = vrot.lane.b32.xlu0 %v6176, 32
    %v6212 = vpop.permute.xlu0 %6211
    %6213 = vrot.lane.b32.xlu0 %v6177, 32
    %v6214 = vpop.permute.xlu0 %6213
    %6215 = vrot.lane.b32.xlu0 %v6178, 32
    %v6216 = vpop.permute.xlu0 %6215
    %6217 = vrot.lane.b32.xlu0 %v6179, 32
    %v6218 = vpop.permute.xlu0 %6217
    %6219 = vrot.lane.b32.xlu0 %v6180, 32
    %v6220 = vpop.permute.xlu0 %6219
    %6221 = vrot.lane.b32.xlu0 %v6181, 32
    %v6222 = vpop.permute.xlu0 %6221
    %6223 = vrot.lane.b32.xlu0 %v6182, 32
    %v6224 = vpop.permute.xlu0 %6223
    %6225 = vrot.lane.b32.xlu0 %v6183, 32
    %v6226 = vpop.permute.xlu0 %6225
    %6227 = vrot.lane.b32.xlu0 %v6184, 32
    %v6228 = vpop.permute.xlu0 %6227
    %6229 = vrot.lane.b32.xlu0 %v6185, 32
    %v6230 = vpop.permute.xlu0 %6229
    %6231 = vrot.lane.b32.xlu0 %v6186, 32
    %v6232 = vpop.permute.xlu0 %6231
    %6233 = vrot.lane.b32.xlu0 %v6187, 32
    %v6234 = vpop.permute.xlu0 %6233
    %6235 = vrot.lane.b32.xlu0 %v6188, 32
    %v6236 = vpop.permute.xlu0 %6235
    %vm6253 = vcmask 523520
    %6254 = vst.msk [vmem:[#allocation5] sm:$0xff] %vm6253, %v6206
    %6255 = vst.msk [vmem:[#allocation5 + $0x18] sm:$0xff] %vm6253, %v6208
    %6256 = vst.msk [vmem:[#allocation5 + $0x30] sm:$0xff] %vm6253, %v6210
    %6257 = vst.msk [vmem:[#allocation5 + $0x48] sm:$0xff] %vm6253, %v6212
    %6258 = vst.msk [vmem:[#allocation5 + $0x60] sm:$0xff] %vm6253, %v6214
    %6259 = vst.msk [vmem:[#allocation5 + $0x78] sm:$0xff] %vm6253, %v6216
    %6260 = vst.msk [vmem:[#allocation5 + $0x90] sm:$0xff] %vm6253, %v6218
    %6261 = vst.msk [vmem:[#allocation5 + $0xa8] sm:$0xff] %vm6253, %v6220
    %6262 = vst.msk [vmem:[#allocation5 + $0xc0] sm:$0xff] %vm6253, %v6222
    %6263 = vst.msk [vmem:[#allocation5 + $0xd8] sm:$0xff] %vm6253, %v6224
    %6264 = vst.msk [vmem:[#allocation5 + $0xf0] sm:$0xff] %vm6253, %v6226
    %6265 = vst.msk [vmem:[#allocation5 + $0x108] sm:$0xff] %vm6253, %v6228
    %6266 = vst.msk [vmem:[#allocation5 + $0x120] sm:$0xff] %vm6253, %v6230
    %6267 = vst.msk [vmem:[#allocation5 + $0x138] sm:$0xff] %vm6253, %v6232
    %6268 = vst.msk [vmem:[#allocation5 + $0x150] sm:$0xff] %vm6253, %v6234
    %6269 = vst.msk [vmem:[#allocation5 + $0x168] sm:$0xff] %vm6253, %v6236
    %v6270 = vld [vmem:[#allocation4 + $0x2] sm:$0xff]
    %v6271 = vld [vmem:[#allocation4 + $0x12] sm:$0xff]
    %v6272 = vld [vmem:[#allocation4 + $0x22] sm:$0xff]
    %v6273 = vld [vmem:[#allocation4 + $0x32] sm:$0xff]
    %v6274 = vld [vmem:[#allocation4 + $0x42] sm:$0xff]
    %v6275 = vld [vmem:[#allocation4 + $0x52] sm:$0xff]
    %v6276 = vld [vmem:[#allocation4 + $0x62] sm:$0xff]
    %v6277 = vld [vmem:[#allocation4 + $0x72] sm:$0xff]
    %v6278 = vld [vmem:[#allocation4 + $0xa2] sm:$0xff]
    %v6279 = vld [vmem:[#allocation4 + $0xb2] sm:$0xff]
    %v6280 = vld [vmem:[#allocation4 + $0xc2] sm:$0xff]
    %v6281 = vld [vmem:[#allocation4 + $0xd2] sm:$0xff]
    %v6282 = vld [vmem:[#allocation4 + $0xe2] sm:$0xff]
    %v6283 = vld [vmem:[#allocation4 + $0xf2] sm:$0xff]
    %v6284 = vld [vmem:[#allocation4 + $0x102] sm:$0xff]
    %v6285 = vld [vmem:[#allocation4 + $0x112] sm:$0xff]
    %6302 = vrot.lane.b32.xlu0 %v6270, 64
    %v6303 = vpop.permute.xlu0 %6302
    %6304 = vrot.lane.b32.xlu0 %v6271, 64
    %v6305 = vpop.permute.xlu0 %6304
    %6306 = vrot.lane.b32.xlu0 %v6272, 64
    %v6307 = vpop.permute.xlu0 %6306
    %6308 = vrot.lane.b32.xlu0 %v6273, 64
    %v6309 = vpop.permute.xlu0 %6308
    %6310 = vrot.lane.b32.xlu0 %v6274, 64
    %v6311 = vpop.permute.xlu0 %6310
    %6312 = vrot.lane.b32.xlu0 %v6275, 64
    %v6313 = vpop.permute.xlu0 %6312
    %6314 = vrot.lane.b32.xlu0 %v6276, 64
    %v6315 = vpop.permute.xlu0 %6314
    %6316 = vrot.lane.b32.xlu0 %v6277, 64
    %v6317 = vpop.permute.xlu0 %6316
    %6318 = vrot.lane.b32.xlu0 %v6278, 64
    %v6319 = vpop.permute.xlu0 %6318
    %6320 = vrot.lane.b32.xlu0 %v6279, 64
    %v6321 = vpop.permute.xlu0 %6320
    %6322 = vrot.lane.b32.xlu0 %v6280, 64
    %v6323 = vpop.permute.xlu0 %6322
    %6324 = vrot.lane.b32.xlu0 %v6281, 64
    %v6325 = vpop.permute.xlu0 %6324
    %6326 = vrot.lane.b32.xlu0 %v6282, 64
    %v6327 = vpop.permute.xlu0 %6326
    %6328 = vrot.lane.b32.xlu0 %v6283, 64
    %v6329 = vpop.permute.xlu0 %6328
    %6330 = vrot.lane.b32.xlu0 %v6284, 64
    %v6331 = vpop.permute.xlu0 %6330
    %6332 = vrot.lane.b32.xlu0 %v6285, 64
    %v6333 = vpop.permute.xlu0 %6332
    %vm6350 = vcmask 785920
    %6351 = vst.msk [vmem:[#allocation5] sm:$0xff] %vm6350, %v6303
    %6352 = vst.msk [vmem:[#allocation5 + $0x18] sm:$0xff] %vm6350, %v6305
    %6353 = vst.msk [vmem:[#allocation5 + $0x30] sm:$0xff] %vm6350, %v6307
    %6354 = vst.msk [vmem:[#allocation5 + $0x48] sm:$0xff] %vm6350, %v6309
    %6355 = vst.msk [vmem:[#allocation5 + $0x60] sm:$0xff] %vm6350, %v6311
    %6356 = vst.msk [vmem:[#allocation5 + $0x78] sm:$0xff] %vm6350, %v6313
    %6357 = vst.msk [vmem:[#allocation5 + $0x90] sm:$0xff] %vm6350, %v6315
    %6358 = vst.msk [vmem:[#allocation5 + $0xa8] sm:$0xff] %vm6350, %v6317
    %6359 = vst.msk [vmem:[#allocation5 + $0xc0] sm:$0xff] %vm6350, %v6319
    %6360 = vst.msk [vmem:[#allocation5 + $0xd8] sm:$0xff] %vm6350, %v6321
    %6361 = vst.msk [vmem:[#allocation5 + $0xf0] sm:$0xff] %vm6350, %v6323
    %6362 = vst.msk [vmem:[#allocation5 + $0x108] sm:$0xff] %vm6350, %v6325
    %6363 = vst.msk [vmem:[#allocation5 + $0x120] sm:$0xff] %vm6350, %v6327
    %6364 = vst.msk [vmem:[#allocation5 + $0x138] sm:$0xff] %vm6350, %v6329
    %6365 = vst.msk [vmem:[#allocation5 + $0x150] sm:$0xff] %vm6350, %v6331
    %6366 = vst.msk [vmem:[#allocation5 + $0x168] sm:$0xff] %vm6350, %v6333
    %v6367 = vld [vmem:[%s6124] sm:$0xff]
    %v6368 = vld [vmem:[%s6124 + $0x10] sm:$0xff]
    %v6369 = vld [vmem:[%s6124 + $0x20] sm:$0xff]
    %v6370 = vld [vmem:[%s6124 + $0x30] sm:$0xff]
    %v6371 = vld [vmem:[%s6124 + $0x40] sm:$0xff]
    %v6372 = vld [vmem:[%s6124 + $0x50] sm:$0xff]
    %v6373 = vld [vmem:[%s6124 + $0x60] sm:$0xff]
    %v6374 = vld [vmem:[%s6124 + $0x70] sm:$0xff]
    %v6375 = vld [vmem:[%s6124 + $0xa0] sm:$0xff]
    %v6376 = vld [vmem:[%s6124 + $0xb0] sm:$0xff]
    %v6377 = vld [vmem:[%s6124 + $0xc0] sm:$0xff]
    %v6378 = vld [vmem:[%s6124 + $0xd0] sm:$0xff]
    %v6379 = vld [vmem:[%s6124 + $0xe0] sm:$0xff]
    %v6380 = vld [vmem:[%s6124 + $0xf0] sm:$0xff]
    %v6381 = vld [vmem:[%s6124 + $0x100] sm:$0xff]
    %v6382 = vld [vmem:[%s6124 + $0x110] sm:$0xff]
    %6399 = vrot.lane.b32.xlu0 %v6367, 96
    %v6400 = vpop.permute.xlu0 %6399
    %6401 = vrot.lane.b32.xlu0 %v6368, 96
    %v6402 = vpop.permute.xlu0 %6401
    %6403 = vrot.lane.b32.xlu0 %v6369, 96
    %v6404 = vpop.permute.xlu0 %6403
    %6405 = vrot.lane.b32.xlu0 %v6370, 96
    %v6406 = vpop.permute.xlu0 %6405
    %6407 = vrot.lane.b32.xlu0 %v6371, 96
    %v6408 = vpop.permute.xlu0 %6407
    %6409 = vrot.lane.b32.xlu0 %v6372, 96
    %v6410 = vpop.permute.xlu0 %6409
    %6411 = vrot.lane.b32.xlu0 %v6373, 96
    %v6412 = vpop.permute.xlu0 %6411
    %6413 = vrot.lane.b32.xlu0 %v6374, 96
    %v6414 = vpop.permute.xlu0 %6413
    %6415 = vrot.lane.b32.xlu0 %v6375, 96
    %v6416 = vpop.permute.xlu0 %6415
    %6417 = vrot.lane.b32.xlu0 %v6376, 96
    %v6418 = vpop.permute.xlu0 %6417
    %6419 = vrot.lane.b32.xlu0 %v6377, 96
    %v6420 = vpop.permute.xlu0 %6419
    %6421 = vrot.lane.b32.xlu0 %v6378, 96
    %v6422 = vpop.permute.xlu0 %6421
    %6423 = vrot.lane.b32.xlu0 %v6379, 96
    %v6424 = vpop.permute.xlu0 %6423
    %6425 = vrot.lane.b32.xlu0 %v6380, 96
    %v6426 = vpop.permute.xlu0 %6425
    %6427 = vrot.lane.b32.xlu0 %v6381, 96
    %v6428 = vpop.permute.xlu0 %6427
    %6429 = vrot.lane.b32.xlu0 %v6382, 96
    %v6430 = vpop.permute.xlu0 %6429
    %vm6447 = vcmask 1048320
    %6448 = vst.msk [vmem:[#allocation5] sm:$0xff] %vm6447, %v6400
    %6449 = vst.msk [vmem:[#allocation5 + $0x18] sm:$0xff] %vm6447, %v6402
    %6450 = vst.msk [vmem:[#allocation5 + $0x30] sm:$0xff] %vm6447, %v6404
    %6451 = vst.msk [vmem:[#allocation5 + $0x48] sm:$0xff] %vm6447, %v6406
    %6452 = vst.msk [vmem:[#allocation5 + $0x60] sm:$0xff] %vm6447, %v6408
    %6453 = vst.msk [vmem:[#allocation5 + $0x78] sm:$0xff] %vm6447, %v6410
    %6454 = vst.msk [vmem:[#allocation5 + $0x90] sm:$0xff] %vm6447, %v6412
    %6455 = vst.msk [vmem:[#allocation5 + $0xa8] sm:$0xff] %vm6447, %v6414
    %6456 = vst.msk [vmem:[#allocation5 + $0xc0] sm:$0xff] %vm6447, %v6416
    %6457 = vst.msk [vmem:[#allocation5 + $0xd8] sm:$0xff] %vm6447, %v6418
    %6458 = vst.msk [vmem:[#allocation5 + $0xf0] sm:$0xff] %vm6447, %v6420
    %6459 = vst.msk [vmem:[#allocation5 + $0x108] sm:$0xff] %vm6447, %v6422
    %6460 = vst.msk [vmem:[#allocation5 + $0x120] sm:$0xff] %vm6447, %v6424
    %6461 = vst.msk [vmem:[#allocation5 + $0x138] sm:$0xff] %vm6447, %v6426
    %6462 = vst.msk [vmem:[#allocation5 + $0x150] sm:$0xff] %vm6447, %v6428
    %6463 = vst.msk [vmem:[#allocation5 + $0x168] sm:$0xff] %vm6447, %v6430
    %v6464 = vld [vmem:[%s6124 + $0x1] sm:$0xff]
    %v6465 = vld [vmem:[%s6124 + $0x11] sm:$0xff]
    %v6466 = vld [vmem:[%s6124 + $0x21] sm:$0xff]
    %v6467 = vld [vmem:[%s6124 + $0x31] sm:$0xff]
    %v6468 = vld [vmem:[%s6124 + $0x41] sm:$0xff]
    %v6469 = vld [vmem:[%s6124 + $0x51] sm:$0xff]
    %v6470 = vld [vmem:[%s6124 + $0x61] sm:$0xff]
    %v6471 = vld [vmem:[%s6124 + $0x71] sm:$0xff]
    %v6472 = vld [vmem:[%s6124 + $0xa1] sm:$0xff]
    %v6473 = vld [vmem:[%s6124 + $0xb1] sm:$0xff]
    %v6474 = vld [vmem:[%s6124 + $0xc1] sm:$0xff]
    %v6475 = vld [vmem:[%s6124 + $0xd1] sm:$0xff]
    %v6476 = vld [vmem:[%s6124 + $0xe1] sm:$0xff]
    %v6477 = vld [vmem:[%s6124 + $0xf1] sm:$0xff]
    %v6478 = vld [vmem:[%s6124 + $0x101] sm:$0xff]
    %v6479 = vld [vmem:[%s6124 + $0x111] sm:$0xff]
    %6480 = vst.msk [vmem:[#allocation5 + $0x8] sm:$0xff] %vm5307, %v6464
    %6481 = vst.msk [vmem:[#allocation5 + $0x20] sm:$0xff] %vm5307, %v6465
    %6482 = vst.msk [vmem:[#allocation5 + $0x38] sm:$0xff] %vm5307, %v6466
    %6483 = vst.msk [vmem:[#allocation5 + $0x50] sm:$0xff] %vm5307, %v6467
    %6484 = vst.msk [vmem:[#allocation5 + $0x68] sm:$0xff] %vm5307, %v6468
    %6485 = vst.msk [vmem:[#allocation5 + $0x80] sm:$0xff] %vm5307, %v6469
    %6486 = vst.msk [vmem:[#allocation5 + $0x98] sm:$0xff] %vm5307, %v6470
    %6487 = vst.msk [vmem:[#allocation5 + $0xb0] sm:$0xff] %vm5307, %v6471
    %6488 = vst.msk [vmem:[#allocation5 + $0xc8] sm:$0xff] %vm5307, %v6472
    %6489 = vst.msk [vmem:[#allocation5 + $0xe0] sm:$0xff] %vm5307, %v6473
    %6490 = vst.msk [vmem:[#allocation5 + $0xf8] sm:$0xff] %vm5307, %v6474
    %6491 = vst.msk [vmem:[#allocation5 + $0x110] sm:$0xff] %vm5307, %v6475
    %6492 = vst.msk [vmem:[#allocation5 + $0x128] sm:$0xff] %vm5307, %v6476
    %6493 = vst.msk [vmem:[#allocation5 + $0x140] sm:$0xff] %vm5307, %v6477
    %6494 = vst.msk [vmem:[#allocation5 + $0x158] sm:$0xff] %vm5307, %v6478
    %6495 = vst.msk [vmem:[#allocation5 + $0x170] sm:$0xff] %vm5307, %v6479
    %v6496 = vld [vmem:[%s6124 + $0x2] sm:$0xff]
    %v6497 = vld [vmem:[%s6124 + $0x12] sm:$0xff]
    %v6498 = vld [vmem:[%s6124 + $0x22] sm:$0xff]
    %v6499 = vld [vmem:[%s6124 + $0x32] sm:$0xff]
    %v6500 = vld [vmem:[%s6124 + $0x42] sm:$0xff]
    %v6501 = vld [vmem:[%s6124 + $0x52] sm:$0xff]
    %v6502 = vld [vmem:[%s6124 + $0x62] sm:$0xff]
    %v6503 = vld [vmem:[%s6124 + $0x72] sm:$0xff]
    %v6504 = vld [vmem:[%s6124 + $0xa2] sm:$0xff]
    %v6505 = vld [vmem:[%s6124 + $0xb2] sm:$0xff]
    %v6506 = vld [vmem:[%s6124 + $0xc2] sm:$0xff]
    %v6507 = vld [vmem:[%s6124 + $0xd2] sm:$0xff]
    %v6508 = vld [vmem:[%s6124 + $0xe2] sm:$0xff]
    %v6509 = vld [vmem:[%s6124 + $0xf2] sm:$0xff]
    %v6510 = vld [vmem:[%s6124 + $0x102] sm:$0xff]
    %v6511 = vld [vmem:[%s6124 + $0x112] sm:$0xff]
    %6528 = vrot.lane.b32.xlu0 %v6496, 32
    %v6529 = vpop.permute.xlu0 %6528
    %6530 = vrot.lane.b32.xlu0 %v6497, 32
    %v6531 = vpop.permute.xlu0 %6530
    %6532 = vrot.lane.b32.xlu0 %v6498, 32
    %v6533 = vpop.permute.xlu0 %6532
    %6534 = vrot.lane.b32.xlu0 %v6499, 32
    %v6535 = vpop.permute.xlu0 %6534
    %6536 = vrot.lane.b32.xlu0 %v6500, 32
    %v6537 = vpop.permute.xlu0 %6536
    %6538 = vrot.lane.b32.xlu0 %v6501, 32
    %v6539 = vpop.permute.xlu0 %6538
    %6540 = vrot.lane.b32.xlu0 %v6502, 32
    %v6541 = vpop.permute.xlu0 %6540
    %6542 = vrot.lane.b32.xlu0 %v6503, 32
    %v6543 = vpop.permute.xlu0 %6542
    %6544 = vrot.lane.b32.xlu0 %v6504, 32
    %v6545 = vpop.permute.xlu0 %6544
    %6546 = vrot.lane.b32.xlu0 %v6505, 32
    %v6547 = vpop.permute.xlu0 %6546
    %6548 = vrot.lane.b32.xlu0 %v6506, 32
    %v6549 = vpop.permute.xlu0 %6548
    %6550 = vrot.lane.b32.xlu0 %v6507, 32
    %v6551 = vpop.permute.xlu0 %6550
    %6552 = vrot.lane.b32.xlu0 %v6508, 32
    %v6553 = vpop.permute.xlu0 %6552
    %6554 = vrot.lane.b32.xlu0 %v6509, 32
    %v6555 = vpop.permute.xlu0 %6554
    %6556 = vrot.lane.b32.xlu0 %v6510, 32
    %v6557 = vpop.permute.xlu0 %6556
    %6558 = vrot.lane.b32.xlu0 %v6511, 32
    %v6559 = vpop.permute.xlu0 %6558
    %6576 = vst.msk [vmem:[#allocation5 + $0x8] sm:$0xff] %vm6253, %v6529
    %6577 = vst.msk [vmem:[#allocation5 + $0x20] sm:$0xff] %vm6253, %v6531
    %6578 = vst.msk [vmem:[#allocation5 + $0x38] sm:$0xff] %vm6253, %v6533
    %6579 = vst.msk [vmem:[#allocation5 + $0x50] sm:$0xff] %vm6253, %v6535
    %6580 = vst.msk [vmem:[#allocation5 + $0x68] sm:$0xff] %vm6253, %v6537
    %6581 = vst.msk [vmem:[#allocation5 + $0x80] sm:$0xff] %vm6253, %v6539
    %6582 = vst.msk [vmem:[#allocation5 + $0x98] sm:$0xff] %vm6253, %v6541
    %6583 = vst.msk [vmem:[#allocation5 + $0xb0] sm:$0xff] %vm6253, %v6543
    %6584 = vst.msk [vmem:[#allocation5 + $0xc8] sm:$0xff] %vm6253, %v6545
    %6585 = vst.msk [vmem:[#allocation5 + $0xe0] sm:$0xff] %vm6253, %v6547
    %6586 = vst.msk [vmem:[#allocation5 + $0xf8] sm:$0xff] %vm6253, %v6549
    %6587 = vst.msk [vmem:[#allocation5 + $0x110] sm:$0xff] %vm6253, %v6551
    %6588 = vst.msk [vmem:[#allocation5 + $0x128] sm:$0xff] %vm6253, %v6553
    %6589 = vst.msk [vmem:[#allocation5 + $0x140] sm:$0xff] %vm6253, %v6555
    %6590 = vst.msk [vmem:[#allocation5 + $0x158] sm:$0xff] %vm6253, %v6557
    %6591 = vst.msk [vmem:[#allocation5 + $0x170] sm:$0xff] %vm6253, %v6559
    %s6592 = scalar_lea.vmem [#allocation4], 32
    %v6593 = vld [vmem:[%s6592] sm:$0xff]
    %v6594 = vld [vmem:[%s6592 + $0x10] sm:$0xff]
    %v6595 = vld [vmem:[%s6592 + $0x20] sm:$0xff]
    %v6596 = vld [vmem:[%s6592 + $0x30] sm:$0xff]
    %v6597 = vld [vmem:[%s6592 + $0x40] sm:$0xff]
    %v6598 = vld [vmem:[%s6592 + $0x50] sm:$0xff]
    %v6599 = vld [vmem:[%s6592 + $0x60] sm:$0xff]
    %v6600 = vld [vmem:[%s6592 + $0x70] sm:$0xff]
    %v6601 = vld [vmem:[%s6592 + $0xa0] sm:$0xff]
    %v6602 = vld [vmem:[%s6592 + $0xb0] sm:$0xff]
    %v6603 = vld [vmem:[%s6592 + $0xc0] sm:$0xff]
    %v6604 = vld [vmem:[%s6592 + $0xd0] sm:$0xff]
    %v6605 = vld [vmem:[%s6592 + $0xe0] sm:$0xff]
    %v6606 = vld [vmem:[%s6592 + $0xf0] sm:$0xff]
    %v6607 = vld [vmem:[%s6592 + $0x100] sm:$0xff]
    %v6608 = vld [vmem:[%s6592 + $0x110] sm:$0xff]
    %6625 = vrot.lane.b32.xlu0 %v6593, 64
    %v6626 = vpop.permute.xlu0 %6625
    %6627 = vrot.lane.b32.xlu0 %v6594, 64
    %v6628 = vpop.permute.xlu0 %6627
    %6629 = vrot.lane.b32.xlu0 %v6595, 64
    %v6630 = vpop.permute.xlu0 %6629
    %6631 = vrot.lane.b32.xlu0 %v6596, 64
    %v6632 = vpop.permute.xlu0 %6631
    %6633 = vrot.lane.b32.xlu0 %v6597, 64
    %v6634 = vpop.permute.xlu0 %6633
    %6635 = vrot.lane.b32.xlu0 %v6598, 64
    %v6636 = vpop.permute.xlu0 %6635
    %6637 = vrot.lane.b32.xlu0 %v6599, 64
    %v6638 = vpop.permute.xlu0 %6637
    %6639 = vrot.lane.b32.xlu0 %v6600, 64
    %v6640 = vpop.permute.xlu0 %6639
    %6641 = vrot.lane.b32.xlu0 %v6601, 64
    %v6642 = vpop.permute.xlu0 %6641
    %6643 = vrot.lane.b32.xlu0 %v6602, 64
    %v6644 = vpop.permute.xlu0 %6643
    %6645 = vrot.lane.b32.xlu0 %v6603, 64
    %v6646 = vpop.permute.xlu0 %6645
    %6647 = vrot.lane.b32.xlu0 %v6604, 64
    %v6648 = vpop.permute.xlu0 %6647
    %6649 = vrot.lane.b32.xlu0 %v6605, 64
    %v6650 = vpop.permute.xlu0 %6649
    %6651 = vrot.lane.b32.xlu0 %v6606, 64
    %v6652 = vpop.permute.xlu0 %6651
    %6653 = vrot.lane.b32.xlu0 %v6607, 64
    %v6654 = vpop.permute.xlu0 %6653
    %6655 = vrot.lane.b32.xlu0 %v6608, 64
    %v6656 = vpop.permute.xlu0 %6655
    %6673 = vst.msk [vmem:[#allocation5 + $0x8] sm:$0xff] %vm6350, %v6626
    %6674 = vst.msk [vmem:[#allocation5 + $0x20] sm:$0xff] %vm6350, %v6628
    %6675 = vst.msk [vmem:[#allocation5 + $0x38] sm:$0xff] %vm6350, %v6630
    %6676 = vst.msk [vmem:[#allocation5 + $0x50] sm:$0xff] %vm6350, %v6632
    %6677 = vst.msk [vmem:[#allocation5 + $0x68] sm:$0xff] %vm6350, %v6634
    %6678 = vst.msk [vmem:[#allocation5 + $0x80] sm:$0xff] %vm6350, %v6636
    %6679 = vst.msk [vmem:[#allocation5 + $0x98] sm:$0xff] %vm6350, %v6638
    %6680 = vst.msk [vmem:[#allocation5 + $0xb0] sm:$0xff] %vm6350, %v6640
    %6681 = vst.msk [vmem:[#allocation5 + $0xc8] sm:$0xff] %vm6350, %v6642
    %6682 = vst.msk [vmem:[#allocation5 + $0xe0] sm:$0xff] %vm6350, %v6644
    %6683 = vst.msk [vmem:[#allocation5 + $0xf8] sm:$0xff] %vm6350, %v6646
    %6684 = vst.msk [vmem:[#allocation5 + $0x110] sm:$0xff] %vm6350, %v6648
    %6685 = vst.msk [vmem:[#allocation5 + $0x128] sm:$0xff] %vm6350, %v6650
    %6686 = vst.msk [vmem:[#allocation5 + $0x140] sm:$0xff] %vm6350, %v6652
    %6687 = vst.msk [vmem:[#allocation5 + $0x158] sm:$0xff] %vm6350, %v6654
    %6688 = vst.msk [vmem:[#allocation5 + $0x170] sm:$0xff] %vm6350, %v6656
    %v6689 = vld [vmem:[%s6592 + $0x1] sm:$0xff]
    %v6690 = vld [vmem:[%s6592 + $0x11] sm:$0xff]
    %v6691 = vld [vmem:[%s6592 + $0x21] sm:$0xff]
    %v6692 = vld [vmem:[%s6592 + $0x31] sm:$0xff]
    %v6693 = vld [vmem:[%s6592 + $0x41] sm:$0xff]
    %v6694 = vld [vmem:[%s6592 + $0x51] sm:$0xff]
    %v6695 = vld [vmem:[%s6592 + $0x61] sm:$0xff]
    %v6696 = vld [vmem:[%s6592 + $0x71] sm:$0xff]
    %v6697 = vld [vmem:[%s6592 + $0xa1] sm:$0xff]
    %v6698 = vld [vmem:[%s6592 + $0xb1] sm:$0xff]
    %v6699 = vld [vmem:[%s6592 + $0xc1] sm:$0xff]
    %v6700 = vld [vmem:[%s6592 + $0xd1] sm:$0xff]
    %v6701 = vld [vmem:[%s6592 + $0xe1] sm:$0xff]
    %v6702 = vld [vmem:[%s6592 + $0xf1] sm:$0xff]
    %v6703 = vld [vmem:[%s6592 + $0x101] sm:$0xff]
    %v6704 = vld [vmem:[%s6592 + $0x111] sm:$0xff]
    %6721 = vrot.lane.b32.xlu0 %v6689, 96
    %v6722 = vpop.permute.xlu0 %6721
    %6723 = vrot.lane.b32.xlu0 %v6690, 96
    %v6724 = vpop.permute.xlu0 %6723
    %6725 = vrot.lane.b32.xlu0 %v6691, 96
    %v6726 = vpop.permute.xlu0 %6725
    %6727 = vrot.lane.b32.xlu0 %v6692, 96
    %v6728 = vpop.permute.xlu0 %6727
    %6729 = vrot.lane.b32.xlu0 %v6693, 96
    %v6730 = vpop.permute.xlu0 %6729
    %6731 = vrot.lane.b32.xlu0 %v6694, 96
    %v6732 = vpop.permute.xlu0 %6731
    %6733 = vrot.lane.b32.xlu0 %v6695, 96
    %v6734 = vpop.permute.xlu0 %6733
    %6735 = vrot.lane.b32.xlu0 %v6696, 96
    %v6736 = vpop.permute.xlu0 %6735
    %6737 = vrot.lane.b32.xlu0 %v6697, 96
    %v6738 = vpop.permute.xlu0 %6737
    %6739 = vrot.lane.b32.xlu0 %v6698, 96
    %v6740 = vpop.permute.xlu0 %6739
    %6741 = vrot.lane.b32.xlu0 %v6699, 96
    %v6742 = vpop.permute.xlu0 %6741
    %6743 = vrot.lane.b32.xlu0 %v6700, 96
    %v6744 = vpop.permute.xlu0 %6743
    %6745 = vrot.lane.b32.xlu0 %v6701, 96
    %v6746 = vpop.permute.xlu0 %6745
    %6747 = vrot.lane.b32.xlu0 %v6702, 96
    %v6748 = vpop.permute.xlu0 %6747
    %6749 = vrot.lane.b32.xlu0 %v6703, 96
    %v6750 = vpop.permute.xlu0 %6749
    %6751 = vrot.lane.b32.xlu0 %v6704, 96
    %v6752 = vpop.permute.xlu0 %6751
    %6769 = vst.msk [vmem:[#allocation5 + $0x8] sm:$0xff] %vm6447, %v6722
    %6770 = vst.msk [vmem:[#allocation5 + $0x20] sm:$0xff] %vm6447, %v6724
    %6771 = vst.msk [vmem:[#allocation5 + $0x38] sm:$0xff] %vm6447, %v6726
    %6772 = vst.msk [vmem:[#allocation5 + $0x50] sm:$0xff] %vm6447, %v6728
    %6773 = vst.msk [vmem:[#allocation5 + $0x68] sm:$0xff] %vm6447, %v6730
    %6774 = vst.msk [vmem:[#allocation5 + $0x80] sm:$0xff] %vm6447, %v6732
    %6775 = vst.msk [vmem:[#allocation5 + $0x98] sm:$0xff] %vm6447, %v6734
    %6776 = vst.msk [vmem:[#allocation5 + $0xb0] sm:$0xff] %vm6447, %v6736
    %6777 = vst.msk [vmem:[#allocation5 + $0xc8] sm:$0xff] %vm6447, %v6738
    %6778 = vst.msk [vmem:[#allocation5 + $0xe0] sm:$0xff] %vm6447, %v6740
    %6779 = vst.msk [vmem:[#allocation5 + $0xf8] sm:$0xff] %vm6447, %v6742
    %6780 = vst.msk [vmem:[#allocation5 + $0x110] sm:$0xff] %vm6447, %v6744
    %6781 = vst.msk [vmem:[#allocation5 + $0x128] sm:$0xff] %vm6447, %v6746
    %6782 = vst.msk [vmem:[#allocation5 + $0x140] sm:$0xff] %vm6447, %v6748
    %6783 = vst.msk [vmem:[#allocation5 + $0x158] sm:$0xff] %vm6447, %v6750
    %6784 = vst.msk [vmem:[#allocation5 + $0x170] sm:$0xff] %vm6447, %v6752
    %v6785 = vld [vmem:[%s6592 + $0x2] sm:$0xff]
    %v6786 = vld [vmem:[%s6592 + $0x12] sm:$0xff]
    %v6787 = vld [vmem:[%s6592 + $0x22] sm:$0xff]
    %v6788 = vld [vmem:[%s6592 + $0x32] sm:$0xff]
    %v6789 = vld [vmem:[%s6592 + $0x42] sm:$0xff]
    %v6790 = vld [vmem:[%s6592 + $0x52] sm:$0xff]
    %v6791 = vld [vmem:[%s6592 + $0x62] sm:$0xff]
    %v6792 = vld [vmem:[%s6592 + $0x72] sm:$0xff]
    %v6793 = vld [vmem:[%s6592 + $0xa2] sm:$0xff]
    %v6794 = vld [vmem:[%s6592 + $0xb2] sm:$0xff]
    %v6795 = vld [vmem:[%s6592 + $0xc2] sm:$0xff]
    %v6796 = vld [vmem:[%s6592 + $0xd2] sm:$0xff]
    %v6797 = vld [vmem:[%s6592 + $0xe2] sm:$0xff]
    %v6798 = vld [vmem:[%s6592 + $0xf2] sm:$0xff]
    %v6799 = vld [vmem:[%s6592 + $0x102] sm:$0xff]
    %v6800 = vld [vmem:[%s6592 + $0x112] sm:$0xff]
    %6801 = vst.msk [vmem:[#allocation5 + $0x10] sm:$0xff] %vm5307, %v6785
    %6802 = vst.msk [vmem:[#allocation5 + $0x28] sm:$0xff] %vm5307, %v6786
    %6803 = vst.msk [vmem:[#allocation5 + $0x40] sm:$0xff] %vm5307, %v6787
    %6804 = vst.msk [vmem:[#allocation5 + $0x58] sm:$0xff] %vm5307, %v6788
    %6805 = vst.msk [vmem:[#allocation5 + $0x70] sm:$0xff] %vm5307, %v6789
    %6806 = vst.msk [vmem:[#allocation5 + $0x88] sm:$0xff] %vm5307, %v6790
    %6807 = vst.msk [vmem:[#allocation5 + $0xa0] sm:$0xff] %vm5307, %v6791
    %6808 = vst.msk [vmem:[#allocation5 + $0xb8] sm:$0xff] %vm5307, %v6792
    %6809 = vst.msk [vmem:[#allocation5 + $0xd0] sm:$0xff] %vm5307, %v6793
    %6810 = vst.msk [vmem:[#allocation5 + $0xe8] sm:$0xff] %vm5307, %v6794
    %6811 = vst.msk [vmem:[#allocation5 + $0x100] sm:$0xff] %vm5307, %v6795
    %6812 = vst.msk [vmem:[#allocation5 + $0x118] sm:$0xff] %vm5307, %v6796
    %6813 = vst.msk [vmem:[#allocation5 + $0x130] sm:$0xff] %vm5307, %v6797
    %6814 = vst.msk [vmem:[#allocation5 + $0x148] sm:$0xff] %vm5307, %v6798
    %6815 = vst.msk [vmem:[#allocation5 + $0x160] sm:$0xff] %vm5307, %v6799
    %6816 = vst.msk [vmem:[#allocation5 + $0x178] sm:$0xff] %vm5307, %v6800
    %v6817 = vld [vmem:[#allocation5] sm:$0xff]
    %v6818 = vld [vmem:[#allocation5 + $0x8] sm:$0xff]
    %v6819 = vld [vmem:[#allocation5 + $0x10] sm:$0xff]
    %v6820 = vld [vmem:[#allocation5 + $0x18] sm:$0xff]
    %v6821 = vld [vmem:[#allocation5 + $0x20] sm:$0xff]
    %v6822 = vld [vmem:[#allocation5 + $0x28] sm:$0xff]
    %v6823 = vld [vmem:[#allocation5 + $0x30] sm:$0xff]
    %v6824 = vld [vmem:[#allocation5 + $0x38] sm:$0xff]
    %v6825 = vld [vmem:[#allocation5 + $0x40] sm:$0xff]
    %v6826 = vld [vmem:[#allocation5 + $0x48] sm:$0xff]
    %v6827 = vld [vmem:[#allocation5 + $0x50] sm:$0xff]
    %v6828 = vld [vmem:[#allocation5 + $0x58] sm:$0xff]
    %v6829 = vld [vmem:[#allocation5 + $0x60] sm:$0xff]
    %v6830 = vld [vmem:[#allocation5 + $0x68] sm:$0xff]
    %v6831 = vld [vmem:[#allocation5 + $0x70] sm:$0xff]
    %v6832 = vld [vmem:[#allocation5 + $0x78] sm:$0xff]
    %v6833 = vld [vmem:[#allocation5 + $0x80] sm:$0xff]
    %v6834 = vld [vmem:[#allocation5 + $0x88] sm:$0xff]
    %v6835 = vld [vmem:[#allocation5 + $0x90] sm:$0xff]
    %v6836 = vld [vmem:[#allocation5 + $0x98] sm:$0xff]
    %v6837 = vld [vmem:[#allocation5 + $0xa0] sm:$0xff]
    %v6838 = vld [vmem:[#allocation5 + $0xa8] sm:$0xff]
    %v6839 = vld [vmem:[#allocation5 + $0xb0] sm:$0xff]
    %v6840 = vld [vmem:[#allocation5 + $0xb8] sm:$0xff]
    %v6841 = vld [vmem:[#allocation5 + $0xc0] sm:$0xff]
    %v6842 = vld [vmem:[#allocation5 + $0xc8] sm:$0xff]
    %v6843 = vld [vmem:[#allocation5 + $0xd0] sm:$0xff]
    %v6844 = vld [vmem:[#allocation5 + $0xd8] sm:$0xff]
    %v6845 = vld [vmem:[#allocation5 + $0xe0] sm:$0xff]
    %v6846 = vld [vmem:[#allocation5 + $0xe8] sm:$0xff]
    %v6847 = vld [vmem:[#allocation5 + $0xf0] sm:$0xff]
    %v6848 = vld [vmem:[#allocation5 + $0xf8] sm:$0xff]
    %v6849 = vld [vmem:[#allocation5 + $0x100] sm:$0xff]
    %v6850 = vld [vmem:[#allocation5 + $0x108] sm:$0xff]
    %v6851 = vld [vmem:[#allocation5 + $0x110] sm:$0xff]
    %v6852 = vld [vmem:[#allocation5 + $0x118] sm:$0xff]
    %v6853 = vld [vmem:[#allocation5 + $0x120] sm:$0xff]
    %v6854 = vld [vmem:[#allocation5 + $0x128] sm:$0xff]
    %v6855 = vld [vmem:[#allocation5 + $0x130] sm:$0xff]
    %v6856 = vld [vmem:[#allocation5 + $0x138] sm:$0xff]
    %v6857 = vld [vmem:[#allocation5 + $0x140] sm:$0xff]
    %v6858 = vld [vmem:[#allocation5 + $0x148] sm:$0xff]
    %v6859 = vld [vmem:[#allocation5 + $0x150] sm:$0xff]
    %v6860 = vld [vmem:[#allocation5 + $0x158] sm:$0xff]
    %v6861 = vld [vmem:[#allocation5 + $0x160] sm:$0xff]
    %v6862 = vld [vmem:[#allocation5 + $0x168] sm:$0xff]
    %v6863 = vld [vmem:[#allocation5 + $0x170] sm:$0xff]
    %v6864 = vld [vmem:[#allocation5 + $0x178] sm:$0xff]
    %v6865 = vpack.c.bf16 %v6820, %v6817
    %v6866 = vpack.c.bf16 %v6821, %v6818
    %v6867 = vpack.c.bf16 %v6822, %v6819
    %v6868 = vpack.c.bf16 %v6826, %v6823
    %v6869 = vpack.c.bf16 %v6827, %v6824
    %v6870 = vpack.c.bf16 %v6828, %v6825
    %v6871 = vpack.c.bf16 %v6832, %v6829
    %v6872 = vpack.c.bf16 %v6833, %v6830
    %v6873 = vpack.c.bf16 %v6834, %v6831
    %v6874 = vpack.c.bf16 %v6838, %v6835
    %v6875 = vpack.c.bf16 %v6839, %v6836
    %v6876 = vpack.c.bf16 %v6840, %v6837
    %v6877 = vpack.c.bf16 %v6844, %v6841
    %v6878 = vpack.c.bf16 %v6845, %v6842
    %v6879 = vpack.c.bf16 %v6846, %v6843
    %v6880 = vpack.c.bf16 %v6850, %v6847
    %v6881 = vpack.c.bf16 %v6851, %v6848
    %v6882 = vpack.c.bf16 %v6852, %v6849
    %v6883 = vpack.c.bf16 %v6856, %v6853
    %v6884 = vpack.c.bf16 %v6857, %v6854
    %v6885 = vpack.c.bf16 %v6858, %v6855
    %v6886 = vpack.c.bf16 %v6862, %v6859
    %v6887 = vpack.c.bf16 %v6863, %v6860
    %v6888 = vpack.c.bf16 %v6864, %v6861
    %v6889 = vld [vmem:[%s3] sm:$0xf]
    %v6890 = vld [vmem:[%s3 + $0x4] sm:$0xf]
    %v6891 = vld [vmem:[%s3 + $0x8] sm:$0xf]
    %v6892 = vld [vmem:[%s3 + $0xc] sm:$0xf]
    %v6893 = vld [vmem:[%s3 + $0x10] sm:$0xf]
    %v6894 = vld [vmem:[%s3 + $0x14] sm:$0xf]
    %v6895 = vld [vmem:[%s3 + $0x18] sm:$0xf]
    %v6896 = vld [vmem:[%s3 + $0x1c] sm:$0xf]
    %v6897 = vld [vmem:[%s3 + $0x20] sm:$0xf]
    %v6898 = vld [vmem:[%s3 + $0x24] sm:$0xf]
    %v6899 = vld [vmem:[%s3 + $0x28] sm:$0xf]
    %v6900 = vld [vmem:[%s3 + $0x2c] sm:$0xf]
    %v6901 = vld [vmem:[%s3 + $0x30] sm:$0xf]
    %v6902 = vld [vmem:[%s3 + $0x34] sm:$0xf]
    %v6903 = vld [vmem:[%s3 + $0x38] sm:$0xf]
    %v6904 = vld [vmem:[%s3 + $0x3c] sm:$0xf]
    %v6905 = vld [vmem:[%s3 + $0x40] sm:$0xf]
    %v6906 = vld [vmem:[%s3 + $0x44] sm:$0xf]
    %v6907 = vld [vmem:[%s3 + $0x48] sm:$0xf]
    %v6908 = vld [vmem:[%s3 + $0x4c] sm:$0xf]
    %v6909 = vld [vmem:[%s3 + $0x50] sm:$0xf]
    %v6910 = vld [vmem:[%s3 + $0x54] sm:$0xf]
    %v6911 = vld [vmem:[%s3 + $0x58] sm:$0xf]
    %v6912 = vld [vmem:[%s3 + $0x5c] sm:$0xf]
    %v6913 = vld [vmem:[%s3 + $0x60] sm:$0xf]
    %v6914 = vld [vmem:[%s3 + $0x64] sm:$0xf]
    %v6915 = vld [vmem:[%s3 + $0x68] sm:$0xf]
    %v6916 = vld [vmem:[%s3 + $0x6c] sm:$0xf]
    %v6917 = vld [vmem:[%s3 + $0x70] sm:$0xf]
    %v6918 = vld [vmem:[%s3 + $0x74] sm:$0xf]
    %v6919 = vld [vmem:[%s3 + $0x78] sm:$0xf]
    %v6920 = vld [vmem:[%s3 + $0x7c] sm:$0xf]
    %v6921 = vld [vmem:[%s3 + $0x80] sm:$0xf]
    %v6922 = vld [vmem:[%s3 + $0x84] sm:$0xf]
    %v6923 = vld [vmem:[%s3 + $0x88] sm:$0xf]
    %v6924 = vld [vmem:[%s3 + $0x8c] sm:$0xf]
    %v6925 = vld [vmem:[%s4] sm:$0x1]
    %v6927 = vlaneseq
    %v6928 = vshrl.u32 %v6927, 7
    %v6929 = vsub.s32 0, %v6928
    %v6930 = vrot.slane %v6925, %v6929
    %v6968 = vunpack.c.l.b16 %v6889
    %v6969 = vunpack.c.l.b16 %v6890
    %v6970 = vunpack.c.l.b16 %v6891
    %v6971 = vunpack.c.l.b16 %v6892
    %v6972 = vunpack.c.l.b16 %v6893
    %v6973 = vunpack.c.l.b16 %v6894
    %v6974 = vunpack.c.l.b16 %v6895
    %v6975 = vunpack.c.l.b16 %v6896
    %v6976 = vunpack.c.l.b16 %v6897
    %v6977 = vunpack.c.l.b16 %v6898
    %v6978 = vunpack.c.l.b16 %v6899
    %v6979 = vunpack.c.l.b16 %v6900
    %v6980 = vunpack.c.l.b16 %v6901
    %v6981 = vunpack.c.l.b16 %v6902
    %v6982 = vunpack.c.l.b16 %v6903
    %v6983 = vunpack.c.l.b16 %v6904
    %v6984 = vunpack.c.l.b16 %v6905
    %v6985 = vunpack.c.l.b16 %v6906
    %v6986 = vunpack.c.l.b16 %v6907
    %v6987 = vunpack.c.l.b16 %v6908
    %v6988 = vunpack.c.l.b16 %v6909
    %v6989 = vunpack.c.l.b16 %v6910
    %v6990 = vunpack.c.l.b16 %v6911
    %v6991 = vunpack.c.l.b16 %v6912
    %v6992 = vunpack.c.l.b16 %v6913
    %v6993 = vunpack.c.l.b16 %v6914
    %v6994 = vunpack.c.l.b16 %v6915
    %v6995 = vunpack.c.l.b16 %v6916
    %v6996 = vunpack.c.l.b16 %v6917
    %v6997 = vunpack.c.l.b16 %v6918
    %v6998 = vunpack.c.l.b16 %v6919
    %v6999 = vunpack.c.l.b16 %v6920
    %v7000 = vunpack.c.l.b16 %v6921
    %v7001 = vunpack.c.l.b16 %v6922
    %v7002 = vunpack.c.l.b16 %v6923
    %v7003 = vunpack.c.l.b16 %v6924
    %v7004 = vpack.c.b16 %v6969, %v6968
    %v7005 = vpack.c.b16 %v6971, %v6970
    %v7006 = vpack.c.b16 %v6973, %v6972
    %v7007 = vpack.c.b16 %v6975, %v6974
    %v7008 = vpack.c.b16 %v6977, %v6976
    %v7009 = vpack.c.b16 %v6979, %v6978
    %v7010 = vpack.c.b16 %v6981, %v6980
    %v7011 = vpack.c.b16 %v6983, %v6982
    %v7012 = vpack.c.b16 %v6985, %v6984
    %v7013 = vpack.c.b16 %v6987, %v6986
    %v7014 = vpack.c.b16 %v6989, %v6988
    %v7015 = vpack.c.b16 %v6991, %v6990
    %v7016 = vpack.c.b16 %v6993, %v6992
    %v7017 = vpack.c.b16 %v6995, %v6994
    %v7018 = vpack.c.b16 %v6997, %v6996
    %v7019 = vpack.c.b16 %v6999, %v6998
    %v7020 = vpack.c.b16 %v7001, %v7000
    %v7021 = vpack.c.b16 %v7003, %v7002
    %v7041 = vsel %vm5307, %v6867, 0
    %v7044 = vsel %vm5307, %v6870, 0
    %v7047 = vsel %vm5307, %v6873, 0
    %v7050 = vsel %vm5307, %v6876, 0
    %v7053 = vsel %vm5307, %v6879, 0
    %v7056 = vsel %vm5307, %v6882, 0
    %v7059 = vsel %vm5307, %v6885, 0
    %v7062 = vsel %vm5307, %v6888, 0
    %7064 = vmatprep.subr.bf16.mxu0 0
    %7065 = vmatpush1.bf16.msra.mxu0 %v7004
    %7066 = vmatprep.subr.bf16.mxu0 0
    %7067 = vmatpush1.bf16.msra.mxu0 %v7005
    %7068 = vmatprep.subr.bf16.mxu0 0
    %7069 = vmatpush1.bf16.msra.mxu0 %v7006
    %7070 = vmatprep.subr.bf16.mxu0 0
    %7071 = vmatpush1.bf16.msra.mxu0 %v7007
    %7072 = vmatprep.subr.bf16.mxu0 0
    %7073 = vmatpush1.bf16.msra.mxu0 %v7008
    %7074 = vmatprep.subr.bf16.mxu0 0
    %7075 = vmatpush1.bf16.msra.mxu0 %v7009
    %7076 = vmatprep.subr.bf16.mxu0 0
    %7077 = vmatpush1.bf16.msra.mxu0 %v7010
    %7078 = vmatprep.subr.bf16.mxu0 0
    %7079 = vmatpush1.bf16.msra.mxu0 %v7011
    %7080 = vmatprep.subr.bf16.mxu0 0
    %7081 = vmatpush1.bf16.msra.mxu0 %v7012
    %7082 = vmatprep.subr.bf16.mxu0 0
    %7083 = vmatpush1.bf16.msra.mxu0 %v7013
    %7084 = vmatprep.subr.bf16.mxu0 0
    %7085 = vmatpush1.bf16.msra.mxu0 %v7014
    %7086 = vmatprep.subr.bf16.mxu0 0
    %7087 = vmatpush1.bf16.msra.mxu0 %v7015
    %7088 = vmatprep.subr.bf16.mxu0 0
    %7089 = vmatpush1.bf16.msra.mxu0 %v7016
    %7090 = vmatprep.subr.bf16.mxu0 0
    %7091 = vmatpush1.bf16.msra.mxu0 %v7017
    %7092 = vmatprep.subr.bf16.mxu0 0
    %7093 = vmatpush1.bf16.msra.mxu0 %v7018
    %7094 = vmatprep.subr.bf16.mxu0 0
    %7095 = vmatpush1.bf16.msra.mxu0 %v7019
    %7096 = vmatprep.mubr.bf16.mxu0 %v6866
    %7097 = vmatmul.mubr.bf16.gmra.mrb[0].mxu0 %v6865
    %v7098 = vpop.f32.mrb[0].mxu0
    %v7099 = vadd.f32 %v6930, %v7098
    %v7100 = vpop.f32.mrb[0].mxu0
    %v7101 = vpop.f32.mrb[0].mxu0
    %v7102 = vadd.f32 %v6930, %v7101
    %v7103 = vpop.f32.mrb[0].mxu0
    %7104 = vmatprep.mubr.bf16.mxu0 %v6869
    %7105 = vmatmul.mubr.bf16.gmra.mrb[0].mxu0 %v6868
    %v7106 = vpop.f32.mrb[0].mxu0
    %v7107 = vadd.f32 %v6930, %v7106
    %v7108 = vpop.f32.mrb[0].mxu0
    %v7109 = vpop.f32.mrb[0].mxu0
    %v7110 = vadd.f32 %v6930, %v7109
    %v7111 = vpop.f32.mrb[0].mxu0
    %7112 = vmatprep.mubr.bf16.mxu0 %v6872
    %7113 = vmatmul.mubr.bf16.gmra.mrb[0].mxu0 %v6871
    %v7114 = vpop.f32.mrb[0].mxu0
    %v7115 = vadd.f32 %v6930, %v7114
    %v7116 = vpop.f32.mrb[0].mxu0
    %v7117 = vpop.f32.mrb[0].mxu0
    %v7118 = vadd.f32 %v6930, %v7117
    %v7119 = vpop.f32.mrb[0].mxu0
    %7120 = vmatprep.mubr.bf16.mxu0 %v6875
    %7121 = vmatmul.mubr.bf16.gmra.mrb[0].mxu0 %v6874
    %v7122 = vpop.f32.mrb[0].mxu0
    %v7123 = vadd.f32 %v6930, %v7122
    %v7124 = vpop.f32.mrb[0].mxu0
    %v7125 = vpop.f32.mrb[0].mxu0
    %v7126 = vadd.f32 %v6930, %v7125
    %v7127 = vpop.f32.mrb[0].mxu0
    %7128 = vmatprep.mubr.bf16.mxu0 %v6878
    %7129 = vmatmul.mubr.bf16.gmra.mrb[0].mxu0 %v6877
    %v7130 = vpop.f32.mrb[0].mxu0
    %v7131 = vadd.f32 %v6930, %v7130
    %v7132 = vpop.f32.mrb[0].mxu0
    %v7133 = vpop.f32.mrb[0].mxu0
    %v7134 = vadd.f32 %v6930, %v7133
    %v7135 = vpop.f32.mrb[0].mxu0
    %7136 = vmatprep.mubr.bf16.mxu0 %v6881
    %7137 = vmatmul.mubr.bf16.gmra.mrb[0].mxu0 %v6880
    %v7138 = vpop.f32.mrb[0].mxu0
    %v7139 = vadd.f32 %v6930, %v7138
    %v7140 = vpop.f32.mrb[0].mxu0
    %v7141 = vpop.f32.mrb[0].mxu0
    %v7142 = vadd.f32 %v6930, %v7141
    %v7143 = vpop.f32.mrb[0].mxu0
    %7144 = vmatprep.mubr.bf16.mxu0 %v6884
    %7145 = vmatmul.mubr.bf16.gmra.mrb[0].mxu0 %v6883
    %v7146 = vpop.f32.mrb[0].mxu0
    %v7147 = vadd.f32 %v6930, %v7146
    %v7148 = vpop.f32.mrb[0].mxu0
    %v7149 = vpop.f32.mrb[0].mxu0
    %v7150 = vadd.f32 %v6930, %v7149
    %v7151 = vpop.f32.mrb[0].mxu0
    %7152 = vmatprep.mubr.bf16.mxu0 %v6887
    %7153 = vmatmul.mubr.bf16.gmra.mrb[0].mxu0 %v6886
    %v7154 = vpop.f32.mrb[0].mxu0
    %v7155 = vadd.f32 %v6930, %v7154
    %v7156 = vpop.f32.mrb[0].mxu0
    %v7157 = vpop.f32.mrb[0].mxu0
    %v7158 = vadd.f32 %v6930, %v7157
    %v7159 = vpop.f32.mrb[0].mxu0
    %7160 = vdwg.mxu0
    %7161 = vmatprep.subr.bf16.mxu0 0
    %7162 = vmatpush1.bf16.msra.mxu0 %v7020
    %7163 = vmatprep.subr.bf16.mxu0 0
    %7164 = vmatpush1.bf16.msra.mxu0 %v7021
    %7165 = vmatprep.subr.bf16.mxu0 0
    %7166 = vmatpush1.bf16.msra.mxu0 0
    %7167 = vmatprep.subr.bf16.mxu0 0
    %7168 = vmatpush1.bf16.msra.mxu0 0
    %7169 = vmatprep.subr.bf16.mxu0 0
    %7170 = vmatpush1.bf16.msra.mxu0 0
    %7171 = vmatprep.subr.bf16.mxu0 0
    %7172 = vmatpush1.bf16.msra.mxu0 0
    %7173 = vmatprep.subr.bf16.mxu0 0
    %7174 = vmatpush1.bf16.msra.mxu0 0
    %7175 = vmatprep.subr.bf16.mxu0 0
    %7176 = vmatpush1.bf16.msra.mxu0 0
    %7177 = vmatprep.subr.bf16.mxu0 0
    %7178 = vmatpush1.bf16.msra.mxu0 0
    %7179 = vmatprep.subr.bf16.mxu0 0
    %7180 = vmatpush1.bf16.msra.mxu0 0
    %7181 = vmatprep.subr.bf16.mxu0 0
    %7182 = vmatpush1.bf16.msra.mxu0 0
    %7183 = vmatprep.subr.bf16.mxu0 0
    %7184 = vmatpush1.bf16.msra.mxu0 0
    %7185 = vmatprep.subr.bf16.mxu0 0
    %7186 = vmatpush1.bf16.msra.mxu0 0
    %7187 = vmatprep.subr.bf16.mxu0 0
    %7188 = vmatpush1.bf16.msra.mxu0 0
    %7189 = vmatprep.subr.bf16.mxu0 0
    %7190 = vmatpush1.bf16.msra.mxu0 0
    %7191 = vmatprep.subr.bf16.mxu0 0
    %7192 = vmatpush1.bf16.msra.mxu0 0
    %7193 = vmatprep.mubr.bf16.mxu0 0
    %7194 = vmatmul.mubr.bf16.gmra.mrb[0].mxu0 %v7041
    %v7195 = vpop.f32.mrb[0].mxu0
    %v7196 = vadd.f32 %v7099, %v7195
    %v7197 = vpop.f32.mrb[0].mxu0
    %v7198 = vpop.f32.mrb[0].mxu0
    %v7199 = vadd.f32 %v7102, %v7198
    %v7200 = vpop.f32.mrb[0].mxu0
    %7201 = vmatprep.mubr.bf16.mxu0 0
    %7202 = vmatmul.mubr.bf16.gmra.mrb[0].mxu0 %v7044
    %v7203 = vpop.f32.mrb[0].mxu0
    %v7204 = vadd.f32 %v7107, %v7203
    %v7205 = vpop.f32.mrb[0].mxu0
    %v7206 = vpop.f32.mrb[0].mxu0
    %v7207 = vadd.f32 %v7110, %v7206
    %v7208 = vpop.f32.mrb[0].mxu0
    %7209 = vmatprep.mubr.bf16.mxu0 0
    %7210 = vmatmul.mubr.bf16.gmra.mrb[0].mxu0 %v7047
    %v7211 = vpop.f32.mrb[0].mxu0
    %v7212 = vadd.f32 %v7115, %v7211
    %v7213 = vpop.f32.mrb[0].mxu0
    %v7214 = vpop.f32.mrb[0].mxu0
    %v7215 = vadd.f32 %v7118, %v7214
    %v7216 = vpop.f32.mrb[0].mxu0
    %7217 = vmatprep.mubr.bf16.mxu0 0
    %7218 = vmatmul.mubr.bf16.gmra.mrb[0].mxu0 %v7050
    %v7219 = vpop.f32.mrb[0].mxu0
    %v7220 = vadd.f32 %v7123, %v7219
    %v7221 = vpop.f32.mrb[0].mxu0
    %v7222 = vpop.f32.mrb[0].mxu0
    %v7223 = vadd.f32 %v7126, %v7222
    %v7224 = vpop.f32.mrb[0].mxu0
    %7225 = vmatprep.mubr.bf16.mxu0 0
    %7226 = vmatmul.mubr.bf16.gmra.mrb[0].mxu0 %v7053
    %v7227 = vpop.f32.mrb[0].mxu0
    %v7228 = vadd.f32 %v7131, %v7227
    %v7229 = vpop.f32.mrb[0].mxu0
    %v7230 = vpop.f32.mrb[0].mxu0
    %v7231 = vadd.f32 %v7134, %v7230
    %v7232 = vpop.f32.mrb[0].mxu0
    %7233 = vmatprep.mubr.bf16.mxu0 0
    %7234 = vmatmul.mubr.bf16.gmra.mrb[0].mxu0 %v7056
    %v7235 = vpop.f32.mrb[0].mxu0
    %v7236 = vadd.f32 %v7139, %v7235
    %v7237 = vpop.f32.mrb[0].mxu0
    %v7238 = vpop.f32.mrb[0].mxu0
    %v7239 = vadd.f32 %v7142, %v7238
    %v7240 = vpop.f32.mrb[0].mxu0
    %7241 = vmatprep.mubr.bf16.mxu0 0
    %7242 = vmatmul.mubr.bf16.gmra.mrb[0].mxu0 %v7059
    %v7243 = vpop.f32.mrb[0].mxu0
    %v7244 = vadd.f32 %v7147, %v7243
    %v7245 = vpop.f32.mrb[0].mxu0
    %v7246 = vpop.f32.mrb[0].mxu0
    %v7247 = vadd.f32 %v7150, %v7246
    %v7248 = vpop.f32.mrb[0].mxu0
    %7249 = vmatprep.mubr.bf16.mxu0 0
    %7250 = vmatmul.mubr.bf16.gmra.mrb[0].mxu0 %v7062
    %v7251 = vpop.f32.mrb[0].mxu0
    %v7252 = vadd.f32 %v7155, %v7251
    %v7253 = vpop.f32.mrb[0].mxu0
    %v7254 = vpop.f32.mrb[0].mxu0
    %v7255 = vadd.f32 %v7158, %v7254
    %v7256 = vpop.f32.mrb[0].mxu0
    %7257 = vdwg.mxu0
    %v7258 = vmax.f32 %v7196, 0.0
    %v7259 = vmax.f32 %v7199, 0.0
    %v7260 = vmax.f32 %v7204, 0.0
    %v7261 = vmax.f32 %v7207, 0.0
    %v7262 = vmax.f32 %v7212, 0.0
    %v7263 = vmax.f32 %v7215, 0.0
    %v7264 = vmax.f32 %v7220, 0.0
    %v7265 = vmax.f32 %v7223, 0.0
    %v7266 = vmax.f32 %v7228, 0.0
    %v7267 = vmax.f32 %v7231, 0.0
    %v7268 = vmax.f32 %v7236, 0.0
    %v7269 = vmax.f32 %v7239, 0.0
    %v7270 = vmax.f32 %v7244, 0.0
    %v7271 = vmax.f32 %v7247, 0.0
    %v7272 = vmax.f32 %v7252, 0.0
    %v7273 = vmax.f32 %v7255, 0.0
    %v7274 = vmax.f32 %v7258, %v7259
    %v7275 = vmax.f32 %v7260, %v7261
    %v7276 = vmax.f32 %v7262, %v7263
    %v7277 = vmax.f32 %v7264, %v7265
    %v7278 = vmax.f32 %v7266, %v7267
    %v7279 = vmax.f32 %v7268, %v7269
    %v7280 = vmax.f32 %v7270, %v7271
    %v7281 = vmax.f32 %v7272, %v7273
    %v7290 = vcombine.high %v7274, %v7274
    %v7292 = vunpack.c.l.s4 1983009808
    %v7293 = vunpack.c.0.s8 %v7292
    %v7294 = vlaneseq
    %v7295 = vshrl.u32 %v7294, 7
    %v7296 = vsub.s32 %v7293, %v7295
    %v7297 = vrot.slane %v7274, %v7296
    %v7299 = vunpack.c.l.s4 1983009808
    %v7300 = vunpack.c.0.s8 %v7299
    %v7301 = vlaneseq
    %v7302 = vshrl.u32 %v7301, 7
    %v7303 = vsub.s32 %v7300, %v7302
    %v7304 = vrot.slane %v7290, %v7303
    %v7305 = vcombine.high %v7297, %v7297
    %v7306 = vcombine.high %v7304, %v7304
    %v7307 = vcombine.high %v7275, %v7275
    %v7309 = vunpack.c.l.s4 1983009808
    %v7310 = vunpack.c.0.s8 %v7309
    %v7311 = vlaneseq
    %v7312 = vshrl.u32 %v7311, 7
    %v7313 = vsub.s32 %v7310, %v7312
    %v7314 = vrot.slane %v7275, %v7313
    %v7316 = vunpack.c.l.s4 1983009808
    %v7317 = vunpack.c.0.s8 %v7316
    %v7318 = vlaneseq
    %v7319 = vshrl.u32 %v7318, 7
    %v7320 = vsub.s32 %v7317, %v7319
    %v7321 = vrot.slane %v7307, %v7320
    %v7322 = vcombine.high %v7314, %v7314
    %v7323 = vcombine.high %v7321, %v7321
    %v7324 = vcombine.high %v7276, %v7276
    %v7326 = vunpack.c.l.s4 1983009808
    %v7327 = vunpack.c.0.s8 %v7326
    %v7328 = vlaneseq
    %v7329 = vshrl.u32 %v7328, 7
    %v7330 = vsub.s32 %v7327, %v7329
    %v7331 = vrot.slane %v7276, %v7330
    %v7333 = vunpack.c.l.s4 1983009808
    %v7334 = vunpack.c.0.s8 %v7333
    %v7335 = vlaneseq
    %v7336 = vshrl.u32 %v7335, 7
    %v7337 = vsub.s32 %v7334, %v7336
    %v7338 = vrot.slane %v7324, %v7337
    %v7339 = vcombine.high %v7331, %v7331
    %v7340 = vcombine.high %v7338, %v7338
    %v7341 = vcombine.high %v7277, %v7277
    %v7343 = vunpack.c.l.s4 1983009808
    %v7344 = vunpack.c.0.s8 %v7343
    %v7345 = vlaneseq
    %v7346 = vshrl.u32 %v7345, 7
    %v7347 = vsub.s32 %v7344, %v7346
    %v7348 = vrot.slane %v7277, %v7347
    %v7350 = vunpack.c.l.s4 1983009808
    %v7351 = vunpack.c.0.s8 %v7350
    %v7352 = vlaneseq
    %v7353 = vshrl.u32 %v7352, 7
    %v7354 = vsub.s32 %v7351, %v7353
    %v7355 = vrot.slane %v7341, %v7354
    %v7356 = vcombine.high %v7348, %v7348
    %v7357 = vcombine.high %v7355, %v7355
    %v7358 = vcombine.high %v7278, %v7278
    %v7360 = vunpack.c.l.s4 1983009808
    %v7361 = vunpack.c.0.s8 %v7360
    %v7362 = vlaneseq
    %v7363 = vshrl.u32 %v7362, 7
    %v7364 = vsub.s32 %v7361, %v7363
    %v7365 = vrot.slane %v7278, %v7364
    %v7367 = vunpack.c.l.s4 1983009808
    %v7368 = vunpack.c.0.s8 %v7367
    %v7369 = vlaneseq
    %v7370 = vshrl.u32 %v7369, 7
    %v7371 = vsub.s32 %v7368, %v7370
    %v7372 = vrot.slane %v7358, %v7371
    %v7373 = vcombine.high %v7365, %v7365
    %v7374 = vcombine.high %v7372, %v7372
    %v7375 = vcombine.high %v7279, %v7279
    %v7377 = vunpack.c.l.s4 1983009808
    %v7378 = vunpack.c.0.s8 %v7377
    %v7379 = vlaneseq
    %v7380 = vshrl.u32 %v7379, 7
    %v7381 = vsub.s32 %v7378, %v7380
    %v7382 = vrot.slane %v7279, %v7381
    %v7384 = vunpack.c.l.s4 1983009808
    %v7385 = vunpack.c.0.s8 %v7384
    %v7386 = vlaneseq
    %v7387 = vshrl.u32 %v7386, 7
    %v7388 = vsub.s32 %v7385, %v7387
    %v7389 = vrot.slane %v7375, %v7388
    %v7390 = vcombine.high %v7382, %v7382
    %v7391 = vcombine.high %v7389, %v7389
    %v7392 = vcombine.high %v7280, %v7280
    %v7394 = vunpack.c.l.s4 1983009808
    %v7395 = vunpack.c.0.s8 %v7394
    %v7396 = vlaneseq
    %v7397 = vshrl.u32 %v7396, 7
    %v7398 = vsub.s32 %v7395, %v7397
    %v7399 = vrot.slane %v7280, %v7398
    %v7401 = vunpack.c.l.s4 1983009808
    %v7402 = vunpack.c.0.s8 %v7401
    %v7403 = vlaneseq
    %v7404 = vshrl.u32 %v7403, 7
    %v7405 = vsub.s32 %v7402, %v7404
    %v7406 = vrot.slane %v7392, %v7405
    %v7407 = vcombine.high %v7399, %v7399
    %v7408 = vcombine.high %v7406, %v7406
    %v7409 = vcombine.high %v7281, %v7281
    %v7411 = vunpack.c.l.s4 1983009808
    %v7412 = vunpack.c.0.s8 %v7411
    %v7413 = vlaneseq
    %v7414 = vshrl.u32 %v7413, 7
    %v7415 = vsub.s32 %v7412, %v7414
    %v7416 = vrot.slane %v7281, %v7415
    %v7418 = vunpack.c.l.s4 1983009808
    %v7419 = vunpack.c.0.s8 %v7418
    %v7420 = vlaneseq
    %v7421 = vshrl.u32 %v7420, 7
    %v7422 = vsub.s32 %v7419, %v7421
    %v7423 = vrot.slane %v7409, %v7422
    %v7424 = vcombine.high %v7416, %v7416
    %v7425 = vcombine.high %v7423, %v7423
    %v7458 = vrot.slane %v7297, 7
    %v7459 = vrot.slane %v7458, 2
    %v7460 = vrot.slane %v7305, 7
    %v7461 = vrot.slane %v7460, 2
    %v7462 = vrot.slane %v7304, 7
    %v7463 = vrot.slane %v7462, 2
    %v7464 = vrot.slane %v7306, 7
    %v7465 = vrot.slane %v7464, 2
    %v7466 = vrot.slane %v7314, 7
    %v7467 = vrot.slane %v7466, 2
    %v7468 = vrot.slane %v7322, 7
    %v7469 = vrot.slane %v7468, 2
    %v7470 = vrot.slane %v7321, 7
    %v7471 = vrot.slane %v7470, 2
    %v7472 = vrot.slane %v7323, 7
    %v7473 = vrot.slane %v7472, 2
    %v7474 = vrot.slane %v7331, 7
    %v7475 = vrot.slane %v7474, 2
    %v7476 = vrot.slane %v7339, 7
    %v7477 = vrot.slane %v7476, 2
    %v7478 = vrot.slane %v7338, 7
    %v7479 = vrot.slane %v7478, 2
    %v7480 = vrot.slane %v7340, 7
    %v7481 = vrot.slane %v7480, 2
    %v7482 = vrot.slane %v7348, 7
    %v7483 = vrot.slane %v7482, 2
    %v7484 = vrot.slane %v7356, 7
    %v7485 = vrot.slane %v7484, 2
    %v7486 = vrot.slane %v7355, 7
    %v7487 = vrot.slane %v7486, 2
    %v7488 = vrot.slane %v7357, 7
    %v7489 = vrot.slane %v7488, 2
    %v7490 = vrot.slane %v7365, 7
    %v7491 = vrot.slane %v7490, 2
    %v7492 = vrot.slane %v7373, 7
    %v7493 = vrot.slane %v7492, 2
    %v7494 = vrot.slane %v7372, 7
    %v7495 = vrot.slane %v7494, 2
    %v7496 = vrot.slane %v7374, 7
    %v7497 = vrot.slane %v7496, 2
    %v7498 = vrot.slane %v7382, 7
    %v7499 = vrot.slane %v7498, 2
    %v7500 = vrot.slane %v7390, 7
    %v7501 = vrot.slane %v7500, 2
    %v7502 = vrot.slane %v7389, 7
    %v7503 = vrot.slane %v7502, 2
    %v7504 = vrot.slane %v7391, 7
    %v7505 = vrot.slane %v7504, 2
    %v7506 = vrot.slane %v7399, 7
    %v7507 = vrot.slane %v7506, 2
    %v7508 = vrot.slane %v7407, 7
    %v7509 = vrot.slane %v7508, 2
    %v7510 = vrot.slane %v7406, 7
    %v7511 = vrot.slane %v7510, 2
    %v7512 = vrot.slane %v7408, 7
    %v7513 = vrot.slane %v7512, 2
    %v7514 = vrot.slane %v7416, 7
    %v7515 = vrot.slane %v7514, 2
    %v7516 = vrot.slane %v7424, 7
    %v7517 = vrot.slane %v7516, 2
    %v7518 = vrot.slane %v7423, 7
    %v7519 = vrot.slane %v7518, 2
    %v7520 = vrot.slane %v7425, 7
    %v7521 = vrot.slane %v7520, 2
    %v7554 = vmax.f32 %v7297, %v7459
    %v7555 = vmax.f32 %v7305, %v7461
    %v7556 = vmax.f32 %v7304, %v7463
    %v7557 = vmax.f32 %v7306, %v7465
    %v7558 = vmax.f32 %v7314, %v7467
    %v7559 = vmax.f32 %v7322, %v7469
    %v7560 = vmax.f32 %v7321, %v7471
    %v7561 = vmax.f32 %v7323, %v7473
    %v7562 = vmax.f32 %v7331, %v7475
    %v7563 = vmax.f32 %v7339, %v7477
    %v7564 = vmax.f32 %v7338, %v7479
    %v7565 = vmax.f32 %v7340, %v7481
    %v7566 = vmax.f32 %v7348, %v7483
    %v7567 = vmax.f32 %v7356, %v7485
    %v7568 = vmax.f32 %v7355, %v7487
    %v7569 = vmax.f32 %v7357, %v7489
    %v7570 = vmax.f32 %v7365, %v7491
    %v7571 = vmax.f32 %v7373, %v7493
    %v7572 = vmax.f32 %v7372, %v7495
    %v7573 = vmax.f32 %v7374, %v7497
    %v7574 = vmax.f32 %v7382, %v7499
    %v7575 = vmax.f32 %v7390, %v7501
    %v7576 = vmax.f32 %v7389, %v7503
    %v7577 = vmax.f32 %v7391, %v7505
    %v7578 = vmax.f32 %v7399, %v7507
    %v7579 = vmax.f32 %v7407, %v7509
    %v7580 = vmax.f32 %v7406, %v7511
    %v7581 = vmax.f32 %v7408, %v7513
    %v7582 = vmax.f32 %v7416, %v7515
    %v7583 = vmax.f32 %v7424, %v7517
    %v7584 = vmax.f32 %v7423, %v7519
    %v7585 = vmax.f32 %v7425, %v7521
    %v7588 = vsel %vm5995, %v7554, %v7554
    %v7589 = vsel %vm5999, %v7554, %v7588
    %v7590 = vrot.slane %v7570, 7
    %v7591 = vsel %vm5989, %v7590, %v7589
    %v7592 = vsel %vm5993, %v7590, %v7591
    %v7593 = vsel %vm5997, %v7590, %v7592
    %v7594 = vsel %vm6001, %v7590, %v7593
    %vm7596 = vcmask 517120
    %7597 = vst.msk [vmem:[#allocation6] sm:$0x3] %vm7596, %v7594
    %v7600 = vsel %vm5995, %v7555, %v7555
    %v7601 = vsel %vm5999, %v7555, %v7600
    %v7602 = vrot.slane %v7571, 7
    %v7603 = vsel %vm5989, %v7602, %v7601
    %v7604 = vsel %vm5993, %v7602, %v7603
    %v7605 = vsel %vm5997, %v7602, %v7604
    %v7606 = vsel %vm6001, %v7602, %v7605
    %7607 = vrot.lane.b32.xlu0 %v7606, 64
    %v7608 = vpop.permute.xlu0 %7607
    %vm7610 = vcmask 1041920
    %7611 = vst.msk [vmem:[#allocation6] sm:$0x3] %vm7610, %v7608
    %v7614 = vsel %vm5995, %v7556, %v7556
    %v7615 = vsel %vm5999, %v7556, %v7614
    %v7616 = vrot.slane %v7572, 7
    %v7617 = vsel %vm5989, %v7616, %v7615
    %v7618 = vsel %vm5993, %v7616, %v7617
    %v7619 = vsel %vm5997, %v7616, %v7618
    %v7620 = vsel %vm6001, %v7616, %v7619
    %7622 = vst.msk [vmem:[#allocation6 + $0x2] sm:$0x3] %vm7596, %v7620
    %v7625 = vsel %vm5995, %v7557, %v7557
    %v7626 = vsel %vm5999, %v7557, %v7625
    %v7627 = vrot.slane %v7573, 7
    %v7628 = vsel %vm5989, %v7627, %v7626
    %v7629 = vsel %vm5993, %v7627, %v7628
    %v7630 = vsel %vm5997, %v7627, %v7629
    %v7631 = vsel %vm6001, %v7627, %v7630
    %7632 = vrot.lane.b32.xlu0 %v7631, 64
    %v7633 = vpop.permute.xlu0 %7632
    %7635 = vst.msk [vmem:[#allocation6 + $0x2] sm:$0x3] %vm7610, %v7633
    %v7638 = vsel %vm5995, %v7558, %v7558
    %v7639 = vsel %vm5999, %v7558, %v7638
    %v7640 = vrot.slane %v7574, 7
    %v7641 = vsel %vm5989, %v7640, %v7639
    %v7642 = vsel %vm5993, %v7640, %v7641
    %v7643 = vsel %vm5997, %v7640, %v7642
    %v7644 = vsel %vm6001, %v7640, %v7643
    %7646 = vst.msk [vmem:[#allocation6 + $0x4] sm:$0x3] %vm7596, %v7644
    %v7649 = vsel %vm5995, %v7559, %v7559
    %v7650 = vsel %vm5999, %v7559, %v7649
    %v7651 = vrot.slane %v7575, 7
    %v7652 = vsel %vm5989, %v7651, %v7650
    %v7653 = vsel %vm5993, %v7651, %v7652
    %v7654 = vsel %vm5997, %v7651, %v7653
    %v7655 = vsel %vm6001, %v7651, %v7654
    %7656 = vrot.lane.b32.xlu0 %v7655, 64
    %v7657 = vpop.permute.xlu0 %7656
    %7659 = vst.msk [vmem:[#allocation6 + $0x4] sm:$0x3] %vm7610, %v7657
    %v7662 = vsel %vm5995, %v7560, %v7560
    %v7663 = vsel %vm5999, %v7560, %v7662
    %v7664 = vrot.slane %v7576, 7
    %v7665 = vsel %vm5989, %v7664, %v7663
    %v7666 = vsel %vm5993, %v7664, %v7665
    %v7667 = vsel %vm5997, %v7664, %v7666
    %v7668 = vsel %vm6001, %v7664, %v7667
    %7670 = vst.msk [vmem:[#allocation6 + $0x6] sm:$0x3] %vm7596, %v7668
    %v7673 = vsel %vm5995, %v7561, %v7561
    %v7674 = vsel %vm5999, %v7561, %v7673
    %v7675 = vrot.slane %v7577, 7
    %v7676 = vsel %vm5989, %v7675, %v7674
    %v7677 = vsel %vm5993, %v7675, %v7676
    %v7678 = vsel %vm5997, %v7675, %v7677
    %v7679 = vsel %vm6001, %v7675, %v7678
    %7680 = vrot.lane.b32.xlu0 %v7679, 64
    %v7681 = vpop.permute.xlu0 %7680
    %7683 = vst.msk [vmem:[#allocation6 + $0x6] sm:$0x3] %vm7610, %v7681
    %v7686 = vsel %vm5995, %v7562, %v7562
    %v7687 = vsel %vm5999, %v7562, %v7686
    %v7688 = vrot.slane %v7578, 7
    %v7689 = vsel %vm5989, %v7688, %v7687
    %v7690 = vsel %vm5993, %v7688, %v7689
    %v7691 = vsel %vm5997, %v7688, %v7690
    %v7692 = vsel %vm6001, %v7688, %v7691
    %7694 = vst.msk [vmem:[#allocation6 + $0x8] sm:$0x3] %vm7596, %v7692
    %v7697 = vsel %vm5995, %v7563, %v7563
    %v7698 = vsel %vm5999, %v7563, %v7697
    %v7699 = vrot.slane %v7579, 7
    %v7700 = vsel %vm5989, %v7699, %v7698
    %v7701 = vsel %vm5993, %v7699, %v7700
    %v7702 = vsel %vm5997, %v7699, %v7701
    %v7703 = vsel %vm6001, %v7699, %v7702
    %7704 = vrot.lane.b32.xlu0 %v7703, 64
    %v7705 = vpop.permute.xlu0 %7704
    %7707 = vst.msk [vmem:[#allocation6 + $0x8] sm:$0x3] %vm7610, %v7705
    %v7710 = vsel %vm5995, %v7564, %v7564
    %v7711 = vsel %vm5999, %v7564, %v7710
    %v7712 = vrot.slane %v7580, 7
    %v7713 = vsel %vm5989, %v7712, %v7711
    %v7714 = vsel %vm5993, %v7712, %v7713
    %v7715 = vsel %vm5997, %v7712, %v7714
    %v7716 = vsel %vm6001, %v7712, %v7715
    %7718 = vst.msk [vmem:[#allocation6 + $0xa] sm:$0x3] %vm7596, %v7716
    %v7721 = vsel %vm5995, %v7565, %v7565
    %v7722 = vsel %vm5999, %v7565, %v7721
    %v7723 = vrot.slane %v7581, 7
    %v7724 = vsel %vm5989, %v7723, %v7722
    %v7725 = vsel %vm5993, %v7723, %v7724
    %v7726 = vsel %vm5997, %v7723, %v7725
    %v7727 = vsel %vm6001, %v7723, %v7726
    %7728 = vrot.lane.b32.xlu0 %v7727, 64
    %v7729 = vpop.permute.xlu0 %7728
    %7731 = vst.msk [vmem:[#allocation6 + $0xa] sm:$0x3] %vm7610, %v7729
    %v7734 = vsel %vm5995, %v7566, %v7566
    %v7735 = vsel %vm5999, %v7566, %v7734
    %v7736 = vrot.slane %v7582, 7
    %v7737 = vsel %vm5989, %v7736, %v7735
    %v7738 = vsel %vm5993, %v7736, %v7737
    %v7739 = vsel %vm5997, %v7736, %v7738
    %v7740 = vsel %vm6001, %v7736, %v7739
    %7742 = vst.msk [vmem:[#allocation6 + $0xc] sm:$0x3] %vm7596, %v7740
    %v7745 = vsel %vm5995, %v7567, %v7567
    %v7746 = vsel %vm5999, %v7567, %v7745
    %v7747 = vrot.slane %v7583, 7
    %v7748 = vsel %vm5989, %v7747, %v7746
    %v7749 = vsel %vm5993, %v7747, %v7748
    %v7750 = vsel %vm5997, %v7747, %v7749
    %v7751 = vsel %vm6001, %v7747, %v7750
    %7752 = vrot.lane.b32.xlu0 %v7751, 64
    %v7753 = vpop.permute.xlu0 %7752
    %7755 = vst.msk [vmem:[#allocation6 + $0xc] sm:$0x3] %vm7610, %v7753
    %v7758 = vsel %vm5995, %v7568, %v7568
    %v7759 = vsel %vm5999, %v7568, %v7758
    %v7760 = vrot.slane %v7584, 7
    %v7761 = vsel %vm5989, %v7760, %v7759
    %v7762 = vsel %vm5993, %v7760, %v7761
    %v7763 = vsel %vm5997, %v7760, %v7762
    %v7764 = vsel %vm6001, %v7760, %v7763
    %7766 = vst.msk [vmem:[#allocation6 + $0xe] sm:$0x3] %vm7596, %v7764
    %v7769 = vsel %vm5995, %v7569, %v7569
    %v7770 = vsel %vm5999, %v7569, %v7769
    %v7771 = vrot.slane %v7585, 7
    %v7772 = vsel %vm5989, %v7771, %v7770
    %v7773 = vsel %vm5993, %v7771, %v7772
    %v7774 = vsel %vm5997, %v7771, %v7773
    %v7775 = vsel %vm6001, %v7771, %v7774
    %7776 = vrot.lane.b32.xlu0 %v7775, 64
    %v7777 = vpop.permute.xlu0 %7776
    %7779 = vst.msk [vmem:[#allocation6 + $0xe] sm:$0x3] %vm7610, %v7777
    %v7780 = vld [vmem:[#allocation6] sm:$0xff]
    %v7781 = vld [vmem:[#allocation6 + $0x8] sm:$0xff]
    %v7784 = vcombine.high %v7780, %v7780
    %v7786 = vunpack.c.l.s4 1983009808
    %v7787 = vunpack.c.0.s8 %v7786
    %v7788 = vlaneseq
    %v7789 = vshrl.u32 %v7788, 7
    %v7790 = vsub.s32 %v7787, %v7789
    %v7791 = vrot.slane %v7780, %v7790
    %v7793 = vunpack.c.l.s4 1983009808
    %v7794 = vunpack.c.0.s8 %v7793
    %v7795 = vlaneseq
    %v7796 = vshrl.u32 %v7795, 7
    %v7797 = vsub.s32 %v7794, %v7796
    %v7798 = vrot.slane %v7784, %v7797
    %v7799 = vcombine.high %v7791, %v7791
    %v7800 = vcombine.high %v7798, %v7798
    %v7801 = vcombine.high %v7781, %v7781
    %v7803 = vunpack.c.l.s4 1983009808
    %v7804 = vunpack.c.0.s8 %v7803
    %v7805 = vlaneseq
    %v7806 = vshrl.u32 %v7805, 7
    %v7807 = vsub.s32 %v7804, %v7806
    %v7808 = vrot.slane %v7781, %v7807
    %v7810 = vunpack.c.l.s4 1983009808
    %v7811 = vunpack.c.0.s8 %v7810
    %v7812 = vlaneseq
    %v7813 = vshrl.u32 %v7812, 7
    %v7814 = vsub.s32 %v7811, %v7813
    %v7815 = vrot.slane %v7801, %v7814
    %v7816 = vcombine.high %v7808, %v7808
    %v7817 = vcombine.high %v7815, %v7815
    %v7826 = vpack.c.bf16 %v7791, %v7791
    %v7827 = vpack.c.bf16 %v7799, %v7799
    %v7828 = vpack.c.bf16 %v7798, %v7798
    %v7829 = vpack.c.bf16 %v7800, %v7800
    %v7830 = vpack.c.bf16 %v7808, %v7808
    %v7831 = vpack.c.bf16 %v7816, %v7816
    %v7832 = vpack.c.bf16 %v7815, %v7815
    %v7833 = vpack.c.bf16 %v7817, %v7817
    %v7834 = vld [vmem:[%s5] sm:$0xf]
    %v7835 = vld [vmem:[%s5 + $0x4] sm:$0xf]
    %v7836 = vld [vmem:[%s5 + $0x8] sm:$0xf]
    %v7837 = vld [vmem:[%s5 + $0xc] sm:$0xf]
    %v7838 = vld [vmem:[%s5 + $0x10] sm:$0xf]
    %v7839 = vld [vmem:[%s5 + $0x14] sm:$0xf]
    %v7840 = vld [vmem:[%s5 + $0x18] sm:$0xf]
    %v7841 = vld [vmem:[%s5 + $0x1c] sm:$0xf]
    %v7842 = vld [vmem:[%s5 + $0x20] sm:$0xf]
    %v7843 = vld [vmem:[%s5 + $0x24] sm:$0xf]
    %v7844 = vld [vmem:[%s5 + $0x28] sm:$0xf]
    %v7845 = vld [vmem:[%s5 + $0x2c] sm:$0xf]
    %v7846 = vld [vmem:[%s5 + $0x30] sm:$0xf]
    %v7847 = vld [vmem:[%s5 + $0x34] sm:$0xf]
    %v7848 = vld [vmem:[%s5 + $0x38] sm:$0xf]
    %v7849 = vld [vmem:[%s5 + $0x3c] sm:$0xf]
    %v7850 = vld [vmem:[%s5 + $0x40] sm:$0xf]
    %v7851 = vld [vmem:[%s5 + $0x44] sm:$0xf]
    %v7852 = vld [vmem:[%s5 + $0x48] sm:$0xf]
    %v7853 = vld [vmem:[%s5 + $0x4c] sm:$0xf]
    %v7854 = vld [vmem:[%s5 + $0x50] sm:$0xf]
    %v7855 = vld [vmem:[%s5 + $0x54] sm:$0xf]
    %v7856 = vld [vmem:[%s5 + $0x58] sm:$0xf]
    %v7857 = vld [vmem:[%s5 + $0x5c] sm:$0xf]
    %v7858 = vld [vmem:[%s5 + $0x60] sm:$0xf]
    %v7859 = vld [vmem:[%s5 + $0x64] sm:$0xf]
    %v7860 = vld [vmem:[%s5 + $0x68] sm:$0xf]
    %v7861 = vld [vmem:[%s5 + $0x6c] sm:$0xf]
    %v7862 = vld [vmem:[%s5 + $0x70] sm:$0xf]
    %v7863 = vld [vmem:[%s5 + $0x74] sm:$0xf]
    %v7864 = vld [vmem:[%s5 + $0x78] sm:$0xf]
    %v7865 = vld [vmem:[%s5 + $0x7c] sm:$0xf]
    %v7866 = vld [vmem:[%s5 + $0x80] sm:$0xf]
    %v7867 = vld [vmem:[%s5 + $0x84] sm:$0xf]
    %v7868 = vld [vmem:[%s5 + $0x88] sm:$0xf]
    %v7869 = vld [vmem:[%s5 + $0x8c] sm:$0xf]
    %v7870 = vld [vmem:[%s5 + $0x90] sm:$0xf]
    %v7871 = vld [vmem:[%s5 + $0x94] sm:$0xf]
    %v7872 = vld [vmem:[%s5 + $0x98] sm:$0xf]
    %v7873 = vld [vmem:[%s5 + $0x9c] sm:$0xf]
    %v7874 = vld [vmem:[%s5 + $0xa0] sm:$0xf]
    %v7875 = vld [vmem:[%s5 + $0xa4] sm:$0xf]
    %v7876 = vld [vmem:[%s5 + $0xa8] sm:$0xf]
    %v7877 = vld [vmem:[%s5 + $0xac] sm:$0xf]
    %v7878 = vld [vmem:[%s5 + $0xb0] sm:$0xf]
    %v7879 = vld [vmem:[%s5 + $0xb4] sm:$0xf]
    %v7880 = vld [vmem:[%s5 + $0xb8] sm:$0xf]
    %v7881 = vld [vmem:[%s5 + $0xbc] sm:$0xf]
    %v7882 = vld [vmem:[%s5 + $0xc0] sm:$0xf]
    %v7883 = vld [vmem:[%s5 + $0xc4] sm:$0xf]
    %v7884 = vld [vmem:[%s5 + $0xc8] sm:$0xf]
    %v7885 = vld [vmem:[%s5 + $0xcc] sm:$0xf]
    %v7886 = vld [vmem:[%s5 + $0xd0] sm:$0xf]
    %v7887 = vld [vmem:[%s5 + $0xd4] sm:$0xf]
    %v7888 = vld [vmem:[%s5 + $0xd8] sm:$0xf]
    %v7889 = vld [vmem:[%s5 + $0xdc] sm:$0xf]
    %v7890 = vld [vmem:[%s5 + $0xe0] sm:$0xf]
    %v7891 = vld [vmem:[%s5 + $0xe4] sm:$0xf]
    %v7892 = vld [vmem:[%s5 + $0xe8] sm:$0xf]
    %v7893 = vld [vmem:[%s5 + $0xec] sm:$0xf]
    %v7894 = vld [vmem:[%s5 + $0xf0] sm:$0xf]
    %v7895 = vld [vmem:[%s5 + $0xf4] sm:$0xf]
    %v7896 = vld [vmem:[%s5 + $0xf8] sm:$0xf]
    %v7897 = vld [vmem:[%s5 + $0xfc] sm:$0xf]
    %v7898 = vld [vmem:[%s5 + $0x100] sm:$0xf]
    %v7899 = vld [vmem:[%s5 + $0x104] sm:$0xf]
    %v7900 = vld [vmem:[%s5 + $0x108] sm:$0xf]
    %v7901 = vld [vmem:[%s5 + $0x10c] sm:$0xf]
    %v7902 = vld [vmem:[%s5 + $0x110] sm:$0xf]
    %v7903 = vld [vmem:[%s5 + $0x114] sm:$0xf]
    %v7904 = vld [vmem:[%s5 + $0x118] sm:$0xf]
    %v7905 = vld [vmem:[%s5 + $0x11c] sm:$0xf]
    %v7906 = vld [vmem:[%s5 + $0x120] sm:$0xf]
    %v7907 = vld [vmem:[%s5 + $0x124] sm:$0xf]
    %v7908 = vld [vmem:[%s5 + $0x128] sm:$0xf]
    %v7909 = vld [vmem:[%s5 + $0x12c] sm:$0xf]
    %v7910 = vld [vmem:[%s5 + $0x130] sm:$0xf]
    %v7911 = vld [vmem:[%s5 + $0x134] sm:$0xf]
    %v7912 = vld [vmem:[%s5 + $0x138] sm:$0xf]
    %v7913 = vld [vmem:[%s5 + $0x13c] sm:$0xf]
    %v7914 = vld [vmem:[%s5 + $0x140] sm:$0xf]
    %v7915 = vld [vmem:[%s5 + $0x144] sm:$0xf]
    %v7916 = vld [vmem:[%s5 + $0x148] sm:$0xf]
    %v7917 = vld [vmem:[%s5 + $0x14c] sm:$0xf]
    %v7918 = vld [vmem:[%s5 + $0x150] sm:$0xf]
    %v7919 = vld [vmem:[%s5 + $0x154] sm:$0xf]
    %v7920 = vld [vmem:[%s5 + $0x158] sm:$0xf]
    %v7921 = vld [vmem:[%s5 + $0x15c] sm:$0xf]
    %v7922 = vld [vmem:[%s5 + $0x160] sm:$0xf]
    %v7923 = vld [vmem:[%s5 + $0x164] sm:$0xf]
    %v7924 = vld [vmem:[%s5 + $0x168] sm:$0xf]
    %v7925 = vld [vmem:[%s5 + $0x16c] sm:$0xf]
    %v7926 = vld [vmem:[%s5 + $0x170] sm:$0xf]
    %v7927 = vld [vmem:[%s5 + $0x174] sm:$0xf]
    %v7928 = vld [vmem:[%s5 + $0x178] sm:$0xf]
    %v7929 = vld [vmem:[%s5 + $0x17c] sm:$0xf]
    %v7930 = vld [vmem:[%s5 + $0x180] sm:$0xf]
    %v7931 = vld [vmem:[%s5 + $0x184] sm:$0xf]
    %v7932 = vld [vmem:[%s5 + $0x188] sm:$0xf]
    %v7933 = vld [vmem:[%s5 + $0x18c] sm:$0xf]
    %v7934 = vld [vmem:[%s5 + $0x190] sm:$0xf]
    %v7935 = vld [vmem:[%s5 + $0x194] sm:$0xf]
    %v7936 = vld [vmem:[%s5 + $0x198] sm:$0xf]
    %v7937 = vld [vmem:[%s5 + $0x19c] sm:$0xf]
    %v7938 = vld [vmem:[%s5 + $0x1a0] sm:$0xf]
    %v7939 = vld [vmem:[%s5 + $0x1a4] sm:$0xf]
    %v7940 = vld [vmem:[%s5 + $0x1a8] sm:$0xf]
    %v7941 = vld [vmem:[%s5 + $0x1ac] sm:$0xf]
    %v7942 = vld [vmem:[%s5 + $0x1b0] sm:$0xf]
    %v7943 = vld [vmem:[%s5 + $0x1b4] sm:$0xf]
    %v7944 = vld [vmem:[%s5 + $0x1b8] sm:$0xf]
    %v7945 = vld [vmem:[%s5 + $0x1bc] sm:$0xf]
    %v7946 = vld [vmem:[%s5 + $0x1c0] sm:$0xf]
    %v7947 = vld [vmem:[%s5 + $0x1c4] sm:$0xf]
    %v7948 = vld [vmem:[%s5 + $0x1c8] sm:$0xf]
    %v7949 = vld [vmem:[%s5 + $0x1cc] sm:$0xf]
    %v7950 = vld [vmem:[%s5 + $0x1d0] sm:$0xf]
    %v7951 = vld [vmem:[%s5 + $0x1d4] sm:$0xf]
    %v7952 = vld [vmem:[%s5 + $0x1d8] sm:$0xf]
    %v7953 = vld [vmem:[%s5 + $0x1dc] sm:$0xf]
    %v7954 = vld [vmem:[%s5 + $0x1e0] sm:$0xf]
    %v7955 = vld [vmem:[%s5 + $0x1e4] sm:$0xf]
    %v7956 = vld [vmem:[%s5 + $0x1e8] sm:$0xf]
    %v7957 = vld [vmem:[%s5 + $0x1ec] sm:$0xf]
    %v7958 = vld [vmem:[%s5 + $0x1f0] sm:$0xf]
    %v7959 = vld [vmem:[%s5 + $0x1f4] sm:$0xf]
    %v7960 = vld [vmem:[%s5 + $0x1f8] sm:$0xf]
    %v7961 = vld [vmem:[%s5 + $0x1fc] sm:$0xf]
    %v7962 = vld [vmem:[%s6] sm:$0x1]
    %v7964 = vlaneseq
    %v7965 = vshrl.u32 %v7964, 7
    %v7966 = vsub.s32 0, %v7965
    %v7967 = vrot.slane %v7962, %v7966
    %v8097 = vunpack.c.l.b16 %v7834
    %v8098 = vunpack.c.l.b16 %v7835
    %v8099 = vunpack.c.l.b16 %v7836
    %v8100 = vunpack.c.l.b16 %v7837
    %v8101 = vunpack.c.l.b16 %v7838
    %v8102 = vunpack.c.l.b16 %v7839
    %v8103 = vunpack.c.l.b16 %v7840
    %v8104 = vunpack.c.l.b16 %v7841
    %v8105 = vunpack.c.l.b16 %v7842
    %v8106 = vunpack.c.l.b16 %v7843
    %v8107 = vunpack.c.l.b16 %v7844
    %v8108 = vunpack.c.l.b16 %v7845
    %v8109 = vunpack.c.l.b16 %v7846
    %v8110 = vunpack.c.l.b16 %v7847
    %v8111 = vunpack.c.l.b16 %v7848
    %v8112 = vunpack.c.l.b16 %v7849
    %v8113 = vunpack.c.l.b16 %v7850
    %v8114 = vunpack.c.l.b16 %v7851
    %v8115 = vunpack.c.l.b16 %v7852
    %v8116 = vunpack.c.l.b16 %v7853
    %v8117 = vunpack.c.l.b16 %v7854
    %v8118 = vunpack.c.l.b16 %v7855
    %v8119 = vunpack.c.l.b16 %v7856
    %v8120 = vunpack.c.l.b16 %v7857
    %v8121 = vunpack.c.l.b16 %v7858
    %v8122 = vunpack.c.l.b16 %v7859
    %v8123 = vunpack.c.l.b16 %v7860
    %v8124 = vunpack.c.l.b16 %v7861
    %v8125 = vunpack.c.l.b16 %v7862
    %v8126 = vunpack.c.l.b16 %v7863
    %v8127 = vunpack.c.l.b16 %v7864
    %v8128 = vunpack.c.l.b16 %v7865
    %v8129 = vunpack.c.l.b16 %v7866
    %v8130 = vunpack.c.l.b16 %v7867
    %v8131 = vunpack.c.l.b16 %v7868
    %v8132 = vunpack.c.l.b16 %v7869
    %v8133 = vunpack.c.l.b16 %v7870
    %v8134 = vunpack.c.l.b16 %v7871
    %v8135 = vunpack.c.l.b16 %v7872
    %v8136 = vunpack.c.l.b16 %v7873
    %v8137 = vunpack.c.l.b16 %v7874
    %v8138 = vunpack.c.l.b16 %v7875
    %v8139 = vunpack.c.l.b16 %v7876
    %v8140 = vunpack.c.l.b16 %v7877
    %v8141 = vunpack.c.l.b16 %v7878
    %v8142 = vunpack.c.l.b16 %v7879
    %v8143 = vunpack.c.l.b16 %v7880
    %v8144 = vunpack.c.l.b16 %v7881
    %v8145 = vunpack.c.l.b16 %v7882
    %v8146 = vunpack.c.l.b16 %v7883
    %v8147 = vunpack.c.l.b16 %v7884
    %v8148 = vunpack.c.l.b16 %v7885
    %v8149 = vunpack.c.l.b16 %v7886
    %v8150 = vunpack.c.l.b16 %v7887
    %v8151 = vunpack.c.l.b16 %v7888
    %v8152 = vunpack.c.l.b16 %v7889
    %v8153 = vunpack.c.l.b16 %v7890
    %v8154 = vunpack.c.l.b16 %v7891
    %v8155 = vunpack.c.l.b16 %v7892
    %v8156 = vunpack.c.l.b16 %v7893
    %v8157 = vunpack.c.l.b16 %v7894
    %v8158 = vunpack.c.l.b16 %v7895
    %v8159 = vunpack.c.l.b16 %v7896
    %v8160 = vunpack.c.l.b16 %v7897
    %v8161 = vunpack.c.l.b16 %v7898
    %v8162 = vunpack.c.l.b16 %v7899
    %v8163 = vunpack.c.l.b16 %v7900
    %v8164 = vunpack.c.l.b16 %v7901
    %v8165 = vunpack.c.l.b16 %v7902
    %v8166 = vunpack.c.l.b16 %v7903
    %v8167 = vunpack.c.l.b16 %v7904
    %v8168 = vunpack.c.l.b16 %v7905
    %v8169 = vunpack.c.l.b16 %v7906
    %v8170 = vunpack.c.l.b16 %v7907
    %v8171 = vunpack.c.l.b16 %v7908
    %v8172 = vunpack.c.l.b16 %v7909
    %v8173 = vunpack.c.l.b16 %v7910
    %v8174 = vunpack.c.l.b16 %v7911
    %v8175 = vunpack.c.l.b16 %v7912
    %v8176 = vunpack.c.l.b16 %v7913
    %v8177 = vunpack.c.l.b16 %v7914
    %v8178 = vunpack.c.l.b16 %v7915
    %v8179 = vunpack.c.l.b16 %v7916
    %v8180 = vunpack.c.l.b16 %v7917
    %v8181 = vunpack.c.l.b16 %v7918
    %v8182 = vunpack.c.l.b16 %v7919
    %v8183 = vunpack.c.l.b16 %v7920
    %v8184 = vunpack.c.l.b16 %v7921
    %v8185 = vunpack.c.l.b16 %v7922
    %v8186 = vunpack.c.l.b16 %v7923
    %v8187 = vunpack.c.l.b16 %v7924
    %v8188 = vunpack.c.l.b16 %v7925
    %v8189 = vunpack.c.l.b16 %v7926
    %v8190 = vunpack.c.l.b16 %v7927
    %v8191 = vunpack.c.l.b16 %v7928
    %v8192 = vunpack.c.l.b16 %v7929
    %v8193 = vunpack.c.l.b16 %v7930
    %v8194 = vunpack.c.l.b16 %v7931
    %v8195 = vunpack.c.l.b16 %v7932
    %v8196 = vunpack.c.l.b16 %v7933
    %v8197 = vunpack.c.l.b16 %v7934
    %v8198 = vunpack.c.l.b16 %v7935
    %v8199 = vunpack.c.l.b16 %v7936
    %v8200 = vunpack.c.l.b16 %v7937
    %v8201 = vunpack.c.l.b16 %v7938
    %v8202 = vunpack.c.l.b16 %v7939
    %v8203 = vunpack.c.l.b16 %v7940
    %v8204 = vunpack.c.l.b16 %v7941
    %v8205 = vunpack.c.l.b16 %v7942
    %v8206 = vunpack.c.l.b16 %v7943
    %v8207 = vunpack.c.l.b16 %v7944
    %v8208 = vunpack.c.l.b16 %v7945
    %v8209 = vunpack.c.l.b16 %v7946
    %v8210 = vunpack.c.l.b16 %v7947
    %v8211 = vunpack.c.l.b16 %v7948
    %v8212 = vunpack.c.l.b16 %v7949
    %v8213 = vunpack.c.l.b16 %v7950
    %v8214 = vunpack.c.l.b16 %v7951
    %v8215 = vunpack.c.l.b16 %v7952
    %v8216 = vunpack.c.l.b16 %v7953
    %v8217 = vunpack.c.l.b16 %v7954
    %v8218 = vunpack.c.l.b16 %v7955
    %v8219 = vunpack.c.l.b16 %v7956
    %v8220 = vunpack.c.l.b16 %v7957
    %v8221 = vunpack.c.l.b16 %v7958
    %v8222 = vunpack.c.l.b16 %v7959
    %v8223 = vunpack.c.l.b16 %v7960
    %v8224 = vunpack.c.l.b16 %v7961
    %v8225 = vpack.c.b16 %v8098, %v8097
    %v8226 = vpack.c.b16 %v8100, %v8099
    %v8227 = vpack.c.b16 %v8102, %v8101
    %v8228 = vpack.c.b16 %v8104, %v8103
    %v8229 = vpack.c.b16 %v8106, %v8105
    %v8230 = vpack.c.b16 %v8108, %v8107
    %v8231 = vpack.c.b16 %v8110, %v8109
    %v8232 = vpack.c.b16 %v8112, %v8111
    %v8233 = vpack.c.b16 %v8114, %v8113
    %v8234 = vpack.c.b16 %v8116, %v8115
    %v8235 = vpack.c.b16 %v8118, %v8117
    %v8236 = vpack.c.b16 %v8120, %v8119
    %v8237 = vpack.c.b16 %v8122, %v8121
    %v8238 = vpack.c.b16 %v8124, %v8123
    %v8239 = vpack.c.b16 %v8126, %v8125
    %v8240 = vpack.c.b16 %v8128, %v8127
    %v8241 = vpack.c.b16 %v8130, %v8129
    %v8242 = vpack.c.b16 %v8132, %v8131
    %v8243 = vpack.c.b16 %v8134, %v8133
    %v8244 = vpack.c.b16 %v8136, %v8135
    %v8245 = vpack.c.b16 %v8138, %v8137
    %v8246 = vpack.c.b16 %v8140, %v8139
    %v8247 = vpack.c.b16 %v8142, %v8141
    %v8248 = vpack.c.b16 %v8144, %v8143
    %v8249 = vpack.c.b16 %v8146, %v8145
    %v8250 = vpack.c.b16 %v8148, %v8147
    %v8251 = vpack.c.b16 %v8150, %v8149
    %v8252 = vpack.c.b16 %v8152, %v8151
    %v8253 = vpack.c.b16 %v8154, %v8153
    %v8254 = vpack.c.b16 %v8156, %v8155
    %v8255 = vpack.c.b16 %v8158, %v8157
    %v8256 = vpack.c.b16 %v8160, %v8159
    %v8257 = vpack.c.b16 %v8162, %v8161
    %v8258 = vpack.c.b16 %v8164, %v8163
    %v8259 = vpack.c.b16 %v8166, %v8165
    %v8260 = vpack.c.b16 %v8168, %v8167
    %v8261 = vpack.c.b16 %v8170, %v8169
    %v8262 = vpack.c.b16 %v8172, %v8171
    %v8263 = vpack.c.b16 %v8174, %v8173
    %v8264 = vpack.c.b16 %v8176, %v8175
    %v8265 = vpack.c.b16 %v8178, %v8177
    %v8266 = vpack.c.b16 %v8180, %v8179
    %v8267 = vpack.c.b16 %v8182, %v8181
    %v8268 = vpack.c.b16 %v8184, %v8183
    %v8269 = vpack.c.b16 %v8186, %v8185
    %v8270 = vpack.c.b16 %v8188, %v8187
    %v8271 = vpack.c.b16 %v8190, %v8189
    %v8272 = vpack.c.b16 %v8192, %v8191
    %v8273 = vpack.c.b16 %v8194, %v8193
    %v8274 = vpack.c.b16 %v8196, %v8195
    %v8275 = vpack.c.b16 %v8198, %v8197
    %v8276 = vpack.c.b16 %v8200, %v8199
    %v8277 = vpack.c.b16 %v8202, %v8201
    %v8278 = vpack.c.b16 %v8204, %v8203
    %v8279 = vpack.c.b16 %v8206, %v8205
    %v8280 = vpack.c.b16 %v8208, %v8207
    %v8281 = vpack.c.b16 %v8210, %v8209
    %v8282 = vpack.c.b16 %v8212, %v8211
    %v8283 = vpack.c.b16 %v8214, %v8213
    %v8284 = vpack.c.b16 %v8216, %v8215
    %v8285 = vpack.c.b16 %v8218, %v8217
    %v8286 = vpack.c.b16 %v8220, %v8219
    %v8287 = vpack.c.b16 %v8222, %v8221
    %v8288 = vpack.c.b16 %v8224, %v8223
    %8353 = vmatprep.subr.bf16.mxu0 0
    %8354 = vmatpush1.bf16.msra.mxu0 %v8225
    %8355 = vmatprep.subr.bf16.mxu0 0
    %8356 = vmatpush1.bf16.msra.mxu0 %v8226
    %8357 = vmatprep.subr.bf16.mxu0 0
    %8358 = vmatpush1.bf16.msra.mxu0 %v8227
    %8359 = vmatprep.subr.bf16.mxu0 0
    %8360 = vmatpush1.bf16.msra.mxu0 %v8228
    %8361 = vmatprep.subr.bf16.mxu0 0
    %8362 = vmatpush1.bf16.msra.mxu0 %v8229
    %8363 = vmatprep.subr.bf16.mxu0 0
    %8364 = vmatpush1.bf16.msra.mxu0 %v8230
    %8365 = vmatprep.subr.bf16.mxu0 0
    %8366 = vmatpush1.bf16.msra.mxu0 %v8231
    %8367 = vmatprep.subr.bf16.mxu0 0
    %8368 = vmatpush1.bf16.msra.mxu0 %v8232
    %8369 = vmatprep.subr.bf16.mxu0 0
    %8370 = vmatpush1.bf16.msra.mxu0 %v8233
    %8371 = vmatprep.subr.bf16.mxu0 0
    %8372 = vmatpush1.bf16.msra.mxu0 %v8234
    %8373 = vmatprep.subr.bf16.mxu0 0
    %8374 = vmatpush1.bf16.msra.mxu0 %v8235
    %8375 = vmatprep.subr.bf16.mxu0 0
    %8376 = vmatpush1.bf16.msra.mxu0 %v8236
    %8377 = vmatprep.subr.bf16.mxu0 0
    %8378 = vmatpush1.bf16.msra.mxu0 %v8237
    %8379 = vmatprep.subr.bf16.mxu0 0
    %8380 = vmatpush1.bf16.msra.mxu0 %v8238
    %8381 = vmatprep.subr.bf16.mxu0 0
    %8382 = vmatpush1.bf16.msra.mxu0 %v8239
    %8383 = vmatprep.subr.bf16.mxu0 0
    %8384 = vmatpush1.bf16.msra.mxu0 %v8240
    %8385 = vmatprep.mubr.bf16.mxu0 %v7827
    %8386 = vmatmul.mubr.bf16.gmra.mrb[0].mxu0 %v7826
    %v8387 = vpop.f32.mrb[0].mxu0
    %v8388 = vadd.f32 %v7967, %v8387
    %v8389 = vpop.f32.mrb[0].mxu0
    %v8390 = vpop.f32.mrb[0].mxu0
    %v8391 = vpop.f32.mrb[0].mxu0
    %8392 = vdwg.mxu0
    %8393 = vmatprep.subr.bf16.mxu0 0
    %8394 = vmatpush1.bf16.msra.mxu0 %v8241
    %8395 = vmatprep.subr.bf16.mxu0 0
    %8396 = vmatpush1.bf16.msra.mxu0 %v8242
    %8397 = vmatprep.subr.bf16.mxu0 0
    %8398 = vmatpush1.bf16.msra.mxu0 %v8243
    %8399 = vmatprep.subr.bf16.mxu0 0
    %8400 = vmatpush1.bf16.msra.mxu0 %v8244
    %8401 = vmatprep.subr.bf16.mxu0 0
    %8402 = vmatpush1.bf16.msra.mxu0 %v8245
    %8403 = vmatprep.subr.bf16.mxu0 0
    %8404 = vmatpush1.bf16.msra.mxu0 %v8246
    %8405 = vmatprep.subr.bf16.mxu0 0
    %8406 = vmatpush1.bf16.msra.mxu0 %v8247
    %8407 = vmatprep.subr.bf16.mxu0 0
    %8408 = vmatpush1.bf16.msra.mxu0 %v8248
    %8409 = vmatprep.subr.bf16.mxu0 0
    %8410 = vmatpush1.bf16.msra.mxu0 %v8249
    %8411 = vmatprep.subr.bf16.mxu0 0
    %8412 = vmatpush1.bf16.msra.mxu0 %v8250
    %8413 = vmatprep.subr.bf16.mxu0 0
    %8414 = vmatpush1.bf16.msra.mxu0 %v8251
    %8415 = vmatprep.subr.bf16.mxu0 0
    %8416 = vmatpush1.bf16.msra.mxu0 %v8252
    %8417 = vmatprep.subr.bf16.mxu0 0
    %8418 = vmatpush1.bf16.msra.mxu0 %v8253
    %8419 = vmatprep.subr.bf16.mxu0 0
    %8420 = vmatpush1.bf16.msra.mxu0 %v8254
    %8421 = vmatprep.subr.bf16.mxu0 0
    %8422 = vmatpush1.bf16.msra.mxu0 %v8255
    %8423 = vmatprep.subr.bf16.mxu0 0
    %8424 = vmatpush1.bf16.msra.mxu0 %v8256
    %8425 = vmatprep.mubr.bf16.mxu0 %v7829
    %8426 = vmatmul.mubr.bf16.gmra.mrb[0].mxu0 %v7828
    %v8427 = vpop.f32.mrb[0].mxu0
    %v8428 = vadd.f32 %v8388, %v8427
    %v8429 = vpop.f32.mrb[0].mxu0
    %v8430 = vpop.f32.mrb[0].mxu0
    %v8431 = vpop.f32.mrb[0].mxu0
    %8432 = vdwg.mxu0
    %8433 = vmatprep.subr.bf16.mxu0 0
    %8434 = vmatpush1.bf16.msra.mxu0 %v8257
    %8435 = vmatprep.subr.bf16.mxu0 0
    %8436 = vmatpush1.bf16.msra.mxu0 %v8258
    %8437 = vmatprep.subr.bf16.mxu0 0
    %8438 = vmatpush1.bf16.msra.mxu0 %v8259
    %8439 = vmatprep.subr.bf16.mxu0 0
    %8440 = vmatpush1.bf16.msra.mxu0 %v8260
    %8441 = vmatprep.subr.bf16.mxu0 0
    %8442 = vmatpush1.bf16.msra.mxu0 %v8261
    %8443 = vmatprep.subr.bf16.mxu0 0
    %8444 = vmatpush1.bf16.msra.mxu0 %v8262
    %8445 = vmatprep.subr.bf16.mxu0 0
    %8446 = vmatpush1.bf16.msra.mxu0 %v8263
    %8447 = vmatprep.subr.bf16.mxu0 0
    %8448 = vmatpush1.bf16.msra.mxu0 %v8264
    %8449 = vmatprep.subr.bf16.mxu0 0
    %8450 = vmatpush1.bf16.msra.mxu0 %v8265
    %8451 = vmatprep.subr.bf16.mxu0 0
    %8452 = vmatpush1.bf16.msra.mxu0 %v8266
    %8453 = vmatprep.subr.bf16.mxu0 0
    %8454 = vmatpush1.bf16.msra.mxu0 %v8267
    %8455 = vmatprep.subr.bf16.mxu0 0
    %8456 = vmatpush1.bf16.msra.mxu0 %v8268
    %8457 = vmatprep.subr.bf16.mxu0 0
    %8458 = vmatpush1.bf16.msra.mxu0 %v8269
    %8459 = vmatprep.subr.bf16.mxu0 0
    %8460 = vmatpush1.bf16.msra.mxu0 %v8270
    %8461 = vmatprep.subr.bf16.mxu0 0
    %8462 = vmatpush1.bf16.msra.mxu0 %v8271
    %8463 = vmatprep.subr.bf16.mxu0 0
    %8464 = vmatpush1.bf16.msra.mxu0 %v8272
    %8465 = vmatprep.mubr.bf16.mxu0 %v7831
    %8466 = vmatmul.mubr.bf16.gmra.mrb[0].mxu0 %v7830
    %v8467 = vpop.f32.mrb[0].mxu0
    %v8468 = vadd.f32 %v8428, %v8467
    %v8469 = vpop.f32.mrb[0].mxu0
    %v8470 = vpop.f32.mrb[0].mxu0
    %v8471 = vpop.f32.mrb[0].mxu0
    %8472 = vdwg.mxu0
    %8473 = vmatprep.subr.bf16.mxu0 0
    %8474 = vmatpush1.bf16.msra.mxu0 %v8273
    %8475 = vmatprep.subr.bf16.mxu0 0
    %8476 = vmatpush1.bf16.msra.mxu0 %v8274
    %8477 = vmatprep.subr.bf16.mxu0 0
    %8478 = vmatpush1.bf16.msra.mxu0 %v8275
    %8479 = vmatprep.subr.bf16.mxu0 0
    %8480 = vmatpush1.bf16.msra.mxu0 %v8276
    %8481 = vmatprep.subr.bf16.mxu0 0
    %8482 = vmatpush1.bf16.msra.mxu0 %v8277
    %8483 = vmatprep.subr.bf16.mxu0 0
    %8484 = vmatpush1.bf16.msra.mxu0 %v8278
    %8485 = vmatprep.subr.bf16.mxu0 0
    %8486 = vmatpush1.bf16.msra.mxu0 %v8279
    %8487 = vmatprep.subr.bf16.mxu0 0
    %8488 = vmatpush1.bf16.msra.mxu0 %v8280
    %8489 = vmatprep.subr.bf16.mxu0 0
    %8490 = vmatpush1.bf16.msra.mxu0 %v8281
    %8491 = vmatprep.subr.bf16.mxu0 0
    %8492 = vmatpush1.bf16.msra.mxu0 %v8282
    %8493 = vmatprep.subr.bf16.mxu0 0
    %8494 = vmatpush1.bf16.msra.mxu0 %v8283
    %8495 = vmatprep.subr.bf16.mxu0 0
    %8496 = vmatpush1.bf16.msra.mxu0 %v8284
    %8497 = vmatprep.subr.bf16.mxu0 0
    %8498 = vmatpush1.bf16.msra.mxu0 %v8285
    %8499 = vmatprep.subr.bf16.mxu0 0
    %8500 = vmatpush1.bf16.msra.mxu0 %v8286
    %8501 = vmatprep.subr.bf16.mxu0 0
    %8502 = vmatpush1.bf16.msra.mxu0 %v8287
    %8503 = vmatprep.subr.bf16.mxu0 0
    %8504 = vmatpush1.bf16.msra.mxu0 %v8288
    %8505 = vmatprep.mubr.bf16.mxu0 %v7833
    %8506 = vmatmul.mubr.bf16.gmra.mrb[0].mxu0 %v7832
    %v8507 = vpop.f32.mrb[0].mxu0
    %v8508 = vadd.f32 %v8468, %v8507
    %v8509 = vpop.f32.mrb[0].mxu0
    %v8510 = vpop.f32.mrb[0].mxu0
    %v8511 = vpop.f32.mrb[0].mxu0
    %8512 = vdwg.mxu0
    %v8513 = vmax.f32 %v8508, 0.0
    %v8514 = vpack.c.bf16 %v8513, %v8513
    %v8515 = vld [vmem:[%s7] sm:$0xf]
    %v8516 = vld [vmem:[%s7 + $0x4] sm:$0xf]
    %v8517 = vld [vmem:[%s7 + $0x8] sm:$0xf]
    %v8518 = vld [vmem:[%s7 + $0xc] sm:$0xf]
    %v8519 = vld [vmem:[%s7 + $0x10] sm:$0xf]
    %v8520 = vld [vmem:[%s7 + $0x14] sm:$0xf]
    %v8521 = vld [vmem:[%s7 + $0x18] sm:$0xf]
    %v8522 = vld [vmem:[%s7 + $0x1c] sm:$0xf]
    %v8523 = vld [vmem:[%s7 + $0x20] sm:$0xf]
    %v8524 = vld [vmem:[%s7 + $0x24] sm:$0xf]
    %v8525 = vld [vmem:[%s7 + $0x28] sm:$0xf]
    %v8526 = vld [vmem:[%s7 + $0x2c] sm:$0xf]
    %v8527 = vld [vmem:[%s7 + $0x30] sm:$0xf]
    %v8528 = vld [vmem:[%s7 + $0x34] sm:$0xf]
    %v8529 = vld [vmem:[%s7 + $0x38] sm:$0xf]
    %v8530 = vld [vmem:[%s7 + $0x3c] sm:$0xf]
    %v8531 = vld [vmem:[%s8] sm:$0x1]
    %v8533 = vlaneseq
    %v8534 = vshrl.u32 %v8533, 7
    %v8535 = vsub.s32 0, %v8534
    %v8536 = vrot.slane %v8531, %v8535
    %v8554 = vunpack.c.l.b16 %v8515
    %v8555 = vunpack.c.l.b16 %v8516
    %v8556 = vunpack.c.l.b16 %v8517
    %v8557 = vunpack.c.l.b16 %v8518
    %v8558 = vunpack.c.l.b16 %v8519
    %v8559 = vunpack.c.l.b16 %v8520
    %v8560 = vunpack.c.l.b16 %v8521
    %v8561 = vunpack.c.l.b16 %v8522
    %v8562 = vunpack.c.l.b16 %v8523
    %v8563 = vunpack.c.l.b16 %v8524
    %v8564 = vunpack.c.l.b16 %v8525
    %v8565 = vunpack.c.l.b16 %v8526
    %v8566 = vunpack.c.l.b16 %v8527
    %v8567 = vunpack.c.l.b16 %v8528
    %v8568 = vunpack.c.l.b16 %v8529
    %v8569 = vunpack.c.l.b16 %v8530
    %v8570 = vpack.c.b16 %v8555, %v8554
    %v8571 = vpack.c.b16 %v8557, %v8556
    %v8572 = vpack.c.b16 %v8559, %v8558
    %v8573 = vpack.c.b16 %v8561, %v8560
    %v8574 = vpack.c.b16 %v8563, %v8562
    %v8575 = vpack.c.b16 %v8565, %v8564
    %v8576 = vpack.c.b16 %v8567, %v8566
    %v8577 = vpack.c.b16 %v8569, %v8568
    %8586 = vmatprep.subr.bf16.mxu0 0
    %8587 = vmatpush1.bf16.msra.mxu0 %v8570
    %8588 = vmatprep.subr.bf16.mxu0 0
    %8589 = vmatpush1.bf16.msra.mxu0 %v8571
    %8590 = vmatprep.subr.bf16.mxu0 0
    %8591 = vmatpush1.bf16.msra.mxu0 %v8572
    %8592 = vmatprep.subr.bf16.mxu0 0
    %8593 = vmatpush1.bf16.msra.mxu0 %v8573
    %8594 = vmatprep.subr.bf16.mxu0 0
    %8595 = vmatpush1.bf16.msra.mxu0 %v8574
    %8596 = vmatprep.subr.bf16.mxu0 0
    %8597 = vmatpush1.bf16.msra.mxu0 %v8575
    %8598 = vmatprep.subr.bf16.mxu0 0
    %8599 = vmatpush1.bf16.msra.mxu0 %v8576
    %8600 = vmatprep.subr.bf16.mxu0 0
    %8601 = vmatpush1.bf16.msra.mxu0 %v8577
    %8602 = vmatprep.subr.bf16.mxu0 0
    %8603 = vmatpush1.bf16.msra.mxu0 0
    %8604 = vmatprep.subr.bf16.mxu0 0
    %8605 = vmatpush1.bf16.msra.mxu0 0
    %8606 = vmatprep.subr.bf16.mxu0 0
    %8607 = vmatpush1.bf16.msra.mxu0 0
    %8608 = vmatprep.subr.bf16.mxu0 0
    %8609 = vmatpush1.bf16.msra.mxu0 0
    %8610 = vmatprep.subr.bf16.mxu0 0
    %8611 = vmatpush1.bf16.msra.mxu0 0
    %8612 = vmatprep.subr.bf16.mxu0 0
    %8613 = vmatpush1.bf16.msra.mxu0 0
    %8614 = vmatprep.subr.bf16.mxu0 0
    %8615 = vmatpush1.bf16.msra.mxu0 0
    %8616 = vmatprep.subr.bf16.mxu0 0
    %8617 = vmatpush1.bf16.msra.mxu0 0
    %8618 = vmatprep.mubr.bf16.mxu0 0
    %8619 = vmatmul.mubr.bf16.gmra.mrb[0].mxu0 %v8514
    %v8620 = vpop.f32.mrb[0].mxu0
    %v8621 = vadd.f32 %v8536, %v8620
    %v8622 = vpop.f32.mrb[0].mxu0
    %v8623 = vpop.f32.mrb[0].mxu0
    %v8624 = vpop.f32.mrb[0].mxu0
    %8625 = vdwg.mxu0
    %v8626 = vlaneseq
    %v8627 = vand.u32 %v8626, 127
    %vm8628 = vcmp.lt.s32.totalorder %v8627, 10
    %v8629 = vsel %vm8628, %v8621, -1e+30
    %v8630 = vsel %vm3702, %v8629, -inf
    %8631 = vmax.xlane.f32.xlu0 %v8630
    %v8632 = vpop.xlane.xlu0 %8631
    %v8633 = vsub.f32 %v8629, %v8632
    %v8634 = vmul.f32 %v8633, 1.442695
    %v8635 = vpow.pop %v8634
    %v8636 = vsel %vm8628, %v8635, 0.0
    %v8637 = vsel %vm3702, %v8636, 0.0
    %8638 = vadd.xlane.f32.xlu0 %v8637
    %v8639 = vpop.xlane.xlu0 %8638
    %v8640 = vlog2.pop %v8639
    %v8641 = vmul.f32 %v8640, 0.6931472
    %v8642 = vadd.f32 %v8641, %v8632
    %v8643 = vsub.f32 %v8629, %v8642
    %vm8644 = vcmask 74752
    %8645 = vst.msk [vmem:[#allocation7] sm:$0x3] %vm8644, %v8643
    // Predicated region
    $region38: #{cnn_forward.1} parent=1 // pred_check
      _
    $region39: #{cnn_forward.1} parent=1 // pred_check_branch
      %8647 = sbr.rel (0) target = $region41
    $region40: #{cnn_forward.1} parent=1 // pred_region
      %s8649 = ssub.s32 32, 32
      %8650 = vsyncadd [#allocation8], %s8649
      %s8652 = sshll.u32 [#allocation7], 4
      %s8653 = int_to_ptr.vmem [resolvable:$true] %s8652
      %8655 = dma.vmem_to_hbm [thread:$0]  %s8653, 32, %s9, [#allocation8]
    $region41: #{cnn_forward.1} parent=1 // pred_fallthru
      _
    // Predicated region
    $region42: #{cnn_forward.1} parent=1 // pred_check
      _
    $region43: #{cnn_forward.1} parent=1 // pred_check_branch
      %8657 = sbr.rel (0) target = $region45
    $region44: #{cnn_forward.1} parent=1 // pred_region
      %8658 = dma.done [#allocation8], 32
    $region45: #{cnn_forward.1} parent=1 // pred_fallthru
      _
    %8659 = vsyncpa [#allocation8], 1

</llo_original>
